<compile_context>
chip_gen: v7x
topology: tpu7x:2x2x1
jax: 0.10.0
libtpu: 0.0.40
codegen_flags: <defaults>
</compile_context>

<pallas_src>
import functools

import jax
import jax.numpy as jnp
from jax import lax
from jax.experimental import pallas as pl
from jax.experimental.pallas import tpu as pltpu

# ----------------------------- configuration --------------------------------
RADIUS = 0.3
NSAMPLE = 32
INPUT_CHANNELS = 0
MLP = [INPUT_CHANNELS + 3, 64, 64, 128]   # use_xyz=True -> +3
BN_EPS = 1e-5


def _round_up(x, m):
    return ((x + m - 1) // m) * m


# ------------------------------ Pallas kernel --------------------------------
def sa_mlp_kernel(x_ref, w1t_ref, w2t_ref, w3t_ref, o_ref):
    """Shared MLP (three 1x1 convs + ReLU) + max-pool over nsample, channel-major.

    x_ref  : (1, Cin, nsample*TM) f32  grouped, centered xyz(+features); lane-dense
    w1t_ref: (C1, Cin)            f32  layer-1 weights (VPU path)
    w2t_ref: (C2, C1)             bf16 layer-2 weights (MXU)
    w3t_ref: (C3, C2)             bf16 layer-3 weights (MXU)
    o_ref  : (C3, TM)             f32  max over the nsample axis, lane-dense in M
    """
    _, cin, cols = x_ref.shape
    tm = o_ref.shape[-1]
    nsample = cols // tm

    x = x_ref[0]                                     # (Cin, nsample*TM) f32
    w1t = w1t_ref[...]

    # Layer 1: K=Cin=3 contraction as VPU broadcast-FMAs over all columns at once
    # (keeps the MXU free; a K=3 matmul would waste the systolic depth).
    h1 = w1t[:, 0:1] * x[0:1, :]
    for c in range(1, cin):
        h1 = h1 + w1t[:, c:c + 1] * x[c:c + 1, :]
    h1 = jnp.maximum(h1, 0.0)                        # (C1, nsample*TM) f32

    # Layers 2/3: one bf16 MXU matmul each over all nsample*TM columns,
    # f32 accumulation.  Weights are pushed to the MXU once per layer per step.
    w2t = w2t_ref[...]
    h2 = jnp.dot(w2t, h1.astype(w2t.dtype), preferred_element_type=jnp.float32)
    h2 = jnp.maximum(h2, 0.0)                        # (C2, nsample*TM)
    w3t = w3t_ref[...]
    h3 = jnp.dot(w3t, h2.astype(w3t.dtype), preferred_element_type=jnp.float32)
    h3 = jnp.maximum(h3, 0.0)                        # (C3, nsample*TM)

    # Max-pool over nsample: tree of elementwise maxima over lane-aligned column
    # slices (TM is a multiple of 128, so every slice start is 128-aligned).
    parts = [h3[:, s * tm:(s + 1) * tm] for s in range(nsample)]
    while len(parts) > 1:
        nxt = [jnp.maximum(a, b) for a, b in zip(parts[0::2], parts[1::2])]
        if len(parts) % 2:
            nxt.append(parts[-1])
        parts = nxt
    o_ref[...] = parts[0]


def run_sa_mlp(grouped_flat, params, *, tile_m=256):
    """grouped_flat: (M, NSAMPLE, Cin) f32 -> (C3, M) f32 via one pallas_call."""
    M, S, Cin = grouped_flat.shape
    C1, C2, C3 = MLP[1], MLP[2], MLP[3]
    assert tile_m % 128 == 0

    tm = min(tile_m, _round_up(M, 128))              # don't over-tile tiny inputs
    m_pad = _round_up(M, tm)
    g = grouped_flat.astype(jnp.float32)
    if m_pad != M:                                   # pad instead of asserting divisibility
        g = jnp.pad(g, ((0, m_pad - M), (0, 0), (0, 0)))
    T = m_pad // tm

    # Layout for the kernel: (T, Cin, S*tm), column index = s*tm + (m % tm).
    g = g.reshape(T, tm, S, Cin)                     # [t, j, s, c]
    g = jnp.transpose(g, (0, 3, 2, 1))               # [t, c, s, j]
    g = g.reshape(T, Cin, S * tm)

    # Per-step VMEM (tm=256): input 2*Cin*S*tm*4 B (~192 KiB) + weights (~50 KiB)
    # + f32/bf16 activations (~10 MiB) + output 2*C3*tm*4 B (~256 KiB) -> ~11 MiB.
    out = pl.pallas_call(
        sa_mlp_kernel,
        out_shape=jax.ShapeDtypeStruct((C3, m_pad), jnp.float32),
        grid_spec=pltpu.PrefetchScalarGridSpec(
            num_scalar_prefetch=0,
            grid=(T,),
            in_specs=[
                pl.BlockSpec((1, Cin, S * tm), lambda i: (i, 0, 0)),
                pl.BlockSpec((C1, Cin), lambda i: (0, 0)),
                pl.BlockSpec((C2, C1), lambda i: (0, 0)),
                pl.BlockSpec((C3, C2), lambda i: (0, 0)),
            ],
            out_specs=pl.BlockSpec((C3, tm), lambda i: (0, i)),
        ),
        compiler_params=pltpu.CompilerParams(
            dimension_semantics=("parallel",),
            vmem_limit_bytes=32 * 1024 * 1024),
    )(g, params["w1t"], params["w2t"], params["w3t"])
    return out[:, :M]


# ------------------------------ JAX glue -------------------------------------
def ball_query(radius, nsample, xyz, new_xyz):
    """pointnet2-style ball query, vectorized (single top_k, no per-slot loop).

    For each center take the first `nsample` point indices within `radius`
    (increasing index order, matching the CUDA kernel); if fewer are found pad
    with the first found index (index 0 when nothing is within radius).
    """
    B, N, _ = xyz.shape
    d2 = jnp.sum((new_xyz[:, :, None, :] - xyz[:, None, :, :]) ** 2, axis=-1)  # (B,S,N)
    within = d2 < (radius * radius)
    n_range = jnp.arange(N, dtype=jnp.int32)[None, None, :]
    keys = jnp.where(within, n_range, n_range + N)       # in-radius indices sort first
    _, cand = lax.top_k(-keys, nsample)                  # ascending-key order
    cand = cand.astype(jnp.int32)                        # (B,S,nsample)
    cnt = jnp.sum(within, axis=-1, keepdims=True).astype(jnp.int32)
    slot = jnp.arange(nsample, dtype=jnp.int32)[None, None, :]
    return jnp.where(slot < cnt, cand, cand[..., 0:1])


def query_and_group(radius, nsample, xyz, new_xyz, features=None,
                    use_xyz=True, normalize_xyz=False):
    """QueryAndGroup: (B, npoint, nsample, 3+C) channels-LAST grouped tensor."""
    idx = ball_query(radius, nsample, xyz, new_xyz)                            # (B,S,ns)
    gathered = jnp.take_along_axis(
        xyz[:, None, :, :], idx[..., None], axis=2)                            # (B,S,ns,3)
    grouped_xyz = gathered - new_xyz[:, :, None, :]
    if normalize_xyz:
        grouped_xyz = grouped_xyz / radius
    if features is not None:
        grouped_feat = jnp.take_along_axis(
            features[:, None, :, :], idx[..., None], axis=2)                   # (B,S,ns,C)
        new_features = (jnp.concatenate([grouped_xyz, grouped_feat], axis=-1)
                        if use_xyz else grouped_feat)
    else:
        assert use_xyz
        new_features = grouped_xyz
    return new_features, idx


# ------------------------------ module wrapper --------------------------------
def init_params(key):
    """Conv2d(1x1, bias=False) weights with eval-mode BN folded in.

    BN defaults (mean=0, var=1, gamma=1, beta=0) fold to a per-layer scale of
    1/sqrt(1+eps) and a zero bias, so biases are dropped entirely.  Layer-1
    weights stay f32 (VPU path); layers 2/3 are stored transposed in bf16 for
    the MXU.  f32 originals are kept for the reference check.
    """
    c_in, c1, c2, c3 = MLP
    k1, k2, k3 = jax.random.split(key, 3)
    bn_scale = 1.0 / jnp.sqrt(1.0 + BN_EPS)

    def conv_w(k, ci, co):
        # torch Conv2d default init: U(-bound, bound), bound = 1/sqrt(fan_in)
        bound = 1.0 / jnp.sqrt(jnp.float32(ci))
        return jax.random.uniform(k, (ci, co), jnp.float32, -bound, bound) * bn_scale

    w1 = conv_w(k1, c_in, c1)
    w2 = conv_w(k2, c1, c2)
    w3 = conv_w(k3, c2, c3)
    return {
        "w1t": jnp.transpose(w1),                        # (C1, Cin) f32
        "w2t": jnp.transpose(w2).astype(jnp.bfloat16),   # (C2, C1)  bf16
        "w3t": jnp.transpose(w3).astype(jnp.bfloat16),   # (C3, C2)  bf16
        "w1": w1, "w2": w2, "w3": w3,                    # f32 copies (reference only)
    }


@functools.partial(jax.jit, static_argnames=("npoint",))
def _sa_module_forward(params, xyz, features_cl, *, npoint):
    B, N, _ = xyz.shape
    # use_fps=False -> the first `npoint` points are the centers.
    sample_idxs = jnp.tile(jnp.arange(npoint, dtype=jnp.int32)[None, :], (B, 1))
    new_xyz = xyz[:, :npoint, :]                                               # (B,S,3)

    grouped, _ = query_and_group(RADIUS, NSAMPLE, xyz, new_xyz,
                                 features=features_cl, use_xyz=True)           # (B,S,ns,Cin)
    cin = grouped.shape[-1]
    grouped_flat = grouped.reshape(B * npoint, NSAMPLE, cin)                   # (M,ns,Cin)

    feat_cf = run_sa_mlp(grouped_flat, params)                                 # (128, M)
    new_features = jnp.transpose(
        feat_cf.reshape(MLP[-1], B, npoint), (1, 0, 2))                        # (B,128,S)
    return new_xyz, new_features, sample_idxs


class ReferedPointnetPallas:
    """JAX/Pallas port of ReferedPointnet (single SA module)."""

    def __init__(self, params, return_intermediate=False):
        self.params = params
        self.return_intermediate = return_intermediate

    def _break_up_pc(self, pc):
        xyz = pc[..., 0:3]
        features = jnp.transpose(pc[..., 3:], (0, 2, 1)) if pc.shape[-1] > 3 else None
        return xyz, features

    def forward(self, pointcloud, numpoints):
        xyz, features = self._break_up_pc(pointcloud)
        # features (if any) are (B, C, N) torch-style; channels-last for grouping.
        features_cl = (jnp.transpose(features, (0, 2, 1))
                       if features is not None else None)
        l_xyz, l_features, l_idxs = [xyz], [features], []
        li_xyz, li_features, sample_idxs = _sa_module_forward(
            self.params, l_xyz[0], features_cl, npoint=int(numpoints[0]))
        l_xyz.append(li_xyz)
        l_features.append(li_features)
        l_idxs.append(sample_idxs)
        if self.return_intermediate:
            return l_xyz[1:], l_features[1:], l_idxs[0]
        return l_xyz[-1], l_features[-1], l_idxs[0]


# ------------------------------ reference check -------------------------------
def mlp_reference(grouped_flat, params):
    """Pure-JAX reference matching the kernel's precision choices
    (f32 layer 1; bf16-rounded weights/activations for layers 2/3, f32 accumulate)."""
    w1 = params["w1"]
    w2 = params["w2t"].astype(jnp.float32).T
    w3 = params["w3t"].astype(jnp.float32).T
    h = jnp.maximum(grouped_flat @ w1, 0.0)
    h = jnp.maximum(h.astype(jnp.bfloat16).astype(jnp.float32) @ w2, 0.0)
    h = jnp.maximum(h.astype(jnp.bfloat16).astype(jnp.float32) @ w3, 0.0)
    return jnp.max(h, axis=1)


if __name__ == "__main__":
    key = jax.random.PRNGKey(0)
    k_pc, k_par = jax.random.split(key)

    B, N = 2, 64
    npoint = 32
    pointcloud = jax.random.normal(k_pc, (B, N, 3 + INPUT_CHANNELS), jnp.float32) * 0.2
    numpoints = [npoint]

    params = init_params(k_par)
    model = ReferedPointnetPallas(params)

    new_xyz, new_features, sample_idxs = model.forward(pointcloud, numpoints)
    jax.block_until_ready((new_xyz, new_features, sample_idxs))

    assert new_xyz.shape == (B, npoint, 3)
    assert new_features.shape == (B, MLP[-1], npoint)
    assert sample_idxs.shape == (B, npoint)

    # Cross-check the Pallas MLP+maxpool against a pure-JAX reference.
    xyz = pointcloud[..., :3]
    grouped, _ = query_and_group(RADIUS, NSAMPLE, xyz, xyz[:, :npoint, :])
    grouped_flat = grouped.reshape(B * npoint, NSAMPLE, MLP[0]).astype(jnp.float32)
    ref = mlp_reference(grouped_flat, params).reshape(
        B, npoint, MLP[-1]).transpose(0, 2, 1)
    # Tolerance covers bf16 MXU vs. XLA matmul precision differences.
    assert jnp.allclose(new_features, ref, atol=2e-2, rtol=2e-2)
    assert jnp.array_equal(new_xyz, xyz[:, :npoint, :])
    assert jnp.array_equal(
        sample_idxs, jnp.tile(jnp.arange(npoint, dtype=jnp.int32)[None, :], (B, 1)))

    print("KERNEL_OK")
</pallas_src>

<mosaic_0001>
module attributes {stable_mosaic.version = 11 : i64} {
  func.func @sa_mlp_kernel(%arg0: i32, %arg1: memref<1x3x4096xf32, #tpu.memory_space<vmem>>, %arg2: memref<64x3xf32, #tpu.memory_space<vmem>>, %arg3: memref<64x64xbf16, #tpu.memory_space<vmem>>, %arg4: memref<128x64xbf16, #tpu.memory_space<vmem>>, %arg5: memref<128x128xf32, #tpu.memory_space<vmem>>) attributes {dimension_semantics = [#tpu.dimension_semantics<parallel>], iteration_bounds = array<i64: 1>, scalar_prefetch = 0 : i64, scratch_operands = 0 : i64, tpu.core_type = #tpu.core_type<tc>, window_params = [{transform_indices = @transform_0, window_bounds = array<i64: 1, 3, 4096>}, {pipeline_mode = #tpu.pipeline_mode<synchronous>, transform_indices = @transform_1, window_bounds = array<i64: 64, 3>}, {pipeline_mode = #tpu.pipeline_mode<synchronous>, transform_indices = @transform_2, window_bounds = array<i64: 64, 64>}, {pipeline_mode = #tpu.pipeline_mode<synchronous>, transform_indices = @transform_3, window_bounds = array<i64: 128, 64>}, {transform_indices = @transform_4, window_bounds = array<i64: 128, 128>}]} {
    %c0 = arith.constant 0 : index
    %c0_0 = arith.constant 0 : index
    %c0_1 = arith.constant 0 : index
    %0 = vector.load %arg1[%c0, %c0_0, %c0_1] : memref<1x3x4096xf32, #tpu.memory_space<vmem>>, vector<1x3x4096xf32>
    %1 = vector.shape_cast %0 : vector<1x3x4096xf32> to vector<3x4096xf32>
    %c0_2 = arith.constant 0 : index
    %c0_3 = arith.constant 0 : index
    %2 = vector.load %arg2[%c0_2, %c0_3] : memref<64x3xf32, #tpu.memory_space<vmem>>, vector<64x3xf32>
    %3 = vector.extract_strided_slice %2 {offsets = [0, 0], sizes = [64, 1], strides = [1, 1]} : vector<64x3xf32> to vector<64x1xf32>
    %4 = vector.extract_strided_slice %1 {offsets = [0, 0], sizes = [1, 4096], strides = [1, 1]} : vector<3x4096xf32> to vector<1x4096xf32>
    %5 = vector.broadcast %3 : vector<64x1xf32> to vector<64x4096xf32>
    %6 = vector.broadcast %4 : vector<1x4096xf32> to vector<64x4096xf32>
    %7 = arith.mulf %5, %6 : vector<64x4096xf32>
    %8 = vector.extract_strided_slice %2 {offsets = [0, 1], sizes = [64, 1], strides = [1, 1]} : vector<64x3xf32> to vector<64x1xf32>
    %9 = vector.extract_strided_slice %1 {offsets = [1, 0], sizes = [1, 4096], strides = [1, 1]} : vector<3x4096xf32> to vector<1x4096xf32>
    %10 = vector.broadcast %8 : vector<64x1xf32> to vector<64x4096xf32>
    %11 = vector.broadcast %9 : vector<1x4096xf32> to vector<64x4096xf32>
    %12 = arith.mulf %10, %11 : vector<64x4096xf32>
    %13 = arith.addf %7, %12 : vector<64x4096xf32>
    %14 = vector.extract_strided_slice %2 {offsets = [0, 2], sizes = [64, 1], strides = [1, 1]} : vector<64x3xf32> to vector<64x1xf32>
    %15 = vector.extract_strided_slice %1 {offsets = [2, 0], sizes = [1, 4096], strides = [1, 1]} : vector<3x4096xf32> to vector<1x4096xf32>
    %16 = vector.broadcast %14 : vector<64x1xf32> to vector<64x4096xf32>
    %17 = vector.broadcast %15 : vector<1x4096xf32> to vector<64x4096xf32>
    %18 = arith.mulf %16, %17 : vector<64x4096xf32>
    %19 = arith.addf %13, %18 : vector<64x4096xf32>
    %cst = arith.constant 0.000000e+00 : f32
    %20 = vector.broadcast %cst : f32 to vector<64x4096xf32>
    %21 = arith.maximumf %19, %20 : vector<64x4096xf32>
    %c0_4 = arith.constant 0 : index
    %c0_5 = arith.constant 0 : index
    %22 = vector.load %arg3[%c0_4, %c0_5] : memref<64x64xbf16, #tpu.memory_space<vmem>>, vector<64x64xbf16>
    %23 = arith.truncf %21 : vector<64x4096xf32> to vector<64x4096xbf16>
    %cst_6 = arith.constant dense<0.000000e+00> : vector<64x4096xf32>
    %24 = tpu.matmul %22, %23, %cst_6 {dimension_numbers = #tpu.dot_dimension_numbers<[1], [0], [0], [1], [0, 0, 1, 1], [], []>} : vector<64x64xbf16>, vector<64x4096xbf16>, vector<64x4096xf32> -> vector<64x4096xf32>
    %cst_7 = arith.constant 0.000000e+00 : f32
    %25 = vector.broadcast %cst_7 : f32 to vector<64x4096xf32>
    %26 = arith.maximumf %24, %25 : vector<64x4096xf32>
    %c0_8 = arith.constant 0 : index
    %c0_9 = arith.constant 0 : index
    %27 = vector.load %arg4[%c0_8, %c0_9] : memref<128x64xbf16, #tpu.memory_space<vmem>>, vector<128x64xbf16>
    %28 = arith.truncf %26 : vector<64x4096xf32> to vector<64x4096xbf16>
    %cst_10 = arith.constant dense<0.000000e+00> : vector<128x4096xf32>
    %29 = tpu.matmul %27, %28, %cst_10 {dimension_numbers = #tpu.dot_dimension_numbers<[1], [0], [0], [1], [0, 0, 1, 1], [], []>} : vector<128x64xbf16>, vector<64x4096xbf16>, vector<128x4096xf32> -> vector<128x4096xf32>
    %cst_11 = arith.constant 0.000000e+00 : f32
    %30 = vector.broadcast %cst_11 : f32 to vector<128x4096xf32>
    %31 = arith.maximumf %29, %30 : vector<128x4096xf32>
    %32 = vector.extract_strided_slice %31 {offsets = [0, 0], sizes = [128, 128], strides = [1, 1]} : vector<128x4096xf32> to vector<128x128xf32>
    %33 = vector.extract_strided_slice %31 {offsets = [0, 128], sizes = [128, 128], strides = [1, 1]} : vector<128x4096xf32> to vector<128x128xf32>
    %34 = vector.extract_strided_slice %31 {offsets = [0, 256], sizes = [128, 128], strides = [1, 1]} : vector<128x4096xf32> to vector<128x128xf32>
    %35 = vector.extract_strided_slice %31 {offsets = [0, 384], sizes = [128, 128], strides = [1, 1]} : vector<128x4096xf32> to vector<128x128xf32>
    %36 = vector.extract_strided_slice %31 {offsets = [0, 512], sizes = [128, 128], strides = [1, 1]} : vector<128x4096xf32> to vector<128x128xf32>
    %37 = vector.extract_strided_slice %31 {offsets = [0, 640], sizes = [128, 128], strides = [1, 1]} : vector<128x4096xf32> to vector<128x128xf32>
    %38 = vector.extract_strided_slice %31 {offsets = [0, 768], sizes = [128, 128], strides = [1, 1]} : vector<128x4096xf32> to vector<128x128xf32>
    %39 = vector.extract_strided_slice %31 {offsets = [0, 896], sizes = [128, 128], strides = [1, 1]} : vector<128x4096xf32> to vector<128x128xf32>
    %40 = vector.extract_strided_slice %31 {offsets = [0, 1024], sizes = [128, 128], strides = [1, 1]} : vector<128x4096xf32> to vector<128x128xf32>
    %41 = vector.extract_strided_slice %31 {offsets = [0, 1152], sizes = [128, 128], strides = [1, 1]} : vector<128x4096xf32> to vector<128x128xf32>
    %42 = vector.extract_strided_slice %31 {offsets = [0, 1280], sizes = [128, 128], strides = [1, 1]} : vector<128x4096xf32> to vector<128x128xf32>
    %43 = vector.extract_strided_slice %31 {offsets = [0, 1408], sizes = [128, 128], strides = [1, 1]} : vector<128x4096xf32> to vector<128x128xf32>
    %44 = vector.extract_strided_slice %31 {offsets = [0, 1536], sizes = [128, 128], strides = [1, 1]} : vector<128x4096xf32> to vector<128x128xf32>
    %45 = vector.extract_strided_slice %31 {offsets = [0, 1664], sizes = [128, 128], strides = [1, 1]} : vector<128x4096xf32> to vector<128x128xf32>
    %46 = vector.extract_strided_slice %31 {offsets = [0, 1792], sizes = [128, 128], strides = [1, 1]} : vector<128x4096xf32> to vector<128x128xf32>
    %47 = vector.extract_strided_slice %31 {offsets = [0, 1920], sizes = [128, 128], strides = [1, 1]} : vector<128x4096xf32> to vector<128x128xf32>
    %48 = vector.extract_strided_slice %31 {offsets = [0, 2048], sizes = [128, 128], strides = [1, 1]} : vector<128x4096xf32> to vector<128x128xf32>
    %49 = vector.extract_strided_slice %31 {offsets = [0, 2176], sizes = [128, 128], strides = [1, 1]} : vector<128x4096xf32> to vector<128x128xf32>
    %50 = vector.extract_strided_slice %31 {offsets = [0, 2304], sizes = [128, 128], strides = [1, 1]} : vector<128x4096xf32> to vector<128x128xf32>
    %51 = vector.extract_strided_slice %31 {offsets = [0, 2432], sizes = [128, 128], strides = [1, 1]} : vector<128x4096xf32> to vector<128x128xf32>
    %52 = vector.extract_strided_slice %31 {offsets = [0, 2560], sizes = [128, 128], strides = [1, 1]} : vector<128x4096xf32> to vector<128x128xf32>
    %53 = vector.extract_strided_slice %31 {offsets = [0, 2688], sizes = [128, 128], strides = [1, 1]} : vector<128x4096xf32> to vector<128x128xf32>
    %54 = vector.extract_strided_slice %31 {offsets = [0, 2816], sizes = [128, 128], strides = [1, 1]} : vector<128x4096xf32> to vector<128x128xf32>
    %55 = vector.extract_strided_slice %31 {offsets = [0, 2944], sizes = [128, 128], strides = [1, 1]} : vector<128x4096xf32> to vector<128x128xf32>
    %56 = vector.extract_strided_slice %31 {offsets = [0, 3072], sizes = [128, 128], strides = [1, 1]} : vector<128x4096xf32> to vector<128x128xf32>
    %57 = vector.extract_strided_slice %31 {offsets = [0, 3200], sizes = [128, 128], strides = [1, 1]} : vector<128x4096xf32> to vector<128x128xf32>
    %58 = vector.extract_strided_slice %31 {offsets = [0, 3328], sizes = [128, 128], strides = [1, 1]} : vector<128x4096xf32> to vector<128x128xf32>
    %59 = vector.extract_strided_slice %31 {offsets = [0, 3456], sizes = [128, 128], strides = [1, 1]} : vector<128x4096xf32> to vector<128x128xf32>
    %60 = vector.extract_strided_slice %31 {offsets = [0, 3584], sizes = [128, 128], strides = [1, 1]} : vector<128x4096xf32> to vector<128x128xf32>
    %61 = vector.extract_strided_slice %31 {offsets = [0, 3712], sizes = [128, 128], strides = [1, 1]} : vector<128x4096xf32> to vector<128x128xf32>
    %62 = vector.extract_strided_slice %31 {offsets = [0, 3840], sizes = [128, 128], strides = [1, 1]} : vector<128x4096xf32> to vector<128x128xf32>
    %63 = vector.extract_strided_slice %31 {offsets = [0, 3968], sizes = [128, 128], strides = [1, 1]} : vector<128x4096xf32> to vector<128x128xf32>
    %64 = arith.maximumf %32, %33 : vector<128x128xf32>
    %65 = arith.maximumf %34, %35 : vector<128x128xf32>
    %66 = arith.maximumf %36, %37 : vector<128x128xf32>
    %67 = arith.maximumf %38, %39 : vector<128x128xf32>
    %68 = arith.maximumf %40, %41 : vector<128x128xf32>
    %69 = arith.maximumf %42, %43 : vector<128x128xf32>
    %70 = arith.maximumf %44, %45 : vector<128x128xf32>
    %71 = arith.maximumf %46, %47 : vector<128x128xf32>
    %72 = arith.maximumf %48, %49 : vector<128x128xf32>
    %73 = arith.maximumf %50, %51 : vector<128x128xf32>
    %74 = arith.maximumf %52, %53 : vector<128x128xf32>
    %75 = arith.maximumf %54, %55 : vector<128x128xf32>
    %76 = arith.maximumf %56, %57 : vector<128x128xf32>
    %77 = arith.maximumf %58, %59 : vector<128x128xf32>
    %78 = arith.maximumf %60, %61 : vector<128x128xf32>
    %79 = arith.maximumf %62, %63 : vector<128x128xf32>
    %80 = arith.maximumf %64, %65 : vector<128x128xf32>
    %81 = arith.maximumf %66, %67 : vector<128x128xf32>
    %82 = arith.maximumf %68, %69 : vector<128x128xf32>
    %83 = arith.maximumf %70, %71 : vector<128x128xf32>
    %84 = arith.maximumf %72, %73 : vector<128x128xf32>
    %85 = arith.maximumf %74, %75 : vector<128x128xf32>
    %86 = arith.maximumf %76, %77 : vector<128x128xf32>
    %87 = arith.maximumf %78, %79 : vector<128x128xf32>
    %88 = arith.maximumf %80, %81 : vector<128x128xf32>
    %89 = arith.maximumf %82, %83 : vector<128x128xf32>
    %90 = arith.maximumf %84, %85 : vector<128x128xf32>
    %91 = arith.maximumf %86, %87 : vector<128x128xf32>
    %92 = arith.maximumf %88, %89 : vector<128x128xf32>
    %93 = arith.maximumf %90, %91 : vector<128x128xf32>
    %94 = arith.maximumf %92, %93 : vector<128x128xf32>
    %c0_12 = arith.constant 0 : index
    %c0_13 = arith.constant 0 : index
    %95 = vector.load %arg5[%c0_12, %c0_13] : memref<128x128xf32, #tpu.memory_space<vmem>>, vector<128x128xf32>
    tpu.vector_store %arg5[%c0_12, %c0_13], %94 {strides = array<i32>} : memref<128x128xf32, #tpu.memory_space<vmem>>, vector<128x128xf32>,
    return
  }
  func.func @transform_0(%arg0: i32) -> (i32, i32, i32) {
    %c0_i32 = arith.constant 0 : i32
    %c0_i32_0 = arith.constant 0 : i32
    %c0_i32_1 = arith.constant 0 : i32
    return %arg0, %c0_i32, %c0_i32_0 : i32, i32, i32
  }
  func.func @transform_1(%arg0: i32) -> (i32, i32) {
    %c0_i32 = arith.constant 0 : i32
    %c0_i32_0 = arith.constant 0 : i32
    %c0_i32_1 = arith.constant 0 : i32
    return %c0_i32, %c0_i32_0 : i32, i32
  }
  func.func @transform_2(%arg0: i32) -> (i32, i32) {
    %c0_i32 = arith.constant 0 : i32
    %c0_i32_0 = arith.constant 0 : i32
    %c0_i32_1 = arith.constant 0 : i32
    return %c0_i32, %c0_i32_0 : i32, i32
  }
  func.func @transform_3(%arg0: i32) -> (i32, i32) {
    %c0_i32 = arith.constant 0 : i32
    %c0_i32_0 = arith.constant 0 : i32
    %c0_i32_1 = arith.constant 0 : i32
    return %c0_i32, %c0_i32_0 : i32, i32
  }
  func.func @transform_4(%arg0: i32) -> (i32, i32) {
    %c0_i32 = arith.constant 0 : i32
    %c0_i32_0 = arith.constant 0 : i32
    return %c0_i32, %arg0 : i32, i32
  }
}

</mosaic_0001>

<llo_original>
// kernel: _sa_module_forward.1
$region0: #{_sa_module_forward.1}
  #allocation0 [shape = 'u32[]', space=smem, size = 0x4, offset = 0x4, fixed_abs, tag = 'smem constant byte address 0x4 - core index']
  #allocation1 [shape = 'u32[144,128]{1,0:T(1,128)}', space=vmem, size = 0x12000, scoped, tag = 'internal scratch']
  %s0 = inlined_call_operand.vmem [shape: f32[1,3,4096], index: 0, kind: input, shape index: {}]
  %s1 = inlined_call_operand.vmem [shape: f32[64,3], index: 1, kind: input, shape index: {}]
  %s2 = inlined_call_operand.vmem [shape: bf16[64,64], index: 2, kind: input, shape index: {}]
  %s3 = inlined_call_operand.vmem [shape: bf16[128,64], index: 3, kind: input, shape index: {}]
  %s4 = inlined_call_operand.vmem [shape: f32[128,128], index: 4, kind: output, shape index: {}]
  %s5 = sld [smem:[#allocation0]]
  $region26: #{_sa_module_forward.1} parent=0
    _
  %s7 = ssub.s32 1, %s5
  %s8 = scalar_select 0, %s7, %s5
  // Predicated region
  $region2: #{_sa_module_forward.1} parent=0 // pred_check
    _
  $region3: #{_sa_module_forward.1} parent=0 // pred_check_branch
    %10 = sbr.rel (0) target = $region5
  $region4: #{_sa_module_forward.1} parent=0 // pred_region
    _
  $region5: #{_sa_module_forward.1} parent=0 // pred_fallthru
    _
  // Predicated region
  $region6: #{_sa_module_forward.1} parent=0 // pred_check
    _
  $region7: #{_sa_module_forward.1} parent=0 // pred_check_branch
    %12 = sbr.rel (0) target = $region9
  $region8: #{_sa_module_forward.1} parent=0 // pred_region
    _
  $region9: #{_sa_module_forward.1} parent=0 // pred_fallthru
    _
  // Predicated region
  $region10: #{_sa_module_forward.1} parent=0 // pred_check
    _
  $region11: #{_sa_module_forward.1} parent=0 // pred_check_branch
    %14 = sbr.rel (0) target = $region13
  $region12: #{_sa_module_forward.1} parent=0 // pred_region
    _
  $region13: #{_sa_module_forward.1} parent=0 // pred_fallthru
    _
  // Predicated region
  $region14: #{_sa_module_forward.1} parent=0 // pred_check
    _
  $region15: #{_sa_module_forward.1} parent=0 // pred_check_branch
    %16 = sbr.rel (0) target = $region17
  $region16: #{_sa_module_forward.1} parent=0 // pred_region
    _
  $region17: #{_sa_module_forward.1} parent=0 // pred_fallthru
    _
  %v18 = vld [vmem:[%s0] sm:$0x77]
  %v19 = vld [vmem:[%s0 + $0x8] sm:$0x77]
  %v20 = vld [vmem:[%s0 + $0x10] sm:$0x77]
  %v21 = vld [vmem:[%s0 + $0x18] sm:$0x77]
  %v22 = vld [vmem:[%s0 + $0x20] sm:$0x77]
  %v23 = vld [vmem:[%s0 + $0x28] sm:$0x77]
  %v24 = vld [vmem:[%s0 + $0x30] sm:$0x77]
  %v25 = vld [vmem:[%s0 + $0x38] sm:$0x77]
  %v26 = vld [vmem:[%s0 + $0x40] sm:$0x77]
  %v27 = vld [vmem:[%s0 + $0x48] sm:$0x77]
  %v28 = vld [vmem:[%s0 + $0x50] sm:$0x77]
  %v29 = vld [vmem:[%s0 + $0x58] sm:$0x77]
  %v30 = vld [vmem:[%s0 + $0x60] sm:$0x77]
  %v31 = vld [vmem:[%s0 + $0x68] sm:$0x77]
  %v32 = vld [vmem:[%s0 + $0x70] sm:$0x77]
  %v33 = vld [vmem:[%s0 + $0x78] sm:$0x77]
  %v34 = vld [vmem:[%s1] sm:$0xff]
  %v35 = vld [vmem:[%s1 + $0x8] sm:$0xff]
  %v36 = vld [vmem:[%s1 + $0x10] sm:$0xff]
  %v37 = vld [vmem:[%s1 + $0x18] sm:$0xff]
  %v38 = vld [vmem:[%s1 + $0x20] sm:$0xff]
  %v39 = vld [vmem:[%s1 + $0x28] sm:$0xff]
  %v40 = vld [vmem:[%s1 + $0x30] sm:$0xff]
  %v41 = vld [vmem:[%s1 + $0x38] sm:$0xff]
  %43 = vset.pattern.permute.xlu0 0
  %44 = vperm.xlu0 %43, %v34
  %v45 = vpop.permute.xlu0 %44
  %48 = vset.pattern.permute.xlu0 0
  %49 = vperm.xlu0 %48, %v35
  %v50 = vpop.permute.xlu0 %49
  %53 = vset.pattern.permute.xlu0 0
  %54 = vperm.xlu0 %53, %v36
  %v55 = vpop.permute.xlu0 %54
  %58 = vset.pattern.permute.xlu0 0
  %59 = vperm.xlu0 %58, %v37
  %v60 = vpop.permute.xlu0 %59
  %63 = vset.pattern.permute.xlu0 0
  %64 = vperm.xlu0 %63, %v38
  %v65 = vpop.permute.xlu0 %64
  %68 = vset.pattern.permute.xlu0 0
  %69 = vperm.xlu0 %68, %v39
  %v70 = vpop.permute.xlu0 %69
  %73 = vset.pattern.permute.xlu0 0
  %74 = vperm.xlu0 %73, %v40
  %v75 = vpop.permute.xlu0 %74
  %78 = vset.pattern.permute.xlu0 0
  %79 = vperm.xlu0 %78, %v41
  %v80 = vpop.permute.xlu0 %79
  %v98 = vlaneseq
  %v99 = vshrl.u32 %v98, 7
  %v100 = vsub.s32 0, %v99
  %v101 = vrot.slane %v18, %v100
  %v102 = vlaneseq
  %v103 = vshrl.u32 %v102, 7
  %v104 = vsub.s32 4, %v103
  %v105 = vrot.slane %v18, %v104
  %v106 = vlaneseq
  %v107 = vshrl.u32 %v106, 7
  %v108 = vsub.s32 0, %v107
  %v109 = vrot.slane %v19, %v108
  %v110 = vlaneseq
  %v111 = vshrl.u32 %v110, 7
  %v112 = vsub.s32 4, %v111
  %v113 = vrot.slane %v19, %v112
  %v114 = vlaneseq
  %v115 = vshrl.u32 %v114, 7
  %v116 = vsub.s32 0, %v115
  %v117 = vrot.slane %v20, %v116
  %v118 = vlaneseq
  %v119 = vshrl.u32 %v118, 7
  %v120 = vsub.s32 4, %v119
  %v121 = vrot.slane %v20, %v120
  %v122 = vlaneseq
  %v123 = vshrl.u32 %v122, 7
  %v124 = vsub.s32 0, %v123
  %v125 = vrot.slane %v21, %v124
  %v126 = vlaneseq
  %v127 = vshrl.u32 %v126, 7
  %v128 = vsub.s32 4, %v127
  %v129 = vrot.slane %v21, %v128
  %v130 = vlaneseq
  %v131 = vshrl.u32 %v130, 7
  %v132 = vsub.s32 0, %v131
  %v133 = vrot.slane %v22, %v132
  %v134 = vlaneseq
  %v135 = vshrl.u32 %v134, 7
  %v136 = vsub.s32 4, %v135
  %v137 = vrot.slane %v22, %v136
  %v138 = vlaneseq
  %v139 = vshrl.u32 %v138, 7
  %v140 = vsub.s32 0, %v139
  %v141 = vrot.slane %v23, %v140
  %v142 = vlaneseq
  %v143 = vshrl.u32 %v142, 7
  %v144 = vsub.s32 4, %v143
  %v145 = vrot.slane %v23, %v144
  %v146 = vlaneseq
  %v147 = vshrl.u32 %v146, 7
  %v148 = vsub.s32 0, %v147
  %v149 = vrot.slane %v24, %v148
  %v150 = vlaneseq
  %v151 = vshrl.u32 %v150, 7
  %v152 = vsub.s32 4, %v151
  %v153 = vrot.slane %v24, %v152
  %v154 = vlaneseq
  %v155 = vshrl.u32 %v154, 7
  %v156 = vsub.s32 0, %v155
  %v157 = vrot.slane %v25, %v156
  %v158 = vlaneseq
  %v159 = vshrl.u32 %v158, 7
  %v160 = vsub.s32 4, %v159
  %v161 = vrot.slane %v25, %v160
  %v162 = vlaneseq
  %v163 = vshrl.u32 %v162, 7
  %v164 = vsub.s32 0, %v163
  %v165 = vrot.slane %v26, %v164
  %v166 = vlaneseq
  %v167 = vshrl.u32 %v166, 7
  %v168 = vsub.s32 4, %v167
  %v169 = vrot.slane %v26, %v168
  %v170 = vlaneseq
  %v171 = vshrl.u32 %v170, 7
  %v172 = vsub.s32 0, %v171
  %v173 = vrot.slane %v27, %v172
  %v174 = vlaneseq
  %v175 = vshrl.u32 %v174, 7
  %v176 = vsub.s32 4, %v175
  %v177 = vrot.slane %v27, %v176
  %v178 = vlaneseq
  %v179 = vshrl.u32 %v178, 7
  %v180 = vsub.s32 0, %v179
  %v181 = vrot.slane %v28, %v180
  %v182 = vlaneseq
  %v183 = vshrl.u32 %v182, 7
  %v184 = vsub.s32 4, %v183
  %v185 = vrot.slane %v28, %v184
  %v186 = vlaneseq
  %v187 = vshrl.u32 %v186, 7
  %v188 = vsub.s32 0, %v187
  %v189 = vrot.slane %v29, %v188
  %v190 = vlaneseq
  %v191 = vshrl.u32 %v190, 7
  %v192 = vsub.s32 4, %v191
  %v193 = vrot.slane %v29, %v192
  %v194 = vlaneseq
  %v195 = vshrl.u32 %v194, 7
  %v196 = vsub.s32 0, %v195
  %v197 = vrot.slane %v30, %v196
  %v198 = vlaneseq
  %v199 = vshrl.u32 %v198, 7
  %v200 = vsub.s32 4, %v199
  %v201 = vrot.slane %v30, %v200
  %v202 = vlaneseq
  %v203 = vshrl.u32 %v202, 7
  %v204 = vsub.s32 0, %v203
  %v205 = vrot.slane %v31, %v204
  %v206 = vlaneseq
  %v207 = vshrl.u32 %v206, 7
  %v208 = vsub.s32 4, %v207
  %v209 = vrot.slane %v31, %v208
  %v210 = vlaneseq
  %v211 = vshrl.u32 %v210, 7
  %v212 = vsub.s32 0, %v211
  %v213 = vrot.slane %v32, %v212
  %v214 = vlaneseq
  %v215 = vshrl.u32 %v214, 7
  %v216 = vsub.s32 4, %v215
  %v217 = vrot.slane %v32, %v216
  %v218 = vlaneseq
  %v219 = vshrl.u32 %v218, 7
  %v220 = vsub.s32 0, %v219
  %v221 = vrot.slane %v33, %v220
  %v222 = vlaneseq
  %v223 = vshrl.u32 %v222, 7
  %v224 = vsub.s32 4, %v223
  %v225 = vrot.slane %v33, %v224
  %v258 = vlaneseq
  %v259 = vshrl.u32 %v258, 7
  %v260 = vsub.s32 0, %v259
  %v261 = vrot.slane %v101, %v260
  %v262 = vlaneseq
  %v263 = vshrl.u32 %v262, 7
  %v264 = vsub.s32 0, %v263
  %v265 = vrot.slane %v105, %v264
  %v266 = vlaneseq
  %v267 = vshrl.u32 %v266, 7
  %v268 = vsub.s32 0, %v267
  %v269 = vrot.slane %v109, %v268
  %v270 = vlaneseq
  %v271 = vshrl.u32 %v270, 7
  %v272 = vsub.s32 0, %v271
  %v273 = vrot.slane %v113, %v272
  %v274 = vlaneseq
  %v275 = vshrl.u32 %v274, 7
  %v276 = vsub.s32 0, %v275
  %v277 = vrot.slane %v117, %v276
  %v278 = vlaneseq
  %v279 = vshrl.u32 %v278, 7
  %v280 = vsub.s32 0, %v279
  %v281 = vrot.slane %v121, %v280
  %v282 = vlaneseq
  %v283 = vshrl.u32 %v282, 7
  %v284 = vsub.s32 0, %v283
  %v285 = vrot.slane %v125, %v284
  %v286 = vlaneseq
  %v287 = vshrl.u32 %v286, 7
  %v288 = vsub.s32 0, %v287
  %v289 = vrot.slane %v129, %v288
  %v290 = vlaneseq
  %v291 = vshrl.u32 %v290, 7
  %v292 = vsub.s32 0, %v291
  %v293 = vrot.slane %v133, %v292
  %v294 = vlaneseq
  %v295 = vshrl.u32 %v294, 7
  %v296 = vsub.s32 0, %v295
  %v297 = vrot.slane %v137, %v296
  %v298 = vlaneseq
  %v299 = vshrl.u32 %v298, 7
  %v300 = vsub.s32 0, %v299
  %v301 = vrot.slane %v141, %v300
  %v302 = vlaneseq
  %v303 = vshrl.u32 %v302, 7
  %v304 = vsub.s32 0, %v303
  %v305 = vrot.slane %v145, %v304
  %v306 = vlaneseq
  %v307 = vshrl.u32 %v306, 7
  %v308 = vsub.s32 0, %v307
  %v309 = vrot.slane %v149, %v308
  %v310 = vlaneseq
  %v311 = vshrl.u32 %v310, 7
  %v312 = vsub.s32 0, %v311
  %v313 = vrot.slane %v153, %v312
  %v314 = vlaneseq
  %v315 = vshrl.u32 %v314, 7
  %v316 = vsub.s32 0, %v315
  %v317 = vrot.slane %v157, %v316
  %v318 = vlaneseq
  %v319 = vshrl.u32 %v318, 7
  %v320 = vsub.s32 0, %v319
  %v321 = vrot.slane %v161, %v320
  %v322 = vlaneseq
  %v323 = vshrl.u32 %v322, 7
  %v324 = vsub.s32 0, %v323
  %v325 = vrot.slane %v165, %v324
  %v326 = vlaneseq
  %v327 = vshrl.u32 %v326, 7
  %v328 = vsub.s32 0, %v327
  %v329 = vrot.slane %v169, %v328
  %v330 = vlaneseq
  %v331 = vshrl.u32 %v330, 7
  %v332 = vsub.s32 0, %v331
  %v333 = vrot.slane %v173, %v332
  %v334 = vlaneseq
  %v335 = vshrl.u32 %v334, 7
  %v336 = vsub.s32 0, %v335
  %v337 = vrot.slane %v177, %v336
  %v338 = vlaneseq
  %v339 = vshrl.u32 %v338, 7
  %v340 = vsub.s32 0, %v339
  %v341 = vrot.slane %v181, %v340
  %v342 = vlaneseq
  %v343 = vshrl.u32 %v342, 7
  %v344 = vsub.s32 0, %v343
  %v345 = vrot.slane %v185, %v344
  %v346 = vlaneseq
  %v347 = vshrl.u32 %v346, 7
  %v348 = vsub.s32 0, %v347
  %v349 = vrot.slane %v189, %v348
  %v350 = vlaneseq
  %v351 = vshrl.u32 %v350, 7
  %v352 = vsub.s32 0, %v351
  %v353 = vrot.slane %v193, %v352
  %v354 = vlaneseq
  %v355 = vshrl.u32 %v354, 7
  %v356 = vsub.s32 0, %v355
  %v357 = vrot.slane %v197, %v356
  %v358 = vlaneseq
  %v359 = vshrl.u32 %v358, 7
  %v360 = vsub.s32 0, %v359
  %v361 = vrot.slane %v201, %v360
  %v362 = vlaneseq
  %v363 = vshrl.u32 %v362, 7
  %v364 = vsub.s32 0, %v363
  %v365 = vrot.slane %v205, %v364
  %v366 = vlaneseq
  %v367 = vshrl.u32 %v366, 7
  %v368 = vsub.s32 0, %v367
  %v369 = vrot.slane %v209, %v368
  %v370 = vlaneseq
  %v371 = vshrl.u32 %v370, 7
  %v372 = vsub.s32 0, %v371
  %v373 = vrot.slane %v213, %v372
  %v374 = vlaneseq
  %v375 = vshrl.u32 %v374, 7
  %v376 = vsub.s32 0, %v375
  %v377 = vrot.slane %v217, %v376
  %v378 = vlaneseq
  %v379 = vshrl.u32 %v378, 7
  %v380 = vsub.s32 0, %v379
  %v381 = vrot.slane %v221, %v380
  %v382 = vlaneseq
  %v383 = vshrl.u32 %v382, 7
  %v384 = vsub.s32 0, %v383
  %v385 = vrot.slane %v225, %v384
  %v386 = vmul.f32 %v45, %v261
  %v387 = vmul.f32 %v45, %v265
  %v388 = vmul.f32 %v45, %v269
  %v389 = vmul.f32 %v45, %v273
  %v390 = vmul.f32 %v45, %v277
  %v391 = vmul.f32 %v45, %v281
  %v392 = vmul.f32 %v45, %v285
  %v393 = vmul.f32 %v45, %v289
  %v394 = vmul.f32 %v45, %v293
  %v395 = vmul.f32 %v45, %v297
  %v396 = vmul.f32 %v45, %v301
  %v397 = vmul.f32 %v45, %v305
  %v398 = vmul.f32 %v45, %v309
  %v399 = vmul.f32 %v45, %v313
  %v400 = vmul.f32 %v45, %v317
  %v401 = vmul.f32 %v45, %v321
  %v402 = vmul.f32 %v45, %v325
  %v403 = vmul.f32 %v45, %v329
  %v404 = vmul.f32 %v45, %v333
  %v405 = vmul.f32 %v45, %v337
  %v406 = vmul.f32 %v45, %v341
  %v407 = vmul.f32 %v45, %v345
  %v408 = vmul.f32 %v45, %v349
  %v409 = vmul.f32 %v45, %v353
  %v410 = vmul.f32 %v45, %v357
  %v411 = vmul.f32 %v45, %v361
  %v412 = vmul.f32 %v45, %v365
  %v413 = vmul.f32 %v45, %v369
  %v414 = vmul.f32 %v45, %v373
  %v415 = vmul.f32 %v45, %v377
  %v416 = vmul.f32 %v45, %v381
  %v417 = vmul.f32 %v45, %v385
  %v418 = vmul.f32 %v50, %v261
  %v419 = vmul.f32 %v50, %v265
  %v420 = vmul.f32 %v50, %v269
  %v421 = vmul.f32 %v50, %v273
  %v422 = vmul.f32 %v50, %v277
  %v423 = vmul.f32 %v50, %v281
  %v424 = vmul.f32 %v50, %v285
  %v425 = vmul.f32 %v50, %v289
  %v426 = vmul.f32 %v50, %v293
  %v427 = vmul.f32 %v50, %v297
  %v428 = vmul.f32 %v50, %v301
  %v429 = vmul.f32 %v50, %v305
  %v430 = vmul.f32 %v50, %v309
  %v431 = vmul.f32 %v50, %v313
  %v432 = vmul.f32 %v50, %v317
  %v433 = vmul.f32 %v50, %v321
  %v434 = vmul.f32 %v50, %v325
  %v435 = vmul.f32 %v50, %v329
  %v436 = vmul.f32 %v50, %v333
  %v437 = vmul.f32 %v50, %v337
  %v438 = vmul.f32 %v50, %v341
  %v439 = vmul.f32 %v50, %v345
  %v440 = vmul.f32 %v50, %v349
  %v441 = vmul.f32 %v50, %v353
  %v442 = vmul.f32 %v50, %v357
  %v443 = vmul.f32 %v50, %v361
  %v444 = vmul.f32 %v50, %v365
  %v445 = vmul.f32 %v50, %v369
  %v446 = vmul.f32 %v50, %v373
  %v447 = vmul.f32 %v50, %v377
  %v448 = vmul.f32 %v50, %v381
  %v449 = vmul.f32 %v50, %v385
  %v450 = vmul.f32 %v55, %v261
  %v451 = vmul.f32 %v55, %v265
  %v452 = vmul.f32 %v55, %v269
  %v453 = vmul.f32 %v55, %v273
  %v454 = vmul.f32 %v55, %v277
  %v455 = vmul.f32 %v55, %v281
  %v456 = vmul.f32 %v55, %v285
  %v457 = vmul.f32 %v55, %v289
  %v458 = vmul.f32 %v55, %v293
  %v459 = vmul.f32 %v55, %v297
  %v460 = vmul.f32 %v55, %v301
  %v461 = vmul.f32 %v55, %v305
  %v462 = vmul.f32 %v55, %v309
  %v463 = vmul.f32 %v55, %v313
  %v464 = vmul.f32 %v55, %v317
  %v465 = vmul.f32 %v55, %v321
  %v466 = vmul.f32 %v55, %v325
  %v467 = vmul.f32 %v55, %v329
  %v468 = vmul.f32 %v55, %v333
  %v469 = vmul.f32 %v55, %v337
  %v470 = vmul.f32 %v55, %v341
  %v471 = vmul.f32 %v55, %v345
  %v472 = vmul.f32 %v55, %v349
  %v473 = vmul.f32 %v55, %v353
  %v474 = vmul.f32 %v55, %v357
  %v475 = vmul.f32 %v55, %v361
  %v476 = vmul.f32 %v55, %v365
  %v477 = vmul.f32 %v55, %v369
  %v478 = vmul.f32 %v55, %v373
  %v479 = vmul.f32 %v55, %v377
  %v480 = vmul.f32 %v55, %v381
  %v481 = vmul.f32 %v55, %v385
  %v482 = vmul.f32 %v60, %v261
  %v483 = vmul.f32 %v60, %v265
  %v484 = vmul.f32 %v60, %v269
  %v485 = vmul.f32 %v60, %v273
  %v486 = vmul.f32 %v60, %v277
  %v487 = vmul.f32 %v60, %v281
  %v488 = vmul.f32 %v60, %v285
  %v489 = vmul.f32 %v60, %v289
  %v490 = vmul.f32 %v60, %v293
  %v491 = vmul.f32 %v60, %v297
  %v492 = vmul.f32 %v60, %v301
  %v493 = vmul.f32 %v60, %v305
  %v494 = vmul.f32 %v60, %v309
  %v495 = vmul.f32 %v60, %v313
  %v496 = vmul.f32 %v60, %v317
  %v497 = vmul.f32 %v60, %v321
  %v498 = vmul.f32 %v60, %v325
  %v499 = vmul.f32 %v60, %v329
  %v500 = vmul.f32 %v60, %v333
  %v501 = vmul.f32 %v60, %v337
  %v502 = vmul.f32 %v60, %v341
  %v503 = vmul.f32 %v60, %v345
  %v504 = vmul.f32 %v60, %v349
  %v505 = vmul.f32 %v60, %v353
  %v506 = vmul.f32 %v60, %v357
  %v507 = vmul.f32 %v60, %v361
  %v508 = vmul.f32 %v60, %v365
  %v509 = vmul.f32 %v60, %v369
  %v510 = vmul.f32 %v60, %v373
  %v511 = vmul.f32 %v60, %v377
  %v512 = vmul.f32 %v60, %v381
  %v513 = vmul.f32 %v60, %v385
  %v514 = vmul.f32 %v65, %v261
  %v515 = vmul.f32 %v65, %v265
  %v516 = vmul.f32 %v65, %v269
  %v517 = vmul.f32 %v65, %v273
  %v518 = vmul.f32 %v65, %v277
  %v519 = vmul.f32 %v65, %v281
  %v520 = vmul.f32 %v65, %v285
  %v521 = vmul.f32 %v65, %v289
  %v522 = vmul.f32 %v65, %v293
  %v523 = vmul.f32 %v65, %v297
  %v524 = vmul.f32 %v65, %v301
  %v525 = vmul.f32 %v65, %v305
  %v526 = vmul.f32 %v65, %v309
  %v527 = vmul.f32 %v65, %v313
  %v528 = vmul.f32 %v65, %v317
  %v529 = vmul.f32 %v65, %v321
  %v530 = vmul.f32 %v65, %v325
  %v531 = vmul.f32 %v65, %v329
  %v532 = vmul.f32 %v65, %v333
  %v533 = vmul.f32 %v65, %v337
  %v534 = vmul.f32 %v65, %v341
  %v535 = vmul.f32 %v65, %v345
  %v536 = vmul.f32 %v65, %v349
  %v537 = vmul.f32 %v65, %v353
  %v538 = vmul.f32 %v65, %v357
  %v539 = vmul.f32 %v65, %v361
  %v540 = vmul.f32 %v65, %v365
  %v541 = vmul.f32 %v65, %v369
  %v542 = vmul.f32 %v65, %v373
  %v543 = vmul.f32 %v65, %v377
  %v544 = vmul.f32 %v65, %v381
  %v545 = vmul.f32 %v65, %v385
  %v546 = vmul.f32 %v70, %v261
  %v547 = vmul.f32 %v70, %v265
  %v548 = vmul.f32 %v70, %v269
  %v549 = vmul.f32 %v70, %v273
  %v550 = vmul.f32 %v70, %v277
  %v551 = vmul.f32 %v70, %v281
  %v552 = vmul.f32 %v70, %v285
  %v553 = vmul.f32 %v70, %v289
  %v554 = vmul.f32 %v70, %v293
  %v555 = vmul.f32 %v70, %v297
  %v556 = vmul.f32 %v70, %v301
  %v557 = vmul.f32 %v70, %v305
  %v558 = vmul.f32 %v70, %v309
  %v559 = vmul.f32 %v70, %v313
  %v560 = vmul.f32 %v70, %v317
  %v561 = vmul.f32 %v70, %v321
  %v562 = vmul.f32 %v70, %v325
  %v563 = vmul.f32 %v70, %v329
  %v564 = vmul.f32 %v70, %v333
  %v565 = vmul.f32 %v70, %v337
  %v566 = vmul.f32 %v70, %v341
  %v567 = vmul.f32 %v70, %v345
  %v568 = vmul.f32 %v70, %v349
  %v569 = vmul.f32 %v70, %v353
  %v570 = vmul.f32 %v70, %v357
  %v571 = vmul.f32 %v70, %v361
  %v572 = vmul.f32 %v70, %v365
  %v573 = vmul.f32 %v70, %v369
  %v574 = vmul.f32 %v70, %v373
  %v575 = vmul.f32 %v70, %v377
  %v576 = vmul.f32 %v70, %v381
  %v577 = vmul.f32 %v70, %v385
  %v578 = vmul.f32 %v75, %v261
  %v579 = vmul.f32 %v75, %v265
  %v580 = vmul.f32 %v75, %v269
  %v581 = vmul.f32 %v75, %v273
  %v582 = vmul.f32 %v75, %v277
  %v583 = vmul.f32 %v75, %v281
  %v584 = vmul.f32 %v75, %v285
  %v585 = vmul.f32 %v75, %v289
  %v586 = vmul.f32 %v75, %v293
  %v587 = vmul.f32 %v75, %v297
  %v588 = vmul.f32 %v75, %v301
  %v589 = vmul.f32 %v75, %v305
  %v590 = vmul.f32 %v75, %v309
  %v591 = vmul.f32 %v75, %v313
  %v592 = vmul.f32 %v75, %v317
  %v593 = vmul.f32 %v75, %v321
  %v594 = vmul.f32 %v75, %v325
  %v595 = vmul.f32 %v75, %v329
  %v596 = vmul.f32 %v75, %v333
  %v597 = vmul.f32 %v75, %v337
  %v598 = vmul.f32 %v75, %v341
  %v599 = vmul.f32 %v75, %v345
  %v600 = vmul.f32 %v75, %v349
  %v601 = vmul.f32 %v75, %v353
  %v602 = vmul.f32 %v75, %v357
  %v603 = vmul.f32 %v75, %v361
  %v604 = vmul.f32 %v75, %v365
  %v605 = vmul.f32 %v75, %v369
  %v606 = vmul.f32 %v75, %v373
  %v607 = vmul.f32 %v75, %v377
  %v608 = vmul.f32 %v75, %v381
  %v609 = vmul.f32 %v75, %v385
  %v610 = vmul.f32 %v80, %v261
  %v611 = vmul.f32 %v80, %v265
  %v612 = vmul.f32 %v80, %v269
  %v613 = vmul.f32 %v80, %v273
  %v614 = vmul.f32 %v80, %v277
  %v615 = vmul.f32 %v80, %v281
  %v616 = vmul.f32 %v80, %v285
  %v617 = vmul.f32 %v80, %v289
  %v618 = vmul.f32 %v80, %v293
  %v619 = vmul.f32 %v80, %v297
  %v620 = vmul.f32 %v80, %v301
  %v621 = vmul.f32 %v80, %v305
  %v622 = vmul.f32 %v80, %v309
  %v623 = vmul.f32 %v80, %v313
  %v624 = vmul.f32 %v80, %v317
  %v625 = vmul.f32 %v80, %v321
  %v626 = vmul.f32 %v80, %v325
  %v627 = vmul.f32 %v80, %v329
  %v628 = vmul.f32 %v80, %v333
  %v629 = vmul.f32 %v80, %v337
  %v630 = vmul.f32 %v80, %v341
  %v631 = vmul.f32 %v80, %v345
  %v632 = vmul.f32 %v80, %v349
  %v633 = vmul.f32 %v80, %v353
  %v634 = vmul.f32 %v80, %v357
  %v635 = vmul.f32 %v80, %v361
  %v636 = vmul.f32 %v80, %v365
  %v637 = vmul.f32 %v80, %v369
  %v638 = vmul.f32 %v80, %v373
  %v639 = vmul.f32 %v80, %v377
  %v640 = vmul.f32 %v80, %v381
  %v641 = vmul.f32 %v80, %v385
  %642 = vset.pattern.permute.xlu0 1
  %643 = vperm.xlu0 %642, %v34
  %v644 = vpop.permute.xlu0 %643
  %646 = vset.pattern.permute.xlu0 1
  %647 = vperm.xlu0 %646, %v35
  %v648 = vpop.permute.xlu0 %647
  %650 = vset.pattern.permute.xlu0 1
  %651 = vperm.xlu0 %650, %v36
  %v652 = vpop.permute.xlu0 %651
  %654 = vset.pattern.permute.xlu0 1
  %655 = vperm.xlu0 %654, %v37
  %v656 = vpop.permute.xlu0 %655
  %658 = vset.pattern.permute.xlu0 1
  %659 = vperm.xlu0 %658, %v38
  %v660 = vpop.permute.xlu0 %659
  %662 = vset.pattern.permute.xlu0 1
  %663 = vperm.xlu0 %662, %v39
  %v664 = vpop.permute.xlu0 %663
  %666 = vset.pattern.permute.xlu0 1
  %667 = vperm.xlu0 %666, %v40
  %v668 = vpop.permute.xlu0 %667
  %670 = vset.pattern.permute.xlu0 1
  %671 = vperm.xlu0 %670, %v41
  %v672 = vpop.permute.xlu0 %671
  %v674 = vlaneseq
  %v675 = vshrl.u32 %v674, 7
  %v676 = vsub.s32 1, %v675
  %v677 = vrot.slane %v18, %v676
  %v678 = vlaneseq
  %v679 = vshrl.u32 %v678, 7
  %v680 = vsub.s32 5, %v679
  %v681 = vrot.slane %v18, %v680
  %v682 = vlaneseq
  %v683 = vshrl.u32 %v682, 7
  %v684 = vsub.s32 1, %v683
  %v685 = vrot.slane %v19, %v684
  %v686 = vlaneseq
  %v687 = vshrl.u32 %v686, 7
  %v688 = vsub.s32 5, %v687
  %v689 = vrot.slane %v19, %v688
  %v690 = vlaneseq
  %v691 = vshrl.u32 %v690, 7
  %v692 = vsub.s32 1, %v691
  %v693 = vrot.slane %v20, %v692
  %v694 = vlaneseq
  %v695 = vshrl.u32 %v694, 7
  %v696 = vsub.s32 5, %v695
  %v697 = vrot.slane %v20, %v696
  %v698 = vlaneseq
  %v699 = vshrl.u32 %v698, 7
  %v700 = vsub.s32 1, %v699
  %v701 = vrot.slane %v21, %v700
  %v702 = vlaneseq
  %v703 = vshrl.u32 %v702, 7
  %v704 = vsub.s32 5, %v703
  %v705 = vrot.slane %v21, %v704
  %v706 = vlaneseq
  %v707 = vshrl.u32 %v706, 7
  %v708 = vsub.s32 1, %v707
  %v709 = vrot.slane %v22, %v708
  %v710 = vlaneseq
  %v711 = vshrl.u32 %v710, 7
  %v712 = vsub.s32 5, %v711
  %v713 = vrot.slane %v22, %v712
  %v714 = vlaneseq
  %v715 = vshrl.u32 %v714, 7
  %v716 = vsub.s32 1, %v715
  %v717 = vrot.slane %v23, %v716
  %v718 = vlaneseq
  %v719 = vshrl.u32 %v718, 7
  %v720 = vsub.s32 5, %v719
  %v721 = vrot.slane %v23, %v720
  %v722 = vlaneseq
  %v723 = vshrl.u32 %v722, 7
  %v724 = vsub.s32 1, %v723
  %v725 = vrot.slane %v24, %v724
  %v726 = vlaneseq
  %v727 = vshrl.u32 %v726, 7
  %v728 = vsub.s32 5, %v727
  %v729 = vrot.slane %v24, %v728
  %v730 = vlaneseq
  %v731 = vshrl.u32 %v730, 7
  %v732 = vsub.s32 1, %v731
  %v733 = vrot.slane %v25, %v732
  %v734 = vlaneseq
  %v735 = vshrl.u32 %v734, 7
  %v736 = vsub.s32 5, %v735
  %v737 = vrot.slane %v25, %v736
  %v738 = vlaneseq
  %v739 = vshrl.u32 %v738, 7
  %v740 = vsub.s32 1, %v739
  %v741 = vrot.slane %v26, %v740
  %v742 = vlaneseq
  %v743 = vshrl.u32 %v742, 7
  %v744 = vsub.s32 5, %v743
  %v745 = vrot.slane %v26, %v744
  %v746 = vlaneseq
  %v747 = vshrl.u32 %v746, 7
  %v748 = vsub.s32 1, %v747
  %v749 = vrot.slane %v27, %v748
  %v750 = vlaneseq
  %v751 = vshrl.u32 %v750, 7
  %v752 = vsub.s32 5, %v751
  %v753 = vrot.slane %v27, %v752
  %v754 = vlaneseq
  %v755 = vshrl.u32 %v754, 7
  %v756 = vsub.s32 1, %v755
  %v757 = vrot.slane %v28, %v756
  %v758 = vlaneseq
  %v759 = vshrl.u32 %v758, 7
  %v760 = vsub.s32 5, %v759
  %v761 = vrot.slane %v28, %v760
  %v762 = vlaneseq
  %v763 = vshrl.u32 %v762, 7
  %v764 = vsub.s32 1, %v763
  %v765 = vrot.slane %v29, %v764
  %v766 = vlaneseq
  %v767 = vshrl.u32 %v766, 7
  %v768 = vsub.s32 5, %v767
  %v769 = vrot.slane %v29, %v768
  %v770 = vlaneseq
  %v771 = vshrl.u32 %v770, 7
  %v772 = vsub.s32 1, %v771
  %v773 = vrot.slane %v30, %v772
  %v774 = vlaneseq
  %v775 = vshrl.u32 %v774, 7
  %v776 = vsub.s32 5, %v775
  %v777 = vrot.slane %v30, %v776
  %v778 = vlaneseq
  %v779 = vshrl.u32 %v778, 7
  %v780 = vsub.s32 1, %v779
  %v781 = vrot.slane %v31, %v780
  %v782 = vlaneseq
  %v783 = vshrl.u32 %v782, 7
  %v784 = vsub.s32 5, %v783
  %v785 = vrot.slane %v31, %v784
  %v786 = vlaneseq
  %v787 = vshrl.u32 %v786, 7
  %v788 = vsub.s32 1, %v787
  %v789 = vrot.slane %v32, %v788
  %v790 = vlaneseq
  %v791 = vshrl.u32 %v790, 7
  %v792 = vsub.s32 5, %v791
  %v793 = vrot.slane %v32, %v792
  %v794 = vlaneseq
  %v795 = vshrl.u32 %v794, 7
  %v796 = vsub.s32 1, %v795
  %v797 = vrot.slane %v33, %v796
  %v798 = vlaneseq
  %v799 = vshrl.u32 %v798, 7
  %v800 = vsub.s32 5, %v799
  %v801 = vrot.slane %v33, %v800
  %v834 = vlaneseq
  %v835 = vshrl.u32 %v834, 7
  %v836 = vsub.s32 1, %v835
  %v837 = vrot.slane %v677, %v836
  %v838 = vlaneseq
  %v839 = vshrl.u32 %v838, 7
  %v840 = vsub.s32 1, %v839
  %v841 = vrot.slane %v681, %v840
  %v842 = vlaneseq
  %v843 = vshrl.u32 %v842, 7
  %v844 = vsub.s32 1, %v843
  %v845 = vrot.slane %v685, %v844
  %v846 = vlaneseq
  %v847 = vshrl.u32 %v846, 7
  %v848 = vsub.s32 1, %v847
  %v849 = vrot.slane %v689, %v848
  %v850 = vlaneseq
  %v851 = vshrl.u32 %v850, 7
  %v852 = vsub.s32 1, %v851
  %v853 = vrot.slane %v693, %v852
  %v854 = vlaneseq
  %v855 = vshrl.u32 %v854, 7
  %v856 = vsub.s32 1, %v855
  %v857 = vrot.slane %v697, %v856
  %v858 = vlaneseq
  %v859 = vshrl.u32 %v858, 7
  %v860 = vsub.s32 1, %v859
  %v861 = vrot.slane %v701, %v860
  %v862 = vlaneseq
  %v863 = vshrl.u32 %v862, 7
  %v864 = vsub.s32 1, %v863
  %v865 = vrot.slane %v705, %v864
  %v866 = vlaneseq
  %v867 = vshrl.u32 %v866, 7
  %v868 = vsub.s32 1, %v867
  %v869 = vrot.slane %v709, %v868
  %v870 = vlaneseq
  %v871 = vshrl.u32 %v870, 7
  %v872 = vsub.s32 1, %v871
  %v873 = vrot.slane %v713, %v872
  %v874 = vlaneseq
  %v875 = vshrl.u32 %v874, 7
  %v876 = vsub.s32 1, %v875
  %v877 = vrot.slane %v717, %v876
  %v878 = vlaneseq
  %v879 = vshrl.u32 %v878, 7
  %v880 = vsub.s32 1, %v879
  %v881 = vrot.slane %v721, %v880
  %v882 = vlaneseq
  %v883 = vshrl.u32 %v882, 7
  %v884 = vsub.s32 1, %v883
  %v885 = vrot.slane %v725, %v884
  %v886 = vlaneseq
  %v887 = vshrl.u32 %v886, 7
  %v888 = vsub.s32 1, %v887
  %v889 = vrot.slane %v729, %v888
  %v890 = vlaneseq
  %v891 = vshrl.u32 %v890, 7
  %v892 = vsub.s32 1, %v891
  %v893 = vrot.slane %v733, %v892
  %v894 = vlaneseq
  %v895 = vshrl.u32 %v894, 7
  %v896 = vsub.s32 1, %v895
  %v897 = vrot.slane %v737, %v896
  %v898 = vlaneseq
  %v899 = vshrl.u32 %v898, 7
  %v900 = vsub.s32 1, %v899
  %v901 = vrot.slane %v741, %v900
  %v902 = vlaneseq
  %v903 = vshrl.u32 %v902, 7
  %v904 = vsub.s32 1, %v903
  %v905 = vrot.slane %v745, %v904
  %v906 = vlaneseq
  %v907 = vshrl.u32 %v906, 7
  %v908 = vsub.s32 1, %v907
  %v909 = vrot.slane %v749, %v908
  %v910 = vlaneseq
  %v911 = vshrl.u32 %v910, 7
  %v912 = vsub.s32 1, %v911
  %v913 = vrot.slane %v753, %v912
  %v914 = vlaneseq
  %v915 = vshrl.u32 %v914, 7
  %v916 = vsub.s32 1, %v915
  %v917 = vrot.slane %v757, %v916
  %v918 = vlaneseq
  %v919 = vshrl.u32 %v918, 7
  %v920 = vsub.s32 1, %v919
  %v921 = vrot.slane %v761, %v920
  %v922 = vlaneseq
  %v923 = vshrl.u32 %v922, 7
  %v924 = vsub.s32 1, %v923
  %v925 = vrot.slane %v765, %v924
  %v926 = vlaneseq
  %v927 = vshrl.u32 %v926, 7
  %v928 = vsub.s32 1, %v927
  %v929 = vrot.slane %v769, %v928
  %v930 = vlaneseq
  %v931 = vshrl.u32 %v930, 7
  %v932 = vsub.s32 1, %v931
  %v933 = vrot.slane %v773, %v932
  %v934 = vlaneseq
  %v935 = vshrl.u32 %v934, 7
  %v936 = vsub.s32 1, %v935
  %v937 = vrot.slane %v777, %v936
  %v938 = vlaneseq
  %v939 = vshrl.u32 %v938, 7
  %v940 = vsub.s32 1, %v939
  %v941 = vrot.slane %v781, %v940
  %v942 = vlaneseq
  %v943 = vshrl.u32 %v942, 7
  %v944 = vsub.s32 1, %v943
  %v945 = vrot.slane %v785, %v944
  %v946 = vlaneseq
  %v947 = vshrl.u32 %v946, 7
  %v948 = vsub.s32 1, %v947
  %v949 = vrot.slane %v789, %v948
  %v950 = vlaneseq
  %v951 = vshrl.u32 %v950, 7
  %v952 = vsub.s32 1, %v951
  %v953 = vrot.slane %v793, %v952
  %v954 = vlaneseq
  %v955 = vshrl.u32 %v954, 7
  %v956 = vsub.s32 1, %v955
  %v957 = vrot.slane %v797, %v956
  %v958 = vlaneseq
  %v959 = vshrl.u32 %v958, 7
  %v960 = vsub.s32 1, %v959
  %v961 = vrot.slane %v801, %v960
  %v962 = vmul.f32 %v644, %v837
  %v963 = vmul.f32 %v644, %v841
  %v964 = vmul.f32 %v644, %v845
  %v965 = vmul.f32 %v644, %v849
  %v966 = vmul.f32 %v644, %v853
  %v967 = vmul.f32 %v644, %v857
  %v968 = vmul.f32 %v644, %v861
  %v969 = vmul.f32 %v644, %v865
  %v970 = vmul.f32 %v644, %v869
  %v971 = vmul.f32 %v644, %v873
  %v972 = vmul.f32 %v644, %v877
  %v973 = vmul.f32 %v644, %v881
  %v974 = vmul.f32 %v644, %v885
  %v975 = vmul.f32 %v644, %v889
  %v976 = vmul.f32 %v644, %v893
  %v977 = vmul.f32 %v644, %v897
  %v978 = vmul.f32 %v644, %v901
  %v979 = vmul.f32 %v644, %v905
  %v980 = vmul.f32 %v644, %v909
  %v981 = vmul.f32 %v644, %v913
  %v982 = vmul.f32 %v644, %v917
  %v983 = vmul.f32 %v644, %v921
  %v984 = vmul.f32 %v644, %v925
  %v985 = vmul.f32 %v644, %v929
  %v986 = vmul.f32 %v644, %v933
  %v987 = vmul.f32 %v644, %v937
  %v988 = vmul.f32 %v644, %v941
  %v989 = vmul.f32 %v644, %v945
  %v990 = vmul.f32 %v644, %v949
  %v991 = vmul.f32 %v644, %v953
  %v992 = vmul.f32 %v644, %v957
  %v993 = vmul.f32 %v644, %v961
  %v994 = vmul.f32 %v648, %v837
  %v995 = vmul.f32 %v648, %v841
  %v996 = vmul.f32 %v648, %v845
  %v997 = vmul.f32 %v648, %v849
  %v998 = vmul.f32 %v648, %v853
  %v999 = vmul.f32 %v648, %v857
  %v1000 = vmul.f32 %v648, %v861
  %v1001 = vmul.f32 %v648, %v865
  %v1002 = vmul.f32 %v648, %v869
  %v1003 = vmul.f32 %v648, %v873
  %v1004 = vmul.f32 %v648, %v877
  %v1005 = vmul.f32 %v648, %v881
  %v1006 = vmul.f32 %v648, %v885
  %v1007 = vmul.f32 %v648, %v889
  %v1008 = vmul.f32 %v648, %v893
  %v1009 = vmul.f32 %v648, %v897
  %v1010 = vmul.f32 %v648, %v901
  %v1011 = vmul.f32 %v648, %v905
  %v1012 = vmul.f32 %v648, %v909
  %v1013 = vmul.f32 %v648, %v913
  %v1014 = vmul.f32 %v648, %v917
  %v1015 = vmul.f32 %v648, %v921
  %v1016 = vmul.f32 %v648, %v925
  %v1017 = vmul.f32 %v648, %v929
  %v1018 = vmul.f32 %v648, %v933
  %v1019 = vmul.f32 %v648, %v937
  %v1020 = vmul.f32 %v648, %v941
  %v1021 = vmul.f32 %v648, %v945
  %v1022 = vmul.f32 %v648, %v949
  %v1023 = vmul.f32 %v648, %v953
  %v1024 = vmul.f32 %v648, %v957
  %v1025 = vmul.f32 %v648, %v961
  %v1026 = vmul.f32 %v652, %v837
  %v1027 = vmul.f32 %v652, %v841
  %v1028 = vmul.f32 %v652, %v845
  %v1029 = vmul.f32 %v652, %v849
  %v1030 = vmul.f32 %v652, %v853
  %v1031 = vmul.f32 %v652, %v857
  %v1032 = vmul.f32 %v652, %v861
  %v1033 = vmul.f32 %v652, %v865
  %v1034 = vmul.f32 %v652, %v869
  %v1035 = vmul.f32 %v652, %v873
  %v1036 = vmul.f32 %v652, %v877
  %v1037 = vmul.f32 %v652, %v881
  %v1038 = vmul.f32 %v652, %v885
  %v1039 = vmul.f32 %v652, %v889
  %v1040 = vmul.f32 %v652, %v893
  %v1041 = vmul.f32 %v652, %v897
  %v1042 = vmul.f32 %v652, %v901
  %v1043 = vmul.f32 %v652, %v905
  %v1044 = vmul.f32 %v652, %v909
  %v1045 = vmul.f32 %v652, %v913
  %v1046 = vmul.f32 %v652, %v917
  %v1047 = vmul.f32 %v652, %v921
  %v1048 = vmul.f32 %v652, %v925
  %v1049 = vmul.f32 %v652, %v929
  %v1050 = vmul.f32 %v652, %v933
  %v1051 = vmul.f32 %v652, %v937
  %v1052 = vmul.f32 %v652, %v941
  %v1053 = vmul.f32 %v652, %v945
  %v1054 = vmul.f32 %v652, %v949
  %v1055 = vmul.f32 %v652, %v953
  %v1056 = vmul.f32 %v652, %v957
  %v1057 = vmul.f32 %v652, %v961
  %v1058 = vmul.f32 %v656, %v837
  %v1059 = vmul.f32 %v656, %v841
  %v1060 = vmul.f32 %v656, %v845
  %v1061 = vmul.f32 %v656, %v849
  %v1062 = vmul.f32 %v656, %v853
  %v1063 = vmul.f32 %v656, %v857
  %v1064 = vmul.f32 %v656, %v861
  %v1065 = vmul.f32 %v656, %v865
  %v1066 = vmul.f32 %v656, %v869
  %v1067 = vmul.f32 %v656, %v873
  %v1068 = vmul.f32 %v656, %v877
  %v1069 = vmul.f32 %v656, %v881
  %v1070 = vmul.f32 %v656, %v885
  %v1071 = vmul.f32 %v656, %v889
  %v1072 = vmul.f32 %v656, %v893
  %v1073 = vmul.f32 %v656, %v897
  %v1074 = vmul.f32 %v656, %v901
  %v1075 = vmul.f32 %v656, %v905
  %v1076 = vmul.f32 %v656, %v909
  %v1077 = vmul.f32 %v656, %v913
  %v1078 = vmul.f32 %v656, %v917
  %v1079 = vmul.f32 %v656, %v921
  %v1080 = vmul.f32 %v656, %v925
  %v1081 = vmul.f32 %v656, %v929
  %v1082 = vmul.f32 %v656, %v933
  %v1083 = vmul.f32 %v656, %v937
  %v1084 = vmul.f32 %v656, %v941
  %v1085 = vmul.f32 %v656, %v945
  %v1086 = vmul.f32 %v656, %v949
  %v1087 = vmul.f32 %v656, %v953
  %v1088 = vmul.f32 %v656, %v957
  %v1089 = vmul.f32 %v656, %v961
  %v1090 = vmul.f32 %v660, %v837
  %v1091 = vmul.f32 %v660, %v841
  %v1092 = vmul.f32 %v660, %v845
  %v1093 = vmul.f32 %v660, %v849
  %v1094 = vmul.f32 %v660, %v853
  %v1095 = vmul.f32 %v660, %v857
  %v1096 = vmul.f32 %v660, %v861
  %v1097 = vmul.f32 %v660, %v865
  %v1098 = vmul.f32 %v660, %v869
  %v1099 = vmul.f32 %v660, %v873
  %v1100 = vmul.f32 %v660, %v877
  %v1101 = vmul.f32 %v660, %v881
  %v1102 = vmul.f32 %v660, %v885
  %v1103 = vmul.f32 %v660, %v889
  %v1104 = vmul.f32 %v660, %v893
  %v1105 = vmul.f32 %v660, %v897
  %v1106 = vmul.f32 %v660, %v901
  %v1107 = vmul.f32 %v660, %v905
  %v1108 = vmul.f32 %v660, %v909
  %v1109 = vmul.f32 %v660, %v913
  %v1110 = vmul.f32 %v660, %v917
  %v1111 = vmul.f32 %v660, %v921
  %v1112 = vmul.f32 %v660, %v925
  %v1113 = vmul.f32 %v660, %v929
  %v1114 = vmul.f32 %v660, %v933
  %v1115 = vmul.f32 %v660, %v937
  %v1116 = vmul.f32 %v660, %v941
  %v1117 = vmul.f32 %v660, %v945
  %v1118 = vmul.f32 %v660, %v949
  %v1119 = vmul.f32 %v660, %v953
  %v1120 = vmul.f32 %v660, %v957
  %v1121 = vmul.f32 %v660, %v961
  %v1122 = vmul.f32 %v664, %v837
  %v1123 = vmul.f32 %v664, %v841
  %v1124 = vmul.f32 %v664, %v845
  %v1125 = vmul.f32 %v664, %v849
  %v1126 = vmul.f32 %v664, %v853
  %v1127 = vmul.f32 %v664, %v857
  %v1128 = vmul.f32 %v664, %v861
  %v1129 = vmul.f32 %v664, %v865
  %v1130 = vmul.f32 %v664, %v869
  %v1131 = vmul.f32 %v664, %v873
  %v1132 = vmul.f32 %v664, %v877
  %v1133 = vmul.f32 %v664, %v881
  %v1134 = vmul.f32 %v664, %v885
  %v1135 = vmul.f32 %v664, %v889
  %v1136 = vmul.f32 %v664, %v893
  %v1137 = vmul.f32 %v664, %v897
  %v1138 = vmul.f32 %v664, %v901
  %v1139 = vmul.f32 %v664, %v905
  %v1140 = vmul.f32 %v664, %v909
  %v1141 = vmul.f32 %v664, %v913
  %v1142 = vmul.f32 %v664, %v917
  %v1143 = vmul.f32 %v664, %v921
  %v1144 = vmul.f32 %v664, %v925
  %v1145 = vmul.f32 %v664, %v929
  %v1146 = vmul.f32 %v664, %v933
  %v1147 = vmul.f32 %v664, %v937
  %v1148 = vmul.f32 %v664, %v941
  %v1149 = vmul.f32 %v664, %v945
  %v1150 = vmul.f32 %v664, %v949
  %v1151 = vmul.f32 %v664, %v953
  %v1152 = vmul.f32 %v664, %v957
  %v1153 = vmul.f32 %v664, %v961
  %v1154 = vmul.f32 %v668, %v837
  %v1155 = vmul.f32 %v668, %v841
  %v1156 = vmul.f32 %v668, %v845
  %v1157 = vmul.f32 %v668, %v849
  %v1158 = vmul.f32 %v668, %v853
  %v1159 = vmul.f32 %v668, %v857
  %v1160 = vmul.f32 %v668, %v861
  %v1161 = vmul.f32 %v668, %v865
  %v1162 = vmul.f32 %v668, %v869
  %v1163 = vmul.f32 %v668, %v873
  %v1164 = vmul.f32 %v668, %v877
  %v1165 = vmul.f32 %v668, %v881
  %v1166 = vmul.f32 %v668, %v885
  %v1167 = vmul.f32 %v668, %v889
  %v1168 = vmul.f32 %v668, %v893
  %v1169 = vmul.f32 %v668, %v897
  %v1170 = vmul.f32 %v668, %v901
  %v1171 = vmul.f32 %v668, %v905
  %v1172 = vmul.f32 %v668, %v909
  %v1173 = vmul.f32 %v668, %v913
  %v1174 = vmul.f32 %v668, %v917
  %v1175 = vmul.f32 %v668, %v921
  %v1176 = vmul.f32 %v668, %v925
  %v1177 = vmul.f32 %v668, %v929
  %v1178 = vmul.f32 %v668, %v933
  %v1179 = vmul.f32 %v668, %v937
  %v1180 = vmul.f32 %v668, %v941
  %v1181 = vmul.f32 %v668, %v945
  %v1182 = vmul.f32 %v668, %v949
  %v1183 = vmul.f32 %v668, %v953
  %v1184 = vmul.f32 %v668, %v957
  %v1185 = vmul.f32 %v668, %v961
  %v1186 = vmul.f32 %v672, %v837
  %v1187 = vmul.f32 %v672, %v841
  %v1188 = vmul.f32 %v672, %v845
  %v1189 = vmul.f32 %v672, %v849
  %v1190 = vmul.f32 %v672, %v853
  %v1191 = vmul.f32 %v672, %v857
  %v1192 = vmul.f32 %v672, %v861
  %v1193 = vmul.f32 %v672, %v865
  %v1194 = vmul.f32 %v672, %v869
  %v1195 = vmul.f32 %v672, %v873
  %v1196 = vmul.f32 %v672, %v877
  %v1197 = vmul.f32 %v672, %v881
  %v1198 = vmul.f32 %v672, %v885
  %v1199 = vmul.f32 %v672, %v889
  %v1200 = vmul.f32 %v672, %v893
  %v1201 = vmul.f32 %v672, %v897
  %v1202 = vmul.f32 %v672, %v901
  %v1203 = vmul.f32 %v672, %v905
  %v1204 = vmul.f32 %v672, %v909
  %v1205 = vmul.f32 %v672, %v913
  %v1206 = vmul.f32 %v672, %v917
  %v1207 = vmul.f32 %v672, %v921
  %v1208 = vmul.f32 %v672, %v925
  %v1209 = vmul.f32 %v672, %v929
  %v1210 = vmul.f32 %v672, %v933
  %v1211 = vmul.f32 %v672, %v937
  %v1212 = vmul.f32 %v672, %v941
  %v1213 = vmul.f32 %v672, %v945
  %v1214 = vmul.f32 %v672, %v949
  %v1215 = vmul.f32 %v672, %v953
  %v1216 = vmul.f32 %v672, %v957
  %v1217 = vmul.f32 %v672, %v961
  %v1218 = vadd.f32 %v386, %v962
  %v1219 = vadd.f32 %v387, %v963
  %v1220 = vadd.f32 %v388, %v964
  %v1221 = vadd.f32 %v389, %v965
  %v1222 = vadd.f32 %v390, %v966
  %v1223 = vadd.f32 %v391, %v967
  %v1224 = vadd.f32 %v392, %v968
  %v1225 = vadd.f32 %v393, %v969
  %v1226 = vadd.f32 %v394, %v970
  %v1227 = vadd.f32 %v395, %v971
  %v1228 = vadd.f32 %v396, %v972
  %v1229 = vadd.f32 %v397, %v973
  %v1230 = vadd.f32 %v398, %v974
  %v1231 = vadd.f32 %v399, %v975
  %v1232 = vadd.f32 %v400, %v976
  %v1233 = vadd.f32 %v401, %v977
  %v1234 = vadd.f32 %v402, %v978
  %v1235 = vadd.f32 %v403, %v979
  %v1236 = vadd.f32 %v404, %v980
  %v1237 = vadd.f32 %v405, %v981
  %v1238 = vadd.f32 %v406, %v982
  %v1239 = vadd.f32 %v407, %v983
  %v1240 = vadd.f32 %v408, %v984
  %v1241 = vadd.f32 %v409, %v985
  %v1242 = vadd.f32 %v410, %v986
  %v1243 = vadd.f32 %v411, %v987
  %v1244 = vadd.f32 %v412, %v988
  %v1245 = vadd.f32 %v413, %v989
  %v1246 = vadd.f32 %v414, %v990
  %v1247 = vadd.f32 %v415, %v991
  %v1248 = vadd.f32 %v416, %v992
  %v1249 = vadd.f32 %v417, %v993
  %v1250 = vadd.f32 %v418, %v994
  %v1251 = vadd.f32 %v419, %v995
  %v1252 = vadd.f32 %v420, %v996
  %v1253 = vadd.f32 %v421, %v997
  %v1254 = vadd.f32 %v422, %v998
  %v1255 = vadd.f32 %v423, %v999
  %v1256 = vadd.f32 %v424, %v1000
  %v1257 = vadd.f32 %v425, %v1001
  %v1258 = vadd.f32 %v426, %v1002
  %v1259 = vadd.f32 %v427, %v1003
  %v1260 = vadd.f32 %v428, %v1004
  %v1261 = vadd.f32 %v429, %v1005
  %v1262 = vadd.f32 %v430, %v1006
  %v1263 = vadd.f32 %v431, %v1007
  %v1264 = vadd.f32 %v432, %v1008
  %v1265 = vadd.f32 %v433, %v1009
  %v1266 = vadd.f32 %v434, %v1010
  %v1267 = vadd.f32 %v435, %v1011
  %v1268 = vadd.f32 %v436, %v1012
  %v1269 = vadd.f32 %v437, %v1013
  %v1270 = vadd.f32 %v438, %v1014
  %v1271 = vadd.f32 %v439, %v1015
  %v1272 = vadd.f32 %v440, %v1016
  %v1273 = vadd.f32 %v441, %v1017
  %v1274 = vadd.f32 %v442, %v1018
  %v1275 = vadd.f32 %v443, %v1019
  %v1276 = vadd.f32 %v444, %v1020
  %v1277 = vadd.f32 %v445, %v1021
  %v1278 = vadd.f32 %v446, %v1022
  %v1279 = vadd.f32 %v447, %v1023
  %v1280 = vadd.f32 %v448, %v1024
  %v1281 = vadd.f32 %v449, %v1025
  %v1282 = vadd.f32 %v450, %v1026
  %v1283 = vadd.f32 %v451, %v1027
  %v1284 = vadd.f32 %v452, %v1028
  %v1285 = vadd.f32 %v453, %v1029
  %v1286 = vadd.f32 %v454, %v1030
  %v1287 = vadd.f32 %v455, %v1031
  %v1288 = vadd.f32 %v456, %v1032
  %v1289 = vadd.f32 %v457, %v1033
  %v1290 = vadd.f32 %v458, %v1034
  %v1291 = vadd.f32 %v459, %v1035
  %v1292 = vadd.f32 %v460, %v1036
  %v1293 = vadd.f32 %v461, %v1037
  %v1294 = vadd.f32 %v462, %v1038
  %v1295 = vadd.f32 %v463, %v1039
  %v1296 = vadd.f32 %v464, %v1040
  %v1297 = vadd.f32 %v465, %v1041
  %v1298 = vadd.f32 %v466, %v1042
  %v1299 = vadd.f32 %v467, %v1043
  %v1300 = vadd.f32 %v468, %v1044
  %v1301 = vadd.f32 %v469, %v1045
  %v1302 = vadd.f32 %v470, %v1046
  %v1303 = vadd.f32 %v471, %v1047
  %v1304 = vadd.f32 %v472, %v1048
  %v1305 = vadd.f32 %v473, %v1049
  %v1306 = vadd.f32 %v474, %v1050
  %v1307 = vadd.f32 %v475, %v1051
  %v1308 = vadd.f32 %v476, %v1052
  %v1309 = vadd.f32 %v477, %v1053
  %v1310 = vadd.f32 %v478, %v1054
  %v1311 = vadd.f32 %v479, %v1055
  %v1312 = vadd.f32 %v480, %v1056
  %v1313 = vadd.f32 %v481, %v1057
  %v1314 = vadd.f32 %v482, %v1058
  %v1315 = vadd.f32 %v483, %v1059
  %v1316 = vadd.f32 %v484, %v1060
  %v1317 = vadd.f32 %v485, %v1061
  %v1318 = vadd.f32 %v486, %v1062
  %v1319 = vadd.f32 %v487, %v1063
  %v1320 = vadd.f32 %v488, %v1064
  %v1321 = vadd.f32 %v489, %v1065
  %v1322 = vadd.f32 %v490, %v1066
  %v1323 = vadd.f32 %v491, %v1067
  %v1324 = vadd.f32 %v492, %v1068
  %v1325 = vadd.f32 %v493, %v1069
  %v1326 = vadd.f32 %v494, %v1070
  %v1327 = vadd.f32 %v495, %v1071
  %v1328 = vadd.f32 %v496, %v1072
  %v1329 = vadd.f32 %v497, %v1073
  %v1330 = vadd.f32 %v498, %v1074
  %v1331 = vadd.f32 %v499, %v1075
  %v1332 = vadd.f32 %v500, %v1076
  %v1333 = vadd.f32 %v501, %v1077
  %v1334 = vadd.f32 %v502, %v1078
  %v1335 = vadd.f32 %v503, %v1079
  %v1336 = vadd.f32 %v504, %v1080
  %v1337 = vadd.f32 %v505, %v1081
  %v1338 = vadd.f32 %v506, %v1082
  %v1339 = vadd.f32 %v507, %v1083
  %v1340 = vadd.f32 %v508, %v1084
  %v1341 = vadd.f32 %v509, %v1085
  %v1342 = vadd.f32 %v510, %v1086
  %v1343 = vadd.f32 %v511, %v1087
  %v1344 = vadd.f32 %v512, %v1088
  %v1345 = vadd.f32 %v513, %v1089
  %v1346 = vadd.f32 %v514, %v1090
  %v1347 = vadd.f32 %v515, %v1091
  %v1348 = vadd.f32 %v516, %v1092
  %v1349 = vadd.f32 %v517, %v1093
  %v1350 = vadd.f32 %v518, %v1094
  %v1351 = vadd.f32 %v519, %v1095
  %v1352 = vadd.f32 %v520, %v1096
  %v1353 = vadd.f32 %v521, %v1097
  %v1354 = vadd.f32 %v522, %v1098
  %v1355 = vadd.f32 %v523, %v1099
  %v1356 = vadd.f32 %v524, %v1100
  %v1357 = vadd.f32 %v525, %v1101
  %v1358 = vadd.f32 %v526, %v1102
  %v1359 = vadd.f32 %v527, %v1103
  %v1360 = vadd.f32 %v528, %v1104
  %v1361 = vadd.f32 %v529, %v1105
  %v1362 = vadd.f32 %v530, %v1106
  %v1363 = vadd.f32 %v531, %v1107
  %v1364 = vadd.f32 %v532, %v1108
  %v1365 = vadd.f32 %v533, %v1109
  %v1366 = vadd.f32 %v534, %v1110
  %v1367 = vadd.f32 %v535, %v1111
  %v1368 = vadd.f32 %v536, %v1112
  %v1369 = vadd.f32 %v537, %v1113
  %v1370 = vadd.f32 %v538, %v1114
  %v1371 = vadd.f32 %v539, %v1115
  %v1372 = vadd.f32 %v540, %v1116
  %v1373 = vadd.f32 %v541, %v1117
  %v1374 = vadd.f32 %v542, %v1118
  %v1375 = vadd.f32 %v543, %v1119
  %v1376 = vadd.f32 %v544, %v1120
  %v1377 = vadd.f32 %v545, %v1121
  %v1378 = vadd.f32 %v546, %v1122
  %v1379 = vadd.f32 %v547, %v1123
  %v1380 = vadd.f32 %v548, %v1124
  %v1381 = vadd.f32 %v549, %v1125
  %v1382 = vadd.f32 %v550, %v1126
  %v1383 = vadd.f32 %v551, %v1127
  %v1384 = vadd.f32 %v552, %v1128
  %v1385 = vadd.f32 %v553, %v1129
  %v1386 = vadd.f32 %v554, %v1130
  %v1387 = vadd.f32 %v555, %v1131
  %v1388 = vadd.f32 %v556, %v1132
  %v1389 = vadd.f32 %v557, %v1133
  %v1390 = vadd.f32 %v558, %v1134
  %v1391 = vadd.f32 %v559, %v1135
  %v1392 = vadd.f32 %v560, %v1136
  %v1393 = vadd.f32 %v561, %v1137
  %v1394 = vadd.f32 %v562, %v1138
  %v1395 = vadd.f32 %v563, %v1139
  %v1396 = vadd.f32 %v564, %v1140
  %v1397 = vadd.f32 %v565, %v1141
  %v1398 = vadd.f32 %v566, %v1142
  %v1399 = vadd.f32 %v567, %v1143
  %v1400 = vadd.f32 %v568, %v1144
  %v1401 = vadd.f32 %v569, %v1145
  %v1402 = vadd.f32 %v570, %v1146
  %v1403 = vadd.f32 %v571, %v1147
  %v1404 = vadd.f32 %v572, %v1148
  %v1405 = vadd.f32 %v573, %v1149
  %v1406 = vadd.f32 %v574, %v1150
  %v1407 = vadd.f32 %v575, %v1151
  %v1408 = vadd.f32 %v576, %v1152
  %v1409 = vadd.f32 %v577, %v1153
  %v1410 = vadd.f32 %v578, %v1154
  %v1411 = vadd.f32 %v579, %v1155
  %v1412 = vadd.f32 %v580, %v1156
  %v1413 = vadd.f32 %v581, %v1157
  %v1414 = vadd.f32 %v582, %v1158
  %v1415 = vadd.f32 %v583, %v1159
  %v1416 = vadd.f32 %v584, %v1160
  %v1417 = vadd.f32 %v585, %v1161
  %v1418 = vadd.f32 %v586, %v1162
  %v1419 = vadd.f32 %v587, %v1163
  %v1420 = vadd.f32 %v588, %v1164
  %v1421 = vadd.f32 %v589, %v1165
  %v1422 = vadd.f32 %v590, %v1166
  %v1423 = vadd.f32 %v591, %v1167
  %v1424 = vadd.f32 %v592, %v1168
  %v1425 = vadd.f32 %v593, %v1169
  %v1426 = vadd.f32 %v594, %v1170
  %v1427 = vadd.f32 %v595, %v1171
  %v1428 = vadd.f32 %v596, %v1172
  %v1429 = vadd.f32 %v597, %v1173
  %v1430 = vadd.f32 %v598, %v1174
  %v1431 = vadd.f32 %v599, %v1175
  %v1432 = vadd.f32 %v600, %v1176
  %v1433 = vadd.f32 %v601, %v1177
  %v1434 = vadd.f32 %v602, %v1178
  %v1435 = vadd.f32 %v603, %v1179
  %v1436 = vadd.f32 %v604, %v1180
  %v1437 = vadd.f32 %v605, %v1181
  %v1438 = vadd.f32 %v606, %v1182
  %v1439 = vadd.f32 %v607, %v1183
  %v1440 = vadd.f32 %v608, %v1184
  %v1441 = vadd.f32 %v609, %v1185
  %v1442 = vadd.f32 %v610, %v1186
  %v1443 = vadd.f32 %v611, %v1187
  %v1444 = vadd.f32 %v612, %v1188
  %v1445 = vadd.f32 %v613, %v1189
  %v1446 = vadd.f32 %v614, %v1190
  %v1447 = vadd.f32 %v615, %v1191
  %v1448 = vadd.f32 %v616, %v1192
  %v1449 = vadd.f32 %v617, %v1193
  %v1450 = vadd.f32 %v618, %v1194
  %v1451 = vadd.f32 %v619, %v1195
  %v1452 = vadd.f32 %v620, %v1196
  %v1453 = vadd.f32 %v621, %v1197
  %v1454 = vadd.f32 %v622, %v1198
  %v1455 = vadd.f32 %v623, %v1199
  %v1456 = vadd.f32 %v624, %v1200
  %v1457 = vadd.f32 %v625, %v1201
  %v1458 = vadd.f32 %v626, %v1202
  %v1459 = vadd.f32 %v627, %v1203
  %v1460 = vadd.f32 %v628, %v1204
  %v1461 = vadd.f32 %v629, %v1205
  %v1462 = vadd.f32 %v630, %v1206
  %v1463 = vadd.f32 %v631, %v1207
  %v1464 = vadd.f32 %v632, %v1208
  %v1465 = vadd.f32 %v633, %v1209
  %v1466 = vadd.f32 %v634, %v1210
  %v1467 = vadd.f32 %v635, %v1211
  %v1468 = vadd.f32 %v636, %v1212
  %v1469 = vadd.f32 %v637, %v1213
  %v1470 = vadd.f32 %v638, %v1214
  %v1471 = vadd.f32 %v639, %v1215
  %v1472 = vadd.f32 %v640, %v1216
  %v1473 = vadd.f32 %v641, %v1217
  %1474 = vset.pattern.permute.xlu0 2
  %1475 = vperm.xlu0 %1474, %v34
  %v1476 = vpop.permute.xlu0 %1475
  %1478 = vset.pattern.permute.xlu0 2
  %1479 = vperm.xlu0 %1478, %v35
  %v1480 = vpop.permute.xlu0 %1479
  %1482 = vset.pattern.permute.xlu0 2
  %1483 = vperm.xlu0 %1482, %v36
  %v1484 = vpop.permute.xlu0 %1483
  %1486 = vset.pattern.permute.xlu0 2
  %1487 = vperm.xlu0 %1486, %v37
  %v1488 = vpop.permute.xlu0 %1487
  %1490 = vset.pattern.permute.xlu0 2
  %1491 = vperm.xlu0 %1490, %v38
  %v1492 = vpop.permute.xlu0 %1491
  %1494 = vset.pattern.permute.xlu0 2
  %1495 = vperm.xlu0 %1494, %v39
  %v1496 = vpop.permute.xlu0 %1495
  %1498 = vset.pattern.permute.xlu0 2
  %1499 = vperm.xlu0 %1498, %v40
  %v1500 = vpop.permute.xlu0 %1499
  %1502 = vset.pattern.permute.xlu0 2
  %1503 = vperm.xlu0 %1502, %v41
  %v1504 = vpop.permute.xlu0 %1503
  %v1506 = vlaneseq
  %v1507 = vshrl.u32 %v1506, 7
  %v1508 = vsub.s32 2, %v1507
  %v1509 = vrot.slane %v18, %v1508
  %v1510 = vlaneseq
  %v1511 = vshrl.u32 %v1510, 7
  %v1512 = vsub.s32 6, %v1511
  %v1513 = vrot.slane %v18, %v1512
  %v1514 = vlaneseq
  %v1515 = vshrl.u32 %v1514, 7
  %v1516 = vsub.s32 2, %v1515
  %v1517 = vrot.slane %v19, %v1516
  %v1518 = vlaneseq
  %v1519 = vshrl.u32 %v1518, 7
  %v1520 = vsub.s32 6, %v1519
  %v1521 = vrot.slane %v19, %v1520
  %v1522 = vlaneseq
  %v1523 = vshrl.u32 %v1522, 7
  %v1524 = vsub.s32 2, %v1523
  %v1525 = vrot.slane %v20, %v1524
  %v1526 = vlaneseq
  %v1527 = vshrl.u32 %v1526, 7
  %v1528 = vsub.s32 6, %v1527
  %v1529 = vrot.slane %v20, %v1528
  %v1530 = vlaneseq
  %v1531 = vshrl.u32 %v1530, 7
  %v1532 = vsub.s32 2, %v1531
  %v1533 = vrot.slane %v21, %v1532
  %v1534 = vlaneseq
  %v1535 = vshrl.u32 %v1534, 7
  %v1536 = vsub.s32 6, %v1535
  %v1537 = vrot.slane %v21, %v1536
  %v1538 = vlaneseq
  %v1539 = vshrl.u32 %v1538, 7
  %v1540 = vsub.s32 2, %v1539
  %v1541 = vrot.slane %v22, %v1540
  %v1542 = vlaneseq
  %v1543 = vshrl.u32 %v1542, 7
  %v1544 = vsub.s32 6, %v1543
  %v1545 = vrot.slane %v22, %v1544
  %v1546 = vlaneseq
  %v1547 = vshrl.u32 %v1546, 7
  %v1548 = vsub.s32 2, %v1547
  %v1549 = vrot.slane %v23, %v1548
  %v1550 = vlaneseq
  %v1551 = vshrl.u32 %v1550, 7
  %v1552 = vsub.s32 6, %v1551
  %v1553 = vrot.slane %v23, %v1552
  %v1554 = vlaneseq
  %v1555 = vshrl.u32 %v1554, 7
  %v1556 = vsub.s32 2, %v1555
  %v1557 = vrot.slane %v24, %v1556
  %v1558 = vlaneseq
  %v1559 = vshrl.u32 %v1558, 7
  %v1560 = vsub.s32 6, %v1559
  %v1561 = vrot.slane %v24, %v1560
  %v1562 = vlaneseq
  %v1563 = vshrl.u32 %v1562, 7
  %v1564 = vsub.s32 2, %v1563
  %v1565 = vrot.slane %v25, %v1564
  %v1566 = vlaneseq
  %v1567 = vshrl.u32 %v1566, 7
  %v1568 = vsub.s32 6, %v1567
  %v1569 = vrot.slane %v25, %v1568
  %v1570 = vlaneseq
  %v1571 = vshrl.u32 %v1570, 7
  %v1572 = vsub.s32 2, %v1571
  %v1573 = vrot.slane %v26, %v1572
  %v1574 = vlaneseq
  %v1575 = vshrl.u32 %v1574, 7
  %v1576 = vsub.s32 6, %v1575
  %v1577 = vrot.slane %v26, %v1576
  %v1578 = vlaneseq
  %v1579 = vshrl.u32 %v1578, 7
  %v1580 = vsub.s32 2, %v1579
  %v1581 = vrot.slane %v27, %v1580
  %v1582 = vlaneseq
  %v1583 = vshrl.u32 %v1582, 7
  %v1584 = vsub.s32 6, %v1583
  %v1585 = vrot.slane %v27, %v1584
  %v1586 = vlaneseq
  %v1587 = vshrl.u32 %v1586, 7
  %v1588 = vsub.s32 2, %v1587
  %v1589 = vrot.slane %v28, %v1588
  %v1590 = vlaneseq
  %v1591 = vshrl.u32 %v1590, 7
  %v1592 = vsub.s32 6, %v1591
  %v1593 = vrot.slane %v28, %v1592
  %v1594 = vlaneseq
  %v1595 = vshrl.u32 %v1594, 7
  %v1596 = vsub.s32 2, %v1595
  %v1597 = vrot.slane %v29, %v1596
  %v1598 = vlaneseq
  %v1599 = vshrl.u32 %v1598, 7
  %v1600 = vsub.s32 6, %v1599
  %v1601 = vrot.slane %v29, %v1600
  %v1602 = vlaneseq
  %v1603 = vshrl.u32 %v1602, 7
  %v1604 = vsub.s32 2, %v1603
  %v1605 = vrot.slane %v30, %v1604
  %v1606 = vlaneseq
  %v1607 = vshrl.u32 %v1606, 7
  %v1608 = vsub.s32 6, %v1607
  %v1609 = vrot.slane %v30, %v1608
  %v1610 = vlaneseq
  %v1611 = vshrl.u32 %v1610, 7
  %v1612 = vsub.s32 2, %v1611
  %v1613 = vrot.slane %v31, %v1612
  %v1614 = vlaneseq
  %v1615 = vshrl.u32 %v1614, 7
  %v1616 = vsub.s32 6, %v1615
  %v1617 = vrot.slane %v31, %v1616
  %v1618 = vlaneseq
  %v1619 = vshrl.u32 %v1618, 7
  %v1620 = vsub.s32 2, %v1619
  %v1621 = vrot.slane %v32, %v1620
  %v1622 = vlaneseq
  %v1623 = vshrl.u32 %v1622, 7
  %v1624 = vsub.s32 6, %v1623
  %v1625 = vrot.slane %v32, %v1624
  %v1626 = vlaneseq
  %v1627 = vshrl.u32 %v1626, 7
  %v1628 = vsub.s32 2, %v1627
  %v1629 = vrot.slane %v33, %v1628
  %v1630 = vlaneseq
  %v1631 = vshrl.u32 %v1630, 7
  %v1632 = vsub.s32 6, %v1631
  %v1633 = vrot.slane %v33, %v1632
  %v1666 = vlaneseq
  %v1667 = vshrl.u32 %v1666, 7
  %v1668 = vsub.s32 2, %v1667
  %v1669 = vrot.slane %v1509, %v1668
  %v1670 = vlaneseq
  %v1671 = vshrl.u32 %v1670, 7
  %v1672 = vsub.s32 2, %v1671
  %v1673 = vrot.slane %v1513, %v1672
  %v1674 = vlaneseq
  %v1675 = vshrl.u32 %v1674, 7
  %v1676 = vsub.s32 2, %v1675
  %v1677 = vrot.slane %v1517, %v1676
  %v1678 = vlaneseq
  %v1679 = vshrl.u32 %v1678, 7
  %v1680 = vsub.s32 2, %v1679
  %v1681 = vrot.slane %v1521, %v1680
  %v1682 = vlaneseq
  %v1683 = vshrl.u32 %v1682, 7
  %v1684 = vsub.s32 2, %v1683
  %v1685 = vrot.slane %v1525, %v1684
  %v1686 = vlaneseq
  %v1687 = vshrl.u32 %v1686, 7
  %v1688 = vsub.s32 2, %v1687
  %v1689 = vrot.slane %v1529, %v1688
  %v1690 = vlaneseq
  %v1691 = vshrl.u32 %v1690, 7
  %v1692 = vsub.s32 2, %v1691
  %v1693 = vrot.slane %v1533, %v1692
  %v1694 = vlaneseq
  %v1695 = vshrl.u32 %v1694, 7
  %v1696 = vsub.s32 2, %v1695
  %v1697 = vrot.slane %v1537, %v1696
  %v1698 = vlaneseq
  %v1699 = vshrl.u32 %v1698, 7
  %v1700 = vsub.s32 2, %v1699
  %v1701 = vrot.slane %v1541, %v1700
  %v1702 = vlaneseq
  %v1703 = vshrl.u32 %v1702, 7
  %v1704 = vsub.s32 2, %v1703
  %v1705 = vrot.slane %v1545, %v1704
  %v1706 = vlaneseq
  %v1707 = vshrl.u32 %v1706, 7
  %v1708 = vsub.s32 2, %v1707
  %v1709 = vrot.slane %v1549, %v1708
  %v1710 = vlaneseq
  %v1711 = vshrl.u32 %v1710, 7
  %v1712 = vsub.s32 2, %v1711
  %v1713 = vrot.slane %v1553, %v1712
  %v1714 = vlaneseq
  %v1715 = vshrl.u32 %v1714, 7
  %v1716 = vsub.s32 2, %v1715
  %v1717 = vrot.slane %v1557, %v1716
  %v1718 = vlaneseq
  %v1719 = vshrl.u32 %v1718, 7
  %v1720 = vsub.s32 2, %v1719
  %v1721 = vrot.slane %v1561, %v1720
  %v1722 = vlaneseq
  %v1723 = vshrl.u32 %v1722, 7
  %v1724 = vsub.s32 2, %v1723
  %v1725 = vrot.slane %v1565, %v1724
  %v1726 = vlaneseq
  %v1727 = vshrl.u32 %v1726, 7
  %v1728 = vsub.s32 2, %v1727
  %v1729 = vrot.slane %v1569, %v1728
  %v1730 = vlaneseq
  %v1731 = vshrl.u32 %v1730, 7
  %v1732 = vsub.s32 2, %v1731
  %v1733 = vrot.slane %v1573, %v1732
  %v1734 = vlaneseq
  %v1735 = vshrl.u32 %v1734, 7
  %v1736 = vsub.s32 2, %v1735
  %v1737 = vrot.slane %v1577, %v1736
  %v1738 = vlaneseq
  %v1739 = vshrl.u32 %v1738, 7
  %v1740 = vsub.s32 2, %v1739
  %v1741 = vrot.slane %v1581, %v1740
  %v1742 = vlaneseq
  %v1743 = vshrl.u32 %v1742, 7
  %v1744 = vsub.s32 2, %v1743
  %v1745 = vrot.slane %v1585, %v1744
  %v1746 = vlaneseq
  %v1747 = vshrl.u32 %v1746, 7
  %v1748 = vsub.s32 2, %v1747
  %v1749 = vrot.slane %v1589, %v1748
  %v1750 = vlaneseq
  %v1751 = vshrl.u32 %v1750, 7
  %v1752 = vsub.s32 2, %v1751
  %v1753 = vrot.slane %v1593, %v1752
  %v1754 = vlaneseq
  %v1755 = vshrl.u32 %v1754, 7
  %v1756 = vsub.s32 2, %v1755
  %v1757 = vrot.slane %v1597, %v1756
  %v1758 = vlaneseq
  %v1759 = vshrl.u32 %v1758, 7
  %v1760 = vsub.s32 2, %v1759
  %v1761 = vrot.slane %v1601, %v1760
  %v1762 = vlaneseq
  %v1763 = vshrl.u32 %v1762, 7
  %v1764 = vsub.s32 2, %v1763
  %v1765 = vrot.slane %v1605, %v1764
  %v1766 = vlaneseq
  %v1767 = vshrl.u32 %v1766, 7
  %v1768 = vsub.s32 2, %v1767
  %v1769 = vrot.slane %v1609, %v1768
  %v1770 = vlaneseq
  %v1771 = vshrl.u32 %v1770, 7
  %v1772 = vsub.s32 2, %v1771
  %v1773 = vrot.slane %v1613, %v1772
  %v1774 = vlaneseq
  %v1775 = vshrl.u32 %v1774, 7
  %v1776 = vsub.s32 2, %v1775
  %v1777 = vrot.slane %v1617, %v1776
  %v1778 = vlaneseq
  %v1779 = vshrl.u32 %v1778, 7
  %v1780 = vsub.s32 2, %v1779
  %v1781 = vrot.slane %v1621, %v1780
  %v1782 = vlaneseq
  %v1783 = vshrl.u32 %v1782, 7
  %v1784 = vsub.s32 2, %v1783
  %v1785 = vrot.slane %v1625, %v1784
  %v1786 = vlaneseq
  %v1787 = vshrl.u32 %v1786, 7
  %v1788 = vsub.s32 2, %v1787
  %v1789 = vrot.slane %v1629, %v1788
  %v1790 = vlaneseq
  %v1791 = vshrl.u32 %v1790, 7
  %v1792 = vsub.s32 2, %v1791
  %v1793 = vrot.slane %v1633, %v1792
  %v1794 = vmul.f32 %v1476, %v1669
  %v1795 = vmul.f32 %v1476, %v1673
  %v1796 = vmul.f32 %v1476, %v1677
  %v1797 = vmul.f32 %v1476, %v1681
  %v1798 = vmul.f32 %v1476, %v1685
  %v1799 = vmul.f32 %v1476, %v1689
  %v1800 = vmul.f32 %v1476, %v1693
  %v1801 = vmul.f32 %v1476, %v1697
  %v1802 = vmul.f32 %v1476, %v1701
  %v1803 = vmul.f32 %v1476, %v1705
  %v1804 = vmul.f32 %v1476, %v1709
  %v1805 = vmul.f32 %v1476, %v1713
  %v1806 = vmul.f32 %v1476, %v1717
  %v1807 = vmul.f32 %v1476, %v1721
  %v1808 = vmul.f32 %v1476, %v1725
  %v1809 = vmul.f32 %v1476, %v1729
  %v1810 = vmul.f32 %v1476, %v1733
  %v1811 = vmul.f32 %v1476, %v1737
  %v1812 = vmul.f32 %v1476, %v1741
  %v1813 = vmul.f32 %v1476, %v1745
  %v1814 = vmul.f32 %v1476, %v1749
  %v1815 = vmul.f32 %v1476, %v1753
  %v1816 = vmul.f32 %v1476, %v1757
  %v1817 = vmul.f32 %v1476, %v1761
  %v1818 = vmul.f32 %v1476, %v1765
  %v1819 = vmul.f32 %v1476, %v1769
  %v1820 = vmul.f32 %v1476, %v1773
  %v1821 = vmul.f32 %v1476, %v1777
  %v1822 = vmul.f32 %v1476, %v1781
  %v1823 = vmul.f32 %v1476, %v1785
  %v1824 = vmul.f32 %v1476, %v1789
  %v1825 = vmul.f32 %v1476, %v1793
  %v1826 = vmul.f32 %v1480, %v1669
  %v1827 = vmul.f32 %v1480, %v1673
  %v1828 = vmul.f32 %v1480, %v1677
  %v1829 = vmul.f32 %v1480, %v1681
  %v1830 = vmul.f32 %v1480, %v1685
  %v1831 = vmul.f32 %v1480, %v1689
  %v1832 = vmul.f32 %v1480, %v1693
  %v1833 = vmul.f32 %v1480, %v1697
  %v1834 = vmul.f32 %v1480, %v1701
  %v1835 = vmul.f32 %v1480, %v1705
  %v1836 = vmul.f32 %v1480, %v1709
  %v1837 = vmul.f32 %v1480, %v1713
  %v1838 = vmul.f32 %v1480, %v1717
  %v1839 = vmul.f32 %v1480, %v1721
  %v1840 = vmul.f32 %v1480, %v1725
  %v1841 = vmul.f32 %v1480, %v1729
  %v1842 = vmul.f32 %v1480, %v1733
  %v1843 = vmul.f32 %v1480, %v1737
  %v1844 = vmul.f32 %v1480, %v1741
  %v1845 = vmul.f32 %v1480, %v1745
  %v1846 = vmul.f32 %v1480, %v1749
  %v1847 = vmul.f32 %v1480, %v1753
  %v1848 = vmul.f32 %v1480, %v1757
  %v1849 = vmul.f32 %v1480, %v1761
  %v1850 = vmul.f32 %v1480, %v1765
  %v1851 = vmul.f32 %v1480, %v1769
  %v1852 = vmul.f32 %v1480, %v1773
  %v1853 = vmul.f32 %v1480, %v1777
  %v1854 = vmul.f32 %v1480, %v1781
  %v1855 = vmul.f32 %v1480, %v1785
  %v1856 = vmul.f32 %v1480, %v1789
  %v1857 = vmul.f32 %v1480, %v1793
  %v1858 = vmul.f32 %v1484, %v1669
  %v1859 = vmul.f32 %v1484, %v1673
  %v1860 = vmul.f32 %v1484, %v1677
  %v1861 = vmul.f32 %v1484, %v1681
  %v1862 = vmul.f32 %v1484, %v1685
  %v1863 = vmul.f32 %v1484, %v1689
  %v1864 = vmul.f32 %v1484, %v1693
  %v1865 = vmul.f32 %v1484, %v1697
  %v1866 = vmul.f32 %v1484, %v1701
  %v1867 = vmul.f32 %v1484, %v1705
  %v1868 = vmul.f32 %v1484, %v1709
  %v1869 = vmul.f32 %v1484, %v1713
  %v1870 = vmul.f32 %v1484, %v1717
  %v1871 = vmul.f32 %v1484, %v1721
  %v1872 = vmul.f32 %v1484, %v1725
  %v1873 = vmul.f32 %v1484, %v1729
  %v1874 = vmul.f32 %v1484, %v1733
  %v1875 = vmul.f32 %v1484, %v1737
  %v1876 = vmul.f32 %v1484, %v1741
  %v1877 = vmul.f32 %v1484, %v1745
  %v1878 = vmul.f32 %v1484, %v1749
  %v1879 = vmul.f32 %v1484, %v1753
  %v1880 = vmul.f32 %v1484, %v1757
  %v1881 = vmul.f32 %v1484, %v1761
  %v1882 = vmul.f32 %v1484, %v1765
  %v1883 = vmul.f32 %v1484, %v1769
  %v1884 = vmul.f32 %v1484, %v1773
  %v1885 = vmul.f32 %v1484, %v1777
  %v1886 = vmul.f32 %v1484, %v1781
  %v1887 = vmul.f32 %v1484, %v1785
  %v1888 = vmul.f32 %v1484, %v1789
  %v1889 = vmul.f32 %v1484, %v1793
  %v1890 = vmul.f32 %v1488, %v1669
  %v1891 = vmul.f32 %v1488, %v1673
  %v1892 = vmul.f32 %v1488, %v1677
  %v1893 = vmul.f32 %v1488, %v1681
  %v1894 = vmul.f32 %v1488, %v1685
  %v1895 = vmul.f32 %v1488, %v1689
  %v1896 = vmul.f32 %v1488, %v1693
  %v1897 = vmul.f32 %v1488, %v1697
  %v1898 = vmul.f32 %v1488, %v1701
  %v1899 = vmul.f32 %v1488, %v1705
  %v1900 = vmul.f32 %v1488, %v1709
  %v1901 = vmul.f32 %v1488, %v1713
  %v1902 = vmul.f32 %v1488, %v1717
  %v1903 = vmul.f32 %v1488, %v1721
  %v1904 = vmul.f32 %v1488, %v1725
  %v1905 = vmul.f32 %v1488, %v1729
  %v1906 = vmul.f32 %v1488, %v1733
  %v1907 = vmul.f32 %v1488, %v1737
  %v1908 = vmul.f32 %v1488, %v1741
  %v1909 = vmul.f32 %v1488, %v1745
  %v1910 = vmul.f32 %v1488, %v1749
  %v1911 = vmul.f32 %v1488, %v1753
  %v1912 = vmul.f32 %v1488, %v1757
  %v1913 = vmul.f32 %v1488, %v1761
  %v1914 = vmul.f32 %v1488, %v1765
  %v1915 = vmul.f32 %v1488, %v1769
  %v1916 = vmul.f32 %v1488, %v1773
  %v1917 = vmul.f32 %v1488, %v1777
  %v1918 = vmul.f32 %v1488, %v1781
  %v1919 = vmul.f32 %v1488, %v1785
  %v1920 = vmul.f32 %v1488, %v1789
  %v1921 = vmul.f32 %v1488, %v1793
  %v1922 = vmul.f32 %v1492, %v1669
  %v1923 = vmul.f32 %v1492, %v1673
  %v1924 = vmul.f32 %v1492, %v1677
  %v1925 = vmul.f32 %v1492, %v1681
  %v1926 = vmul.f32 %v1492, %v1685
  %v1927 = vmul.f32 %v1492, %v1689
  %v1928 = vmul.f32 %v1492, %v1693
  %v1929 = vmul.f32 %v1492, %v1697
  %v1930 = vmul.f32 %v1492, %v1701
  %v1931 = vmul.f32 %v1492, %v1705
  %v1932 = vmul.f32 %v1492, %v1709
  %v1933 = vmul.f32 %v1492, %v1713
  %v1934 = vmul.f32 %v1492, %v1717
  %v1935 = vmul.f32 %v1492, %v1721
  %v1936 = vmul.f32 %v1492, %v1725
  %v1937 = vmul.f32 %v1492, %v1729
  %v1938 = vmul.f32 %v1492, %v1733
  %v1939 = vmul.f32 %v1492, %v1737
  %v1940 = vmul.f32 %v1492, %v1741
  %v1941 = vmul.f32 %v1492, %v1745
  %v1942 = vmul.f32 %v1492, %v1749
  %v1943 = vmul.f32 %v1492, %v1753
  %v1944 = vmul.f32 %v1492, %v1757
  %v1945 = vmul.f32 %v1492, %v1761
  %v1946 = vmul.f32 %v1492, %v1765
  %v1947 = vmul.f32 %v1492, %v1769
  %v1948 = vmul.f32 %v1492, %v1773
  %v1949 = vmul.f32 %v1492, %v1777
  %v1950 = vmul.f32 %v1492, %v1781
  %v1951 = vmul.f32 %v1492, %v1785
  %v1952 = vmul.f32 %v1492, %v1789
  %v1953 = vmul.f32 %v1492, %v1793
  %v1954 = vmul.f32 %v1496, %v1669
  %v1955 = vmul.f32 %v1496, %v1673
  %v1956 = vmul.f32 %v1496, %v1677
  %v1957 = vmul.f32 %v1496, %v1681
  %v1958 = vmul.f32 %v1496, %v1685
  %v1959 = vmul.f32 %v1496, %v1689
  %v1960 = vmul.f32 %v1496, %v1693
  %v1961 = vmul.f32 %v1496, %v1697
  %v1962 = vmul.f32 %v1496, %v1701
  %v1963 = vmul.f32 %v1496, %v1705
  %v1964 = vmul.f32 %v1496, %v1709
  %v1965 = vmul.f32 %v1496, %v1713
  %v1966 = vmul.f32 %v1496, %v1717
  %v1967 = vmul.f32 %v1496, %v1721
  %v1968 = vmul.f32 %v1496, %v1725
  %v1969 = vmul.f32 %v1496, %v1729
  %v1970 = vmul.f32 %v1496, %v1733
  %v1971 = vmul.f32 %v1496, %v1737
  %v1972 = vmul.f32 %v1496, %v1741
  %v1973 = vmul.f32 %v1496, %v1745
  %v1974 = vmul.f32 %v1496, %v1749
  %v1975 = vmul.f32 %v1496, %v1753
  %v1976 = vmul.f32 %v1496, %v1757
  %v1977 = vmul.f32 %v1496, %v1761
  %v1978 = vmul.f32 %v1496, %v1765
  %v1979 = vmul.f32 %v1496, %v1769
  %v1980 = vmul.f32 %v1496, %v1773
  %v1981 = vmul.f32 %v1496, %v1777
  %v1982 = vmul.f32 %v1496, %v1781
  %v1983 = vmul.f32 %v1496, %v1785
  %v1984 = vmul.f32 %v1496, %v1789
  %v1985 = vmul.f32 %v1496, %v1793
  %v1986 = vmul.f32 %v1500, %v1669
  %v1987 = vmul.f32 %v1500, %v1673
  %v1988 = vmul.f32 %v1500, %v1677
  %v1989 = vmul.f32 %v1500, %v1681
  %v1990 = vmul.f32 %v1500, %v1685
  %v1991 = vmul.f32 %v1500, %v1689
  %v1992 = vmul.f32 %v1500, %v1693
  %v1993 = vmul.f32 %v1500, %v1697
  %v1994 = vmul.f32 %v1500, %v1701
  %v1995 = vmul.f32 %v1500, %v1705
  %v1996 = vmul.f32 %v1500, %v1709
  %v1997 = vmul.f32 %v1500, %v1713
  %v1998 = vmul.f32 %v1500, %v1717
  %v1999 = vmul.f32 %v1500, %v1721
  %v2000 = vmul.f32 %v1500, %v1725
  %v2001 = vmul.f32 %v1500, %v1729
  %v2002 = vmul.f32 %v1500, %v1733
  %v2003 = vmul.f32 %v1500, %v1737
  %v2004 = vmul.f32 %v1500, %v1741
  %v2005 = vmul.f32 %v1500, %v1745
  %v2006 = vmul.f32 %v1500, %v1749
  %v2007 = vmul.f32 %v1500, %v1753
  %v2008 = vmul.f32 %v1500, %v1757
  %v2009 = vmul.f32 %v1500, %v1761
  %v2010 = vmul.f32 %v1500, %v1765
  %v2011 = vmul.f32 %v1500, %v1769
  %v2012 = vmul.f32 %v1500, %v1773
  %v2013 = vmul.f32 %v1500, %v1777
  %v2014 = vmul.f32 %v1500, %v1781
  %v2015 = vmul.f32 %v1500, %v1785
  %v2016 = vmul.f32 %v1500, %v1789
  %v2017 = vmul.f32 %v1500, %v1793
  %v2018 = vmul.f32 %v1504, %v1669
  %v2019 = vmul.f32 %v1504, %v1673
  %v2020 = vmul.f32 %v1504, %v1677
  %v2021 = vmul.f32 %v1504, %v1681
  %v2022 = vmul.f32 %v1504, %v1685
  %v2023 = vmul.f32 %v1504, %v1689
  %v2024 = vmul.f32 %v1504, %v1693
  %v2025 = vmul.f32 %v1504, %v1697
  %v2026 = vmul.f32 %v1504, %v1701
  %v2027 = vmul.f32 %v1504, %v1705
  %v2028 = vmul.f32 %v1504, %v1709
  %v2029 = vmul.f32 %v1504, %v1713
  %v2030 = vmul.f32 %v1504, %v1717
  %v2031 = vmul.f32 %v1504, %v1721
  %v2032 = vmul.f32 %v1504, %v1725
  %v2033 = vmul.f32 %v1504, %v1729
  %v2034 = vmul.f32 %v1504, %v1733
  %v2035 = vmul.f32 %v1504, %v1737
  %v2036 = vmul.f32 %v1504, %v1741
  %v2037 = vmul.f32 %v1504, %v1745
  %v2038 = vmul.f32 %v1504, %v1749
  %v2039 = vmul.f32 %v1504, %v1753
  %v2040 = vmul.f32 %v1504, %v1757
  %v2041 = vmul.f32 %v1504, %v1761
  %v2042 = vmul.f32 %v1504, %v1765
  %v2043 = vmul.f32 %v1504, %v1769
  %v2044 = vmul.f32 %v1504, %v1773
  %v2045 = vmul.f32 %v1504, %v1777
  %v2046 = vmul.f32 %v1504, %v1781
  %v2047 = vmul.f32 %v1504, %v1785
  %v2048 = vmul.f32 %v1504, %v1789
  %v2049 = vmul.f32 %v1504, %v1793
  %v2050 = vadd.f32 %v1218, %v1794
  %v2051 = vadd.f32 %v1219, %v1795
  %v2052 = vadd.f32 %v1220, %v1796
  %v2053 = vadd.f32 %v1221, %v1797
  %v2054 = vadd.f32 %v1222, %v1798
  %v2055 = vadd.f32 %v1223, %v1799
  %v2056 = vadd.f32 %v1224, %v1800
  %v2057 = vadd.f32 %v1225, %v1801
  %v2058 = vadd.f32 %v1226, %v1802
  %v2059 = vadd.f32 %v1227, %v1803
  %v2060 = vadd.f32 %v1228, %v1804
  %v2061 = vadd.f32 %v1229, %v1805
  %v2062 = vadd.f32 %v1230, %v1806
  %v2063 = vadd.f32 %v1231, %v1807
  %v2064 = vadd.f32 %v1232, %v1808
  %v2065 = vadd.f32 %v1233, %v1809
  %v2066 = vadd.f32 %v1234, %v1810
  %v2067 = vadd.f32 %v1235, %v1811
  %v2068 = vadd.f32 %v1236, %v1812
  %v2069 = vadd.f32 %v1237, %v1813
  %v2070 = vadd.f32 %v1238, %v1814
  %v2071 = vadd.f32 %v1239, %v1815
  %v2072 = vadd.f32 %v1240, %v1816
  %v2073 = vadd.f32 %v1241, %v1817
  %v2074 = vadd.f32 %v1242, %v1818
  %v2075 = vadd.f32 %v1243, %v1819
  %v2076 = vadd.f32 %v1244, %v1820
  %v2077 = vadd.f32 %v1245, %v1821
  %v2078 = vadd.f32 %v1246, %v1822
  %v2079 = vadd.f32 %v1247, %v1823
  %v2080 = vadd.f32 %v1248, %v1824
  %v2081 = vadd.f32 %v1249, %v1825
  %v2082 = vadd.f32 %v1250, %v1826
  %v2083 = vadd.f32 %v1251, %v1827
  %v2084 = vadd.f32 %v1252, %v1828
  %v2085 = vadd.f32 %v1253, %v1829
  %v2086 = vadd.f32 %v1254, %v1830
  %v2087 = vadd.f32 %v1255, %v1831
  %v2088 = vadd.f32 %v1256, %v1832
  %v2089 = vadd.f32 %v1257, %v1833
  %v2090 = vadd.f32 %v1258, %v1834
  %v2091 = vadd.f32 %v1259, %v1835
  %v2092 = vadd.f32 %v1260, %v1836
  %v2093 = vadd.f32 %v1261, %v1837
  %v2094 = vadd.f32 %v1262, %v1838
  %v2095 = vadd.f32 %v1263, %v1839
  %v2096 = vadd.f32 %v1264, %v1840
  %v2097 = vadd.f32 %v1265, %v1841
  %v2098 = vadd.f32 %v1266, %v1842
  %v2099 = vadd.f32 %v1267, %v1843
  %v2100 = vadd.f32 %v1268, %v1844
  %v2101 = vadd.f32 %v1269, %v1845
  %v2102 = vadd.f32 %v1270, %v1846
  %v2103 = vadd.f32 %v1271, %v1847
  %v2104 = vadd.f32 %v1272, %v1848
  %v2105 = vadd.f32 %v1273, %v1849
  %v2106 = vadd.f32 %v1274, %v1850
  %v2107 = vadd.f32 %v1275, %v1851
  %v2108 = vadd.f32 %v1276, %v1852
  %v2109 = vadd.f32 %v1277, %v1853
  %v2110 = vadd.f32 %v1278, %v1854
  %v2111 = vadd.f32 %v1279, %v1855
  %v2112 = vadd.f32 %v1280, %v1856
  %v2113 = vadd.f32 %v1281, %v1857
  %v2114 = vadd.f32 %v1282, %v1858
  %v2115 = vadd.f32 %v1283, %v1859
  %v2116 = vadd.f32 %v1284, %v1860
  %v2117 = vadd.f32 %v1285, %v1861
  %v2118 = vadd.f32 %v1286, %v1862
  %v2119 = vadd.f32 %v1287, %v1863
  %v2120 = vadd.f32 %v1288, %v1864
  %v2121 = vadd.f32 %v1289, %v1865
  %v2122 = vadd.f32 %v1290, %v1866
  %v2123 = vadd.f32 %v1291, %v1867
  %v2124 = vadd.f32 %v1292, %v1868
  %v2125 = vadd.f32 %v1293, %v1869
  %v2126 = vadd.f32 %v1294, %v1870
  %v2127 = vadd.f32 %v1295, %v1871
  %v2128 = vadd.f32 %v1296, %v1872
  %v2129 = vadd.f32 %v1297, %v1873
  %v2130 = vadd.f32 %v1298, %v1874
  %v2131 = vadd.f32 %v1299, %v1875
  %v2132 = vadd.f32 %v1300, %v1876
  %v2133 = vadd.f32 %v1301, %v1877
  %v2134 = vadd.f32 %v1302, %v1878
  %v2135 = vadd.f32 %v1303, %v1879
  %v2136 = vadd.f32 %v1304, %v1880
  %v2137 = vadd.f32 %v1305, %v1881
  %v2138 = vadd.f32 %v1306, %v1882
  %v2139 = vadd.f32 %v1307, %v1883
  %v2140 = vadd.f32 %v1308, %v1884
  %v2141 = vadd.f32 %v1309, %v1885
  %v2142 = vadd.f32 %v1310, %v1886
  %v2143 = vadd.f32 %v1311, %v1887
  %v2144 = vadd.f32 %v1312, %v1888
  %v2145 = vadd.f32 %v1313, %v1889
  %v2146 = vadd.f32 %v1314, %v1890
  %v2147 = vadd.f32 %v1315, %v1891
  %v2148 = vadd.f32 %v1316, %v1892
  %v2149 = vadd.f32 %v1317, %v1893
  %v2150 = vadd.f32 %v1318, %v1894
  %v2151 = vadd.f32 %v1319, %v1895
  %v2152 = vadd.f32 %v1320, %v1896
  %v2153 = vadd.f32 %v1321, %v1897
  %v2154 = vadd.f32 %v1322, %v1898
  %v2155 = vadd.f32 %v1323, %v1899
  %v2156 = vadd.f32 %v1324, %v1900
  %v2157 = vadd.f32 %v1325, %v1901
  %v2158 = vadd.f32 %v1326, %v1902
  %v2159 = vadd.f32 %v1327, %v1903
  %v2160 = vadd.f32 %v1328, %v1904
  %v2161 = vadd.f32 %v1329, %v1905
  %v2162 = vadd.f32 %v1330, %v1906
  %v2163 = vadd.f32 %v1331, %v1907
  %v2164 = vadd.f32 %v1332, %v1908
  %v2165 = vadd.f32 %v1333, %v1909
  %v2166 = vadd.f32 %v1334, %v1910
  %v2167 = vadd.f32 %v1335, %v1911
  %v2168 = vadd.f32 %v1336, %v1912
  %v2169 = vadd.f32 %v1337, %v1913
  %v2170 = vadd.f32 %v1338, %v1914
  %v2171 = vadd.f32 %v1339, %v1915
  %v2172 = vadd.f32 %v1340, %v1916
  %v2173 = vadd.f32 %v1341, %v1917
  %v2174 = vadd.f32 %v1342, %v1918
  %v2175 = vadd.f32 %v1343, %v1919
  %v2176 = vadd.f32 %v1344, %v1920
  %v2177 = vadd.f32 %v1345, %v1921
  %v2178 = vadd.f32 %v1346, %v1922
  %v2179 = vadd.f32 %v1347, %v1923
  %v2180 = vadd.f32 %v1348, %v1924
  %v2181 = vadd.f32 %v1349, %v1925
  %v2182 = vadd.f32 %v1350, %v1926
  %v2183 = vadd.f32 %v1351, %v1927
  %v2184 = vadd.f32 %v1352, %v1928
  %v2185 = vadd.f32 %v1353, %v1929
  %v2186 = vadd.f32 %v1354, %v1930
  %v2187 = vadd.f32 %v1355, %v1931
  %v2188 = vadd.f32 %v1356, %v1932
  %v2189 = vadd.f32 %v1357, %v1933
  %v2190 = vadd.f32 %v1358, %v1934
  %v2191 = vadd.f32 %v1359, %v1935
  %v2192 = vadd.f32 %v1360, %v1936
  %v2193 = vadd.f32 %v1361, %v1937
  %v2194 = vadd.f32 %v1362, %v1938
  %v2195 = vadd.f32 %v1363, %v1939
  %v2196 = vadd.f32 %v1364, %v1940
  %v2197 = vadd.f32 %v1365, %v1941
  %v2198 = vadd.f32 %v1366, %v1942
  %v2199 = vadd.f32 %v1367, %v1943
  %v2200 = vadd.f32 %v1368, %v1944
  %v2201 = vadd.f32 %v1369, %v1945
  %v2202 = vadd.f32 %v1370, %v1946
  %v2203 = vadd.f32 %v1371, %v1947
  %v2204 = vadd.f32 %v1372, %v1948
  %v2205 = vadd.f32 %v1373, %v1949
  %v2206 = vadd.f32 %v1374, %v1950
  %v2207 = vadd.f32 %v1375, %v1951
  %v2208 = vadd.f32 %v1376, %v1952
  %v2209 = vadd.f32 %v1377, %v1953
  %v2210 = vadd.f32 %v1378, %v1954
  %v2211 = vadd.f32 %v1379, %v1955
  %v2212 = vadd.f32 %v1380, %v1956
  %v2213 = vadd.f32 %v1381, %v1957
  %v2214 = vadd.f32 %v1382, %v1958
  %v2215 = vadd.f32 %v1383, %v1959
  %v2216 = vadd.f32 %v1384, %v1960
  %v2217 = vadd.f32 %v1385, %v1961
  %v2218 = vadd.f32 %v1386, %v1962
  %v2219 = vadd.f32 %v1387, %v1963
  %v2220 = vadd.f32 %v1388, %v1964
  %v2221 = vadd.f32 %v1389, %v1965
  %v2222 = vadd.f32 %v1390, %v1966
  %v2223 = vadd.f32 %v1391, %v1967
  %v2224 = vadd.f32 %v1392, %v1968
  %v2225 = vadd.f32 %v1393, %v1969
  %v2226 = vadd.f32 %v1394, %v1970
  %v2227 = vadd.f32 %v1395, %v1971
  %v2228 = vadd.f32 %v1396, %v1972
  %v2229 = vadd.f32 %v1397, %v1973
  %v2230 = vadd.f32 %v1398, %v1974
  %v2231 = vadd.f32 %v1399, %v1975
  %v2232 = vadd.f32 %v1400, %v1976
  %v2233 = vadd.f32 %v1401, %v1977
  %v2234 = vadd.f32 %v1402, %v1978
  %v2235 = vadd.f32 %v1403, %v1979
  %v2236 = vadd.f32 %v1404, %v1980
  %v2237 = vadd.f32 %v1405, %v1981
  %v2238 = vadd.f32 %v1406, %v1982
  %v2239 = vadd.f32 %v1407, %v1983
  %v2240 = vadd.f32 %v1408, %v1984
  %v2241 = vadd.f32 %v1409, %v1985
  %v2242 = vadd.f32 %v1410, %v1986
  %v2243 = vadd.f32 %v1411, %v1987
  %v2244 = vadd.f32 %v1412, %v1988
  %v2245 = vadd.f32 %v1413, %v1989
  %v2246 = vadd.f32 %v1414, %v1990
  %v2247 = vadd.f32 %v1415, %v1991
  %v2248 = vadd.f32 %v1416, %v1992
  %v2249 = vadd.f32 %v1417, %v1993
  %v2250 = vadd.f32 %v1418, %v1994
  %v2251 = vadd.f32 %v1419, %v1995
  %v2252 = vadd.f32 %v1420, %v1996
  %v2253 = vadd.f32 %v1421, %v1997
  %v2254 = vadd.f32 %v1422, %v1998
  %v2255 = vadd.f32 %v1423, %v1999
  %v2256 = vadd.f32 %v1424, %v2000
  %v2257 = vadd.f32 %v1425, %v2001
  %v2258 = vadd.f32 %v1426, %v2002
  %v2259 = vadd.f32 %v1427, %v2003
  %v2260 = vadd.f32 %v1428, %v2004
  %v2261 = vadd.f32 %v1429, %v2005
  %v2262 = vadd.f32 %v1430, %v2006
  %v2263 = vadd.f32 %v1431, %v2007
  %v2264 = vadd.f32 %v1432, %v2008
  %v2265 = vadd.f32 %v1433, %v2009
  %v2266 = vadd.f32 %v1434, %v2010
  %v2267 = vadd.f32 %v1435, %v2011
  %v2268 = vadd.f32 %v1436, %v2012
  %v2269 = vadd.f32 %v1437, %v2013
  %v2270 = vadd.f32 %v1438, %v2014
  %v2271 = vadd.f32 %v1439, %v2015
  %v2272 = vadd.f32 %v1440, %v2016
  %v2273 = vadd.f32 %v1441, %v2017
  %v2274 = vadd.f32 %v1442, %v2018
  %v2275 = vadd.f32 %v1443, %v2019
  %v2276 = vadd.f32 %v1444, %v2020
  %v2277 = vadd.f32 %v1445, %v2021
  %v2278 = vadd.f32 %v1446, %v2022
  %v2279 = vadd.f32 %v1447, %v2023
  %v2280 = vadd.f32 %v1448, %v2024
  %v2281 = vadd.f32 %v1449, %v2025
  %v2282 = vadd.f32 %v1450, %v2026
  %v2283 = vadd.f32 %v1451, %v2027
  %v2284 = vadd.f32 %v1452, %v2028
  %v2285 = vadd.f32 %v1453, %v2029
  %v2286 = vadd.f32 %v1454, %v2030
  %v2287 = vadd.f32 %v1455, %v2031
  %v2288 = vadd.f32 %v1456, %v2032
  %v2289 = vadd.f32 %v1457, %v2033
  %v2290 = vadd.f32 %v1458, %v2034
  %v2291 = vadd.f32 %v1459, %v2035
  %v2292 = vadd.f32 %v1460, %v2036
  %v2293 = vadd.f32 %v1461, %v2037
  %v2294 = vadd.f32 %v1462, %v2038
  %v2295 = vadd.f32 %v1463, %v2039
  %v2296 = vadd.f32 %v1464, %v2040
  %v2297 = vadd.f32 %v1465, %v2041
  %v2298 = vadd.f32 %v1466, %v2042
  %v2299 = vadd.f32 %v1467, %v2043
  %v2300 = vadd.f32 %v1468, %v2044
  %v2301 = vadd.f32 %v1469, %v2045
  %v2302 = vadd.f32 %v1470, %v2046
  %v2303 = vadd.f32 %v1471, %v2047
  %v2304 = vadd.f32 %v1472, %v2048
  %v2305 = vadd.f32 %v1473, %v2049
  %v2306 = vmax.f32 %v2050, 0.0
  %v2307 = vmax.f32 %v2051, 0.0
  %v2308 = vmax.f32 %v2052, 0.0
  %v2309 = vmax.f32 %v2053, 0.0
  %v2310 = vmax.f32 %v2054, 0.0
  %v2311 = vmax.f32 %v2055, 0.0
  %v2312 = vmax.f32 %v2056, 0.0
  %v2313 = vmax.f32 %v2057, 0.0
  %v2314 = vmax.f32 %v2058, 0.0
  %v2315 = vmax.f32 %v2059, 0.0
  %v2316 = vmax.f32 %v2060, 0.0
  %v2317 = vmax.f32 %v2061, 0.0
  %v2318 = vmax.f32 %v2062, 0.0
  %v2319 = vmax.f32 %v2063, 0.0
  %v2320 = vmax.f32 %v2064, 0.0
  %v2321 = vmax.f32 %v2065, 0.0
  %v2322 = vmax.f32 %v2066, 0.0
  %v2323 = vmax.f32 %v2067, 0.0
  %v2324 = vmax.f32 %v2068, 0.0
  %v2325 = vmax.f32 %v2069, 0.0
  %v2326 = vmax.f32 %v2070, 0.0
  %v2327 = vmax.f32 %v2071, 0.0
  %v2328 = vmax.f32 %v2072, 0.0
  %v2329 = vmax.f32 %v2073, 0.0
  %v2330 = vmax.f32 %v2074, 0.0
  %v2331 = vmax.f32 %v2075, 0.0
  %v2332 = vmax.f32 %v2076, 0.0
  %v2333 = vmax.f32 %v2077, 0.0
  %v2334 = vmax.f32 %v2078, 0.0
  %v2335 = vmax.f32 %v2079, 0.0
  %v2336 = vmax.f32 %v2080, 0.0
  %v2337 = vmax.f32 %v2081, 0.0
  %v2338 = vmax.f32 %v2082, 0.0
  %v2339 = vmax.f32 %v2083, 0.0
  %v2340 = vmax.f32 %v2084, 0.0
  %v2341 = vmax.f32 %v2085, 0.0
  %v2342 = vmax.f32 %v2086, 0.0
  %v2343 = vmax.f32 %v2087, 0.0
  %v2344 = vmax.f32 %v2088, 0.0
  %v2345 = vmax.f32 %v2089, 0.0
  %v2346 = vmax.f32 %v2090, 0.0
  %v2347 = vmax.f32 %v2091, 0.0
  %v2348 = vmax.f32 %v2092, 0.0
  %v2349 = vmax.f32 %v2093, 0.0
  %v2350 = vmax.f32 %v2094, 0.0
  %v2351 = vmax.f32 %v2095, 0.0
  %v2352 = vmax.f32 %v2096, 0.0
  %v2353 = vmax.f32 %v2097, 0.0
  %v2354 = vmax.f32 %v2098, 0.0
  %v2355 = vmax.f32 %v2099, 0.0
  %v2356 = vmax.f32 %v2100, 0.0
  %v2357 = vmax.f32 %v2101, 0.0
  %v2358 = vmax.f32 %v2102, 0.0
  %v2359 = vmax.f32 %v2103, 0.0
  %v2360 = vmax.f32 %v2104, 0.0
  %v2361 = vmax.f32 %v2105, 0.0
  %v2362 = vmax.f32 %v2106, 0.0
  %v2363 = vmax.f32 %v2107, 0.0
  %v2364 = vmax.f32 %v2108, 0.0
  %v2365 = vmax.f32 %v2109, 0.0
  %v2366 = vmax.f32 %v2110, 0.0
  %v2367 = vmax.f32 %v2111, 0.0
  %v2368 = vmax.f32 %v2112, 0.0
  %v2369 = vmax.f32 %v2113, 0.0
  %v2370 = vmax.f32 %v2114, 0.0
  %v2371 = vmax.f32 %v2115, 0.0
  %v2372 = vmax.f32 %v2116, 0.0
  %v2373 = vmax.f32 %v2117, 0.0
  %v2374 = vmax.f32 %v2118, 0.0
  %v2375 = vmax.f32 %v2119, 0.0
  %v2376 = vmax.f32 %v2120, 0.0
  %v2377 = vmax.f32 %v2121, 0.0
  %v2378 = vmax.f32 %v2122, 0.0
  %v2379 = vmax.f32 %v2123, 0.0
  %v2380 = vmax.f32 %v2124, 0.0
  %v2381 = vmax.f32 %v2125, 0.0
  %v2382 = vmax.f32 %v2126, 0.0
  %v2383 = vmax.f32 %v2127, 0.0
  %v2384 = vmax.f32 %v2128, 0.0
  %v2385 = vmax.f32 %v2129, 0.0
  %v2386 = vmax.f32 %v2130, 0.0
  %v2387 = vmax.f32 %v2131, 0.0
  %v2388 = vmax.f32 %v2132, 0.0
  %v2389 = vmax.f32 %v2133, 0.0
  %v2390 = vmax.f32 %v2134, 0.0
  %v2391 = vmax.f32 %v2135, 0.0
  %v2392 = vmax.f32 %v2136, 0.0
  %v2393 = vmax.f32 %v2137, 0.0
  %v2394 = vmax.f32 %v2138, 0.0
  %v2395 = vmax.f32 %v2139, 0.0
  %v2396 = vmax.f32 %v2140, 0.0
  %v2397 = vmax.f32 %v2141, 0.0
  %v2398 = vmax.f32 %v2142, 0.0
  %v2399 = vmax.f32 %v2143, 0.0
  %v2400 = vmax.f32 %v2144, 0.0
  %v2401 = vmax.f32 %v2145, 0.0
  %v2402 = vmax.f32 %v2146, 0.0
  %v2403 = vmax.f32 %v2147, 0.0
  %v2404 = vmax.f32 %v2148, 0.0
  %v2405 = vmax.f32 %v2149, 0.0
  %v2406 = vmax.f32 %v2150, 0.0
  %v2407 = vmax.f32 %v2151, 0.0
  %v2408 = vmax.f32 %v2152, 0.0
  %v2409 = vmax.f32 %v2153, 0.0
  %v2410 = vmax.f32 %v2154, 0.0
  %v2411 = vmax.f32 %v2155, 0.0
  %v2412 = vmax.f32 %v2156, 0.0
  %v2413 = vmax.f32 %v2157, 0.0
  %v2414 = vmax.f32 %v2158, 0.0
  %v2415 = vmax.f32 %v2159, 0.0
  %v2416 = vmax.f32 %v2160, 0.0
  %v2417 = vmax.f32 %v2161, 0.0
  %v2418 = vmax.f32 %v2162, 0.0
  %v2419 = vmax.f32 %v2163, 0.0
  %v2420 = vmax.f32 %v2164, 0.0
  %v2421 = vmax.f32 %v2165, 0.0
  %v2422 = vmax.f32 %v2166, 0.0
  %v2423 = vmax.f32 %v2167, 0.0
  %v2424 = vmax.f32 %v2168, 0.0
  %v2425 = vmax.f32 %v2169, 0.0
  %v2426 = vmax.f32 %v2170, 0.0
  %v2427 = vmax.f32 %v2171, 0.0
  %v2428 = vmax.f32 %v2172, 0.0
  %v2429 = vmax.f32 %v2173, 0.0
  %v2430 = vmax.f32 %v2174, 0.0
  %v2431 = vmax.f32 %v2175, 0.0
  %v2432 = vmax.f32 %v2176, 0.0
  %v2433 = vmax.f32 %v2177, 0.0
  %v2434 = vmax.f32 %v2178, 0.0
  %v2435 = vmax.f32 %v2179, 0.0
  %v2436 = vmax.f32 %v2180, 0.0
  %v2437 = vmax.f32 %v2181, 0.0
  %v2438 = vmax.f32 %v2182, 0.0
  %v2439 = vmax.f32 %v2183, 0.0
  %v2440 = vmax.f32 %v2184, 0.0
  %v2441 = vmax.f32 %v2185, 0.0
  %v2442 = vmax.f32 %v2186, 0.0
  %v2443 = vmax.f32 %v2187, 0.0
  %v2444 = vmax.f32 %v2188, 0.0
  %v2445 = vmax.f32 %v2189, 0.0
  %v2446 = vmax.f32 %v2190, 0.0
  %v2447 = vmax.f32 %v2191, 0.0
  %v2448 = vmax.f32 %v2192, 0.0
  %v2449 = vmax.f32 %v2193, 0.0
  %v2450 = vmax.f32 %v2194, 0.0
  %v2451 = vmax.f32 %v2195, 0.0
  %v2452 = vmax.f32 %v2196, 0.0
  %v2453 = vmax.f32 %v2197, 0.0
  %v2454 = vmax.f32 %v2198, 0.0
  %v2455 = vmax.f32 %v2199, 0.0
  %v2456 = vmax.f32 %v2200, 0.0
  %v2457 = vmax.f32 %v2201, 0.0
  %v2458 = vmax.f32 %v2202, 0.0
  %v2459 = vmax.f32 %v2203, 0.0
  %v2460 = vmax.f32 %v2204, 0.0
  %v2461 = vmax.f32 %v2205, 0.0
  %v2462 = vmax.f32 %v2206, 0.0
  %v2463 = vmax.f32 %v2207, 0.0
  %v2464 = vmax.f32 %v2208, 0.0
  %v2465 = vmax.f32 %v2209, 0.0
  %v2466 = vmax.f32 %v2210, 0.0
  %v2467 = vmax.f32 %v2211, 0.0
  %v2468 = vmax.f32 %v2212, 0.0
  %v2469 = vmax.f32 %v2213, 0.0
  %v2470 = vmax.f32 %v2214, 0.0
  %v2471 = vmax.f32 %v2215, 0.0
  %v2472 = vmax.f32 %v2216, 0.0
  %v2473 = vmax.f32 %v2217, 0.0
  %v2474 = vmax.f32 %v2218, 0.0
  %v2475 = vmax.f32 %v2219, 0.0
  %v2476 = vmax.f32 %v2220, 0.0
  %v2477 = vmax.f32 %v2221, 0.0
  %v2478 = vmax.f32 %v2222, 0.0
  %v2479 = vmax.f32 %v2223, 0.0
  %v2480 = vmax.f32 %v2224, 0.0
  %v2481 = vmax.f32 %v2225, 0.0
  %v2482 = vmax.f32 %v2226, 0.0
  %v2483 = vmax.f32 %v2227, 0.0
  %v2484 = vmax.f32 %v2228, 0.0
  %v2485 = vmax.f32 %v2229, 0.0
  %v2486 = vmax.f32 %v2230, 0.0
  %v2487 = vmax.f32 %v2231, 0.0
  %v2488 = vmax.f32 %v2232, 0.0
  %v2489 = vmax.f32 %v2233, 0.0
  %v2490 = vmax.f32 %v2234, 0.0
  %v2491 = vmax.f32 %v2235, 0.0
  %v2492 = vmax.f32 %v2236, 0.0
  %v2493 = vmax.f32 %v2237, 0.0
  %v2494 = vmax.f32 %v2238, 0.0
  %v2495 = vmax.f32 %v2239, 0.0
  %v2496 = vmax.f32 %v2240, 0.0
  %v2497 = vmax.f32 %v2241, 0.0
  %v2498 = vmax.f32 %v2242, 0.0
  %v2499 = vmax.f32 %v2243, 0.0
  %v2500 = vmax.f32 %v2244, 0.0
  %v2501 = vmax.f32 %v2245, 0.0
  %v2502 = vmax.f32 %v2246, 0.0
  %v2503 = vmax.f32 %v2247, 0.0
  %v2504 = vmax.f32 %v2248, 0.0
  %v2505 = vmax.f32 %v2249, 0.0
  %v2506 = vmax.f32 %v2250, 0.0
  %v2507 = vmax.f32 %v2251, 0.0
  %v2508 = vmax.f32 %v2252, 0.0
  %v2509 = vmax.f32 %v2253, 0.0
  %v2510 = vmax.f32 %v2254, 0.0
  %v2511 = vmax.f32 %v2255, 0.0
  %v2512 = vmax.f32 %v2256, 0.0
  %v2513 = vmax.f32 %v2257, 0.0
  %v2514 = vmax.f32 %v2258, 0.0
  %v2515 = vmax.f32 %v2259, 0.0
  %v2516 = vmax.f32 %v2260, 0.0
  %v2517 = vmax.f32 %v2261, 0.0
  %v2518 = vmax.f32 %v2262, 0.0
  %v2519 = vmax.f32 %v2263, 0.0
  %v2520 = vmax.f32 %v2264, 0.0
  %v2521 = vmax.f32 %v2265, 0.0
  %v2522 = vmax.f32 %v2266, 0.0
  %v2523 = vmax.f32 %v2267, 0.0
  %v2524 = vmax.f32 %v2268, 0.0
  %v2525 = vmax.f32 %v2269, 0.0
  %v2526 = vmax.f32 %v2270, 0.0
  %v2527 = vmax.f32 %v2271, 0.0
  %v2528 = vmax.f32 %v2272, 0.0
  %v2529 = vmax.f32 %v2273, 0.0
  %v2530 = vmax.f32 %v2274, 0.0
  %v2531 = vmax.f32 %v2275, 0.0
  %v2532 = vmax.f32 %v2276, 0.0
  %v2533 = vmax.f32 %v2277, 0.0
  %v2534 = vmax.f32 %v2278, 0.0
  %v2535 = vmax.f32 %v2279, 0.0
  %v2536 = vmax.f32 %v2280, 0.0
  %v2537 = vmax.f32 %v2281, 0.0
  %v2538 = vmax.f32 %v2282, 0.0
  %v2539 = vmax.f32 %v2283, 0.0
  %v2540 = vmax.f32 %v2284, 0.0
  %v2541 = vmax.f32 %v2285, 0.0
  %v2542 = vmax.f32 %v2286, 0.0
  %v2543 = vmax.f32 %v2287, 0.0
  %v2544 = vmax.f32 %v2288, 0.0
  %v2545 = vmax.f32 %v2289, 0.0
  %v2546 = vmax.f32 %v2290, 0.0
  %v2547 = vmax.f32 %v2291, 0.0
  %v2548 = vmax.f32 %v2292, 0.0
  %v2549 = vmax.f32 %v2293, 0.0
  %v2550 = vmax.f32 %v2294, 0.0
  %v2551 = vmax.f32 %v2295, 0.0
  %v2552 = vmax.f32 %v2296, 0.0
  %v2553 = vmax.f32 %v2297, 0.0
  %v2554 = vmax.f32 %v2298, 0.0
  %v2555 = vmax.f32 %v2299, 0.0
  %v2556 = vmax.f32 %v2300, 0.0
  %v2557 = vmax.f32 %v2301, 0.0
  %v2558 = vmax.f32 %v2302, 0.0
  %v2559 = vmax.f32 %v2303, 0.0
  %v2560 = vmax.f32 %v2304, 0.0
  %v2561 = vmax.f32 %v2305, 0.0
  %v2562 = vld [vmem:[%s2] sm:$0xf]
  %v2563 = vld [vmem:[%s2 + $0x4] sm:$0xf]
  %v2564 = vld [vmem:[%s2 + $0x8] sm:$0xf]
  %v2565 = vld [vmem:[%s2 + $0xc] sm:$0xf]
  %v2566 = vld [vmem:[%s2 + $0x10] sm:$0xf]
  %v2567 = vld [vmem:[%s2 + $0x14] sm:$0xf]
  %v2568 = vld [vmem:[%s2 + $0x18] sm:$0xf]
  %v2569 = vld [vmem:[%s2 + $0x1c] sm:$0xf]
  %v2570 = vpack.c.bf16 %v2338, %v2306
  %v2571 = vpack.c.bf16 %v2339, %v2307
  %v2572 = vpack.c.bf16 %v2340, %v2308
  %v2573 = vpack.c.bf16 %v2341, %v2309
  %v2574 = vpack.c.bf16 %v2342, %v2310
  %v2575 = vpack.c.bf16 %v2343, %v2311
  %v2576 = vpack.c.bf16 %v2344, %v2312
  %v2577 = vpack.c.bf16 %v2345, %v2313
  %v2578 = vpack.c.bf16 %v2346, %v2314
  %v2579 = vpack.c.bf16 %v2347, %v2315
  %v2580 = vpack.c.bf16 %v2348, %v2316
  %v2581 = vpack.c.bf16 %v2349, %v2317
  %v2582 = vpack.c.bf16 %v2350, %v2318
  %v2583 = vpack.c.bf16 %v2351, %v2319
  %v2584 = vpack.c.bf16 %v2352, %v2320
  %v2585 = vpack.c.bf16 %v2353, %v2321
  %v2586 = vpack.c.bf16 %v2354, %v2322
  %v2587 = vpack.c.bf16 %v2355, %v2323
  %v2588 = vpack.c.bf16 %v2356, %v2324
  %v2589 = vpack.c.bf16 %v2357, %v2325
  %v2590 = vpack.c.bf16 %v2358, %v2326
  %v2591 = vpack.c.bf16 %v2359, %v2327
  %v2592 = vpack.c.bf16 %v2360, %v2328
  %v2593 = vpack.c.bf16 %v2361, %v2329
  %v2594 = vpack.c.bf16 %v2362, %v2330
  %v2595 = vpack.c.bf16 %v2363, %v2331
  %v2596 = vpack.c.bf16 %v2364, %v2332
  %v2597 = vpack.c.bf16 %v2365, %v2333
  %v2598 = vpack.c.bf16 %v2366, %v2334
  %v2599 = vpack.c.bf16 %v2367, %v2335
  %v2600 = vpack.c.bf16 %v2368, %v2336
  %v2601 = vpack.c.bf16 %v2369, %v2337
  %v2602 = vpack.c.bf16 %v2402, %v2370
  %v2603 = vpack.c.bf16 %v2403, %v2371
  %v2604 = vpack.c.bf16 %v2404, %v2372
  %v2605 = vpack.c.bf16 %v2405, %v2373
  %v2606 = vpack.c.bf16 %v2406, %v2374
  %v2607 = vpack.c.bf16 %v2407, %v2375
  %v2608 = vpack.c.bf16 %v2408, %v2376
  %v2609 = vpack.c.bf16 %v2409, %v2377
  %v2610 = vpack.c.bf16 %v2410, %v2378
  %v2611 = vpack.c.bf16 %v2411, %v2379
  %v2612 = vpack.c.bf16 %v2412, %v2380
  %v2613 = vpack.c.bf16 %v2413, %v2381
  %v2614 = vpack.c.bf16 %v2414, %v2382
  %v2615 = vpack.c.bf16 %v2415, %v2383
  %v2616 = vpack.c.bf16 %v2416, %v2384
  %v2617 = vpack.c.bf16 %v2417, %v2385
  %v2618 = vpack.c.bf16 %v2418, %v2386
  %v2619 = vpack.c.bf16 %v2419, %v2387
  %v2620 = vpack.c.bf16 %v2420, %v2388
  %v2621 = vpack.c.bf16 %v2421, %v2389
  %v2622 = vpack.c.bf16 %v2422, %v2390
  %v2623 = vpack.c.bf16 %v2423, %v2391
  %v2624 = vpack.c.bf16 %v2424, %v2392
  %v2625 = vpack.c.bf16 %v2425, %v2393
  %v2626 = vpack.c.bf16 %v2426, %v2394
  %v2627 = vpack.c.bf16 %v2427, %v2395
  %v2628 = vpack.c.bf16 %v2428, %v2396
  %v2629 = vpack.c.bf16 %v2429, %v2397
  %v2630 = vpack.c.bf16 %v2430, %v2398
  %v2631 = vpack.c.bf16 %v2431, %v2399
  %v2632 = vpack.c.bf16 %v2432, %v2400
  %v2633 = vpack.c.bf16 %v2433, %v2401
  %v2634 = vpack.c.bf16 %v2466, %v2434
  %v2635 = vpack.c.bf16 %v2467, %v2435
  %v2636 = vpack.c.bf16 %v2468, %v2436
  %v2637 = vpack.c.bf16 %v2469, %v2437
  %v2638 = vpack.c.bf16 %v2470, %v2438
  %v2639 = vpack.c.bf16 %v2471, %v2439
  %v2640 = vpack.c.bf16 %v2472, %v2440
  %v2641 = vpack.c.bf16 %v2473, %v2441
  %v2642 = vpack.c.bf16 %v2474, %v2442
  %v2643 = vpack.c.bf16 %v2475, %v2443
  %v2644 = vpack.c.bf16 %v2476, %v2444
  %v2645 = vpack.c.bf16 %v2477, %v2445
  %v2646 = vpack.c.bf16 %v2478, %v2446
  %v2647 = vpack.c.bf16 %v2479, %v2447
  %v2648 = vpack.c.bf16 %v2480, %v2448
  %v2649 = vpack.c.bf16 %v2481, %v2449
  %v2650 = vpack.c.bf16 %v2482, %v2450
  %v2651 = vpack.c.bf16 %v2483, %v2451
  %v2652 = vpack.c.bf16 %v2484, %v2452
  %v2653 = vpack.c.bf16 %v2485, %v2453
  %v2654 = vpack.c.bf16 %v2486, %v2454
  %v2655 = vpack.c.bf16 %v2487, %v2455
  %v2656 = vpack.c.bf16 %v2488, %v2456
  %v2657 = vpack.c.bf16 %v2489, %v2457
  %v2658 = vpack.c.bf16 %v2490, %v2458
  %v2659 = vpack.c.bf16 %v2491, %v2459
  %v2660 = vpack.c.bf16 %v2492, %v2460
  %v2661 = vpack.c.bf16 %v2493, %v2461
  %v2662 = vpack.c.bf16 %v2494, %v2462
  %v2663 = vpack.c.bf16 %v2495, %v2463
  %v2664 = vpack.c.bf16 %v2496, %v2464
  %v2665 = vpack.c.bf16 %v2497, %v2465
  %v2666 = vpack.c.bf16 %v2530, %v2498
  %v2667 = vpack.c.bf16 %v2531, %v2499
  %v2668 = vpack.c.bf16 %v2532, %v2500
  %v2669 = vpack.c.bf16 %v2533, %v2501
  %v2670 = vpack.c.bf16 %v2534, %v2502
  %v2671 = vpack.c.bf16 %v2535, %v2503
  %v2672 = vpack.c.bf16 %v2536, %v2504
  %v2673 = vpack.c.bf16 %v2537, %v2505
  %v2674 = vpack.c.bf16 %v2538, %v2506
  %v2675 = vpack.c.bf16 %v2539, %v2507
  %v2676 = vpack.c.bf16 %v2540, %v2508
  %v2677 = vpack.c.bf16 %v2541, %v2509
  %v2678 = vpack.c.bf16 %v2542, %v2510
  %v2679 = vpack.c.bf16 %v2543, %v2511
  %v2680 = vpack.c.bf16 %v2544, %v2512
  %v2681 = vpack.c.bf16 %v2545, %v2513
  %v2682 = vpack.c.bf16 %v2546, %v2514
  %v2683 = vpack.c.bf16 %v2547, %v2515
  %v2684 = vpack.c.bf16 %v2548, %v2516
  %v2685 = vpack.c.bf16 %v2549, %v2517
  %v2686 = vpack.c.bf16 %v2550, %v2518
  %v2687 = vpack.c.bf16 %v2551, %v2519
  %v2688 = vpack.c.bf16 %v2552, %v2520
  %v2689 = vpack.c.bf16 %v2553, %v2521
  %v2690 = vpack.c.bf16 %v2554, %v2522
  %v2691 = vpack.c.bf16 %v2555, %v2523
  %v2692 = vpack.c.bf16 %v2556, %v2524
  %v2693 = vpack.c.bf16 %v2557, %v2525
  %v2694 = vpack.c.bf16 %v2558, %v2526
  %v2695 = vpack.c.bf16 %v2559, %v2527
  %v2696 = vpack.c.bf16 %v2560, %v2528
  %v2697 = vpack.c.bf16 %v2561, %v2529
  %v2706 = vunpack.c.l.b16 %v2562
  %v2707 = vunpack.c.l.b16 %v2563
  %v2708 = vunpack.c.l.b16 %v2564
  %v2709 = vunpack.c.l.b16 %v2565
  %v2710 = vunpack.c.l.b16 %v2566
  %v2711 = vunpack.c.l.b16 %v2567
  %v2712 = vunpack.c.l.b16 %v2568
  %v2713 = vunpack.c.l.b16 %v2569
  %v2714 = vpack.c.b16 %v2707, %v2706
  %v2715 = vpack.c.b16 %v2709, %v2708
  %v2716 = vpack.c.b16 %v2711, %v2710
  %v2717 = vpack.c.b16 %v2713, %v2712
  %vm2718 = vcmask 523264
  %v2720 = vsel %vm2718, %v2714, 0
  %v2723 = vsel %vm2718, %v2715, 0
  %v2726 = vsel %vm2718, %v2716, 0
  %v2729 = vsel %vm2718, %v2717, 0
  %2731 = vmatprep.subr.bf16.mxu0 %v2571
  %2732 = vmatpush1.bf16.msra.mxu0 %v2570
  %2733 = vmatprep.subr.bf16.mxu0 %v2603
  %2734 = vmatpush1.bf16.msra.mxu0 %v2602
  %2735 = vmatprep.subr.bf16.mxu0 %v2635
  %2736 = vmatpush1.bf16.msra.mxu0 %v2634
  %2737 = vmatprep.subr.bf16.mxu0 %v2667
  %2738 = vmatpush1.bf16.msra.mxu0 %v2666
  %2739 = vmatprep.subr.bf16.mxu0 0
  %2740 = vmatpush1.bf16.msra.mxu0 0
  %2741 = vmatprep.subr.bf16.mxu0 0
  %2742 = vmatpush1.bf16.msra.mxu0 0
  %2743 = vmatprep.subr.bf16.mxu0 0
  %2744 = vmatpush1.bf16.msra.mxu0 0
  %2745 = vmatprep.subr.bf16.mxu0 0
  %2746 = vmatpush1.bf16.msra.mxu0 0
  %2747 = vmatprep.subr.bf16.mxu0 0
  %2748 = vmatpush1.bf16.msra.mxu0 0
  %2749 = vmatprep.subr.bf16.mxu0 0
  %2750 = vmatpush1.bf16.msra.mxu0 0
  %2751 = vmatprep.subr.bf16.mxu0 0
  %2752 = vmatpush1.bf16.msra.mxu0 0
  %2753 = vmatprep.subr.bf16.mxu0 0
  %2754 = vmatpush1.bf16.msra.mxu0 0
  %2755 = vmatprep.subr.bf16.mxu0 0
  %2756 = vmatpush1.bf16.msra.mxu0 0
  %2757 = vmatprep.subr.bf16.mxu0 0
  %2758 = vmatpush1.bf16.msra.mxu0 0
  %2759 = vmatprep.subr.bf16.mxu0 0
  %2760 = vmatpush1.bf16.msra.mxu0 0
  %2761 = vmatprep.subr.bf16.mxu0 0
  %2762 = vmatpush1.bf16.msra.mxu0 0
  %2763 = vmatprep.mubr.bf16.mxu0 0
  %2764 = vmatmul.mubr.bf16.gmra.mrb[0].mxu0 %v2720
  %v2765 = vpop.f32.mrb[0].mxu0
  %v2766 = vadd.f32 0.0, %v2765
  %v2767 = vpop.f32.mrb[0].mxu0
  %v2768 = vadd.f32 0.0, %v2767
  %v2769 = vpop.f32.mrb[0].mxu0
  %v2770 = vadd.f32 0.0, %v2769
  %v2771 = vpop.f32.mrb[0].mxu0
  %v2772 = vadd.f32 0.0, %v2771
  %2773 = vmatprep.mubr.bf16.mxu0 0
  %2774 = vmatmul.mubr.bf16.gmra.mrb[0].mxu0 %v2723
  %v2775 = vpop.f32.mrb[0].mxu0
  %v2776 = vadd.f32 0.0, %v2775
  %v2777 = vpop.f32.mrb[0].mxu0
  %v2778 = vadd.f32 0.0, %v2777
  %v2779 = vpop.f32.mrb[0].mxu0
  %v2780 = vadd.f32 0.0, %v2779
  %v2781 = vpop.f32.mrb[0].mxu0
  %v2782 = vadd.f32 0.0, %v2781
  %2783 = vmatprep.mubr.bf16.mxu0 0
  %2784 = vmatmul.mubr.bf16.gmra.mrb[0].mxu0 %v2726
  %v2785 = vpop.f32.mrb[0].mxu0
  %v2786 = vadd.f32 0.0, %v2785
  %v2787 = vpop.f32.mrb[0].mxu0
  %v2788 = vadd.f32 0.0, %v2787
  %v2789 = vpop.f32.mrb[0].mxu0
  %v2790 = vadd.f32 0.0, %v2789
  %v2791 = vpop.f32.mrb[0].mxu0
  %v2792 = vadd.f32 0.0, %v2791
  %2793 = vmatprep.mubr.bf16.mxu0 0
  %2794 = vmatmul.mubr.bf16.gmra.mrb[0].mxu0 %v2729
  %v2795 = vpop.f32.mrb[0].mxu0
  %v2796 = vadd.f32 0.0, %v2795
  %v2797 = vpop.f32.mrb[0].mxu0
  %v2798 = vadd.f32 0.0, %v2797
  %v2799 = vpop.f32.mrb[0].mxu0
  %v2800 = vadd.f32 0.0, %v2799
  %v2801 = vpop.f32.mrb[0].mxu0
  %v2802 = vadd.f32 0.0, %v2801
  %2803 = vdwg.mxu0
  %2804 = vmatprep.subr.bf16.mxu0 %v2573
  %2805 = vmatpush1.bf16.msra.mxu0 %v2572
  %2806 = vmatprep.subr.bf16.mxu0 %v2605
  %2807 = vmatpush1.bf16.msra.mxu0 %v2604
  %2808 = vmatprep.subr.bf16.mxu0 %v2637
  %2809 = vmatpush1.bf16.msra.mxu0 %v2636
  %2810 = vmatprep.subr.bf16.mxu0 %v2669
  %2811 = vmatpush1.bf16.msra.mxu0 %v2668
  %2812 = vmatprep.subr.bf16.mxu0 0
  %2813 = vmatpush1.bf16.msra.mxu0 0
  %2814 = vmatprep.subr.bf16.mxu0 0
  %2815 = vmatpush1.bf16.msra.mxu0 0
  %2816 = vmatprep.subr.bf16.mxu0 0
  %2817 = vmatpush1.bf16.msra.mxu0 0
  %2818 = vmatprep.subr.bf16.mxu0 0
  %2819 = vmatpush1.bf16.msra.mxu0 0
  %2820 = vmatprep.subr.bf16.mxu0 0
  %2821 = vmatpush1.bf16.msra.mxu0 0
  %2822 = vmatprep.subr.bf16.mxu0 0
  %2823 = vmatpush1.bf16.msra.mxu0 0
  %2824 = vmatprep.subr.bf16.mxu0 0
  %2825 = vmatpush1.bf16.msra.mxu0 0
  %2826 = vmatprep.subr.bf16.mxu0 0
  %2827 = vmatpush1.bf16.msra.mxu0 0
  %2828 = vmatprep.subr.bf16.mxu0 0
  %2829 = vmatpush1.bf16.msra.mxu0 0
  %2830 = vmatprep.subr.bf16.mxu0 0
  %2831 = vmatpush1.bf16.msra.mxu0 0
  %2832 = vmatprep.subr.bf16.mxu0 0
  %2833 = vmatpush1.bf16.msra.mxu0 0
  %2834 = vmatprep.subr.bf16.mxu0 0
  %2835 = vmatpush1.bf16.msra.mxu0 0
  %2836 = vmatprep.mubr.bf16.mxu0 0
  %2837 = vmatmul.mubr.bf16.gmra.mrb[0].mxu0 %v2720
  %v2838 = vpop.f32.mrb[0].mxu0
  %v2839 = vadd.f32 0.0, %v2838
  %v2840 = vpop.f32.mrb[0].mxu0
  %v2841 = vadd.f32 0.0, %v2840
  %v2842 = vpop.f32.mrb[0].mxu0
  %v2843 = vadd.f32 0.0, %v2842
  %v2844 = vpop.f32.mrb[0].mxu0
  %v2845 = vadd.f32 0.0, %v2844
  %2846 = vmatprep.mubr.bf16.mxu0 0
  %2847 = vmatmul.mubr.bf16.gmra.mrb[0].mxu0 %v2723
  %v2848 = vpop.f32.mrb[0].mxu0
  %v2849 = vadd.f32 0.0, %v2848
  %v2850 = vpop.f32.mrb[0].mxu0
  %v2851 = vadd.f32 0.0, %v2850
  %v2852 = vpop.f32.mrb[0].mxu0
  %v2853 = vadd.f32 0.0, %v2852
  %v2854 = vpop.f32.mrb[0].mxu0
  %v2855 = vadd.f32 0.0, %v2854
  %2856 = vmatprep.mubr.bf16.mxu0 0
  %2857 = vmatmul.mubr.bf16.gmra.mrb[0].mxu0 %v2726
  %v2858 = vpop.f32.mrb[0].mxu0
  %v2859 = vadd.f32 0.0, %v2858
  %v2860 = vpop.f32.mrb[0].mxu0
  %v2861 = vadd.f32 0.0, %v2860
  %v2862 = vpop.f32.mrb[0].mxu0
  %v2863 = vadd.f32 0.0, %v2862
  %v2864 = vpop.f32.mrb[0].mxu0
  %v2865 = vadd.f32 0.0, %v2864
  %2866 = vmatprep.mubr.bf16.mxu0 0
  %2867 = vmatmul.mubr.bf16.gmra.mrb[0].mxu0 %v2729
  %v2868 = vpop.f32.mrb[0].mxu0
  %v2869 = vadd.f32 0.0, %v2868
  %v2870 = vpop.f32.mrb[0].mxu0
  %v2871 = vadd.f32 0.0, %v2870
  %v2872 = vpop.f32.mrb[0].mxu0
  %v2873 = vadd.f32 0.0, %v2872
  %v2874 = vpop.f32.mrb[0].mxu0
  %v2875 = vadd.f32 0.0, %v2874
  %2876 = vdwg.mxu0
  %2877 = vmatprep.subr.bf16.mxu0 %v2575
  %2878 = vmatpush1.bf16.msra.mxu0 %v2574
  %2879 = vmatprep.subr.bf16.mxu0 %v2607
  %2880 = vmatpush1.bf16.msra.mxu0 %v2606
  %2881 = vmatprep.subr.bf16.mxu0 %v2639
  %2882 = vmatpush1.bf16.msra.mxu0 %v2638
  %2883 = vmatprep.subr.bf16.mxu0 %v2671
  %2884 = vmatpush1.bf16.msra.mxu0 %v2670
  %2885 = vmatprep.subr.bf16.mxu0 0
  %2886 = vmatpush1.bf16.msra.mxu0 0
  %2887 = vmatprep.subr.bf16.mxu0 0
  %2888 = vmatpush1.bf16.msra.mxu0 0
  %2889 = vmatprep.subr.bf16.mxu0 0
  %2890 = vmatpush1.bf16.msra.mxu0 0
  %2891 = vmatprep.subr.bf16.mxu0 0
  %2892 = vmatpush1.bf16.msra.mxu0 0
  %2893 = vmatprep.subr.bf16.mxu0 0
  %2894 = vmatpush1.bf16.msra.mxu0 0
  %2895 = vmatprep.subr.bf16.mxu0 0
  %2896 = vmatpush1.bf16.msra.mxu0 0
  %2897 = vmatprep.subr.bf16.mxu0 0
  %2898 = vmatpush1.bf16.msra.mxu0 0
  %2899 = vmatprep.subr.bf16.mxu0 0
  %2900 = vmatpush1.bf16.msra.mxu0 0
  %2901 = vmatprep.subr.bf16.mxu0 0
  %2902 = vmatpush1.bf16.msra.mxu0 0
  %2903 = vmatprep.subr.bf16.mxu0 0
  %2904 = vmatpush1.bf16.msra.mxu0 0
  %2905 = vmatprep.subr.bf16.mxu0 0
  %2906 = vmatpush1.bf16.msra.mxu0 0
  %2907 = vmatprep.subr.bf16.mxu0 0
  %2908 = vmatpush1.bf16.msra.mxu0 0
  %2909 = vmatprep.mubr.bf16.mxu0 0
  %2910 = vmatmul.mubr.bf16.gmra.mrb[0].mxu0 %v2720
  %v2911 = vpop.f32.mrb[0].mxu0
  %v2912 = vadd.f32 0.0, %v2911
  %v2913 = vpop.f32.mrb[0].mxu0
  %v2914 = vadd.f32 0.0, %v2913
  %v2915 = vpop.f32.mrb[0].mxu0
  %v2916 = vadd.f32 0.0, %v2915
  %v2917 = vpop.f32.mrb[0].mxu0
  %v2918 = vadd.f32 0.0, %v2917
  %2919 = vmatprep.mubr.bf16.mxu0 0
  %2920 = vmatmul.mubr.bf16.gmra.mrb[0].mxu0 %v2723
  %v2921 = vpop.f32.mrb[0].mxu0
  %v2922 = vadd.f32 0.0, %v2921
  %v2923 = vpop.f32.mrb[0].mxu0
  %v2924 = vadd.f32 0.0, %v2923
  %v2925 = vpop.f32.mrb[0].mxu0
  %v2926 = vadd.f32 0.0, %v2925
  %v2927 = vpop.f32.mrb[0].mxu0
  %v2928 = vadd.f32 0.0, %v2927
  %2929 = vmatprep.mubr.bf16.mxu0 0
  %2930 = vmatmul.mubr.bf16.gmra.mrb[0].mxu0 %v2726
  %v2931 = vpop.f32.mrb[0].mxu0
  %v2932 = vadd.f32 0.0, %v2931
  %v2933 = vpop.f32.mrb[0].mxu0
  %v2934 = vadd.f32 0.0, %v2933
  %v2935 = vpop.f32.mrb[0].mxu0
  %v2936 = vadd.f32 0.0, %v2935
  %v2937 = vpop.f32.mrb[0].mxu0
  %v2938 = vadd.f32 0.0, %v2937
  %2939 = vmatprep.mubr.bf16.mxu0 0
  %2940 = vmatmul.mubr.bf16.gmra.mrb[0].mxu0 %v2729
  %v2941 = vpop.f32.mrb[0].mxu0
  %v2942 = vadd.f32 0.0, %v2941
  %v2943 = vpop.f32.mrb[0].mxu0
  %v2944 = vadd.f32 0.0, %v2943
  %v2945 = vpop.f32.mrb[0].mxu0
  %v2946 = vadd.f32 0.0, %v2945
  %v2947 = vpop.f32.mrb[0].mxu0
  %v2948 = vadd.f32 0.0, %v2947
  %2949 = vdwg.mxu0
  %2950 = vmatprep.subr.bf16.mxu0 %v2577
  %2951 = vmatpush1.bf16.msra.mxu0 %v2576
  %2952 = vmatprep.subr.bf16.mxu0 %v2609
  %2953 = vmatpush1.bf16.msra.mxu0 %v2608
  %2954 = vmatprep.subr.bf16.mxu0 %v2641
  %2955 = vmatpush1.bf16.msra.mxu0 %v2640
  %2956 = vmatprep.subr.bf16.mxu0 %v2673
  %2957 = vmatpush1.bf16.msra.mxu0 %v2672
  %2958 = vmatprep.subr.bf16.mxu0 0
  %2959 = vmatpush1.bf16.msra.mxu0 0
  %2960 = vmatprep.subr.bf16.mxu0 0
  %2961 = vmatpush1.bf16.msra.mxu0 0
  %2962 = vmatprep.subr.bf16.mxu0 0
  %2963 = vmatpush1.bf16.msra.mxu0 0
  %2964 = vmatprep.subr.bf16.mxu0 0
  %2965 = vmatpush1.bf16.msra.mxu0 0
  %2966 = vmatprep.subr.bf16.mxu0 0
  %2967 = vmatpush1.bf16.msra.mxu0 0
  %2968 = vmatprep.subr.bf16.mxu0 0
  %2969 = vmatpush1.bf16.msra.mxu0 0
  %2970 = vmatprep.subr.bf16.mxu0 0
  %2971 = vmatpush1.bf16.msra.mxu0 0
  %2972 = vmatprep.subr.bf16.mxu0 0
  %2973 = vmatpush1.bf16.msra.mxu0 0
  %2974 = vmatprep.subr.bf16.mxu0 0
  %2975 = vmatpush1.bf16.msra.mxu0 0
  %2976 = vmatprep.subr.bf16.mxu0 0
  %2977 = vmatpush1.bf16.msra.mxu0 0
  %2978 = vmatprep.subr.bf16.mxu0 0
  %2979 = vmatpush1.bf16.msra.mxu0 0
  %2980 = vmatprep.subr.bf16.mxu0 0
  %2981 = vmatpush1.bf16.msra.mxu0 0
  %2982 = vmatprep.mubr.bf16.mxu0 0
  %2983 = vmatmul.mubr.bf16.gmra.mrb[0].mxu0 %v2720
  %v2984 = vpop.f32.mrb[0].mxu0
  %v2985 = vadd.f32 0.0, %v2984
  %v2986 = vpop.f32.mrb[0].mxu0
  %v2987 = vadd.f32 0.0, %v2986
  %v2988 = vpop.f32.mrb[0].mxu0
  %v2989 = vadd.f32 0.0, %v2988
  %v2990 = vpop.f32.mrb[0].mxu0
  %v2991 = vadd.f32 0.0, %v2990
  %2992 = vmatprep.mubr.bf16.mxu0 0
  %2993 = vmatmul.mubr.bf16.gmra.mrb[0].mxu0 %v2723
  %v2994 = vpop.f32.mrb[0].mxu0
  %v2995 = vadd.f32 0.0, %v2994
  %v2996 = vpop.f32.mrb[0].mxu0
  %v2997 = vadd.f32 0.0, %v2996
  %v2998 = vpop.f32.mrb[0].mxu0
  %v2999 = vadd.f32 0.0, %v2998
  %v3000 = vpop.f32.mrb[0].mxu0
  %v3001 = vadd.f32 0.0, %v3000
  %3002 = vmatprep.mubr.bf16.mxu0 0
  %3003 = vmatmul.mubr.bf16.gmra.mrb[0].mxu0 %v2726
  %v3004 = vpop.f32.mrb[0].mxu0
  %v3005 = vadd.f32 0.0, %v3004
  %v3006 = vpop.f32.mrb[0].mxu0
  %v3007 = vadd.f32 0.0, %v3006
  %v3008 = vpop.f32.mrb[0].mxu0
  %v3009 = vadd.f32 0.0, %v3008
  %v3010 = vpop.f32.mrb[0].mxu0
  %v3011 = vadd.f32 0.0, %v3010
  %3012 = vmatprep.mubr.bf16.mxu0 0
  %3013 = vmatmul.mubr.bf16.gmra.mrb[0].mxu0 %v2729
  %v3014 = vpop.f32.mrb[0].mxu0
  %v3015 = vadd.f32 0.0, %v3014
  %v3016 = vpop.f32.mrb[0].mxu0
  %v3017 = vadd.f32 0.0, %v3016
  %v3018 = vpop.f32.mrb[0].mxu0
  %v3019 = vadd.f32 0.0, %v3018
  %v3020 = vpop.f32.mrb[0].mxu0
  %v3021 = vadd.f32 0.0, %v3020
  %3022 = vdwg.mxu0
  %3023 = vmatprep.subr.bf16.mxu0 %v2579
  %3024 = vmatpush1.bf16.msra.mxu0 %v2578
  %3025 = vmatprep.subr.bf16.mxu0 %v2611
  %3026 = vmatpush1.bf16.msra.mxu0 %v2610
  %3027 = vmatprep.subr.bf16.mxu0 %v2643
  %3028 = vmatpush1.bf16.msra.mxu0 %v2642
  %3029 = vmatprep.subr.bf16.mxu0 %v2675
  %3030 = vmatpush1.bf16.msra.mxu0 %v2674
  %3031 = vmatprep.subr.bf16.mxu0 0
  %3032 = vmatpush1.bf16.msra.mxu0 0
  %3033 = vmatprep.subr.bf16.mxu0 0
  %3034 = vmatpush1.bf16.msra.mxu0 0
  %3035 = vmatprep.subr.bf16.mxu0 0
  %3036 = vmatpush1.bf16.msra.mxu0 0
  %3037 = vmatprep.subr.bf16.mxu0 0
  %3038 = vmatpush1.bf16.msra.mxu0 0
  %3039 = vmatprep.subr.bf16.mxu0 0
  %3040 = vmatpush1.bf16.msra.mxu0 0
  %3041 = vmatprep.subr.bf16.mxu0 0
  %3042 = vmatpush1.bf16.msra.mxu0 0
  %3043 = vmatprep.subr.bf16.mxu0 0
  %3044 = vmatpush1.bf16.msra.mxu0 0
  %3045 = vmatprep.subr.bf16.mxu0 0
  %3046 = vmatpush1.bf16.msra.mxu0 0
  %3047 = vmatprep.subr.bf16.mxu0 0
  %3048 = vmatpush1.bf16.msra.mxu0 0
  %3049 = vmatprep.subr.bf16.mxu0 0
  %3050 = vmatpush1.bf16.msra.mxu0 0
  %3051 = vmatprep.subr.bf16.mxu0 0
  %3052 = vmatpush1.bf16.msra.mxu0 0
  %3053 = vmatprep.subr.bf16.mxu0 0
  %3054 = vmatpush1.bf16.msra.mxu0 0
  %3055 = vmatprep.mubr.bf16.mxu0 0
  %3056 = vmatmul.mubr.bf16.gmra.mrb[0].mxu0 %v2720
  %v3057 = vpop.f32.mrb[0].mxu0
  %v3058 = vadd.f32 0.0, %v3057
  %v3059 = vpop.f32.mrb[0].mxu0
  %v3060 = vadd.f32 0.0, %v3059
  %v3061 = vpop.f32.mrb[0].mxu0
  %v3062 = vadd.f32 0.0, %v3061
  %v3063 = vpop.f32.mrb[0].mxu0
  %v3064 = vadd.f32 0.0, %v3063
  %3065 = vmatprep.mubr.bf16.mxu0 0
  %3066 = vmatmul.mubr.bf16.gmra.mrb[0].mxu0 %v2723
  %v3067 = vpop.f32.mrb[0].mxu0
  %v3068 = vadd.f32 0.0, %v3067
  %v3069 = vpop.f32.mrb[0].mxu0
  %v3070 = vadd.f32 0.0, %v3069
  %v3071 = vpop.f32.mrb[0].mxu0
  %v3072 = vadd.f32 0.0, %v3071
  %v3073 = vpop.f32.mrb[0].mxu0
  %v3074 = vadd.f32 0.0, %v3073
  %3075 = vmatprep.mubr.bf16.mxu0 0
  %3076 = vmatmul.mubr.bf16.gmra.mrb[0].mxu0 %v2726
  %v3077 = vpop.f32.mrb[0].mxu0
  %v3078 = vadd.f32 0.0, %v3077
  %v3079 = vpop.f32.mrb[0].mxu0
  %v3080 = vadd.f32 0.0, %v3079
  %v3081 = vpop.f32.mrb[0].mxu0
  %v3082 = vadd.f32 0.0, %v3081
  %v3083 = vpop.f32.mrb[0].mxu0
  %v3084 = vadd.f32 0.0, %v3083
  %3085 = vmatprep.mubr.bf16.mxu0 0
  %3086 = vmatmul.mubr.bf16.gmra.mrb[0].mxu0 %v2729
  %v3087 = vpop.f32.mrb[0].mxu0
  %v3088 = vadd.f32 0.0, %v3087
  %v3089 = vpop.f32.mrb[0].mxu0
  %v3090 = vadd.f32 0.0, %v3089
  %v3091 = vpop.f32.mrb[0].mxu0
  %v3092 = vadd.f32 0.0, %v3091
  %v3093 = vpop.f32.mrb[0].mxu0
  %v3094 = vadd.f32 0.0, %v3093
  %3095 = vdwg.mxu0
  %3096 = vmatprep.subr.bf16.mxu0 %v2581
  %3097 = vmatpush1.bf16.msra.mxu0 %v2580
  %3098 = vmatprep.subr.bf16.mxu0 %v2613
  %3099 = vmatpush1.bf16.msra.mxu0 %v2612
  %3100 = vmatprep.subr.bf16.mxu0 %v2645
  %3101 = vmatpush1.bf16.msra.mxu0 %v2644
  %3102 = vmatprep.subr.bf16.mxu0 %v2677
  %3103 = vmatpush1.bf16.msra.mxu0 %v2676
  %3104 = vmatprep.subr.bf16.mxu0 0
  %3105 = vmatpush1.bf16.msra.mxu0 0
  %3106 = vmatprep.subr.bf16.mxu0 0
  %3107 = vmatpush1.bf16.msra.mxu0 0
  %3108 = vmatprep.subr.bf16.mxu0 0
  %3109 = vmatpush1.bf16.msra.mxu0 0
  %3110 = vmatprep.subr.bf16.mxu0 0
  %3111 = vmatpush1.bf16.msra.mxu0 0
  %3112 = vmatprep.subr.bf16.mxu0 0
  %3113 = vmatpush1.bf16.msra.mxu0 0
  %3114 = vmatprep.subr.bf16.mxu0 0
  %3115 = vmatpush1.bf16.msra.mxu0 0
  %3116 = vmatprep.subr.bf16.mxu0 0
  %3117 = vmatpush1.bf16.msra.mxu0 0
  %3118 = vmatprep.subr.bf16.mxu0 0
  %3119 = vmatpush1.bf16.msra.mxu0 0
  %3120 = vmatprep.subr.bf16.mxu0 0
  %3121 = vmatpush1.bf16.msra.mxu0 0
  %3122 = vmatprep.subr.bf16.mxu0 0
  %3123 = vmatpush1.bf16.msra.mxu0 0
  %3124 = vmatprep.subr.bf16.mxu0 0
  %3125 = vmatpush1.bf16.msra.mxu0 0
  %3126 = vmatprep.subr.bf16.mxu0 0
  %3127 = vmatpush1.bf16.msra.mxu0 0
  %3128 = vmatprep.mubr.bf16.mxu0 0
  %3129 = vmatmul.mubr.bf16.gmra.mrb[0].mxu0 %v2720
  %v3130 = vpop.f32.mrb[0].mxu0
  %v3131 = vadd.f32 0.0, %v3130
  %v3132 = vpop.f32.mrb[0].mxu0
  %v3133 = vadd.f32 0.0, %v3132
  %v3134 = vpop.f32.mrb[0].mxu0
  %v3135 = vadd.f32 0.0, %v3134
  %v3136 = vpop.f32.mrb[0].mxu0
  %v3137 = vadd.f32 0.0, %v3136
  %3138 = vmatprep.mubr.bf16.mxu0 0
  %3139 = vmatmul.mubr.bf16.gmra.mrb[0].mxu0 %v2723
  %v3140 = vpop.f32.mrb[0].mxu0
  %v3141 = vadd.f32 0.0, %v3140
  %v3142 = vpop.f32.mrb[0].mxu0
  %v3143 = vadd.f32 0.0, %v3142
  %v3144 = vpop.f32.mrb[0].mxu0
  %v3145 = vadd.f32 0.0, %v3144
  %v3146 = vpop.f32.mrb[0].mxu0
  %v3147 = vadd.f32 0.0, %v3146
  %3148 = vmatprep.mubr.bf16.mxu0 0
  %3149 = vmatmul.mubr.bf16.gmra.mrb[0].mxu0 %v2726
  %v3150 = vpop.f32.mrb[0].mxu0
  %v3151 = vadd.f32 0.0, %v3150
  %v3152 = vpop.f32.mrb[0].mxu0
  %v3153 = vadd.f32 0.0, %v3152
  %v3154 = vpop.f32.mrb[0].mxu0
  %v3155 = vadd.f32 0.0, %v3154
  %v3156 = vpop.f32.mrb[0].mxu0
  %v3157 = vadd.f32 0.0, %v3156
  %3158 = vmatprep.mubr.bf16.mxu0 0
  %3159 = vmatmul.mubr.bf16.gmra.mrb[0].mxu0 %v2729
  %v3160 = vpop.f32.mrb[0].mxu0
  %v3161 = vadd.f32 0.0, %v3160
  %v3162 = vpop.f32.mrb[0].mxu0
  %v3163 = vadd.f32 0.0, %v3162
  %v3164 = vpop.f32.mrb[0].mxu0
  %v3165 = vadd.f32 0.0, %v3164
  %v3166 = vpop.f32.mrb[0].mxu0
  %v3167 = vadd.f32 0.0, %v3166
  %3168 = vdwg.mxu0
  %3169 = vmatprep.subr.bf16.mxu0 %v2583
  %3170 = vmatpush1.bf16.msra.mxu0 %v2582
  %3171 = vmatprep.subr.bf16.mxu0 %v2615
  %3172 = vmatpush1.bf16.msra.mxu0 %v2614
  %3173 = vmatprep.subr.bf16.mxu0 %v2647
  %3174 = vmatpush1.bf16.msra.mxu0 %v2646
  %3175 = vmatprep.subr.bf16.mxu0 %v2679
  %3176 = vmatpush1.bf16.msra.mxu0 %v2678
  %3177 = vmatprep.subr.bf16.mxu0 0
  %3178 = vmatpush1.bf16.msra.mxu0 0
  %3179 = vmatprep.subr.bf16.mxu0 0
  %3180 = vmatpush1.bf16.msra.mxu0 0
  %3181 = vmatprep.subr.bf16.mxu0 0
  %3182 = vmatpush1.bf16.msra.mxu0 0
  %3183 = vmatprep.subr.bf16.mxu0 0
  %3184 = vmatpush1.bf16.msra.mxu0 0
  %3185 = vmatprep.subr.bf16.mxu0 0
  %3186 = vmatpush1.bf16.msra.mxu0 0
  %3187 = vmatprep.subr.bf16.mxu0 0
  %3188 = vmatpush1.bf16.msra.mxu0 0
  %3189 = vmatprep.subr.bf16.mxu0 0
  %3190 = vmatpush1.bf16.msra.mxu0 0
  %3191 = vmatprep.subr.bf16.mxu0 0
  %3192 = vmatpush1.bf16.msra.mxu0 0
  %3193 = vmatprep.subr.bf16.mxu0 0
  %3194 = vmatpush1.bf16.msra.mxu0 0
  %3195 = vmatprep.subr.bf16.mxu0 0
  %3196 = vmatpush1.bf16.msra.mxu0 0
  %3197 = vmatprep.subr.bf16.mxu0 0
  %3198 = vmatpush1.bf16.msra.mxu0 0
  %3199 = vmatprep.subr.bf16.mxu0 0
  %3200 = vmatpush1.bf16.msra.mxu0 0
  %3201 = vmatprep.mubr.bf16.mxu0 0
  %3202 = vmatmul.mubr.bf16.gmra.mrb[0].mxu0 %v2720
  %v3203 = vpop.f32.mrb[0].mxu0
  %v3204 = vadd.f32 0.0, %v3203
  %v3205 = vpop.f32.mrb[0].mxu0
  %v3206 = vadd.f32 0.0, %v3205
  %v3207 = vpop.f32.mrb[0].mxu0
  %v3208 = vadd.f32 0.0, %v3207
  %v3209 = vpop.f32.mrb[0].mxu0
  %v3210 = vadd.f32 0.0, %v3209
  %3211 = vmatprep.mubr.bf16.mxu0 0
  %3212 = vmatmul.mubr.bf16.gmra.mrb[0].mxu0 %v2723
  %v3213 = vpop.f32.mrb[0].mxu0
  %v3214 = vadd.f32 0.0, %v3213
  %v3215 = vpop.f32.mrb[0].mxu0
  %v3216 = vadd.f32 0.0, %v3215
  %v3217 = vpop.f32.mrb[0].mxu0
  %v3218 = vadd.f32 0.0, %v3217
  %v3219 = vpop.f32.mrb[0].mxu0
  %v3220 = vadd.f32 0.0, %v3219
  %3221 = vmatprep.mubr.bf16.mxu0 0
  %3222 = vmatmul.mubr.bf16.gmra.mrb[0].mxu0 %v2726
  %v3223 = vpop.f32.mrb[0].mxu0
  %v3224 = vadd.f32 0.0, %v3223
  %v3225 = vpop.f32.mrb[0].mxu0
  %v3226 = vadd.f32 0.0, %v3225
  %v3227 = vpop.f32.mrb[0].mxu0
  %v3228 = vadd.f32 0.0, %v3227
  %v3229 = vpop.f32.mrb[0].mxu0
  %v3230 = vadd.f32 0.0, %v3229
  %3231 = vmatprep.mubr.bf16.mxu0 0
  %3232 = vmatmul.mubr.bf16.gmra.mrb[0].mxu0 %v2729
  %v3233 = vpop.f32.mrb[0].mxu0
  %v3234 = vadd.f32 0.0, %v3233
  %v3235 = vpop.f32.mrb[0].mxu0
  %v3236 = vadd.f32 0.0, %v3235
  %v3237 = vpop.f32.mrb[0].mxu0
  %v3238 = vadd.f32 0.0, %v3237
  %v3239 = vpop.f32.mrb[0].mxu0
  %v3240 = vadd.f32 0.0, %v3239
  %3241 = vdwg.mxu0
  %3242 = vmatprep.subr.bf16.mxu0 %v2585
  %3243 = vmatpush1.bf16.msra.mxu0 %v2584
  %3244 = vmatprep.subr.bf16.mxu0 %v2617
  %3245 = vmatpush1.bf16.msra.mxu0 %v2616
  %3246 = vmatprep.subr.bf16.mxu0 %v2649
  %3247 = vmatpush1.bf16.msra.mxu0 %v2648
  %3248 = vmatprep.subr.bf16.mxu0 %v2681
  %3249 = vmatpush1.bf16.msra.mxu0 %v2680
  %3250 = vmatprep.subr.bf16.mxu0 0
  %3251 = vmatpush1.bf16.msra.mxu0 0
  %3252 = vmatprep.subr.bf16.mxu0 0
  %3253 = vmatpush1.bf16.msra.mxu0 0
  %3254 = vmatprep.subr.bf16.mxu0 0
  %3255 = vmatpush1.bf16.msra.mxu0 0
  %3256 = vmatprep.subr.bf16.mxu0 0
  %3257 = vmatpush1.bf16.msra.mxu0 0
  %3258 = vmatprep.subr.bf16.mxu0 0
  %3259 = vmatpush1.bf16.msra.mxu0 0
  %3260 = vmatprep.subr.bf16.mxu0 0
  %3261 = vmatpush1.bf16.msra.mxu0 0
  %3262 = vmatprep.subr.bf16.mxu0 0
  %3263 = vmatpush1.bf16.msra.mxu0 0
  %3264 = vmatprep.subr.bf16.mxu0 0
  %3265 = vmatpush1.bf16.msra.mxu0 0
  %3266 = vmatprep.subr.bf16.mxu0 0
  %3267 = vmatpush1.bf16.msra.mxu0 0
  %3268 = vmatprep.subr.bf16.mxu0 0
  %3269 = vmatpush1.bf16.msra.mxu0 0
  %3270 = vmatprep.subr.bf16.mxu0 0
  %3271 = vmatpush1.bf16.msra.mxu0 0
  %3272 = vmatprep.subr.bf16.mxu0 0
  %3273 = vmatpush1.bf16.msra.mxu0 0
  %3274 = vmatprep.mubr.bf16.mxu0 0
  %3275 = vmatmul.mubr.bf16.gmra.mrb[0].mxu0 %v2720
  %v3276 = vpop.f32.mrb[0].mxu0
  %v3277 = vadd.f32 0.0, %v3276
  %v3278 = vpop.f32.mrb[0].mxu0
  %v3279 = vadd.f32 0.0, %v3278
  %v3280 = vpop.f32.mrb[0].mxu0
  %v3281 = vadd.f32 0.0, %v3280
  %v3282 = vpop.f32.mrb[0].mxu0
  %v3283 = vadd.f32 0.0, %v3282
  %3284 = vmatprep.mubr.bf16.mxu0 0
  %3285 = vmatmul.mubr.bf16.gmra.mrb[0].mxu0 %v2723
  %v3286 = vpop.f32.mrb[0].mxu0
  %v3287 = vadd.f32 0.0, %v3286
  %v3288 = vpop.f32.mrb[0].mxu0
  %v3289 = vadd.f32 0.0, %v3288
  %v3290 = vpop.f32.mrb[0].mxu0
  %v3291 = vadd.f32 0.0, %v3290
  %v3292 = vpop.f32.mrb[0].mxu0
  %v3293 = vadd.f32 0.0, %v3292
  %3294 = vmatprep.mubr.bf16.mxu0 0
  %3295 = vmatmul.mubr.bf16.gmra.mrb[0].mxu0 %v2726
  %v3296 = vpop.f32.mrb[0].mxu0
  %v3297 = vadd.f32 0.0, %v3296
  %v3298 = vpop.f32.mrb[0].mxu0
  %v3299 = vadd.f32 0.0, %v3298
  %v3300 = vpop.f32.mrb[0].mxu0
  %v3301 = vadd.f32 0.0, %v3300
  %v3302 = vpop.f32.mrb[0].mxu0
  %v3303 = vadd.f32 0.0, %v3302
  %3304 = vmatprep.mubr.bf16.mxu0 0
  %3305 = vmatmul.mubr.bf16.gmra.mrb[0].mxu0 %v2729
  %v3306 = vpop.f32.mrb[0].mxu0
  %v3307 = vadd.f32 0.0, %v3306
  %v3308 = vpop.f32.mrb[0].mxu0
  %v3309 = vadd.f32 0.0, %v3308
  %v3310 = vpop.f32.mrb[0].mxu0
  %v3311 = vadd.f32 0.0, %v3310
  %v3312 = vpop.f32.mrb[0].mxu0
  %v3313 = vadd.f32 0.0, %v3312
  %3314 = vdwg.mxu0
  %3315 = vmatprep.subr.bf16.mxu0 %v2587
  %3316 = vmatpush1.bf16.msra.mxu0 %v2586
  %3317 = vmatprep.subr.bf16.mxu0 %v2619
  %3318 = vmatpush1.bf16.msra.mxu0 %v2618
  %3319 = vmatprep.subr.bf16.mxu0 %v2651
  %3320 = vmatpush1.bf16.msra.mxu0 %v2650
  %3321 = vmatprep.subr.bf16.mxu0 %v2683
  %3322 = vmatpush1.bf16.msra.mxu0 %v2682
  %3323 = vmatprep.subr.bf16.mxu0 0
  %3324 = vmatpush1.bf16.msra.mxu0 0
  %3325 = vmatprep.subr.bf16.mxu0 0
  %3326 = vmatpush1.bf16.msra.mxu0 0
  %3327 = vmatprep.subr.bf16.mxu0 0
  %3328 = vmatpush1.bf16.msra.mxu0 0
  %3329 = vmatprep.subr.bf16.mxu0 0
  %3330 = vmatpush1.bf16.msra.mxu0 0
  %3331 = vmatprep.subr.bf16.mxu0 0
  %3332 = vmatpush1.bf16.msra.mxu0 0
  %3333 = vmatprep.subr.bf16.mxu0 0
  %3334 = vmatpush1.bf16.msra.mxu0 0
  %3335 = vmatprep.subr.bf16.mxu0 0
  %3336 = vmatpush1.bf16.msra.mxu0 0
  %3337 = vmatprep.subr.bf16.mxu0 0
  %3338 = vmatpush1.bf16.msra.mxu0 0
  %3339 = vmatprep.subr.bf16.mxu0 0
  %3340 = vmatpush1.bf16.msra.mxu0 0
  %3341 = vmatprep.subr.bf16.mxu0 0
  %3342 = vmatpush1.bf16.msra.mxu0 0
  %3343 = vmatprep.subr.bf16.mxu0 0
  %3344 = vmatpush1.bf16.msra.mxu0 0
  %3345 = vmatprep.subr.bf16.mxu0 0
  %3346 = vmatpush1.bf16.msra.mxu0 0
  %3347 = vmatprep.mubr.bf16.mxu0 0
  %3348 = vmatmul.mubr.bf16.gmra.mrb[0].mxu0 %v2720
  %v3349 = vpop.f32.mrb[0].mxu0
  %v3350 = vadd.f32 0.0, %v3349
  %v3351 = vpop.f32.mrb[0].mxu0
  %v3352 = vadd.f32 0.0, %v3351
  %v3353 = vpop.f32.mrb[0].mxu0
  %v3354 = vadd.f32 0.0, %v3353
  %v3355 = vpop.f32.mrb[0].mxu0
  %v3356 = vadd.f32 0.0, %v3355
  %3357 = vmatprep.mubr.bf16.mxu0 0
  %3358 = vmatmul.mubr.bf16.gmra.mrb[0].mxu0 %v2723
  %v3359 = vpop.f32.mrb[0].mxu0
  %v3360 = vadd.f32 0.0, %v3359
  %v3361 = vpop.f32.mrb[0].mxu0
  %v3362 = vadd.f32 0.0, %v3361
  %v3363 = vpop.f32.mrb[0].mxu0
  %v3364 = vadd.f32 0.0, %v3363
  %v3365 = vpop.f32.mrb[0].mxu0
  %v3366 = vadd.f32 0.0, %v3365
  %3367 = vmatprep.mubr.bf16.mxu0 0
  %3368 = vmatmul.mubr.bf16.gmra.mrb[0].mxu0 %v2726
  %v3369 = vpop.f32.mrb[0].mxu0
  %v3370 = vadd.f32 0.0, %v3369
  %v3371 = vpop.f32.mrb[0].mxu0
  %v3372 = vadd.f32 0.0, %v3371
  %v3373 = vpop.f32.mrb[0].mxu0
  %v3374 = vadd.f32 0.0, %v3373
  %v3375 = vpop.f32.mrb[0].mxu0
  %v3376 = vadd.f32 0.0, %v3375
  %3377 = vmatprep.mubr.bf16.mxu0 0
  %3378 = vmatmul.mubr.bf16.gmra.mrb[0].mxu0 %v2729
  %v3379 = vpop.f32.mrb[0].mxu0
  %v3380 = vadd.f32 0.0, %v3379
  %v3381 = vpop.f32.mrb[0].mxu0
  %v3382 = vadd.f32 0.0, %v3381
  %v3383 = vpop.f32.mrb[0].mxu0
  %v3384 = vadd.f32 0.0, %v3383
  %v3385 = vpop.f32.mrb[0].mxu0
  %v3386 = vadd.f32 0.0, %v3385
  %3387 = vdwg.mxu0
  %3388 = vmatprep.subr.bf16.mxu0 %v2589
  %3389 = vmatpush1.bf16.msra.mxu0 %v2588
  %3390 = vmatprep.subr.bf16.mxu0 %v2621
  %3391 = vmatpush1.bf16.msra.mxu0 %v2620
  %3392 = vmatprep.subr.bf16.mxu0 %v2653
  %3393 = vmatpush1.bf16.msra.mxu0 %v2652
  %3394 = vmatprep.subr.bf16.mxu0 %v2685
  %3395 = vmatpush1.bf16.msra.mxu0 %v2684
  %3396 = vmatprep.subr.bf16.mxu0 0
  %3397 = vmatpush1.bf16.msra.mxu0 0
  %3398 = vmatprep.subr.bf16.mxu0 0
  %3399 = vmatpush1.bf16.msra.mxu0 0
  %3400 = vmatprep.subr.bf16.mxu0 0
  %3401 = vmatpush1.bf16.msra.mxu0 0
  %3402 = vmatprep.subr.bf16.mxu0 0
  %3403 = vmatpush1.bf16.msra.mxu0 0
  %3404 = vmatprep.subr.bf16.mxu0 0
  %3405 = vmatpush1.bf16.msra.mxu0 0
  %3406 = vmatprep.subr.bf16.mxu0 0
  %3407 = vmatpush1.bf16.msra.mxu0 0
  %3408 = vmatprep.subr.bf16.mxu0 0
  %3409 = vmatpush1.bf16.msra.mxu0 0
  %3410 = vmatprep.subr.bf16.mxu0 0
  %3411 = vmatpush1.bf16.msra.mxu0 0
  %3412 = vmatprep.subr.bf16.mxu0 0
  %3413 = vmatpush1.bf16.msra.mxu0 0
  %3414 = vmatprep.subr.bf16.mxu0 0
  %3415 = vmatpush1.bf16.msra.mxu0 0
  %3416 = vmatprep.subr.bf16.mxu0 0
  %3417 = vmatpush1.bf16.msra.mxu0 0
  %3418 = vmatprep.subr.bf16.mxu0 0
  %3419 = vmatpush1.bf16.msra.mxu0 0
  %3420 = vmatprep.mubr.bf16.mxu0 0
  %3421 = vmatmul.mubr.bf16.gmra.mrb[0].mxu0 %v2720
  %v3422 = vpop.f32.mrb[0].mxu0
  %v3423 = vadd.f32 0.0, %v3422
  %v3424 = vpop.f32.mrb[0].mxu0
  %v3425 = vadd.f32 0.0, %v3424
  %v3426 = vpop.f32.mrb[0].mxu0
  %v3427 = vadd.f32 0.0, %v3426
  %v3428 = vpop.f32.mrb[0].mxu0
  %v3429 = vadd.f32 0.0, %v3428
  %3430 = vmatprep.mubr.bf16.mxu0 0
  %3431 = vmatmul.mubr.bf16.gmra.mrb[0].mxu0 %v2723
  %v3432 = vpop.f32.mrb[0].mxu0
  %v3433 = vadd.f32 0.0, %v3432
  %v3434 = vpop.f32.mrb[0].mxu0
  %v3435 = vadd.f32 0.0, %v3434
  %v3436 = vpop.f32.mrb[0].mxu0
  %v3437 = vadd.f32 0.0, %v3436
  %v3438 = vpop.f32.mrb[0].mxu0
  %v3439 = vadd.f32 0.0, %v3438
  %3440 = vmatprep.mubr.bf16.mxu0 0
  %3441 = vmatmul.mubr.bf16.gmra.mrb[0].mxu0 %v2726
  %v3442 = vpop.f32.mrb[0].mxu0
  %v3443 = vadd.f32 0.0, %v3442
  %v3444 = vpop.f32.mrb[0].mxu0
  %v3445 = vadd.f32 0.0, %v3444
  %v3446 = vpop.f32.mrb[0].mxu0
  %v3447 = vadd.f32 0.0, %v3446
  %v3448 = vpop.f32.mrb[0].mxu0
  %v3449 = vadd.f32 0.0, %v3448
  %3450 = vmatprep.mubr.bf16.mxu0 0
  %3451 = vmatmul.mubr.bf16.gmra.mrb[0].mxu0 %v2729
  %v3452 = vpop.f32.mrb[0].mxu0
  %v3453 = vadd.f32 0.0, %v3452
  %v3454 = vpop.f32.mrb[0].mxu0
  %v3455 = vadd.f32 0.0, %v3454
  %v3456 = vpop.f32.mrb[0].mxu0
  %v3457 = vadd.f32 0.0, %v3456
  %v3458 = vpop.f32.mrb[0].mxu0
  %v3459 = vadd.f32 0.0, %v3458
  %3460 = vdwg.mxu0
  %3461 = vmatprep.subr.bf16.mxu0 %v2591
  %3462 = vmatpush1.bf16.msra.mxu0 %v2590
  %3463 = vmatprep.subr.bf16.mxu0 %v2623
  %3464 = vmatpush1.bf16.msra.mxu0 %v2622
  %3465 = vmatprep.subr.bf16.mxu0 %v2655
  %3466 = vmatpush1.bf16.msra.mxu0 %v2654
  %3467 = vmatprep.subr.bf16.mxu0 %v2687
  %3468 = vmatpush1.bf16.msra.mxu0 %v2686
  %3469 = vmatprep.subr.bf16.mxu0 0
  %3470 = vmatpush1.bf16.msra.mxu0 0
  %3471 = vmatprep.subr.bf16.mxu0 0
  %3472 = vmatpush1.bf16.msra.mxu0 0
  %3473 = vmatprep.subr.bf16.mxu0 0
  %3474 = vmatpush1.bf16.msra.mxu0 0
  %3475 = vmatprep.subr.bf16.mxu0 0
  %3476 = vmatpush1.bf16.msra.mxu0 0
  %3477 = vmatprep.subr.bf16.mxu0 0
  %3478 = vmatpush1.bf16.msra.mxu0 0
  %3479 = vmatprep.subr.bf16.mxu0 0
  %3480 = vmatpush1.bf16.msra.mxu0 0
  %3481 = vmatprep.subr.bf16.mxu0 0
  %3482 = vmatpush1.bf16.msra.mxu0 0
  %3483 = vmatprep.subr.bf16.mxu0 0
  %3484 = vmatpush1.bf16.msra.mxu0 0
  %3485 = vmatprep.subr.bf16.mxu0 0
  %3486 = vmatpush1.bf16.msra.mxu0 0
  %3487 = vmatprep.subr.bf16.mxu0 0
  %3488 = vmatpush1.bf16.msra.mxu0 0
  %3489 = vmatprep.subr.bf16.mxu0 0
  %3490 = vmatpush1.bf16.msra.mxu0 0
  %3491 = vmatprep.subr.bf16.mxu0 0
  %3492 = vmatpush1.bf16.msra.mxu0 0
  %3493 = vmatprep.mubr.bf16.mxu0 0
  %3494 = vmatmul.mubr.bf16.gmra.mrb[0].mxu0 %v2720
  %v3495 = vpop.f32.mrb[0].mxu0
  %v3496 = vadd.f32 0.0, %v3495
  %v3497 = vpop.f32.mrb[0].mxu0
  %v3498 = vadd.f32 0.0, %v3497
  %v3499 = vpop.f32.mrb[0].mxu0
  %v3500 = vadd.f32 0.0, %v3499
  %v3501 = vpop.f32.mrb[0].mxu0
  %v3502 = vadd.f32 0.0, %v3501
  %3503 = vmatprep.mubr.bf16.mxu0 0
  %3504 = vmatmul.mubr.bf16.gmra.mrb[0].mxu0 %v2723
  %v3505 = vpop.f32.mrb[0].mxu0
  %v3506 = vadd.f32 0.0, %v3505
  %v3507 = vpop.f32.mrb[0].mxu0
  %v3508 = vadd.f32 0.0, %v3507
  %v3509 = vpop.f32.mrb[0].mxu0
  %v3510 = vadd.f32 0.0, %v3509
  %v3511 = vpop.f32.mrb[0].mxu0
  %v3512 = vadd.f32 0.0, %v3511
  %3513 = vmatprep.mubr.bf16.mxu0 0
  %3514 = vmatmul.mubr.bf16.gmra.mrb[0].mxu0 %v2726
  %v3515 = vpop.f32.mrb[0].mxu0
  %v3516 = vadd.f32 0.0, %v3515
  %v3517 = vpop.f32.mrb[0].mxu0
  %v3518 = vadd.f32 0.0, %v3517
  %v3519 = vpop.f32.mrb[0].mxu0
  %v3520 = vadd.f32 0.0, %v3519
  %v3521 = vpop.f32.mrb[0].mxu0
  %v3522 = vadd.f32 0.0, %v3521
  %3523 = vmatprep.mubr.bf16.mxu0 0
  %3524 = vmatmul.mubr.bf16.gmra.mrb[0].mxu0 %v2729
  %v3525 = vpop.f32.mrb[0].mxu0
  %v3526 = vadd.f32 0.0, %v3525
  %v3527 = vpop.f32.mrb[0].mxu0
  %v3528 = vadd.f32 0.0, %v3527
  %v3529 = vpop.f32.mrb[0].mxu0
  %v3530 = vadd.f32 0.0, %v3529
  %v3531 = vpop.f32.mrb[0].mxu0
  %v3532 = vadd.f32 0.0, %v3531
  %3533 = vdwg.mxu0
  %3534 = vmatprep.subr.bf16.mxu0 %v2593
  %3535 = vmatpush1.bf16.msra.mxu0 %v2592
  %3536 = vmatprep.subr.bf16.mxu0 %v2625
  %3537 = vmatpush1.bf16.msra.mxu0 %v2624
  %3538 = vmatprep.subr.bf16.mxu0 %v2657
  %3539 = vmatpush1.bf16.msra.mxu0 %v2656
  %3540 = vmatprep.subr.bf16.mxu0 %v2689
  %3541 = vmatpush1.bf16.msra.mxu0 %v2688
  %3542 = vmatprep.subr.bf16.mxu0 0
  %3543 = vmatpush1.bf16.msra.mxu0 0
  %3544 = vmatprep.subr.bf16.mxu0 0
  %3545 = vmatpush1.bf16.msra.mxu0 0
  %3546 = vmatprep.subr.bf16.mxu0 0
  %3547 = vmatpush1.bf16.msra.mxu0 0
  %3548 = vmatprep.subr.bf16.mxu0 0
  %3549 = vmatpush1.bf16.msra.mxu0 0
  %3550 = vmatprep.subr.bf16.mxu0 0
  %3551 = vmatpush1.bf16.msra.mxu0 0
  %3552 = vmatprep.subr.bf16.mxu0 0
  %3553 = vmatpush1.bf16.msra.mxu0 0
  %3554 = vmatprep.subr.bf16.mxu0 0
  %3555 = vmatpush1.bf16.msra.mxu0 0
  %3556 = vmatprep.subr.bf16.mxu0 0
  %3557 = vmatpush1.bf16.msra.mxu0 0
  %3558 = vmatprep.subr.bf16.mxu0 0
  %3559 = vmatpush1.bf16.msra.mxu0 0
  %3560 = vmatprep.subr.bf16.mxu0 0
  %3561 = vmatpush1.bf16.msra.mxu0 0
  %3562 = vmatprep.subr.bf16.mxu0 0
  %3563 = vmatpush1.bf16.msra.mxu0 0
  %3564 = vmatprep.subr.bf16.mxu0 0
  %3565 = vmatpush1.bf16.msra.mxu0 0
  %3566 = vmatprep.mubr.bf16.mxu0 0
  %3567 = vmatmul.mubr.bf16.gmra.mrb[0].mxu0 %v2720
  %v3568 = vpop.f32.mrb[0].mxu0
  %v3569 = vadd.f32 0.0, %v3568
  %v3570 = vpop.f32.mrb[0].mxu0
  %v3571 = vadd.f32 0.0, %v3570
  %v3572 = vpop.f32.mrb[0].mxu0
  %v3573 = vadd.f32 0.0, %v3572
  %v3574 = vpop.f32.mrb[0].mxu0
  %v3575 = vadd.f32 0.0, %v3574
  %3576 = vmatprep.mubr.bf16.mxu0 0
  %3577 = vmatmul.mubr.bf16.gmra.mrb[0].mxu0 %v2723
  %v3578 = vpop.f32.mrb[0].mxu0
  %v3579 = vadd.f32 0.0, %v3578
  %v3580 = vpop.f32.mrb[0].mxu0
  %v3581 = vadd.f32 0.0, %v3580
  %v3582 = vpop.f32.mrb[0].mxu0
  %v3583 = vadd.f32 0.0, %v3582
  %v3584 = vpop.f32.mrb[0].mxu0
  %v3585 = vadd.f32 0.0, %v3584
  %3586 = vmatprep.mubr.bf16.mxu0 0
  %3587 = vmatmul.mubr.bf16.gmra.mrb[0].mxu0 %v2726
  %v3588 = vpop.f32.mrb[0].mxu0
  %v3589 = vadd.f32 0.0, %v3588
  %v3590 = vpop.f32.mrb[0].mxu0
  %v3591 = vadd.f32 0.0, %v3590
  %v3592 = vpop.f32.mrb[0].mxu0
  %v3593 = vadd.f32 0.0, %v3592
  %v3594 = vpop.f32.mrb[0].mxu0
  %v3595 = vadd.f32 0.0, %v3594
  %3596 = vmatprep.mubr.bf16.mxu0 0
  %3597 = vmatmul.mubr.bf16.gmra.mrb[0].mxu0 %v2729
  %v3598 = vpop.f32.mrb[0].mxu0
  %v3599 = vadd.f32 0.0, %v3598
  %v3600 = vpop.f32.mrb[0].mxu0
  %v3601 = vadd.f32 0.0, %v3600
  %v3602 = vpop.f32.mrb[0].mxu0
  %v3603 = vadd.f32 0.0, %v3602
  %v3604 = vpop.f32.mrb[0].mxu0
  %v3605 = vadd.f32 0.0, %v3604
  %3606 = vdwg.mxu0
  %3607 = vmatprep.subr.bf16.mxu0 %v2595
  %3608 = vmatpush1.bf16.msra.mxu0 %v2594
  %3609 = vmatprep.subr.bf16.mxu0 %v2627
  %3610 = vmatpush1.bf16.msra.mxu0 %v2626
  %3611 = vmatprep.subr.bf16.mxu0 %v2659
  %3612 = vmatpush1.bf16.msra.mxu0 %v2658
  %3613 = vmatprep.subr.bf16.mxu0 %v2691
  %3614 = vmatpush1.bf16.msra.mxu0 %v2690
  %3615 = vmatprep.subr.bf16.mxu0 0
  %3616 = vmatpush1.bf16.msra.mxu0 0
  %3617 = vmatprep.subr.bf16.mxu0 0
  %3618 = vmatpush1.bf16.msra.mxu0 0
  %3619 = vmatprep.subr.bf16.mxu0 0
  %3620 = vmatpush1.bf16.msra.mxu0 0
  %3621 = vmatprep.subr.bf16.mxu0 0
  %3622 = vmatpush1.bf16.msra.mxu0 0
  %3623 = vmatprep.subr.bf16.mxu0 0
  %3624 = vmatpush1.bf16.msra.mxu0 0
  %3625 = vmatprep.subr.bf16.mxu0 0
  %3626 = vmatpush1.bf16.msra.mxu0 0
  %3627 = vmatprep.subr.bf16.mxu0 0
  %3628 = vmatpush1.bf16.msra.mxu0 0
  %3629 = vmatprep.subr.bf16.mxu0 0
  %3630 = vmatpush1.bf16.msra.mxu0 0
  %3631 = vmatprep.subr.bf16.mxu0 0
  %3632 = vmatpush1.bf16.msra.mxu0 0
  %3633 = vmatprep.subr.bf16.mxu0 0
  %3634 = vmatpush1.bf16.msra.mxu0 0
  %3635 = vmatprep.subr.bf16.mxu0 0
  %3636 = vmatpush1.bf16.msra.mxu0 0
  %3637 = vmatprep.subr.bf16.mxu0 0
  %3638 = vmatpush1.bf16.msra.mxu0 0
  %3639 = vmatprep.mubr.bf16.mxu0 0
  %3640 = vmatmul.mubr.bf16.gmra.mrb[0].mxu0 %v2720
  %v3641 = vpop.f32.mrb[0].mxu0
  %v3642 = vadd.f32 0.0, %v3641
  %v3643 = vpop.f32.mrb[0].mxu0
  %v3644 = vadd.f32 0.0, %v3643
  %v3645 = vpop.f32.mrb[0].mxu0
  %v3646 = vadd.f32 0.0, %v3645
  %v3647 = vpop.f32.mrb[0].mxu0
  %v3648 = vadd.f32 0.0, %v3647
  %3649 = vmatprep.mubr.bf16.mxu0 0
  %3650 = vmatmul.mubr.bf16.gmra.mrb[0].mxu0 %v2723
  %v3651 = vpop.f32.mrb[0].mxu0
  %v3652 = vadd.f32 0.0, %v3651
  %v3653 = vpop.f32.mrb[0].mxu0
  %v3654 = vadd.f32 0.0, %v3653
  %v3655 = vpop.f32.mrb[0].mxu0
  %v3656 = vadd.f32 0.0, %v3655
  %v3657 = vpop.f32.mrb[0].mxu0
  %v3658 = vadd.f32 0.0, %v3657
  %3659 = vmatprep.mubr.bf16.mxu0 0
  %3660 = vmatmul.mubr.bf16.gmra.mrb[0].mxu0 %v2726
  %v3661 = vpop.f32.mrb[0].mxu0
  %v3662 = vadd.f32 0.0, %v3661
  %v3663 = vpop.f32.mrb[0].mxu0
  %v3664 = vadd.f32 0.0, %v3663
  %v3665 = vpop.f32.mrb[0].mxu0
  %v3666 = vadd.f32 0.0, %v3665
  %v3667 = vpop.f32.mrb[0].mxu0
  %v3668 = vadd.f32 0.0, %v3667
  %3669 = vmatprep.mubr.bf16.mxu0 0
  %3670 = vmatmul.mubr.bf16.gmra.mrb[0].mxu0 %v2729
  %v3671 = vpop.f32.mrb[0].mxu0
  %v3672 = vadd.f32 0.0, %v3671
  %v3673 = vpop.f32.mrb[0].mxu0
  %v3674 = vadd.f32 0.0, %v3673
  %v3675 = vpop.f32.mrb[0].mxu0
  %v3676 = vadd.f32 0.0, %v3675
  %v3677 = vpop.f32.mrb[0].mxu0
  %v3678 = vadd.f32 0.0, %v3677
  %3679 = vdwg.mxu0
  %3680 = vmatprep.subr.bf16.mxu0 %v2597
  %3681 = vmatpush1.bf16.msra.mxu0 %v2596
  %3682 = vmatprep.subr.bf16.mxu0 %v2629
  %3683 = vmatpush1.bf16.msra.mxu0 %v2628
  %3684 = vmatprep.subr.bf16.mxu0 %v2661
  %3685 = vmatpush1.bf16.msra.mxu0 %v2660
  %3686 = vmatprep.subr.bf16.mxu0 %v2693
  %3687 = vmatpush1.bf16.msra.mxu0 %v2692
  %3688 = vmatprep.subr.bf16.mxu0 0
  %3689 = vmatpush1.bf16.msra.mxu0 0
  %3690 = vmatprep.subr.bf16.mxu0 0
  %3691 = vmatpush1.bf16.msra.mxu0 0
  %3692 = vmatprep.subr.bf16.mxu0 0
  %3693 = vmatpush1.bf16.msra.mxu0 0
  %3694 = vmatprep.subr.bf16.mxu0 0
  %3695 = vmatpush1.bf16.msra.mxu0 0
  %3696 = vmatprep.subr.bf16.mxu0 0
  %3697 = vmatpush1.bf16.msra.mxu0 0
  %3698 = vmatprep.subr.bf16.mxu0 0
  %3699 = vmatpush1.bf16.msra.mxu0 0
  %3700 = vmatprep.subr.bf16.mxu0 0
  %3701 = vmatpush1.bf16.msra.mxu0 0
  %3702 = vmatprep.subr.bf16.mxu0 0
  %3703 = vmatpush1.bf16.msra.mxu0 0
  %3704 = vmatprep.subr.bf16.mxu0 0
  %3705 = vmatpush1.bf16.msra.mxu0 0
  %3706 = vmatprep.subr.bf16.mxu0 0
  %3707 = vmatpush1.bf16.msra.mxu0 0
  %3708 = vmatprep.subr.bf16.mxu0 0
  %3709 = vmatpush1.bf16.msra.mxu0 0
  %3710 = vmatprep.subr.bf16.mxu0 0
  %3711 = vmatpush1.bf16.msra.mxu0 0
  %3712 = vmatprep.mubr.bf16.mxu0 0
  %3713 = vmatmul.mubr.bf16.gmra.mrb[0].mxu0 %v2720
  %v3714 = vpop.f32.mrb[0].mxu0
  %v3715 = vadd.f32 0.0, %v3714
  %v3716 = vpop.f32.mrb[0].mxu0
  %v3717 = vadd.f32 0.0, %v3716
  %v3718 = vpop.f32.mrb[0].mxu0
  %v3719 = vadd.f32 0.0, %v3718
  %v3720 = vpop.f32.mrb[0].mxu0
  %v3721 = vadd.f32 0.0, %v3720
  %3722 = vmatprep.mubr.bf16.mxu0 0
  %3723 = vmatmul.mubr.bf16.gmra.mrb[0].mxu0 %v2723
  %v3724 = vpop.f32.mrb[0].mxu0
  %v3725 = vadd.f32 0.0, %v3724
  %v3726 = vpop.f32.mrb[0].mxu0
  %v3727 = vadd.f32 0.0, %v3726
  %v3728 = vpop.f32.mrb[0].mxu0
  %v3729 = vadd.f32 0.0, %v3728
  %v3730 = vpop.f32.mrb[0].mxu0
  %v3731 = vadd.f32 0.0, %v3730
  %3732 = vmatprep.mubr.bf16.mxu0 0
  %3733 = vmatmul.mubr.bf16.gmra.mrb[0].mxu0 %v2726
  %v3734 = vpop.f32.mrb[0].mxu0
  %v3735 = vadd.f32 0.0, %v3734
  %v3736 = vpop.f32.mrb[0].mxu0
  %v3737 = vadd.f32 0.0, %v3736
  %v3738 = vpop.f32.mrb[0].mxu0
  %v3739 = vadd.f32 0.0, %v3738
  %v3740 = vpop.f32.mrb[0].mxu0
  %v3741 = vadd.f32 0.0, %v3740
  %3742 = vmatprep.mubr.bf16.mxu0 0
  %3743 = vmatmul.mubr.bf16.gmra.mrb[0].mxu0 %v2729
  %v3744 = vpop.f32.mrb[0].mxu0
  %v3745 = vadd.f32 0.0, %v3744
  %v3746 = vpop.f32.mrb[0].mxu0
  %v3747 = vadd.f32 0.0, %v3746
  %v3748 = vpop.f32.mrb[0].mxu0
  %v3749 = vadd.f32 0.0, %v3748
  %v3750 = vpop.f32.mrb[0].mxu0
  %v3751 = vadd.f32 0.0, %v3750
  %3752 = vdwg.mxu0
  %3753 = vmatprep.subr.bf16.mxu0 %v2599
  %3754 = vmatpush1.bf16.msra.mxu0 %v2598
  %3755 = vmatprep.subr.bf16.mxu0 %v2631
  %3756 = vmatpush1.bf16.msra.mxu0 %v2630
  %3757 = vmatprep.subr.bf16.mxu0 %v2663
  %3758 = vmatpush1.bf16.msra.mxu0 %v2662
  %3759 = vmatprep.subr.bf16.mxu0 %v2695
  %3760 = vmatpush1.bf16.msra.mxu0 %v2694
  %3761 = vmatprep.subr.bf16.mxu0 0
  %3762 = vmatpush1.bf16.msra.mxu0 0
  %3763 = vmatprep.subr.bf16.mxu0 0
  %3764 = vmatpush1.bf16.msra.mxu0 0
  %3765 = vmatprep.subr.bf16.mxu0 0
  %3766 = vmatpush1.bf16.msra.mxu0 0
  %3767 = vmatprep.subr.bf16.mxu0 0
  %3768 = vmatpush1.bf16.msra.mxu0 0
  %3769 = vmatprep.subr.bf16.mxu0 0
  %3770 = vmatpush1.bf16.msra.mxu0 0
  %3771 = vmatprep.subr.bf16.mxu0 0
  %3772 = vmatpush1.bf16.msra.mxu0 0
  %3773 = vmatprep.subr.bf16.mxu0 0
  %3774 = vmatpush1.bf16.msra.mxu0 0
  %3775 = vmatprep.subr.bf16.mxu0 0
  %3776 = vmatpush1.bf16.msra.mxu0 0
  %3777 = vmatprep.subr.bf16.mxu0 0
  %3778 = vmatpush1.bf16.msra.mxu0 0
  %3779 = vmatprep.subr.bf16.mxu0 0
  %3780 = vmatpush1.bf16.msra.mxu0 0
  %3781 = vmatprep.subr.bf16.mxu0 0
  %3782 = vmatpush1.bf16.msra.mxu0 0
  %3783 = vmatprep.subr.bf16.mxu0 0
  %3784 = vmatpush1.bf16.msra.mxu0 0
  %3785 = vmatprep.mubr.bf16.mxu0 0
  %3786 = vmatmul.mubr.bf16.gmra.mrb[0].mxu0 %v2720
  %v3787 = vpop.f32.mrb[0].mxu0
  %v3788 = vadd.f32 0.0, %v3787
  %v3789 = vpop.f32.mrb[0].mxu0
  %v3790 = vadd.f32 0.0, %v3789
  %v3791 = vpop.f32.mrb[0].mxu0
  %v3792 = vadd.f32 0.0, %v3791
  %v3793 = vpop.f32.mrb[0].mxu0
  %v3794 = vadd.f32 0.0, %v3793
  %3795 = vmatprep.mubr.bf16.mxu0 0
  %3796 = vmatmul.mubr.bf16.gmra.mrb[0].mxu0 %v2723
  %v3797 = vpop.f32.mrb[0].mxu0
  %v3798 = vadd.f32 0.0, %v3797
  %v3799 = vpop.f32.mrb[0].mxu0
  %v3800 = vadd.f32 0.0, %v3799
  %v3801 = vpop.f32.mrb[0].mxu0
  %v3802 = vadd.f32 0.0, %v3801
  %v3803 = vpop.f32.mrb[0].mxu0
  %v3804 = vadd.f32 0.0, %v3803
  %3805 = vmatprep.mubr.bf16.mxu0 0
  %3806 = vmatmul.mubr.bf16.gmra.mrb[0].mxu0 %v2726
  %v3807 = vpop.f32.mrb[0].mxu0
  %v3808 = vadd.f32 0.0, %v3807
  %v3809 = vpop.f32.mrb[0].mxu0
  %v3810 = vadd.f32 0.0, %v3809
  %v3811 = vpop.f32.mrb[0].mxu0
  %v3812 = vadd.f32 0.0, %v3811
  %v3813 = vpop.f32.mrb[0].mxu0
  %v3814 = vadd.f32 0.0, %v3813
  %3815 = vmatprep.mubr.bf16.mxu0 0
  %3816 = vmatmul.mubr.bf16.gmra.mrb[0].mxu0 %v2729
  %v3817 = vpop.f32.mrb[0].mxu0
  %v3818 = vadd.f32 0.0, %v3817
  %v3819 = vpop.f32.mrb[0].mxu0
  %v3820 = vadd.f32 0.0, %v3819
  %v3821 = vpop.f32.mrb[0].mxu0
  %v3822 = vadd.f32 0.0, %v3821
  %v3823 = vpop.f32.mrb[0].mxu0
  %v3824 = vadd.f32 0.0, %v3823
  %3825 = vdwg.mxu0
  %3826 = vmatprep.subr.bf16.mxu0 %v2601
  %3827 = vmatpush1.bf16.msra.mxu0 %v2600
  %3828 = vmatprep.subr.bf16.mxu0 %v2633
  %3829 = vmatpush1.bf16.msra.mxu0 %v2632
  %3830 = vmatprep.subr.bf16.mxu0 %v2665
  %3831 = vmatpush1.bf16.msra.mxu0 %v2664
  %3832 = vmatprep.subr.bf16.mxu0 %v2697
  %3833 = vmatpush1.bf16.msra.mxu0 %v2696
  %3834 = vmatprep.subr.bf16.mxu0 0
  %3835 = vmatpush1.bf16.msra.mxu0 0
  %3836 = vmatprep.subr.bf16.mxu0 0
  %3837 = vmatpush1.bf16.msra.mxu0 0
  %3838 = vmatprep.subr.bf16.mxu0 0
  %3839 = vmatpush1.bf16.msra.mxu0 0
  %3840 = vmatprep.subr.bf16.mxu0 0
  %3841 = vmatpush1.bf16.msra.mxu0 0
  %3842 = vmatprep.subr.bf16.mxu0 0
  %3843 = vmatpush1.bf16.msra.mxu0 0
  %3844 = vmatprep.subr.bf16.mxu0 0
  %3845 = vmatpush1.bf16.msra.mxu0 0
  %3846 = vmatprep.subr.bf16.mxu0 0
  %3847 = vmatpush1.bf16.msra.mxu0 0
  %3848 = vmatprep.subr.bf16.mxu0 0
  %3849 = vmatpush1.bf16.msra.mxu0 0
  %3850 = vmatprep.subr.bf16.mxu0 0
  %3851 = vmatpush1.bf16.msra.mxu0 0
  %3852 = vmatprep.subr.bf16.mxu0 0
  %3853 = vmatpush1.bf16.msra.mxu0 0
  %3854 = vmatprep.subr.bf16.mxu0 0
  %3855 = vmatpush1.bf16.msra.mxu0 0
  %3856 = vmatprep.subr.bf16.mxu0 0
  %3857 = vmatpush1.bf16.msra.mxu0 0
  %3858 = vmatprep.mubr.bf16.mxu0 0
  %3859 = vmatmul.mubr.bf16.gmra.mrb[0].mxu0 %v2720
  %v3860 = vpop.f32.mrb[0].mxu0
  %v3861 = vadd.f32 0.0, %v3860
  %v3862 = vpop.f32.mrb[0].mxu0
  %v3863 = vadd.f32 0.0, %v3862
  %v3864 = vpop.f32.mrb[0].mxu0
  %v3865 = vadd.f32 0.0, %v3864
  %v3866 = vpop.f32.mrb[0].mxu0
  %v3867 = vadd.f32 0.0, %v3866
  %3868 = vmatprep.mubr.bf16.mxu0 0
  %3869 = vmatmul.mubr.bf16.gmra.mrb[0].mxu0 %v2723
  %v3870 = vpop.f32.mrb[0].mxu0
  %v3871 = vadd.f32 0.0, %v3870
  %v3872 = vpop.f32.mrb[0].mxu0
  %v3873 = vadd.f32 0.0, %v3872
  %v3874 = vpop.f32.mrb[0].mxu0
  %v3875 = vadd.f32 0.0, %v3874
  %v3876 = vpop.f32.mrb[0].mxu0
  %v3877 = vadd.f32 0.0, %v3876
  %3878 = vmatprep.mubr.bf16.mxu0 0
  %3879 = vmatmul.mubr.bf16.gmra.mrb[0].mxu0 %v2726
  %v3880 = vpop.f32.mrb[0].mxu0
  %v3881 = vadd.f32 0.0, %v3880
  %v3882 = vpop.f32.mrb[0].mxu0
  %v3883 = vadd.f32 0.0, %v3882
  %v3884 = vpop.f32.mrb[0].mxu0
  %v3885 = vadd.f32 0.0, %v3884
  %v3886 = vpop.f32.mrb[0].mxu0
  %v3887 = vadd.f32 0.0, %v3886
  %3888 = vmatprep.mubr.bf16.mxu0 0
  %3889 = vmatmul.mubr.bf16.gmra.mrb[0].mxu0 %v2729
  %v3890 = vpop.f32.mrb[0].mxu0
  %v3891 = vadd.f32 0.0, %v3890
  %v3892 = vpop.f32.mrb[0].mxu0
  %v3893 = vadd.f32 0.0, %v3892
  %v3894 = vpop.f32.mrb[0].mxu0
  %v3895 = vadd.f32 0.0, %v3894
  %v3896 = vpop.f32.mrb[0].mxu0
  %v3897 = vadd.f32 0.0, %v3896
  %3898 = vdwg.mxu0
  %v3899 = vmax.f32 %v2766, 0.0
  %v3900 = vmax.f32 %v2768, 0.0
  %v3901 = vmax.f32 %v2839, 0.0
  %v3902 = vmax.f32 %v2841, 0.0
  %v3903 = vmax.f32 %v2912, 0.0
  %v3904 = vmax.f32 %v2914, 0.0
  %v3905 = vmax.f32 %v2985, 0.0
  %v3906 = vmax.f32 %v2987, 0.0
  %v3907 = vmax.f32 %v3058, 0.0
  %v3908 = vmax.f32 %v3060, 0.0
  %v3909 = vmax.f32 %v3131, 0.0
  %v3910 = vmax.f32 %v3133, 0.0
  %v3911 = vmax.f32 %v3204, 0.0
  %v3912 = vmax.f32 %v3206, 0.0
  %v3913 = vmax.f32 %v3277, 0.0
  %v3914 = vmax.f32 %v3279, 0.0
  %v3915 = vmax.f32 %v3350, 0.0
  %v3916 = vmax.f32 %v3352, 0.0
  %v3917 = vmax.f32 %v3423, 0.0
  %v3918 = vmax.f32 %v3425, 0.0
  %v3919 = vmax.f32 %v3496, 0.0
  %v3920 = vmax.f32 %v3498, 0.0
  %v3921 = vmax.f32 %v3569, 0.0
  %v3922 = vmax.f32 %v3571, 0.0
  %v3923 = vmax.f32 %v3642, 0.0
  %v3924 = vmax.f32 %v3644, 0.0
  %v3925 = vmax.f32 %v3715, 0.0
  %v3926 = vmax.f32 %v3717, 0.0
  %v3927 = vmax.f32 %v3788, 0.0
  %v3928 = vmax.f32 %v3790, 0.0
  %v3929 = vmax.f32 %v3861, 0.0
  %v3930 = vmax.f32 %v3863, 0.0
  %v3931 = vmax.f32 %v2770, 0.0
  %v3932 = vmax.f32 %v2772, 0.0
  %v3933 = vmax.f32 %v2843, 0.0
  %v3934 = vmax.f32 %v2845, 0.0
  %v3935 = vmax.f32 %v2916, 0.0
  %v3936 = vmax.f32 %v2918, 0.0
  %v3937 = vmax.f32 %v2989, 0.0
  %v3938 = vmax.f32 %v2991, 0.0
  %v3939 = vmax.f32 %v3062, 0.0
  %v3940 = vmax.f32 %v3064, 0.0
  %v3941 = vmax.f32 %v3135, 0.0
  %v3942 = vmax.f32 %v3137, 0.0
  %v3943 = vmax.f32 %v3208, 0.0
  %v3944 = vmax.f32 %v3210, 0.0
  %v3945 = vmax.f32 %v3281, 0.0
  %v3946 = vmax.f32 %v3283, 0.0
  %v3947 = vmax.f32 %v3354, 0.0
  %v3948 = vmax.f32 %v3356, 0.0
  %v3949 = vmax.f32 %v3427, 0.0
  %v3950 = vmax.f32 %v3429, 0.0
  %v3951 = vmax.f32 %v3500, 0.0
  %v3952 = vmax.f32 %v3502, 0.0
  %v3953 = vmax.f32 %v3573, 0.0
  %v3954 = vmax.f32 %v3575, 0.0
  %v3955 = vmax.f32 %v3646, 0.0
  %v3956 = vmax.f32 %v3648, 0.0
  %v3957 = vmax.f32 %v3719, 0.0
  %v3958 = vmax.f32 %v3721, 0.0
  %v3959 = vmax.f32 %v3792, 0.0
  %v3960 = vmax.f32 %v3794, 0.0
  %v3961 = vmax.f32 %v3865, 0.0
  %v3962 = vmax.f32 %v3867, 0.0
  %v3963 = vmax.f32 %v2776, 0.0
  %v3964 = vmax.f32 %v2778, 0.0
  %v3965 = vmax.f32 %v2849, 0.0
  %v3966 = vmax.f32 %v2851, 0.0
  %v3967 = vmax.f32 %v2922, 0.0
  %v3968 = vmax.f32 %v2924, 0.0
  %v3969 = vmax.f32 %v2995, 0.0
  %v3970 = vmax.f32 %v2997, 0.0
  %v3971 = vmax.f32 %v3068, 0.0
  %v3972 = vmax.f32 %v3070, 0.0
  %v3973 = vmax.f32 %v3141, 0.0
  %v3974 = vmax.f32 %v3143, 0.0
  %v3975 = vmax.f32 %v3214, 0.0
  %v3976 = vmax.f32 %v3216, 0.0
  %v3977 = vmax.f32 %v3287, 0.0
  %v3978 = vmax.f32 %v3289, 0.0
  %v3979 = vmax.f32 %v3360, 0.0
  %v3980 = vmax.f32 %v3362, 0.0
  %v3981 = vmax.f32 %v3433, 0.0
  %v3982 = vmax.f32 %v3435, 0.0
  %v3983 = vmax.f32 %v3506, 0.0
  %v3984 = vmax.f32 %v3508, 0.0
  %v3985 = vmax.f32 %v3579, 0.0
  %v3986 = vmax.f32 %v3581, 0.0
  %v3987 = vmax.f32 %v3652, 0.0
  %v3988 = vmax.f32 %v3654, 0.0
  %v3989 = vmax.f32 %v3725, 0.0
  %v3990 = vmax.f32 %v3727, 0.0
  %v3991 = vmax.f32 %v3798, 0.0
  %v3992 = vmax.f32 %v3800, 0.0
  %v3993 = vmax.f32 %v3871, 0.0
  %v3994 = vmax.f32 %v3873, 0.0
  %v3995 = vmax.f32 %v2780, 0.0
  %v3996 = vmax.f32 %v2782, 0.0
  %v3997 = vmax.f32 %v2853, 0.0
  %v3998 = vmax.f32 %v2855, 0.0
  %v3999 = vmax.f32 %v2926, 0.0
  %v4000 = vmax.f32 %v2928, 0.0
  %v4001 = vmax.f32 %v2999, 0.0
  %v4002 = vmax.f32 %v3001, 0.0
  %v4003 = vmax.f32 %v3072, 0.0
  %v4004 = vmax.f32 %v3074, 0.0
  %v4005 = vmax.f32 %v3145, 0.0
  %v4006 = vmax.f32 %v3147, 0.0
  %v4007 = vmax.f32 %v3218, 0.0
  %v4008 = vmax.f32 %v3220, 0.0
  %v4009 = vmax.f32 %v3291, 0.0
  %v4010 = vmax.f32 %v3293, 0.0
  %v4011 = vmax.f32 %v3364, 0.0
  %v4012 = vmax.f32 %v3366, 0.0
  %v4013 = vmax.f32 %v3437, 0.0
  %v4014 = vmax.f32 %v3439, 0.0
  %v4015 = vmax.f32 %v3510, 0.0
  %v4016 = vmax.f32 %v3512, 0.0
  %v4017 = vmax.f32 %v3583, 0.0
  %v4018 = vmax.f32 %v3585, 0.0
  %v4019 = vmax.f32 %v3656, 0.0
  %v4020 = vmax.f32 %v3658, 0.0
  %v4021 = vmax.f32 %v3729, 0.0
  %v4022 = vmax.f32 %v3731, 0.0
  %v4023 = vmax.f32 %v3802, 0.0
  %v4024 = vmax.f32 %v3804, 0.0
  %v4025 = vmax.f32 %v3875, 0.0
  %v4026 = vmax.f32 %v3877, 0.0
  %v4027 = vmax.f32 %v2786, 0.0
  %v4028 = vmax.f32 %v2788, 0.0
  %v4029 = vmax.f32 %v2859, 0.0
  %v4030 = vmax.f32 %v2861, 0.0
  %v4031 = vmax.f32 %v2932, 0.0
  %v4032 = vmax.f32 %v2934, 0.0
  %v4033 = vmax.f32 %v3005, 0.0
  %v4034 = vmax.f32 %v3007, 0.0
  %v4035 = vmax.f32 %v3078, 0.0
  %v4036 = vmax.f32 %v3080, 0.0
  %v4037 = vmax.f32 %v3151, 0.0
  %v4038 = vmax.f32 %v3153, 0.0
  %v4039 = vmax.f32 %v3224, 0.0
  %v4040 = vmax.f32 %v3226, 0.0
  %v4041 = vmax.f32 %v3297, 0.0
  %v4042 = vmax.f32 %v3299, 0.0
  %v4043 = vmax.f32 %v3370, 0.0
  %v4044 = vmax.f32 %v3372, 0.0
  %v4045 = vmax.f32 %v3443, 0.0
  %v4046 = vmax.f32 %v3445, 0.0
  %v4047 = vmax.f32 %v3516, 0.0
  %v4048 = vmax.f32 %v3518, 0.0
  %v4049 = vmax.f32 %v3589, 0.0
  %v4050 = vmax.f32 %v3591, 0.0
  %v4051 = vmax.f32 %v3662, 0.0
  %v4052 = vmax.f32 %v3664, 0.0
  %v4053 = vmax.f32 %v3735, 0.0
  %v4054 = vmax.f32 %v3737, 0.0
  %v4055 = vmax.f32 %v3808, 0.0
  %v4056 = vmax.f32 %v3810, 0.0
  %v4057 = vmax.f32 %v3881, 0.0
  %v4058 = vmax.f32 %v3883, 0.0
  %v4059 = vmax.f32 %v2790, 0.0
  %v4060 = vmax.f32 %v2792, 0.0
  %v4061 = vmax.f32 %v2863, 0.0
  %v4062 = vmax.f32 %v2865, 0.0
  %v4063 = vmax.f32 %v2936, 0.0
  %v4064 = vmax.f32 %v2938, 0.0
  %v4065 = vmax.f32 %v3009, 0.0
  %v4066 = vmax.f32 %v3011, 0.0
  %v4067 = vmax.f32 %v3082, 0.0
  %v4068 = vmax.f32 %v3084, 0.0
  %v4069 = vmax.f32 %v3155, 0.0
  %v4070 = vmax.f32 %v3157, 0.0
  %v4071 = vmax.f32 %v3228, 0.0
  %v4072 = vmax.f32 %v3230, 0.0
  %v4073 = vmax.f32 %v3301, 0.0
  %v4074 = vmax.f32 %v3303, 0.0
  %v4075 = vmax.f32 %v3374, 0.0
  %v4076 = vmax.f32 %v3376, 0.0
  %v4077 = vmax.f32 %v3447, 0.0
  %v4078 = vmax.f32 %v3449, 0.0
  %v4079 = vmax.f32 %v3520, 0.0
  %v4080 = vmax.f32 %v3522, 0.0
  %v4081 = vmax.f32 %v3593, 0.0
  %v4082 = vmax.f32 %v3595, 0.0
  %v4083 = vmax.f32 %v3666, 0.0
  %v4084 = vmax.f32 %v3668, 0.0
  %v4085 = vmax.f32 %v3739, 0.0
  %v4086 = vmax.f32 %v3741, 0.0
  %v4087 = vmax.f32 %v3812, 0.0
  %v4088 = vmax.f32 %v3814, 0.0
  %v4089 = vmax.f32 %v3885, 0.0
  %v4090 = vmax.f32 %v3887, 0.0
  %v4091 = vmax.f32 %v2796, 0.0
  %v4092 = vmax.f32 %v2798, 0.0
  %v4093 = vmax.f32 %v2869, 0.0
  %v4094 = vmax.f32 %v2871, 0.0
  %v4095 = vmax.f32 %v2942, 0.0
  %v4096 = vmax.f32 %v2944, 0.0
  %v4097 = vmax.f32 %v3015, 0.0
  %v4098 = vmax.f32 %v3017, 0.0
  %v4099 = vmax.f32 %v3088, 0.0
  %v4100 = vmax.f32 %v3090, 0.0
  %v4101 = vmax.f32 %v3161, 0.0
  %v4102 = vmax.f32 %v3163, 0.0
  %v4103 = vmax.f32 %v3234, 0.0
  %v4104 = vmax.f32 %v3236, 0.0
  %v4105 = vmax.f32 %v3307, 0.0
  %v4106 = vmax.f32 %v3309, 0.0
  %v4107 = vmax.f32 %v3380, 0.0
  %v4108 = vmax.f32 %v3382, 0.0
  %v4109 = vmax.f32 %v3453, 0.0
  %v4110 = vmax.f32 %v3455, 0.0
  %v4111 = vmax.f32 %v3526, 0.0
  %v4112 = vmax.f32 %v3528, 0.0
  %v4113 = vmax.f32 %v3599, 0.0
  %v4114 = vmax.f32 %v3601, 0.0
  %v4115 = vmax.f32 %v3672, 0.0
  %v4116 = vmax.f32 %v3674, 0.0
  %v4117 = vmax.f32 %v3745, 0.0
  %v4118 = vmax.f32 %v3747, 0.0
  %v4119 = vmax.f32 %v3818, 0.0
  %v4120 = vmax.f32 %v3820, 0.0
  %v4121 = vmax.f32 %v3891, 0.0
  %v4122 = vmax.f32 %v3893, 0.0
  %v4123 = vmax.f32 %v2800, 0.0
  %v4124 = vmax.f32 %v2802, 0.0
  %v4125 = vmax.f32 %v2873, 0.0
  %v4126 = vmax.f32 %v2875, 0.0
  %v4127 = vmax.f32 %v2946, 0.0
  %v4128 = vmax.f32 %v2948, 0.0
  %v4129 = vmax.f32 %v3019, 0.0
  %v4130 = vmax.f32 %v3021, 0.0
  %v4131 = vmax.f32 %v3092, 0.0
  %v4132 = vmax.f32 %v3094, 0.0
  %v4133 = vmax.f32 %v3165, 0.0
  %v4134 = vmax.f32 %v3167, 0.0
  %v4135 = vmax.f32 %v3238, 0.0
  %v4136 = vmax.f32 %v3240, 0.0
  %v4137 = vmax.f32 %v3311, 0.0
  %v4138 = vmax.f32 %v3313, 0.0
  %v4139 = vmax.f32 %v3384, 0.0
  %v4140 = vmax.f32 %v3386, 0.0
  %v4141 = vmax.f32 %v3457, 0.0
  %v4142 = vmax.f32 %v3459, 0.0
  %v4143 = vmax.f32 %v3530, 0.0
  %v4144 = vmax.f32 %v3532, 0.0
  %v4145 = vmax.f32 %v3603, 0.0
  %v4146 = vmax.f32 %v3605, 0.0
  %v4147 = vmax.f32 %v3676, 0.0
  %v4148 = vmax.f32 %v3678, 0.0
  %v4149 = vmax.f32 %v3749, 0.0
  %v4150 = vmax.f32 %v3751, 0.0
  %v4151 = vmax.f32 %v3822, 0.0
  %v4152 = vmax.f32 %v3824, 0.0
  %v4153 = vmax.f32 %v3895, 0.0
  %v4154 = vmax.f32 %v3897, 0.0
  %v4155 = vld [vmem:[%s3] sm:$0xf]
  %v4156 = vld [vmem:[%s3 + $0x4] sm:$0xf]
  %v4157 = vld [vmem:[%s3 + $0x8] sm:$0xf]
  %v4158 = vld [vmem:[%s3 + $0xc] sm:$0xf]
  %v4159 = vld [vmem:[%s3 + $0x10] sm:$0xf]
  %v4160 = vld [vmem:[%s3 + $0x14] sm:$0xf]
  %v4161 = vld [vmem:[%s3 + $0x18] sm:$0xf]
  %v4162 = vld [vmem:[%s3 + $0x1c] sm:$0xf]
  %v4163 = vld [vmem:[%s3 + $0x20] sm:$0xf]
  %v4164 = vld [vmem:[%s3 + $0x24] sm:$0xf]
  %v4165 = vld [vmem:[%s3 + $0x28] sm:$0xf]
  %v4166 = vld [vmem:[%s3 + $0x2c] sm:$0xf]
  %v4167 = vld [vmem:[%s3 + $0x30] sm:$0xf]
  %v4168 = vld [vmem:[%s3 + $0x34] sm:$0xf]
  %v4169 = vld [vmem:[%s3 + $0x38] sm:$0xf]
  %v4170 = vld [vmem:[%s3 + $0x3c] sm:$0xf]
  %v4171 = vpack.c.bf16 %v3931, %v3899
  %v4172 = vpack.c.bf16 %v3932, %v3900
  %v4173 = vpack.c.bf16 %v3933, %v3901
  %v4174 = vpack.c.bf16 %v3934, %v3902
  %v4175 = vpack.c.bf16 %v3935, %v3903
  %v4176 = vpack.c.bf16 %v3936, %v3904
  %v4177 = vpack.c.bf16 %v3937, %v3905
  %v4178 = vpack.c.bf16 %v3938, %v3906
  %v4179 = vpack.c.bf16 %v3939, %v3907
  %v4180 = vpack.c.bf16 %v3940, %v3908
  %v4181 = vpack.c.bf16 %v3941, %v3909
  %v4182 = vpack.c.bf16 %v3942, %v3910
  %v4183 = vpack.c.bf16 %v3943, %v3911
  %v4184 = vpack.c.bf16 %v3944, %v3912
  %v4185 = vpack.c.bf16 %v3945, %v3913
  %v4186 = vpack.c.bf16 %v3946, %v3914
  %v4187 = vpack.c.bf16 %v3947, %v3915
  %v4188 = vpack.c.bf16 %v3948, %v3916
  %v4189 = vpack.c.bf16 %v3949, %v3917
  %v4190 = vpack.c.bf16 %v3950, %v3918
  %v4191 = vpack.c.bf16 %v3951, %v3919
  %v4192 = vpack.c.bf16 %v3952, %v3920
  %v4193 = vpack.c.bf16 %v3953, %v3921
  %v4194 = vpack.c.bf16 %v3954, %v3922
  %v4195 = vpack.c.bf16 %v3955, %v3923
  %v4196 = vpack.c.bf16 %v3956, %v3924
  %v4197 = vpack.c.bf16 %v3957, %v3925
  %v4198 = vpack.c.bf16 %v3958, %v3926
  %v4199 = vpack.c.bf16 %v3959, %v3927
  %v4200 = vpack.c.bf16 %v3960, %v3928
  %v4201 = vpack.c.bf16 %v3961, %v3929
  %v4202 = vpack.c.bf16 %v3962, %v3930
  %v4203 = vpack.c.bf16 %v3995, %v3963
  %v4204 = vpack.c.bf16 %v3996, %v3964
  %v4205 = vpack.c.bf16 %v3997, %v3965
  %v4206 = vpack.c.bf16 %v3998, %v3966
  %v4207 = vpack.c.bf16 %v3999, %v3967
  %v4208 = vpack.c.bf16 %v4000, %v3968
  %v4209 = vpack.c.bf16 %v4001, %v3969
  %v4210 = vpack.c.bf16 %v4002, %v3970
  %v4211 = vpack.c.bf16 %v4003, %v3971
  %v4212 = vpack.c.bf16 %v4004, %v3972
  %v4213 = vpack.c.bf16 %v4005, %v3973
  %v4214 = vpack.c.bf16 %v4006, %v3974
  %v4215 = vpack.c.bf16 %v4007, %v3975
  %v4216 = vpack.c.bf16 %v4008, %v3976
  %v4217 = vpack.c.bf16 %v4009, %v3977
  %v4218 = vpack.c.bf16 %v4010, %v3978
  %v4219 = vpack.c.bf16 %v4011, %v3979
  %v4220 = vpack.c.bf16 %v4012, %v3980
  %v4221 = vpack.c.bf16 %v4013, %v3981
  %v4222 = vpack.c.bf16 %v4014, %v3982
  %v4223 = vpack.c.bf16 %v4015, %v3983
  %v4224 = vpack.c.bf16 %v4016, %v3984
  %v4225 = vpack.c.bf16 %v4017, %v3985
  %v4226 = vpack.c.bf16 %v4018, %v3986
  %v4227 = vpack.c.bf16 %v4019, %v3987
  %v4228 = vpack.c.bf16 %v4020, %v3988
  %v4229 = vpack.c.bf16 %v4021, %v3989
  %v4230 = vpack.c.bf16 %v4022, %v3990
  %v4231 = vpack.c.bf16 %v4023, %v3991
  %v4232 = vpack.c.bf16 %v4024, %v3992
  %v4233 = vpack.c.bf16 %v4025, %v3993
  %v4234 = vpack.c.bf16 %v4026, %v3994
  %v4235 = vpack.c.bf16 %v4059, %v4027
  %v4236 = vpack.c.bf16 %v4060, %v4028
  %v4237 = vpack.c.bf16 %v4061, %v4029
  %v4238 = vpack.c.bf16 %v4062, %v4030
  %v4239 = vpack.c.bf16 %v4063, %v4031
  %v4240 = vpack.c.bf16 %v4064, %v4032
  %v4241 = vpack.c.bf16 %v4065, %v4033
  %v4242 = vpack.c.bf16 %v4066, %v4034
  %v4243 = vpack.c.bf16 %v4067, %v4035
  %v4244 = vpack.c.bf16 %v4068, %v4036
  %v4245 = vpack.c.bf16 %v4069, %v4037
  %v4246 = vpack.c.bf16 %v4070, %v4038
  %v4247 = vpack.c.bf16 %v4071, %v4039
  %v4248 = vpack.c.bf16 %v4072, %v4040
  %v4249 = vpack.c.bf16 %v4073, %v4041
  %v4250 = vpack.c.bf16 %v4074, %v4042
  %v4251 = vpack.c.bf16 %v4075, %v4043
  %v4252 = vpack.c.bf16 %v4076, %v4044
  %v4253 = vpack.c.bf16 %v4077, %v4045
  %v4254 = vpack.c.bf16 %v4078, %v4046
  %v4255 = vpack.c.bf16 %v4079, %v4047
  %v4256 = vpack.c.bf16 %v4080, %v4048
  %v4257 = vpack.c.bf16 %v4081, %v4049
  %v4258 = vpack.c.bf16 %v4082, %v4050
  %v4259 = vpack.c.bf16 %v4083, %v4051
  %v4260 = vpack.c.bf16 %v4084, %v4052
  %v4261 = vpack.c.bf16 %v4085, %v4053
  %v4262 = vpack.c.bf16 %v4086, %v4054
  %v4263 = vpack.c.bf16 %v4087, %v4055
  %v4264 = vpack.c.bf16 %v4088, %v4056
  %v4265 = vpack.c.bf16 %v4089, %v4057
  %v4266 = vpack.c.bf16 %v4090, %v4058
  %v4267 = vpack.c.bf16 %v4123, %v4091
  %v4268 = vpack.c.bf16 %v4124, %v4092
  %v4269 = vpack.c.bf16 %v4125, %v4093
  %v4270 = vpack.c.bf16 %v4126, %v4094
  %v4271 = vpack.c.bf16 %v4127, %v4095
  %v4272 = vpack.c.bf16 %v4128, %v4096
  %v4273 = vpack.c.bf16 %v4129, %v4097
  %v4274 = vpack.c.bf16 %v4130, %v4098
  %v4275 = vpack.c.bf16 %v4131, %v4099
  %v4276 = vpack.c.bf16 %v4132, %v4100
  %v4277 = vpack.c.bf16 %v4133, %v4101
  %v4278 = vpack.c.bf16 %v4134, %v4102
  %v4279 = vpack.c.bf16 %v4135, %v4103
  %v4280 = vpack.c.bf16 %v4136, %v4104
  %v4281 = vpack.c.bf16 %v4137, %v4105
  %v4282 = vpack.c.bf16 %v4138, %v4106
  %v4283 = vpack.c.bf16 %v4139, %v4107
  %v4284 = vpack.c.bf16 %v4140, %v4108
  %v4285 = vpack.c.bf16 %v4141, %v4109
  %v4286 = vpack.c.bf16 %v4142, %v4110
  %v4287 = vpack.c.bf16 %v4143, %v4111
  %v4288 = vpack.c.bf16 %v4144, %v4112
  %v4289 = vpack.c.bf16 %v4145, %v4113
  %v4290 = vpack.c.bf16 %v4146, %v4114
  %v4291 = vpack.c.bf16 %v4147, %v4115
  %v4292 = vpack.c.bf16 %v4148, %v4116
  %v4293 = vpack.c.bf16 %v4149, %v4117
  %v4294 = vpack.c.bf16 %v4150, %v4118
  %v4295 = vpack.c.bf16 %v4151, %v4119
  %v4296 = vpack.c.bf16 %v4152, %v4120
  %v4297 = vpack.c.bf16 %v4153, %v4121
  %v4298 = vpack.c.bf16 %v4154, %v4122
  %v4315 = vunpack.c.l.b16 %v4155
  %v4316 = vunpack.c.l.b16 %v4156
  %v4317 = vunpack.c.l.b16 %v4157
  %v4318 = vunpack.c.l.b16 %v4158
  %v4319 = vunpack.c.l.b16 %v4159
  %v4320 = vunpack.c.l.b16 %v4160
  %v4321 = vunpack.c.l.b16 %v4161
  %v4322 = vunpack.c.l.b16 %v4162
  %v4323 = vunpack.c.l.b16 %v4163
  %v4324 = vunpack.c.l.b16 %v4164
  %v4325 = vunpack.c.l.b16 %v4165
  %v4326 = vunpack.c.l.b16 %v4166
  %v4327 = vunpack.c.l.b16 %v4167
  %v4328 = vunpack.c.l.b16 %v4168
  %v4329 = vunpack.c.l.b16 %v4169
  %v4330 = vunpack.c.l.b16 %v4170
  %v4331 = vpack.c.b16 %v4316, %v4315
  %v4332 = vpack.c.b16 %v4318, %v4317
  %v4333 = vpack.c.b16 %v4320, %v4319
  %v4334 = vpack.c.b16 %v4322, %v4321
  %v4335 = vpack.c.b16 %v4324, %v4323
  %v4336 = vpack.c.b16 %v4326, %v4325
  %v4337 = vpack.c.b16 %v4328, %v4327
  %v4338 = vpack.c.b16 %v4330, %v4329
  %v4340 = vsel %vm2718, %v4331, 0
  %v4343 = vsel %vm2718, %v4332, 0
  %v4346 = vsel %vm2718, %v4333, 0
  %v4349 = vsel %vm2718, %v4334, 0
  %v4352 = vsel %vm2718, %v4335, 0
  %v4355 = vsel %vm2718, %v4336, 0
  %v4358 = vsel %vm2718, %v4337, 0
  %v4361 = vsel %vm2718, %v4338, 0
  %4363 = vmatprep.subr.bf16.mxu0 %v4172
  %4364 = vmatpush1.bf16.msra.mxu0 %v4171
  %4365 = vmatprep.subr.bf16.mxu0 %v4204
  %4366 = vmatpush1.bf16.msra.mxu0 %v4203
  %4367 = vmatprep.subr.bf16.mxu0 %v4236
  %4368 = vmatpush1.bf16.msra.mxu0 %v4235
  %4369 = vmatprep.subr.bf16.mxu0 %v4268
  %4370 = vmatpush1.bf16.msra.mxu0 %v4267
  %4371 = vmatprep.subr.bf16.mxu0 0
  %4372 = vmatpush1.bf16.msra.mxu0 0
  %4373 = vmatprep.subr.bf16.mxu0 0
  %4374 = vmatpush1.bf16.msra.mxu0 0
  %4375 = vmatprep.subr.bf16.mxu0 0
  %4376 = vmatpush1.bf16.msra.mxu0 0
  %4377 = vmatprep.subr.bf16.mxu0 0
  %4378 = vmatpush1.bf16.msra.mxu0 0
  %4379 = vmatprep.subr.bf16.mxu0 0
  %4380 = vmatpush1.bf16.msra.mxu0 0
  %4381 = vmatprep.subr.bf16.mxu0 0
  %4382 = vmatpush1.bf16.msra.mxu0 0
  %4383 = vmatprep.subr.bf16.mxu0 0
  %4384 = vmatpush1.bf16.msra.mxu0 0
  %4385 = vmatprep.subr.bf16.mxu0 0
  %4386 = vmatpush1.bf16.msra.mxu0 0
  %4387 = vmatprep.subr.bf16.mxu0 0
  %4388 = vmatpush1.bf16.msra.mxu0 0
  %4389 = vmatprep.subr.bf16.mxu0 0
  %4390 = vmatpush1.bf16.msra.mxu0 0
  %4391 = vmatprep.subr.bf16.mxu0 0
  %4392 = vmatpush1.bf16.msra.mxu0 0
  %4393 = vmatprep.subr.bf16.mxu0 0
  %4394 = vmatpush1.bf16.msra.mxu0 0
  %4395 = vmatprep.mubr.bf16.mxu0 0
  %4396 = vmatmul.mubr.bf16.gmra.mrb[0].mxu0 %v4340
  %v4397 = vpop.f32.mrb[0].mxu0
  %v4398 = vadd.f32 0.0, %v4397
  %v4399 = vpop.f32.mrb[0].mxu0
  %v4400 = vadd.f32 0.0, %v4399
  %v4401 = vpop.f32.mrb[0].mxu0
  %v4402 = vadd.f32 0.0, %v4401
  %v4403 = vpop.f32.mrb[0].mxu0
  %v4404 = vadd.f32 0.0, %v4403
  %4405 = vmatprep.mubr.bf16.mxu0 0
  %4406 = vmatmul.mubr.bf16.gmra.mrb[0].mxu0 %v4343
  %v4407 = vpop.f32.mrb[0].mxu0
  %v4408 = vadd.f32 0.0, %v4407
  %v4409 = vpop.f32.mrb[0].mxu0
  %v4410 = vadd.f32 0.0, %v4409
  %v4411 = vpop.f32.mrb[0].mxu0
  %v4412 = vadd.f32 0.0, %v4411
  %v4413 = vpop.f32.mrb[0].mxu0
  %v4414 = vadd.f32 0.0, %v4413
  %4415 = vmatprep.mubr.bf16.mxu0 0
  %4416 = vmatmul.mubr.bf16.gmra.mrb[0].mxu0 %v4346
  %v4417 = vpop.f32.mrb[0].mxu0
  %v4418 = vadd.f32 0.0, %v4417
  %v4419 = vpop.f32.mrb[0].mxu0
  %v4420 = vadd.f32 0.0, %v4419
  %v4421 = vpop.f32.mrb[0].mxu0
  %v4422 = vadd.f32 0.0, %v4421
  %v4423 = vpop.f32.mrb[0].mxu0
  %v4424 = vadd.f32 0.0, %v4423
  %4425 = vmatprep.mubr.bf16.mxu0 0
  %4426 = vmatmul.mubr.bf16.gmra.mrb[0].mxu0 %v4349
  %v4427 = vpop.f32.mrb[0].mxu0
  %v4428 = vadd.f32 0.0, %v4427
  %v4429 = vpop.f32.mrb[0].mxu0
  %v4430 = vadd.f32 0.0, %v4429
  %v4431 = vpop.f32.mrb[0].mxu0
  %v4432 = vadd.f32 0.0, %v4431
  %v4433 = vpop.f32.mrb[0].mxu0
  %v4434 = vadd.f32 0.0, %v4433
  %4435 = vmatprep.mubr.bf16.mxu0 0
  %4436 = vmatmul.mubr.bf16.gmra.mrb[0].mxu0 %v4352
  %v4437 = vpop.f32.mrb[0].mxu0
  %v4438 = vadd.f32 0.0, %v4437
  %v4439 = vpop.f32.mrb[0].mxu0
  %v4440 = vadd.f32 0.0, %v4439
  %v4441 = vpop.f32.mrb[0].mxu0
  %v4442 = vadd.f32 0.0, %v4441
  %v4443 = vpop.f32.mrb[0].mxu0
  %v4444 = vadd.f32 0.0, %v4443
  %4445 = vmatprep.mubr.bf16.mxu0 0
  %4446 = vmatmul.mubr.bf16.gmra.mrb[0].mxu0 %v4355
  %v4447 = vpop.f32.mrb[0].mxu0
  %v4448 = vadd.f32 0.0, %v4447
  %v4449 = vpop.f32.mrb[0].mxu0
  %v4450 = vadd.f32 0.0, %v4449
  %v4451 = vpop.f32.mrb[0].mxu0
  %v4452 = vadd.f32 0.0, %v4451
  %v4453 = vpop.f32.mrb[0].mxu0
  %v4454 = vadd.f32 0.0, %v4453
  %4455 = vmatprep.mubr.bf16.mxu0 0
  %4456 = vmatmul.mubr.bf16.gmra.mrb[0].mxu0 %v4358
  %v4457 = vpop.f32.mrb[0].mxu0
  %v4458 = vadd.f32 0.0, %v4457
  %v4459 = vpop.f32.mrb[0].mxu0
  %v4460 = vadd.f32 0.0, %v4459
  %v4461 = vpop.f32.mrb[0].mxu0
  %v4462 = vadd.f32 0.0, %v4461
  %v4463 = vpop.f32.mrb[0].mxu0
  %v4464 = vadd.f32 0.0, %v4463
  %4465 = vmatprep.mubr.bf16.mxu0 0
  %4466 = vmatmul.mubr.bf16.gmra.mrb[0].mxu0 %v4361
  %v4467 = vpop.f32.mrb[0].mxu0
  %v4468 = vadd.f32 0.0, %v4467
  %v4469 = vpop.f32.mrb[0].mxu0
  %v4470 = vadd.f32 0.0, %v4469
  %v4471 = vpop.f32.mrb[0].mxu0
  %v4472 = vadd.f32 0.0, %v4471
  %v4473 = vpop.f32.mrb[0].mxu0
  %v4474 = vadd.f32 0.0, %v4473
  %4475 = vdwg.mxu0
  %4476 = vmatprep.subr.bf16.mxu0 %v4174
  %4477 = vmatpush1.bf16.msra.mxu0 %v4173
  %4478 = vmatprep.subr.bf16.mxu0 %v4206
  %4479 = vmatpush1.bf16.msra.mxu0 %v4205
  %4480 = vmatprep.subr.bf16.mxu0 %v4238
  %4481 = vmatpush1.bf16.msra.mxu0 %v4237
  %4482 = vmatprep.subr.bf16.mxu0 %v4270
  %4483 = vmatpush1.bf16.msra.mxu0 %v4269
  %4484 = vmatprep.subr.bf16.mxu0 0
  %4485 = vmatpush1.bf16.msra.mxu0 0
  %4486 = vmatprep.subr.bf16.mxu0 0
  %4487 = vmatpush1.bf16.msra.mxu0 0
  %4488 = vmatprep.subr.bf16.mxu0 0
  %4489 = vmatpush1.bf16.msra.mxu0 0
  %4490 = vmatprep.subr.bf16.mxu0 0
  %4491 = vmatpush1.bf16.msra.mxu0 0
  %4492 = vmatprep.subr.bf16.mxu0 0
  %4493 = vmatpush1.bf16.msra.mxu0 0
  %4494 = vmatprep.subr.bf16.mxu0 0
  %4495 = vmatpush1.bf16.msra.mxu0 0
  %4496 = vmatprep.subr.bf16.mxu0 0
  %4497 = vmatpush1.bf16.msra.mxu0 0
  %4498 = vmatprep.subr.bf16.mxu0 0
  %4499 = vmatpush1.bf16.msra.mxu0 0
  %4500 = vmatprep.subr.bf16.mxu0 0
  %4501 = vmatpush1.bf16.msra.mxu0 0
  %4502 = vmatprep.subr.bf16.mxu0 0
  %4503 = vmatpush1.bf16.msra.mxu0 0
  %4504 = vmatprep.subr.bf16.mxu0 0
  %4505 = vmatpush1.bf16.msra.mxu0 0
  %4506 = vmatprep.subr.bf16.mxu0 0
  %4507 = vmatpush1.bf16.msra.mxu0 0
  %4508 = vmatprep.mubr.bf16.mxu0 0
  %4509 = vmatmul.mubr.bf16.gmra.mrb[0].mxu0 %v4340
  %v4510 = vpop.f32.mrb[0].mxu0
  %v4511 = vadd.f32 0.0, %v4510
  %v4512 = vpop.f32.mrb[0].mxu0
  %v4513 = vadd.f32 0.0, %v4512
  %v4514 = vpop.f32.mrb[0].mxu0
  %v4515 = vadd.f32 0.0, %v4514
  %v4516 = vpop.f32.mrb[0].mxu0
  %v4517 = vadd.f32 0.0, %v4516
  %4518 = vmatprep.mubr.bf16.mxu0 0
  %4519 = vmatmul.mubr.bf16.gmra.mrb[0].mxu0 %v4343
  %v4520 = vpop.f32.mrb[0].mxu0
  %v4521 = vadd.f32 0.0, %v4520
  %v4522 = vpop.f32.mrb[0].mxu0
  %v4523 = vadd.f32 0.0, %v4522
  %v4524 = vpop.f32.mrb[0].mxu0
  %v4525 = vadd.f32 0.0, %v4524
  %v4526 = vpop.f32.mrb[0].mxu0
  %v4527 = vadd.f32 0.0, %v4526
  %4528 = vmatprep.mubr.bf16.mxu0 0
  %4529 = vmatmul.mubr.bf16.gmra.mrb[0].mxu0 %v4346
  %v4530 = vpop.f32.mrb[0].mxu0
  %v4531 = vadd.f32 0.0, %v4530
  %v4532 = vpop.f32.mrb[0].mxu0
  %v4533 = vadd.f32 0.0, %v4532
  %v4534 = vpop.f32.mrb[0].mxu0
  %v4535 = vadd.f32 0.0, %v4534
  %v4536 = vpop.f32.mrb[0].mxu0
  %v4537 = vadd.f32 0.0, %v4536
  %4538 = vmatprep.mubr.bf16.mxu0 0
  %4539 = vmatmul.mubr.bf16.gmra.mrb[0].mxu0 %v4349
  %v4540 = vpop.f32.mrb[0].mxu0
  %v4541 = vadd.f32 0.0, %v4540
  %v4542 = vpop.f32.mrb[0].mxu0
  %v4543 = vadd.f32 0.0, %v4542
  %v4544 = vpop.f32.mrb[0].mxu0
  %v4545 = vadd.f32 0.0, %v4544
  %v4546 = vpop.f32.mrb[0].mxu0
  %v4547 = vadd.f32 0.0, %v4546
  %4548 = vmatprep.mubr.bf16.mxu0 0
  %4549 = vmatmul.mubr.bf16.gmra.mrb[0].mxu0 %v4352
  %v4550 = vpop.f32.mrb[0].mxu0
  %v4551 = vadd.f32 0.0, %v4550
  %v4552 = vpop.f32.mrb[0].mxu0
  %v4553 = vadd.f32 0.0, %v4552
  %v4554 = vpop.f32.mrb[0].mxu0
  %v4555 = vadd.f32 0.0, %v4554
  %v4556 = vpop.f32.mrb[0].mxu0
  %v4557 = vadd.f32 0.0, %v4556
  %4558 = vmatprep.mubr.bf16.mxu0 0
  %4559 = vmatmul.mubr.bf16.gmra.mrb[0].mxu0 %v4355
  %v4560 = vpop.f32.mrb[0].mxu0
  %v4561 = vadd.f32 0.0, %v4560
  %v4562 = vpop.f32.mrb[0].mxu0
  %v4563 = vadd.f32 0.0, %v4562
  %v4564 = vpop.f32.mrb[0].mxu0
  %v4565 = vadd.f32 0.0, %v4564
  %v4566 = vpop.f32.mrb[0].mxu0
  %v4567 = vadd.f32 0.0, %v4566
  %4568 = vmatprep.mubr.bf16.mxu0 0
  %4569 = vmatmul.mubr.bf16.gmra.mrb[0].mxu0 %v4358
  %v4570 = vpop.f32.mrb[0].mxu0
  %v4571 = vadd.f32 0.0, %v4570
  %v4572 = vpop.f32.mrb[0].mxu0
  %v4573 = vadd.f32 0.0, %v4572
  %v4574 = vpop.f32.mrb[0].mxu0
  %v4575 = vadd.f32 0.0, %v4574
  %v4576 = vpop.f32.mrb[0].mxu0
  %v4577 = vadd.f32 0.0, %v4576
  %4578 = vmatprep.mubr.bf16.mxu0 0
  %4579 = vmatmul.mubr.bf16.gmra.mrb[0].mxu0 %v4361
  %v4580 = vpop.f32.mrb[0].mxu0
  %v4581 = vadd.f32 0.0, %v4580
  %v4582 = vpop.f32.mrb[0].mxu0
  %v4583 = vadd.f32 0.0, %v4582
  %v4584 = vpop.f32.mrb[0].mxu0
  %v4585 = vadd.f32 0.0, %v4584
  %v4586 = vpop.f32.mrb[0].mxu0
  %v4587 = vadd.f32 0.0, %v4586
  %4588 = vdwg.mxu0
  %4589 = vmatprep.subr.bf16.mxu0 %v4176
  %4590 = vmatpush1.bf16.msra.mxu0 %v4175
  %4591 = vmatprep.subr.bf16.mxu0 %v4208
  %4592 = vmatpush1.bf16.msra.mxu0 %v4207
  %4593 = vmatprep.subr.bf16.mxu0 %v4240
  %4594 = vmatpush1.bf16.msra.mxu0 %v4239
  %4595 = vmatprep.subr.bf16.mxu0 %v4272
  %4596 = vmatpush1.bf16.msra.mxu0 %v4271
  %4597 = vmatprep.subr.bf16.mxu0 0
  %4598 = vmatpush1.bf16.msra.mxu0 0
  %4599 = vmatprep.subr.bf16.mxu0 0
  %4600 = vmatpush1.bf16.msra.mxu0 0
  %4601 = vmatprep.subr.bf16.mxu0 0
  %4602 = vmatpush1.bf16.msra.mxu0 0
  %4603 = vmatprep.subr.bf16.mxu0 0
  %4604 = vmatpush1.bf16.msra.mxu0 0
  %4605 = vmatprep.subr.bf16.mxu0 0
  %4606 = vmatpush1.bf16.msra.mxu0 0
  %4607 = vmatprep.subr.bf16.mxu0 0
  %4608 = vmatpush1.bf16.msra.mxu0 0
  %4609 = vmatprep.subr.bf16.mxu0 0
  %4610 = vmatpush1.bf16.msra.mxu0 0
  %4611 = vmatprep.subr.bf16.mxu0 0
  %4612 = vmatpush1.bf16.msra.mxu0 0
  %4613 = vmatprep.subr.bf16.mxu0 0
  %4614 = vmatpush1.bf16.msra.mxu0 0
  %4615 = vmatprep.subr.bf16.mxu0 0
  %4616 = vmatpush1.bf16.msra.mxu0 0
  %4617 = vmatprep.subr.bf16.mxu0 0
  %4618 = vmatpush1.bf16.msra.mxu0 0
  %4619 = vmatprep.subr.bf16.mxu0 0
  %4620 = vmatpush1.bf16.msra.mxu0 0
  %4621 = vmatprep.mubr.bf16.mxu0 0
  %4622 = vmatmul.mubr.bf16.gmra.mrb[0].mxu0 %v4340
  %v4623 = vpop.f32.mrb[0].mxu0
  %v4624 = vadd.f32 0.0, %v4623
  %v4625 = vpop.f32.mrb[0].mxu0
  %v4626 = vadd.f32 0.0, %v4625
  %v4627 = vpop.f32.mrb[0].mxu0
  %v4628 = vadd.f32 0.0, %v4627
  %v4629 = vpop.f32.mrb[0].mxu0
  %v4630 = vadd.f32 0.0, %v4629
  %4631 = vmatprep.mubr.bf16.mxu0 0
  %4632 = vmatmul.mubr.bf16.gmra.mrb[0].mxu0 %v4343
  %v4633 = vpop.f32.mrb[0].mxu0
  %v4634 = vadd.f32 0.0, %v4633
  %v4635 = vpop.f32.mrb[0].mxu0
  %v4636 = vadd.f32 0.0, %v4635
  %v4637 = vpop.f32.mrb[0].mxu0
  %v4638 = vadd.f32 0.0, %v4637
  %v4639 = vpop.f32.mrb[0].mxu0
  %v4640 = vadd.f32 0.0, %v4639
  %4641 = vmatprep.mubr.bf16.mxu0 0
  %4642 = vmatmul.mubr.bf16.gmra.mrb[0].mxu0 %v4346
  %v4643 = vpop.f32.mrb[0].mxu0
  %v4644 = vadd.f32 0.0, %v4643
  %v4645 = vpop.f32.mrb[0].mxu0
  %v4646 = vadd.f32 0.0, %v4645
  %v4647 = vpop.f32.mrb[0].mxu0
  %v4648 = vadd.f32 0.0, %v4647
  %v4649 = vpop.f32.mrb[0].mxu0
  %v4650 = vadd.f32 0.0, %v4649
  %4651 = vmatprep.mubr.bf16.mxu0 0
  %4652 = vmatmul.mubr.bf16.gmra.mrb[0].mxu0 %v4349
  %v4653 = vpop.f32.mrb[0].mxu0
  %v4654 = vadd.f32 0.0, %v4653
  %v4655 = vpop.f32.mrb[0].mxu0
  %v4656 = vadd.f32 0.0, %v4655
  %v4657 = vpop.f32.mrb[0].mxu0
  %v4658 = vadd.f32 0.0, %v4657
  %v4659 = vpop.f32.mrb[0].mxu0
  %v4660 = vadd.f32 0.0, %v4659
  %4661 = vmatprep.mubr.bf16.mxu0 0
  %4662 = vmatmul.mubr.bf16.gmra.mrb[0].mxu0 %v4352
  %v4663 = vpop.f32.mrb[0].mxu0
  %v4664 = vadd.f32 0.0, %v4663
  %v4665 = vpop.f32.mrb[0].mxu0
  %v4666 = vadd.f32 0.0, %v4665
  %v4667 = vpop.f32.mrb[0].mxu0
  %v4668 = vadd.f32 0.0, %v4667
  %v4669 = vpop.f32.mrb[0].mxu0
  %v4670 = vadd.f32 0.0, %v4669
  %4671 = vmatprep.mubr.bf16.mxu0 0
  %4672 = vmatmul.mubr.bf16.gmra.mrb[0].mxu0 %v4355
  %v4673 = vpop.f32.mrb[0].mxu0
  %v4674 = vadd.f32 0.0, %v4673
  %v4675 = vpop.f32.mrb[0].mxu0
  %v4676 = vadd.f32 0.0, %v4675
  %v4677 = vpop.f32.mrb[0].mxu0
  %v4678 = vadd.f32 0.0, %v4677
  %v4679 = vpop.f32.mrb[0].mxu0
  %v4680 = vadd.f32 0.0, %v4679
  %4681 = vmatprep.mubr.bf16.mxu0 0
  %4682 = vmatmul.mubr.bf16.gmra.mrb[0].mxu0 %v4358
  %v4683 = vpop.f32.mrb[0].mxu0
  %v4684 = vadd.f32 0.0, %v4683
  %v4685 = vpop.f32.mrb[0].mxu0
  %v4686 = vadd.f32 0.0, %v4685
  %v4687 = vpop.f32.mrb[0].mxu0
  %v4688 = vadd.f32 0.0, %v4687
  %v4689 = vpop.f32.mrb[0].mxu0
  %v4690 = vadd.f32 0.0, %v4689
  %4691 = vmatprep.mubr.bf16.mxu0 0
  %4692 = vmatmul.mubr.bf16.gmra.mrb[0].mxu0 %v4361
  %v4693 = vpop.f32.mrb[0].mxu0
  %v4694 = vadd.f32 0.0, %v4693
  %v4695 = vpop.f32.mrb[0].mxu0
  %v4696 = vadd.f32 0.0, %v4695
  %v4697 = vpop.f32.mrb[0].mxu0
  %v4698 = vadd.f32 0.0, %v4697
  %v4699 = vpop.f32.mrb[0].mxu0
  %v4700 = vadd.f32 0.0, %v4699
  %4701 = vdwg.mxu0
  %4702 = vmatprep.subr.bf16.mxu0 %v4178
  %4703 = vmatpush1.bf16.msra.mxu0 %v4177
  %4704 = vmatprep.subr.bf16.mxu0 %v4210
  %4705 = vmatpush1.bf16.msra.mxu0 %v4209
  %4706 = vmatprep.subr.bf16.mxu0 %v4242
  %4707 = vmatpush1.bf16.msra.mxu0 %v4241
  %4708 = vmatprep.subr.bf16.mxu0 %v4274
  %4709 = vmatpush1.bf16.msra.mxu0 %v4273
  %4710 = vmatprep.subr.bf16.mxu0 0
  %4711 = vmatpush1.bf16.msra.mxu0 0
  %4712 = vmatprep.subr.bf16.mxu0 0
  %4713 = vmatpush1.bf16.msra.mxu0 0
  %4714 = vmatprep.subr.bf16.mxu0 0
  %4715 = vmatpush1.bf16.msra.mxu0 0
  %4716 = vmatprep.subr.bf16.mxu0 0
  %4717 = vmatpush1.bf16.msra.mxu0 0
  %4718 = vmatprep.subr.bf16.mxu0 0
  %4719 = vmatpush1.bf16.msra.mxu0 0
  %4720 = vmatprep.subr.bf16.mxu0 0
  %4721 = vmatpush1.bf16.msra.mxu0 0
  %4722 = vmatprep.subr.bf16.mxu0 0
  %4723 = vmatpush1.bf16.msra.mxu0 0
  %4724 = vmatprep.subr.bf16.mxu0 0
  %4725 = vmatpush1.bf16.msra.mxu0 0
  %4726 = vmatprep.subr.bf16.mxu0 0
  %4727 = vmatpush1.bf16.msra.mxu0 0
  %4728 = vmatprep.subr.bf16.mxu0 0
  %4729 = vmatpush1.bf16.msra.mxu0 0
  %4730 = vmatprep.subr.bf16.mxu0 0
  %4731 = vmatpush1.bf16.msra.mxu0 0
  %4732 = vmatprep.subr.bf16.mxu0 0
  %4733 = vmatpush1.bf16.msra.mxu0 0
  %4734 = vmatprep.mubr.bf16.mxu0 0
  %4735 = vmatmul.mubr.bf16.gmra.mrb[0].mxu0 %v4340
  %v4736 = vpop.f32.mrb[0].mxu0
  %v4737 = vadd.f32 0.0, %v4736
  %v4738 = vpop.f32.mrb[0].mxu0
  %v4739 = vadd.f32 0.0, %v4738
  %v4740 = vpop.f32.mrb[0].mxu0
  %v4741 = vadd.f32 0.0, %v4740
  %v4742 = vpop.f32.mrb[0].mxu0
  %v4743 = vadd.f32 0.0, %v4742
  %4744 = vmatprep.mubr.bf16.mxu0 0
  %4745 = vmatmul.mubr.bf16.gmra.mrb[0].mxu0 %v4343
  %v4746 = vpop.f32.mrb[0].mxu0
  %v4747 = vadd.f32 0.0, %v4746
  %v4748 = vpop.f32.mrb[0].mxu0
  %v4749 = vadd.f32 0.0, %v4748
  %v4750 = vpop.f32.mrb[0].mxu0
  %v4751 = vadd.f32 0.0, %v4750
  %v4752 = vpop.f32.mrb[0].mxu0
  %v4753 = vadd.f32 0.0, %v4752
  %4754 = vmatprep.mubr.bf16.mxu0 0
  %4755 = vmatmul.mubr.bf16.gmra.mrb[0].mxu0 %v4346
  %v4756 = vpop.f32.mrb[0].mxu0
  %v4757 = vadd.f32 0.0, %v4756
  %v4758 = vpop.f32.mrb[0].mxu0
  %v4759 = vadd.f32 0.0, %v4758
  %v4760 = vpop.f32.mrb[0].mxu0
  %v4761 = vadd.f32 0.0, %v4760
  %v4762 = vpop.f32.mrb[0].mxu0
  %v4763 = vadd.f32 0.0, %v4762
  %4764 = vmatprep.mubr.bf16.mxu0 0
  %4765 = vmatmul.mubr.bf16.gmra.mrb[0].mxu0 %v4349
  %v4766 = vpop.f32.mrb[0].mxu0
  %v4767 = vadd.f32 0.0, %v4766
  %v4768 = vpop.f32.mrb[0].mxu0
  %v4769 = vadd.f32 0.0, %v4768
  %v4770 = vpop.f32.mrb[0].mxu0
  %v4771 = vadd.f32 0.0, %v4770
  %v4772 = vpop.f32.mrb[0].mxu0
  %v4773 = vadd.f32 0.0, %v4772
  %4774 = vmatprep.mubr.bf16.mxu0 0
  %4775 = vmatmul.mubr.bf16.gmra.mrb[0].mxu0 %v4352
  %v4776 = vpop.f32.mrb[0].mxu0
  %v4777 = vadd.f32 0.0, %v4776
  %v4778 = vpop.f32.mrb[0].mxu0
  %v4779 = vadd.f32 0.0, %v4778
  %v4780 = vpop.f32.mrb[0].mxu0
  %v4781 = vadd.f32 0.0, %v4780
  %v4782 = vpop.f32.mrb[0].mxu0
  %v4783 = vadd.f32 0.0, %v4782
  %4784 = vmatprep.mubr.bf16.mxu0 0
  %4785 = vmatmul.mubr.bf16.gmra.mrb[0].mxu0 %v4355
  %v4786 = vpop.f32.mrb[0].mxu0
  %v4787 = vadd.f32 0.0, %v4786
  %v4788 = vpop.f32.mrb[0].mxu0
  %v4789 = vadd.f32 0.0, %v4788
  %v4790 = vpop.f32.mrb[0].mxu0
  %v4791 = vadd.f32 0.0, %v4790
  %v4792 = vpop.f32.mrb[0].mxu0
  %v4793 = vadd.f32 0.0, %v4792
  %4794 = vmatprep.mubr.bf16.mxu0 0
  %4795 = vmatmul.mubr.bf16.gmra.mrb[0].mxu0 %v4358
  %v4796 = vpop.f32.mrb[0].mxu0
  %v4797 = vadd.f32 0.0, %v4796
  %v4798 = vpop.f32.mrb[0].mxu0
  %v4799 = vadd.f32 0.0, %v4798
  %v4800 = vpop.f32.mrb[0].mxu0
  %v4801 = vadd.f32 0.0, %v4800
  %v4802 = vpop.f32.mrb[0].mxu0
  %v4803 = vadd.f32 0.0, %v4802
  %4804 = vmatprep.mubr.bf16.mxu0 0
  %4805 = vmatmul.mubr.bf16.gmra.mrb[0].mxu0 %v4361
  %v4806 = vpop.f32.mrb[0].mxu0
  %v4807 = vadd.f32 0.0, %v4806
  %v4808 = vpop.f32.mrb[0].mxu0
  %v4809 = vadd.f32 0.0, %v4808
  %v4810 = vpop.f32.mrb[0].mxu0
  %v4811 = vadd.f32 0.0, %v4810
  %v4812 = vpop.f32.mrb[0].mxu0
  %v4813 = vadd.f32 0.0, %v4812
  %4814 = vdwg.mxu0
  %4815 = vmatprep.subr.bf16.mxu0 %v4180
  %4816 = vmatpush1.bf16.msra.mxu0 %v4179
  %4817 = vmatprep.subr.bf16.mxu0 %v4212
  %4818 = vmatpush1.bf16.msra.mxu0 %v4211
  %4819 = vmatprep.subr.bf16.mxu0 %v4244
  %4820 = vmatpush1.bf16.msra.mxu0 %v4243
  %4821 = vmatprep.subr.bf16.mxu0 %v4276
  %4822 = vmatpush1.bf16.msra.mxu0 %v4275
  %4823 = vmatprep.subr.bf16.mxu0 0
  %4824 = vmatpush1.bf16.msra.mxu0 0
  %4825 = vmatprep.subr.bf16.mxu0 0
  %4826 = vmatpush1.bf16.msra.mxu0 0
  %4827 = vmatprep.subr.bf16.mxu0 0
  %4828 = vmatpush1.bf16.msra.mxu0 0
  %4829 = vmatprep.subr.bf16.mxu0 0
  %4830 = vmatpush1.bf16.msra.mxu0 0
  %4831 = vmatprep.subr.bf16.mxu0 0
  %4832 = vmatpush1.bf16.msra.mxu0 0
  %4833 = vmatprep.subr.bf16.mxu0 0
  %4834 = vmatpush1.bf16.msra.mxu0 0
  %4835 = vmatprep.subr.bf16.mxu0 0
  %4836 = vmatpush1.bf16.msra.mxu0 0
  %4837 = vmatprep.subr.bf16.mxu0 0
  %4838 = vmatpush1.bf16.msra.mxu0 0
  %4839 = vmatprep.subr.bf16.mxu0 0
  %4840 = vmatpush1.bf16.msra.mxu0 0
  %4841 = vmatprep.subr.bf16.mxu0 0
  %4842 = vmatpush1.bf16.msra.mxu0 0
  %4843 = vmatprep.subr.bf16.mxu0 0
  %4844 = vmatpush1.bf16.msra.mxu0 0
  %4845 = vmatprep.subr.bf16.mxu0 0
  %4846 = vmatpush1.bf16.msra.mxu0 0
  %4847 = vmatprep.mubr.bf16.mxu0 0
  %4848 = vmatmul.mubr.bf16.gmra.mrb[0].mxu0 %v4340
  %v4849 = vpop.f32.mrb[0].mxu0
  %v4850 = vadd.f32 0.0, %v4849
  %v4851 = vpop.f32.mrb[0].mxu0
  %v4852 = vadd.f32 0.0, %v4851
  %v4853 = vpop.f32.mrb[0].mxu0
  %v4854 = vadd.f32 0.0, %v4853
  %v4855 = vpop.f32.mrb[0].mxu0
  %v4856 = vadd.f32 0.0, %v4855
  %4857 = vmatprep.mubr.bf16.mxu0 0
  %4858 = vmatmul.mubr.bf16.gmra.mrb[0].mxu0 %v4343
  %v4859 = vpop.f32.mrb[0].mxu0
  %v4860 = vadd.f32 0.0, %v4859
  %v4861 = vpop.f32.mrb[0].mxu0
  %v4862 = vadd.f32 0.0, %v4861
  %v4863 = vpop.f32.mrb[0].mxu0
  %v4864 = vadd.f32 0.0, %v4863
  %v4865 = vpop.f32.mrb[0].mxu0
  %v4866 = vadd.f32 0.0, %v4865
  %4867 = vmatprep.mubr.bf16.mxu0 0
  %4868 = vmatmul.mubr.bf16.gmra.mrb[0].mxu0 %v4346
  %v4869 = vpop.f32.mrb[0].mxu0
  %v4870 = vadd.f32 0.0, %v4869
  %v4871 = vpop.f32.mrb[0].mxu0
  %v4872 = vadd.f32 0.0, %v4871
  %v4873 = vpop.f32.mrb[0].mxu0
  %v4874 = vadd.f32 0.0, %v4873
  %v4875 = vpop.f32.mrb[0].mxu0
  %v4876 = vadd.f32 0.0, %v4875
  %4877 = vmatprep.mubr.bf16.mxu0 0
  %4878 = vmatmul.mubr.bf16.gmra.mrb[0].mxu0 %v4349
  %v4879 = vpop.f32.mrb[0].mxu0
  %v4880 = vadd.f32 0.0, %v4879
  %v4881 = vpop.f32.mrb[0].mxu0
  %v4882 = vadd.f32 0.0, %v4881
  %v4883 = vpop.f32.mrb[0].mxu0
  %v4884 = vadd.f32 0.0, %v4883
  %v4885 = vpop.f32.mrb[0].mxu0
  %v4886 = vadd.f32 0.0, %v4885
  %4887 = vmatprep.mubr.bf16.mxu0 0
  %4888 = vmatmul.mubr.bf16.gmra.mrb[0].mxu0 %v4352
  %v4889 = vpop.f32.mrb[0].mxu0
  %v4890 = vadd.f32 0.0, %v4889
  %v4891 = vpop.f32.mrb[0].mxu0
  %v4892 = vadd.f32 0.0, %v4891
  %v4893 = vpop.f32.mrb[0].mxu0
  %v4894 = vadd.f32 0.0, %v4893
  %v4895 = vpop.f32.mrb[0].mxu0
  %v4896 = vadd.f32 0.0, %v4895
  %4897 = vmatprep.mubr.bf16.mxu0 0
  %4898 = vmatmul.mubr.bf16.gmra.mrb[0].mxu0 %v4355
  %v4899 = vpop.f32.mrb[0].mxu0
  %v4900 = vadd.f32 0.0, %v4899
  %v4901 = vpop.f32.mrb[0].mxu0
  %v4902 = vadd.f32 0.0, %v4901
  %v4903 = vpop.f32.mrb[0].mxu0
  %v4904 = vadd.f32 0.0, %v4903
  %v4905 = vpop.f32.mrb[0].mxu0
  %v4906 = vadd.f32 0.0, %v4905
  %4907 = vmatprep.mubr.bf16.mxu0 0
  %4908 = vmatmul.mubr.bf16.gmra.mrb[0].mxu0 %v4358
  %v4909 = vpop.f32.mrb[0].mxu0
  %v4910 = vadd.f32 0.0, %v4909
  %v4911 = vpop.f32.mrb[0].mxu0
  %v4912 = vadd.f32 0.0, %v4911
  %v4913 = vpop.f32.mrb[0].mxu0
  %v4914 = vadd.f32 0.0, %v4913
  %v4915 = vpop.f32.mrb[0].mxu0
  %v4916 = vadd.f32 0.0, %v4915
  %4917 = vmatprep.mubr.bf16.mxu0 0
  %4918 = vmatmul.mubr.bf16.gmra.mrb[0].mxu0 %v4361
  %v4919 = vpop.f32.mrb[0].mxu0
  %v4920 = vadd.f32 0.0, %v4919
  %v4921 = vpop.f32.mrb[0].mxu0
  %v4922 = vadd.f32 0.0, %v4921
  %v4923 = vpop.f32.mrb[0].mxu0
  %v4924 = vadd.f32 0.0, %v4923
  %v4925 = vpop.f32.mrb[0].mxu0
  %v4926 = vadd.f32 0.0, %v4925
  %4927 = vdwg.mxu0
  %4928 = vmatprep.subr.bf16.mxu0 %v4182
  %4929 = vmatpush1.bf16.msra.mxu0 %v4181
  %4930 = vmatprep.subr.bf16.mxu0 %v4214
  %4931 = vmatpush1.bf16.msra.mxu0 %v4213
  %4932 = vmatprep.subr.bf16.mxu0 %v4246
  %4933 = vmatpush1.bf16.msra.mxu0 %v4245
  %4934 = vmatprep.subr.bf16.mxu0 %v4278
  %4935 = vmatpush1.bf16.msra.mxu0 %v4277
  %4936 = vmatprep.subr.bf16.mxu0 0
  %4937 = vmatpush1.bf16.msra.mxu0 0
  %4938 = vmatprep.subr.bf16.mxu0 0
  %4939 = vmatpush1.bf16.msra.mxu0 0
  %4940 = vmatprep.subr.bf16.mxu0 0
  %4941 = vmatpush1.bf16.msra.mxu0 0
  %4942 = vmatprep.subr.bf16.mxu0 0
  %4943 = vmatpush1.bf16.msra.mxu0 0
  %4944 = vmatprep.subr.bf16.mxu0 0
  %4945 = vmatpush1.bf16.msra.mxu0 0
  %4946 = vmatprep.subr.bf16.mxu0 0
  %4947 = vmatpush1.bf16.msra.mxu0 0
  %4948 = vmatprep.subr.bf16.mxu0 0
  %4949 = vmatpush1.bf16.msra.mxu0 0
  %4950 = vmatprep.subr.bf16.mxu0 0
  %4951 = vmatpush1.bf16.msra.mxu0 0
  %4952 = vmatprep.subr.bf16.mxu0 0
  %4953 = vmatpush1.bf16.msra.mxu0 0
  %4954 = vmatprep.subr.bf16.mxu0 0
  %4955 = vmatpush1.bf16.msra.mxu0 0
  %4956 = vmatprep.subr.bf16.mxu0 0
  %4957 = vmatpush1.bf16.msra.mxu0 0
  %4958 = vmatprep.subr.bf16.mxu0 0
  %4959 = vmatpush1.bf16.msra.mxu0 0
  %4960 = vmatprep.mubr.bf16.mxu0 0
  %4961 = vmatmul.mubr.bf16.gmra.mrb[0].mxu0 %v4340
  %v4962 = vpop.f32.mrb[0].mxu0
  %v4963 = vadd.f32 0.0, %v4962
  %v4964 = vpop.f32.mrb[0].mxu0
  %v4965 = vadd.f32 0.0, %v4964
  %v4966 = vpop.f32.mrb[0].mxu0
  %v4967 = vadd.f32 0.0, %v4966
  %v4968 = vpop.f32.mrb[0].mxu0
  %v4969 = vadd.f32 0.0, %v4968
  %4970 = vmatprep.mubr.bf16.mxu0 0
  %4971 = vmatmul.mubr.bf16.gmra.mrb[0].mxu0 %v4343
  %v4972 = vpop.f32.mrb[0].mxu0
  %v4973 = vadd.f32 0.0, %v4972
  %v4974 = vpop.f32.mrb[0].mxu0
  %v4975 = vadd.f32 0.0, %v4974
  %v4976 = vpop.f32.mrb[0].mxu0
  %v4977 = vadd.f32 0.0, %v4976
  %v4978 = vpop.f32.mrb[0].mxu0
  %v4979 = vadd.f32 0.0, %v4978
  %4980 = vmatprep.mubr.bf16.mxu0 0
  %4981 = vmatmul.mubr.bf16.gmra.mrb[0].mxu0 %v4346
  %v4982 = vpop.f32.mrb[0].mxu0
  %v4983 = vadd.f32 0.0, %v4982
  %v4984 = vpop.f32.mrb[0].mxu0
  %v4985 = vadd.f32 0.0, %v4984
  %v4986 = vpop.f32.mrb[0].mxu0
  %v4987 = vadd.f32 0.0, %v4986
  %v4988 = vpop.f32.mrb[0].mxu0
  %v4989 = vadd.f32 0.0, %v4988
  %4990 = vmatprep.mubr.bf16.mxu0 0
  %4991 = vmatmul.mubr.bf16.gmra.mrb[0].mxu0 %v4349
  %v4992 = vpop.f32.mrb[0].mxu0
  %v4993 = vadd.f32 0.0, %v4992
  %v4994 = vpop.f32.mrb[0].mxu0
  %v4995 = vadd.f32 0.0, %v4994
  %v4996 = vpop.f32.mrb[0].mxu0
  %v4997 = vadd.f32 0.0, %v4996
  %v4998 = vpop.f32.mrb[0].mxu0
  %v4999 = vadd.f32 0.0, %v4998
  %5000 = vmatprep.mubr.bf16.mxu0 0
  %5001 = vmatmul.mubr.bf16.gmra.mrb[0].mxu0 %v4352
  %v5002 = vpop.f32.mrb[0].mxu0
  %v5003 = vadd.f32 0.0, %v5002
  %v5004 = vpop.f32.mrb[0].mxu0
  %v5005 = vadd.f32 0.0, %v5004
  %v5006 = vpop.f32.mrb[0].mxu0
  %v5007 = vadd.f32 0.0, %v5006
  %v5008 = vpop.f32.mrb[0].mxu0
  %v5009 = vadd.f32 0.0, %v5008
  %5010 = vmatprep.mubr.bf16.mxu0 0
  %5011 = vmatmul.mubr.bf16.gmra.mrb[0].mxu0 %v4355
  %v5012 = vpop.f32.mrb[0].mxu0
  %v5013 = vadd.f32 0.0, %v5012
  %v5014 = vpop.f32.mrb[0].mxu0
  %v5015 = vadd.f32 0.0, %v5014
  %v5016 = vpop.f32.mrb[0].mxu0
  %v5017 = vadd.f32 0.0, %v5016
  %v5018 = vpop.f32.mrb[0].mxu0
  %v5019 = vadd.f32 0.0, %v5018
  %5020 = vmatprep.mubr.bf16.mxu0 0
  %5021 = vmatmul.mubr.bf16.gmra.mrb[0].mxu0 %v4358
  %v5022 = vpop.f32.mrb[0].mxu0
  %v5023 = vadd.f32 0.0, %v5022
  %v5024 = vpop.f32.mrb[0].mxu0
  %v5025 = vadd.f32 0.0, %v5024
  %v5026 = vpop.f32.mrb[0].mxu0
  %v5027 = vadd.f32 0.0, %v5026
  %v5028 = vpop.f32.mrb[0].mxu0
  %v5029 = vadd.f32 0.0, %v5028
  %5030 = vmatprep.mubr.bf16.mxu0 0
  %5031 = vmatmul.mubr.bf16.gmra.mrb[0].mxu0 %v4361
  %v5032 = vpop.f32.mrb[0].mxu0
  %v5033 = vadd.f32 0.0, %v5032
  %v5034 = vpop.f32.mrb[0].mxu0
  %v5035 = vadd.f32 0.0, %v5034
  %v5036 = vpop.f32.mrb[0].mxu0
  %v5037 = vadd.f32 0.0, %v5036
  %v5038 = vpop.f32.mrb[0].mxu0
  %v5039 = vadd.f32 0.0, %v5038
  %5040 = vdwg.mxu0
  %5041 = vmatprep.subr.bf16.mxu0 %v4184
  %5042 = vmatpush1.bf16.msra.mxu0 %v4183
  %5043 = vmatprep.subr.bf16.mxu0 %v4216
  %5044 = vmatpush1.bf16.msra.mxu0 %v4215
  %5045 = vmatprep.subr.bf16.mxu0 %v4248
  %5046 = vmatpush1.bf16.msra.mxu0 %v4247
  %5047 = vmatprep.subr.bf16.mxu0 %v4280
  %5048 = vmatpush1.bf16.msra.mxu0 %v4279
  %5049 = vmatprep.subr.bf16.mxu0 0
  %5050 = vmatpush1.bf16.msra.mxu0 0
  %5051 = vmatprep.subr.bf16.mxu0 0
  %5052 = vmatpush1.bf16.msra.mxu0 0
  %5053 = vmatprep.subr.bf16.mxu0 0
  %5054 = vmatpush1.bf16.msra.mxu0 0
  %5055 = vmatprep.subr.bf16.mxu0 0
  %5056 = vmatpush1.bf16.msra.mxu0 0
  %5057 = vmatprep.subr.bf16.mxu0 0
  %5058 = vmatpush1.bf16.msra.mxu0 0
  %5059 = vmatprep.subr.bf16.mxu0 0
  %5060 = vmatpush1.bf16.msra.mxu0 0
  %5061 = vmatprep.subr.bf16.mxu0 0
  %5062 = vmatpush1.bf16.msra.mxu0 0
  %5063 = vmatprep.subr.bf16.mxu0 0
  %5064 = vmatpush1.bf16.msra.mxu0 0
  %5065 = vmatprep.subr.bf16.mxu0 0
  %5066 = vmatpush1.bf16.msra.mxu0 0
  %5067 = vmatprep.subr.bf16.mxu0 0
  %5068 = vmatpush1.bf16.msra.mxu0 0
  %5069 = vmatprep.subr.bf16.mxu0 0
  %5070 = vmatpush1.bf16.msra.mxu0 0
  %5071 = vmatprep.subr.bf16.mxu0 0
  %5072 = vmatpush1.bf16.msra.mxu0 0
  %5073 = vmatprep.mubr.bf16.mxu0 0
  %5074 = vmatmul.mubr.bf16.gmra.mrb[0].mxu0 %v4340
  %v5075 = vpop.f32.mrb[0].mxu0
  %v5076 = vadd.f32 0.0, %v5075
  %v5077 = vpop.f32.mrb[0].mxu0
  %v5078 = vadd.f32 0.0, %v5077
  %v5079 = vpop.f32.mrb[0].mxu0
  %v5080 = vadd.f32 0.0, %v5079
  %v5081 = vpop.f32.mrb[0].mxu0
  %v5082 = vadd.f32 0.0, %v5081
  %5083 = vmatprep.mubr.bf16.mxu0 0
  %5084 = vmatmul.mubr.bf16.gmra.mrb[0].mxu0 %v4343
  %v5085 = vpop.f32.mrb[0].mxu0
  %v5086 = vadd.f32 0.0, %v5085
  %v5087 = vpop.f32.mrb[0].mxu0
  %v5088 = vadd.f32 0.0, %v5087
  %v5089 = vpop.f32.mrb[0].mxu0
  %v5090 = vadd.f32 0.0, %v5089
  %v5091 = vpop.f32.mrb[0].mxu0
  %v5092 = vadd.f32 0.0, %v5091
  %5093 = vmatprep.mubr.bf16.mxu0 0
  %5094 = vmatmul.mubr.bf16.gmra.mrb[0].mxu0 %v4346
  %v5095 = vpop.f32.mrb[0].mxu0
  %v5096 = vadd.f32 0.0, %v5095
  %v5097 = vpop.f32.mrb[0].mxu0
  %v5098 = vadd.f32 0.0, %v5097
  %v5099 = vpop.f32.mrb[0].mxu0
  %v5100 = vadd.f32 0.0, %v5099
  %v5101 = vpop.f32.mrb[0].mxu0
  %v5102 = vadd.f32 0.0, %v5101
  %5103 = vmatprep.mubr.bf16.mxu0 0
  %5104 = vmatmul.mubr.bf16.gmra.mrb[0].mxu0 %v4349
  %v5105 = vpop.f32.mrb[0].mxu0
  %v5106 = vadd.f32 0.0, %v5105
  %v5107 = vpop.f32.mrb[0].mxu0
  %v5108 = vadd.f32 0.0, %v5107
  %v5109 = vpop.f32.mrb[0].mxu0
  %v5110 = vadd.f32 0.0, %v5109
  %v5111 = vpop.f32.mrb[0].mxu0
  %v5112 = vadd.f32 0.0, %v5111
  %5113 = vmatprep.mubr.bf16.mxu0 0
  %5114 = vmatmul.mubr.bf16.gmra.mrb[0].mxu0 %v4352
  %v5115 = vpop.f32.mrb[0].mxu0
  %v5116 = vadd.f32 0.0, %v5115
  %v5117 = vpop.f32.mrb[0].mxu0
  %v5118 = vadd.f32 0.0, %v5117
  %v5119 = vpop.f32.mrb[0].mxu0
  %v5120 = vadd.f32 0.0, %v5119
  %v5121 = vpop.f32.mrb[0].mxu0
  %v5122 = vadd.f32 0.0, %v5121
  %5123 = vmatprep.mubr.bf16.mxu0 0
  %5124 = vmatmul.mubr.bf16.gmra.mrb[0].mxu0 %v4355
  %v5125 = vpop.f32.mrb[0].mxu0
  %v5126 = vadd.f32 0.0, %v5125
  %v5127 = vpop.f32.mrb[0].mxu0
  %v5128 = vadd.f32 0.0, %v5127
  %v5129 = vpop.f32.mrb[0].mxu0
  %v5130 = vadd.f32 0.0, %v5129
  %v5131 = vpop.f32.mrb[0].mxu0
  %v5132 = vadd.f32 0.0, %v5131
  %5133 = vmatprep.mubr.bf16.mxu0 0
  %5134 = vmatmul.mubr.bf16.gmra.mrb[0].mxu0 %v4358
  %v5135 = vpop.f32.mrb[0].mxu0
  %v5136 = vadd.f32 0.0, %v5135
  %v5137 = vpop.f32.mrb[0].mxu0
  %v5138 = vadd.f32 0.0, %v5137
  %v5139 = vpop.f32.mrb[0].mxu0
  %v5140 = vadd.f32 0.0, %v5139
  %v5141 = vpop.f32.mrb[0].mxu0
  %v5142 = vadd.f32 0.0, %v5141
  %5143 = vmatprep.mubr.bf16.mxu0 0
  %5144 = vmatmul.mubr.bf16.gmra.mrb[0].mxu0 %v4361
  %v5145 = vpop.f32.mrb[0].mxu0
  %v5146 = vadd.f32 0.0, %v5145
  %v5147 = vpop.f32.mrb[0].mxu0
  %v5148 = vadd.f32 0.0, %v5147
  %v5149 = vpop.f32.mrb[0].mxu0
  %v5150 = vadd.f32 0.0, %v5149
  %v5151 = vpop.f32.mrb[0].mxu0
  %v5152 = vadd.f32 0.0, %v5151
  %5153 = vdwg.mxu0
  %5154 = vmatprep.subr.bf16.mxu0 %v4186
  %5155 = vmatpush1.bf16.msra.mxu0 %v4185
  %5156 = vmatprep.subr.bf16.mxu0 %v4218
  %5157 = vmatpush1.bf16.msra.mxu0 %v4217
  %5158 = vmatprep.subr.bf16.mxu0 %v4250
  %5159 = vmatpush1.bf16.msra.mxu0 %v4249
  %5160 = vmatprep.subr.bf16.mxu0 %v4282
  %5161 = vmatpush1.bf16.msra.mxu0 %v4281
  %5162 = vmatprep.subr.bf16.mxu0 0
  %5163 = vmatpush1.bf16.msra.mxu0 0
  %5164 = vmatprep.subr.bf16.mxu0 0
  %5165 = vmatpush1.bf16.msra.mxu0 0
  %5166 = vmatprep.subr.bf16.mxu0 0
  %5167 = vmatpush1.bf16.msra.mxu0 0
  %5168 = vmatprep.subr.bf16.mxu0 0
  %5169 = vmatpush1.bf16.msra.mxu0 0
  %5170 = vmatprep.subr.bf16.mxu0 0
  %5171 = vmatpush1.bf16.msra.mxu0 0
  %5172 = vmatprep.subr.bf16.mxu0 0
  %5173 = vmatpush1.bf16.msra.mxu0 0
  %5174 = vmatprep.subr.bf16.mxu0 0
  %5175 = vmatpush1.bf16.msra.mxu0 0
  %5176 = vmatprep.subr.bf16.mxu0 0
  %5177 = vmatpush1.bf16.msra.mxu0 0
  %5178 = vmatprep.subr.bf16.mxu0 0
  %5179 = vmatpush1.bf16.msra.mxu0 0
  %5180 = vmatprep.subr.bf16.mxu0 0
  %5181 = vmatpush1.bf16.msra.mxu0 0
  %5182 = vmatprep.subr.bf16.mxu0 0
  %5183 = vmatpush1.bf16.msra.mxu0 0
  %5184 = vmatprep.subr.bf16.mxu0 0
  %5185 = vmatpush1.bf16.msra.mxu0 0
  %5186 = vmatprep.mubr.bf16.mxu0 0
  %5187 = vmatmul.mubr.bf16.gmra.mrb[0].mxu0 %v4340
  %v5188 = vpop.f32.mrb[0].mxu0
  %v5189 = vadd.f32 0.0, %v5188
  %v5190 = vpop.f32.mrb[0].mxu0
  %v5191 = vadd.f32 0.0, %v5190
  %v5192 = vpop.f32.mrb[0].mxu0
  %v5193 = vadd.f32 0.0, %v5192
  %v5194 = vpop.f32.mrb[0].mxu0
  %v5195 = vadd.f32 0.0, %v5194
  %5196 = vmatprep.mubr.bf16.mxu0 0
  %5197 = vmatmul.mubr.bf16.gmra.mrb[0].mxu0 %v4343
  %v5198 = vpop.f32.mrb[0].mxu0
  %v5199 = vadd.f32 0.0, %v5198
  %v5200 = vpop.f32.mrb[0].mxu0
  %v5201 = vadd.f32 0.0, %v5200
  %v5202 = vpop.f32.mrb[0].mxu0
  %v5203 = vadd.f32 0.0, %v5202
  %v5204 = vpop.f32.mrb[0].mxu0
  %v5205 = vadd.f32 0.0, %v5204
  %5206 = vmatprep.mubr.bf16.mxu0 0
  %5207 = vmatmul.mubr.bf16.gmra.mrb[0].mxu0 %v4346
  %v5208 = vpop.f32.mrb[0].mxu0
  %v5209 = vadd.f32 0.0, %v5208
  %v5210 = vpop.f32.mrb[0].mxu0
  %v5211 = vadd.f32 0.0, %v5210
  %v5212 = vpop.f32.mrb[0].mxu0
  %v5213 = vadd.f32 0.0, %v5212
  %v5214 = vpop.f32.mrb[0].mxu0
  %v5215 = vadd.f32 0.0, %v5214
  %5216 = vmatprep.mubr.bf16.mxu0 0
  %5217 = vmatmul.mubr.bf16.gmra.mrb[0].mxu0 %v4349
  %v5218 = vpop.f32.mrb[0].mxu0
  %v5219 = vadd.f32 0.0, %v5218
  %v5220 = vpop.f32.mrb[0].mxu0
  %v5221 = vadd.f32 0.0, %v5220
  %v5222 = vpop.f32.mrb[0].mxu0
  %v5223 = vadd.f32 0.0, %v5222
  %v5224 = vpop.f32.mrb[0].mxu0
  %v5225 = vadd.f32 0.0, %v5224
  %5226 = vmatprep.mubr.bf16.mxu0 0
  %5227 = vmatmul.mubr.bf16.gmra.mrb[0].mxu0 %v4352
  %v5228 = vpop.f32.mrb[0].mxu0
  %v5229 = vadd.f32 0.0, %v5228
  %v5230 = vpop.f32.mrb[0].mxu0
  %v5231 = vadd.f32 0.0, %v5230
  %v5232 = vpop.f32.mrb[0].mxu0
  %v5233 = vadd.f32 0.0, %v5232
  %v5234 = vpop.f32.mrb[0].mxu0
  %v5235 = vadd.f32 0.0, %v5234
  %5236 = vmatprep.mubr.bf16.mxu0 0
  %5237 = vmatmul.mubr.bf16.gmra.mrb[0].mxu0 %v4355
  %v5238 = vpop.f32.mrb[0].mxu0
  %v5239 = vadd.f32 0.0, %v5238
  %v5240 = vpop.f32.mrb[0].mxu0
  %v5241 = vadd.f32 0.0, %v5240
  %v5242 = vpop.f32.mrb[0].mxu0
  %v5243 = vadd.f32 0.0, %v5242
  %v5244 = vpop.f32.mrb[0].mxu0
  %v5245 = vadd.f32 0.0, %v5244
  %5246 = vmatprep.mubr.bf16.mxu0 0
  %5247 = vmatmul.mubr.bf16.gmra.mrb[0].mxu0 %v4358
  %v5248 = vpop.f32.mrb[0].mxu0
  %v5249 = vadd.f32 0.0, %v5248
  %v5250 = vpop.f32.mrb[0].mxu0
  %v5251 = vadd.f32 0.0, %v5250
  %v5252 = vpop.f32.mrb[0].mxu0
  %v5253 = vadd.f32 0.0, %v5252
  %v5254 = vpop.f32.mrb[0].mxu0
  %v5255 = vadd.f32 0.0, %v5254
  %5256 = vmatprep.mubr.bf16.mxu0 0
  %5257 = vmatmul.mubr.bf16.gmra.mrb[0].mxu0 %v4361
  %v5258 = vpop.f32.mrb[0].mxu0
  %v5259 = vadd.f32 0.0, %v5258
  %v5260 = vpop.f32.mrb[0].mxu0
  %v5261 = vadd.f32 0.0, %v5260
  %v5262 = vpop.f32.mrb[0].mxu0
  %v5263 = vadd.f32 0.0, %v5262
  %v5264 = vpop.f32.mrb[0].mxu0
  %v5265 = vadd.f32 0.0, %v5264
  %5266 = vdwg.mxu0
  %5267 = vmatprep.subr.bf16.mxu0 %v4188
  %5268 = vmatpush1.bf16.msra.mxu0 %v4187
  %5269 = vmatprep.subr.bf16.mxu0 %v4220
  %5270 = vmatpush1.bf16.msra.mxu0 %v4219
  %5271 = vmatprep.subr.bf16.mxu0 %v4252
  %5272 = vmatpush1.bf16.msra.mxu0 %v4251
  %5273 = vmatprep.subr.bf16.mxu0 %v4284
  %5274 = vmatpush1.bf16.msra.mxu0 %v4283
  %5275 = vmatprep.subr.bf16.mxu0 0
  %5276 = vmatpush1.bf16.msra.mxu0 0
  %5277 = vmatprep.subr.bf16.mxu0 0
  %5278 = vmatpush1.bf16.msra.mxu0 0
  %5279 = vmatprep.subr.bf16.mxu0 0
  %5280 = vmatpush1.bf16.msra.mxu0 0
  %5281 = vmatprep.subr.bf16.mxu0 0
  %5282 = vmatpush1.bf16.msra.mxu0 0
  %5283 = vmatprep.subr.bf16.mxu0 0
  %5284 = vmatpush1.bf16.msra.mxu0 0
  %5285 = vmatprep.subr.bf16.mxu0 0
  %5286 = vmatpush1.bf16.msra.mxu0 0
  %5287 = vmatprep.subr.bf16.mxu0 0
  %5288 = vmatpush1.bf16.msra.mxu0 0
  %5289 = vmatprep.subr.bf16.mxu0 0
  %5290 = vmatpush1.bf16.msra.mxu0 0
  %5291 = vmatprep.subr.bf16.mxu0 0
  %5292 = vmatpush1.bf16.msra.mxu0 0
  %5293 = vmatprep.subr.bf16.mxu0 0
  %5294 = vmatpush1.bf16.msra.mxu0 0
  %5295 = vmatprep.subr.bf16.mxu0 0
  %5296 = vmatpush1.bf16.msra.mxu0 0
  %5297 = vmatprep.subr.bf16.mxu0 0
  %5298 = vmatpush1.bf16.msra.mxu0 0
  %5299 = vmatprep.mubr.bf16.mxu0 0
  %5300 = vmatmul.mubr.bf16.gmra.mrb[0].mxu0 %v4340
  %v5301 = vpop.f32.mrb[0].mxu0
  %v5302 = vadd.f32 0.0, %v5301
  %v5303 = vpop.f32.mrb[0].mxu0
  %v5304 = vadd.f32 0.0, %v5303
  %v5305 = vpop.f32.mrb[0].mxu0
  %v5306 = vadd.f32 0.0, %v5305
  %v5307 = vpop.f32.mrb[0].mxu0
  %v5308 = vadd.f32 0.0, %v5307
  %5309 = vmatprep.mubr.bf16.mxu0 0
  %5310 = vmatmul.mubr.bf16.gmra.mrb[0].mxu0 %v4343
  %v5311 = vpop.f32.mrb[0].mxu0
  %v5312 = vadd.f32 0.0, %v5311
  %v5313 = vpop.f32.mrb[0].mxu0
  %v5314 = vadd.f32 0.0, %v5313
  %v5315 = vpop.f32.mrb[0].mxu0
  %v5316 = vadd.f32 0.0, %v5315
  %v5317 = vpop.f32.mrb[0].mxu0
  %v5318 = vadd.f32 0.0, %v5317
  %5319 = vmatprep.mubr.bf16.mxu0 0
  %5320 = vmatmul.mubr.bf16.gmra.mrb[0].mxu0 %v4346
  %v5321 = vpop.f32.mrb[0].mxu0
  %v5322 = vadd.f32 0.0, %v5321
  %v5323 = vpop.f32.mrb[0].mxu0
  %v5324 = vadd.f32 0.0, %v5323
  %v5325 = vpop.f32.mrb[0].mxu0
  %v5326 = vadd.f32 0.0, %v5325
  %v5327 = vpop.f32.mrb[0].mxu0
  %v5328 = vadd.f32 0.0, %v5327
  %5329 = vmatprep.mubr.bf16.mxu0 0
  %5330 = vmatmul.mubr.bf16.gmra.mrb[0].mxu0 %v4349
  %v5331 = vpop.f32.mrb[0].mxu0
  %v5332 = vadd.f32 0.0, %v5331
  %v5333 = vpop.f32.mrb[0].mxu0
  %v5334 = vadd.f32 0.0, %v5333
  %v5335 = vpop.f32.mrb[0].mxu0
  %v5336 = vadd.f32 0.0, %v5335
  %v5337 = vpop.f32.mrb[0].mxu0
  %v5338 = vadd.f32 0.0, %v5337
  %5339 = vmatprep.mubr.bf16.mxu0 0
  %5340 = vmatmul.mubr.bf16.gmra.mrb[0].mxu0 %v4352
  %v5341 = vpop.f32.mrb[0].mxu0
  %v5342 = vadd.f32 0.0, %v5341
  %v5343 = vpop.f32.mrb[0].mxu0
  %v5344 = vadd.f32 0.0, %v5343
  %v5345 = vpop.f32.mrb[0].mxu0
  %v5346 = vadd.f32 0.0, %v5345
  %v5347 = vpop.f32.mrb[0].mxu0
  %v5348 = vadd.f32 0.0, %v5347
  %5349 = vmatprep.mubr.bf16.mxu0 0
  %5350 = vmatmul.mubr.bf16.gmra.mrb[0].mxu0 %v4355
  %v5351 = vpop.f32.mrb[0].mxu0
  %v5352 = vadd.f32 0.0, %v5351
  %v5353 = vpop.f32.mrb[0].mxu0
  %v5354 = vadd.f32 0.0, %v5353
  %v5355 = vpop.f32.mrb[0].mxu0
  %v5356 = vadd.f32 0.0, %v5355
  %v5357 = vpop.f32.mrb[0].mxu0
  %v5358 = vadd.f32 0.0, %v5357
  %5359 = vmatprep.mubr.bf16.mxu0 0
  %5360 = vmatmul.mubr.bf16.gmra.mrb[0].mxu0 %v4358
  %v5361 = vpop.f32.mrb[0].mxu0
  %v5362 = vadd.f32 0.0, %v5361
  %v5363 = vpop.f32.mrb[0].mxu0
  %v5364 = vadd.f32 0.0, %v5363
  %v5365 = vpop.f32.mrb[0].mxu0
  %v5366 = vadd.f32 0.0, %v5365
  %v5367 = vpop.f32.mrb[0].mxu0
  %v5368 = vadd.f32 0.0, %v5367
  %5369 = vmatprep.mubr.bf16.mxu0 0
  %5370 = vmatmul.mubr.bf16.gmra.mrb[0].mxu0 %v4361
  %v5371 = vpop.f32.mrb[0].mxu0
  %v5372 = vadd.f32 0.0, %v5371
  %v5373 = vpop.f32.mrb[0].mxu0
  %v5374 = vadd.f32 0.0, %v5373
  %v5375 = vpop.f32.mrb[0].mxu0
  %v5376 = vadd.f32 0.0, %v5375
  %v5377 = vpop.f32.mrb[0].mxu0
  %v5378 = vadd.f32 0.0, %v5377
  %5379 = vdwg.mxu0
  %5380 = vmatprep.subr.bf16.mxu0 %v4190
  %5381 = vmatpush1.bf16.msra.mxu0 %v4189
  %5382 = vmatprep.subr.bf16.mxu0 %v4222
  %5383 = vmatpush1.bf16.msra.mxu0 %v4221
  %5384 = vmatprep.subr.bf16.mxu0 %v4254
  %5385 = vmatpush1.bf16.msra.mxu0 %v4253
  %5386 = vmatprep.subr.bf16.mxu0 %v4286
  %5387 = vmatpush1.bf16.msra.mxu0 %v4285
  %5388 = vmatprep.subr.bf16.mxu0 0
  %5389 = vmatpush1.bf16.msra.mxu0 0
  %5390 = vmatprep.subr.bf16.mxu0 0
  %5391 = vmatpush1.bf16.msra.mxu0 0
  %5392 = vmatprep.subr.bf16.mxu0 0
  %5393 = vmatpush1.bf16.msra.mxu0 0
  %5394 = vmatprep.subr.bf16.mxu0 0
  %5395 = vmatpush1.bf16.msra.mxu0 0
  %5396 = vmatprep.subr.bf16.mxu0 0
  %5397 = vmatpush1.bf16.msra.mxu0 0
  %5398 = vmatprep.subr.bf16.mxu0 0
  %5399 = vmatpush1.bf16.msra.mxu0 0
  %5400 = vmatprep.subr.bf16.mxu0 0
  %5401 = vmatpush1.bf16.msra.mxu0 0
  %5402 = vmatprep.subr.bf16.mxu0 0
  %5403 = vmatpush1.bf16.msra.mxu0 0
  %5404 = vmatprep.subr.bf16.mxu0 0
  %5405 = vmatpush1.bf16.msra.mxu0 0
  %5406 = vmatprep.subr.bf16.mxu0 0
  %5407 = vmatpush1.bf16.msra.mxu0 0
  %5408 = vmatprep.subr.bf16.mxu0 0
  %5409 = vmatpush1.bf16.msra.mxu0 0
  %5410 = vmatprep.subr.bf16.mxu0 0
  %5411 = vmatpush1.bf16.msra.mxu0 0
  %5412 = vmatprep.mubr.bf16.mxu0 0
  %5413 = vmatmul.mubr.bf16.gmra.mrb[0].mxu0 %v4340
  %v5414 = vpop.f32.mrb[0].mxu0
  %v5415 = vadd.f32 0.0, %v5414
  %v5416 = vpop.f32.mrb[0].mxu0
  %v5417 = vadd.f32 0.0, %v5416
  %v5418 = vpop.f32.mrb[0].mxu0
  %v5419 = vadd.f32 0.0, %v5418
  %v5420 = vpop.f32.mrb[0].mxu0
  %v5421 = vadd.f32 0.0, %v5420
  %5422 = vmatprep.mubr.bf16.mxu0 0
  %5423 = vmatmul.mubr.bf16.gmra.mrb[0].mxu0 %v4343
  %v5424 = vpop.f32.mrb[0].mxu0
  %v5425 = vadd.f32 0.0, %v5424
  %v5426 = vpop.f32.mrb[0].mxu0
  %v5427 = vadd.f32 0.0, %v5426
  %v5428 = vpop.f32.mrb[0].mxu0
  %v5429 = vadd.f32 0.0, %v5428
  %v5430 = vpop.f32.mrb[0].mxu0
  %v5431 = vadd.f32 0.0, %v5430
  %5432 = vmatprep.mubr.bf16.mxu0 0
  %5433 = vmatmul.mubr.bf16.gmra.mrb[0].mxu0 %v4346
  %v5434 = vpop.f32.mrb[0].mxu0
  %v5435 = vadd.f32 0.0, %v5434
  %v5436 = vpop.f32.mrb[0].mxu0
  %v5437 = vadd.f32 0.0, %v5436
  %v5438 = vpop.f32.mrb[0].mxu0
  %v5439 = vadd.f32 0.0, %v5438
  %v5440 = vpop.f32.mrb[0].mxu0
  %v5441 = vadd.f32 0.0, %v5440
  %5442 = vmatprep.mubr.bf16.mxu0 0
  %5443 = vmatmul.mubr.bf16.gmra.mrb[0].mxu0 %v4349
  %v5444 = vpop.f32.mrb[0].mxu0
  %v5445 = vadd.f32 0.0, %v5444
  %v5446 = vpop.f32.mrb[0].mxu0
  %v5447 = vadd.f32 0.0, %v5446
  %v5448 = vpop.f32.mrb[0].mxu0
  %v5449 = vadd.f32 0.0, %v5448
  %v5450 = vpop.f32.mrb[0].mxu0
  %v5451 = vadd.f32 0.0, %v5450
  %5452 = vmatprep.mubr.bf16.mxu0 0
  %5453 = vmatmul.mubr.bf16.gmra.mrb[0].mxu0 %v4352
  %v5454 = vpop.f32.mrb[0].mxu0
  %v5455 = vadd.f32 0.0, %v5454
  %v5456 = vpop.f32.mrb[0].mxu0
  %v5457 = vadd.f32 0.0, %v5456
  %v5458 = vpop.f32.mrb[0].mxu0
  %v5459 = vadd.f32 0.0, %v5458
  %v5460 = vpop.f32.mrb[0].mxu0
  %v5461 = vadd.f32 0.0, %v5460
  %5462 = vmatprep.mubr.bf16.mxu0 0
  %5463 = vmatmul.mubr.bf16.gmra.mrb[0].mxu0 %v4355
  %v5464 = vpop.f32.mrb[0].mxu0
  %v5465 = vadd.f32 0.0, %v5464
  %v5466 = vpop.f32.mrb[0].mxu0
  %v5467 = vadd.f32 0.0, %v5466
  %v5468 = vpop.f32.mrb[0].mxu0
  %v5469 = vadd.f32 0.0, %v5468
  %v5470 = vpop.f32.mrb[0].mxu0
  %v5471 = vadd.f32 0.0, %v5470
  %5472 = vmatprep.mubr.bf16.mxu0 0
  %5473 = vmatmul.mubr.bf16.gmra.mrb[0].mxu0 %v4358
  %v5474 = vpop.f32.mrb[0].mxu0
  %v5475 = vadd.f32 0.0, %v5474
  %v5476 = vpop.f32.mrb[0].mxu0
  %v5477 = vadd.f32 0.0, %v5476
  %v5478 = vpop.f32.mrb[0].mxu0
  %v5479 = vadd.f32 0.0, %v5478
  %v5480 = vpop.f32.mrb[0].mxu0
  %v5481 = vadd.f32 0.0, %v5480
  %5482 = vmatprep.mubr.bf16.mxu0 0
  %5483 = vmatmul.mubr.bf16.gmra.mrb[0].mxu0 %v4361
  %v5484 = vpop.f32.mrb[0].mxu0
  %v5485 = vadd.f32 0.0, %v5484
  %v5486 = vpop.f32.mrb[0].mxu0
  %v5487 = vadd.f32 0.0, %v5486
  %v5488 = vpop.f32.mrb[0].mxu0
  %v5489 = vadd.f32 0.0, %v5488
  %v5490 = vpop.f32.mrb[0].mxu0
  %v5491 = vadd.f32 0.0, %v5490
  %5492 = vdwg.mxu0
  %5493 = vmatprep.subr.bf16.mxu0 %v4192
  %5494 = vmatpush1.bf16.msra.mxu0 %v4191
  %5495 = vmatprep.subr.bf16.mxu0 %v4224
  %5496 = vmatpush1.bf16.msra.mxu0 %v4223
  %5497 = vmatprep.subr.bf16.mxu0 %v4256
  %5498 = vmatpush1.bf16.msra.mxu0 %v4255
  %5499 = vmatprep.subr.bf16.mxu0 %v4288
  %5500 = vmatpush1.bf16.msra.mxu0 %v4287
  %5501 = vmatprep.subr.bf16.mxu0 0
  %5502 = vmatpush1.bf16.msra.mxu0 0
  %5503 = vmatprep.subr.bf16.mxu0 0
  %5504 = vmatpush1.bf16.msra.mxu0 0
  %5505 = vmatprep.subr.bf16.mxu0 0
  %5506 = vmatpush1.bf16.msra.mxu0 0
  %5507 = vmatprep.subr.bf16.mxu0 0
  %5508 = vmatpush1.bf16.msra.mxu0 0
  %5509 = vmatprep.subr.bf16.mxu0 0
  %5510 = vmatpush1.bf16.msra.mxu0 0
  %5511 = vmatprep.subr.bf16.mxu0 0
  %5512 = vmatpush1.bf16.msra.mxu0 0
  %5513 = vmatprep.subr.bf16.mxu0 0
  %5514 = vmatpush1.bf16.msra.mxu0 0
  %5515 = vmatprep.subr.bf16.mxu0 0
  %5516 = vmatpush1.bf16.msra.mxu0 0
  %5517 = vmatprep.subr.bf16.mxu0 0
  %5518 = vmatpush1.bf16.msra.mxu0 0
  %5519 = vmatprep.subr.bf16.mxu0 0
  %5520 = vmatpush1.bf16.msra.mxu0 0
  %5521 = vmatprep.subr.bf16.mxu0 0
  %5522 = vmatpush1.bf16.msra.mxu0 0
  %5523 = vmatprep.subr.bf16.mxu0 0
  %5524 = vmatpush1.bf16.msra.mxu0 0
  %5525 = vmatprep.mubr.bf16.mxu0 0
  %5526 = vmatmul.mubr.bf16.gmra.mrb[0].mxu0 %v4340
  %v5527 = vpop.f32.mrb[0].mxu0
  %v5528 = vadd.f32 0.0, %v5527
  %v5529 = vpop.f32.mrb[0].mxu0
  %v5530 = vadd.f32 0.0, %v5529
  %v5531 = vpop.f32.mrb[0].mxu0
  %v5532 = vadd.f32 0.0, %v5531
  %v5533 = vpop.f32.mrb[0].mxu0
  %v5534 = vadd.f32 0.0, %v5533
  %5535 = vmatprep.mubr.bf16.mxu0 0
  %5536 = vmatmul.mubr.bf16.gmra.mrb[0].mxu0 %v4343
  %v5537 = vpop.f32.mrb[0].mxu0
  %v5538 = vadd.f32 0.0, %v5537
  %v5539 = vpop.f32.mrb[0].mxu0
  %v5540 = vadd.f32 0.0, %v5539
  %v5541 = vpop.f32.mrb[0].mxu0
  %v5542 = vadd.f32 0.0, %v5541
  %v5543 = vpop.f32.mrb[0].mxu0
  %v5544 = vadd.f32 0.0, %v5543
  %5545 = vmatprep.mubr.bf16.mxu0 0
  %5546 = vmatmul.mubr.bf16.gmra.mrb[0].mxu0 %v4346
  %v5547 = vpop.f32.mrb[0].mxu0
  %v5548 = vadd.f32 0.0, %v5547
  %v5549 = vpop.f32.mrb[0].mxu0
  %v5550 = vadd.f32 0.0, %v5549
  %v5551 = vpop.f32.mrb[0].mxu0
  %v5552 = vadd.f32 0.0, %v5551
  %v5553 = vpop.f32.mrb[0].mxu0
  %v5554 = vadd.f32 0.0, %v5553
  %5555 = vmatprep.mubr.bf16.mxu0 0
  %5556 = vmatmul.mubr.bf16.gmra.mrb[0].mxu0 %v4349
  %v5557 = vpop.f32.mrb[0].mxu0
  %v5558 = vadd.f32 0.0, %v5557
  %v5559 = vpop.f32.mrb[0].mxu0
  %v5560 = vadd.f32 0.0, %v5559
  %v5561 = vpop.f32.mrb[0].mxu0
  %v5562 = vadd.f32 0.0, %v5561
  %v5563 = vpop.f32.mrb[0].mxu0
  %v5564 = vadd.f32 0.0, %v5563
  %5565 = vmatprep.mubr.bf16.mxu0 0
  %5566 = vmatmul.mubr.bf16.gmra.mrb[0].mxu0 %v4352
  %v5567 = vpop.f32.mrb[0].mxu0
  %v5568 = vadd.f32 0.0, %v5567
  %v5569 = vpop.f32.mrb[0].mxu0
  %v5570 = vadd.f32 0.0, %v5569
  %v5571 = vpop.f32.mrb[0].mxu0
  %v5572 = vadd.f32 0.0, %v5571
  %v5573 = vpop.f32.mrb[0].mxu0
  %v5574 = vadd.f32 0.0, %v5573
  %5575 = vmatprep.mubr.bf16.mxu0 0
  %5576 = vmatmul.mubr.bf16.gmra.mrb[0].mxu0 %v4355
  %v5577 = vpop.f32.mrb[0].mxu0
  %v5578 = vadd.f32 0.0, %v5577
  %v5579 = vpop.f32.mrb[0].mxu0
  %v5580 = vadd.f32 0.0, %v5579
  %v5581 = vpop.f32.mrb[0].mxu0
  %v5582 = vadd.f32 0.0, %v5581
  %v5583 = vpop.f32.mrb[0].mxu0
  %v5584 = vadd.f32 0.0, %v5583
  %5585 = vmatprep.mubr.bf16.mxu0 0
  %5586 = vmatmul.mubr.bf16.gmra.mrb[0].mxu0 %v4358
  %v5587 = vpop.f32.mrb[0].mxu0
  %v5588 = vadd.f32 0.0, %v5587
  %v5589 = vpop.f32.mrb[0].mxu0
  %v5590 = vadd.f32 0.0, %v5589
  %v5591 = vpop.f32.mrb[0].mxu0
  %v5592 = vadd.f32 0.0, %v5591
  %v5593 = vpop.f32.mrb[0].mxu0
  %v5594 = vadd.f32 0.0, %v5593
  %5595 = vmatprep.mubr.bf16.mxu0 0
  %5596 = vmatmul.mubr.bf16.gmra.mrb[0].mxu0 %v4361
  %v5597 = vpop.f32.mrb[0].mxu0
  %v5598 = vadd.f32 0.0, %v5597
  %v5599 = vpop.f32.mrb[0].mxu0
  %v5600 = vadd.f32 0.0, %v5599
  %v5601 = vpop.f32.mrb[0].mxu0
  %v5602 = vadd.f32 0.0, %v5601
  %v5603 = vpop.f32.mrb[0].mxu0
  %v5604 = vadd.f32 0.0, %v5603
  %5605 = vdwg.mxu0
  %5606 = vmatprep.subr.bf16.mxu0 %v4194
  %5607 = vmatpush1.bf16.msra.mxu0 %v4193
  %5608 = vmatprep.subr.bf16.mxu0 %v4226
  %5609 = vmatpush1.bf16.msra.mxu0 %v4225
  %5610 = vmatprep.subr.bf16.mxu0 %v4258
  %5611 = vmatpush1.bf16.msra.mxu0 %v4257
  %5612 = vmatprep.subr.bf16.mxu0 %v4290
  %5613 = vmatpush1.bf16.msra.mxu0 %v4289
  %5614 = vmatprep.subr.bf16.mxu0 0
  %5615 = vmatpush1.bf16.msra.mxu0 0
  %5616 = vmatprep.subr.bf16.mxu0 0
  %5617 = vmatpush1.bf16.msra.mxu0 0
  %5618 = vmatprep.subr.bf16.mxu0 0
  %5619 = vmatpush1.bf16.msra.mxu0 0
  %5620 = vmatprep.subr.bf16.mxu0 0
  %5621 = vmatpush1.bf16.msra.mxu0 0
  %5622 = vmatprep.subr.bf16.mxu0 0
  %5623 = vmatpush1.bf16.msra.mxu0 0
  %5624 = vmatprep.subr.bf16.mxu0 0
  %5625 = vmatpush1.bf16.msra.mxu0 0
  %5626 = vmatprep.subr.bf16.mxu0 0
  %5627 = vmatpush1.bf16.msra.mxu0 0
  %5628 = vmatprep.subr.bf16.mxu0 0
  %5629 = vmatpush1.bf16.msra.mxu0 0
  %5630 = vmatprep.subr.bf16.mxu0 0
  %5631 = vmatpush1.bf16.msra.mxu0 0
  %5632 = vmatprep.subr.bf16.mxu0 0
  %5633 = vmatpush1.bf16.msra.mxu0 0
  %5634 = vmatprep.subr.bf16.mxu0 0
  %5635 = vmatpush1.bf16.msra.mxu0 0
  %5636 = vmatprep.subr.bf16.mxu0 0
  %5637 = vmatpush1.bf16.msra.mxu0 0
  %5638 = vmatprep.mubr.bf16.mxu0 0
  %5639 = vmatmul.mubr.bf16.gmra.mrb[0].mxu0 %v4340
  %v5640 = vpop.f32.mrb[0].mxu0
  %v5641 = vadd.f32 0.0, %v5640
  %v5642 = vpop.f32.mrb[0].mxu0
  %v5643 = vadd.f32 0.0, %v5642
  %v5644 = vpop.f32.mrb[0].mxu0
  %v5645 = vadd.f32 0.0, %v5644
  %v5646 = vpop.f32.mrb[0].mxu0
  %v5647 = vadd.f32 0.0, %v5646
  %5648 = vmatprep.mubr.bf16.mxu0 0
  %5649 = vmatmul.mubr.bf16.gmra.mrb[0].mxu0 %v4343
  %v5650 = vpop.f32.mrb[0].mxu0
  %v5651 = vadd.f32 0.0, %v5650
  %v5652 = vpop.f32.mrb[0].mxu0
  %v5653 = vadd.f32 0.0, %v5652
  %v5654 = vpop.f32.mrb[0].mxu0
  %v5655 = vadd.f32 0.0, %v5654
  %v5656 = vpop.f32.mrb[0].mxu0
  %v5657 = vadd.f32 0.0, %v5656
  %5658 = vmatprep.mubr.bf16.mxu0 0
  %5659 = vmatmul.mubr.bf16.gmra.mrb[0].mxu0 %v4346
  %v5660 = vpop.f32.mrb[0].mxu0
  %v5661 = vadd.f32 0.0, %v5660
  %v5662 = vpop.f32.mrb[0].mxu0
  %v5663 = vadd.f32 0.0, %v5662
  %v5664 = vpop.f32.mrb[0].mxu0
  %v5665 = vadd.f32 0.0, %v5664
  %v5666 = vpop.f32.mrb[0].mxu0
  %v5667 = vadd.f32 0.0, %v5666
  %5668 = vmatprep.mubr.bf16.mxu0 0
  %5669 = vmatmul.mubr.bf16.gmra.mrb[0].mxu0 %v4349
  %v5670 = vpop.f32.mrb[0].mxu0
  %v5671 = vadd.f32 0.0, %v5670
  %v5672 = vpop.f32.mrb[0].mxu0
  %v5673 = vadd.f32 0.0, %v5672
  %v5674 = vpop.f32.mrb[0].mxu0
  %v5675 = vadd.f32 0.0, %v5674
  %v5676 = vpop.f32.mrb[0].mxu0
  %v5677 = vadd.f32 0.0, %v5676
  %5678 = vmatprep.mubr.bf16.mxu0 0
  %5679 = vmatmul.mubr.bf16.gmra.mrb[0].mxu0 %v4352
  %v5680 = vpop.f32.mrb[0].mxu0
  %v5681 = vadd.f32 0.0, %v5680
  %v5682 = vpop.f32.mrb[0].mxu0
  %v5683 = vadd.f32 0.0, %v5682
  %v5684 = vpop.f32.mrb[0].mxu0
  %v5685 = vadd.f32 0.0, %v5684
  %v5686 = vpop.f32.mrb[0].mxu0
  %v5687 = vadd.f32 0.0, %v5686
  %5688 = vmatprep.mubr.bf16.mxu0 0
  %5689 = vmatmul.mubr.bf16.gmra.mrb[0].mxu0 %v4355
  %v5690 = vpop.f32.mrb[0].mxu0
  %v5691 = vadd.f32 0.0, %v5690
  %v5692 = vpop.f32.mrb[0].mxu0
  %v5693 = vadd.f32 0.0, %v5692
  %v5694 = vpop.f32.mrb[0].mxu0
  %v5695 = vadd.f32 0.0, %v5694
  %v5696 = vpop.f32.mrb[0].mxu0
  %v5697 = vadd.f32 0.0, %v5696
  %5698 = vmatprep.mubr.bf16.mxu0 0
  %5699 = vmatmul.mubr.bf16.gmra.mrb[0].mxu0 %v4358
  %v5700 = vpop.f32.mrb[0].mxu0
  %v5701 = vadd.f32 0.0, %v5700
  %v5702 = vpop.f32.mrb[0].mxu0
  %v5703 = vadd.f32 0.0, %v5702
  %v5704 = vpop.f32.mrb[0].mxu0
  %v5705 = vadd.f32 0.0, %v5704
  %v5706 = vpop.f32.mrb[0].mxu0
  %v5707 = vadd.f32 0.0, %v5706
  %5708 = vmatprep.mubr.bf16.mxu0 0
  %5709 = vmatmul.mubr.bf16.gmra.mrb[0].mxu0 %v4361
  %v5710 = vpop.f32.mrb[0].mxu0
  %v5711 = vadd.f32 0.0, %v5710
  %v5712 = vpop.f32.mrb[0].mxu0
  %v5713 = vadd.f32 0.0, %v5712
  %v5714 = vpop.f32.mrb[0].mxu0
  %v5715 = vadd.f32 0.0, %v5714
  %v5716 = vpop.f32.mrb[0].mxu0
  %v5717 = vadd.f32 0.0, %v5716
  %5718 = vdwg.mxu0
  %5719 = vmatprep.subr.bf16.mxu0 %v4196
  %5720 = vmatpush1.bf16.msra.mxu0 %v4195
  %5721 = vmatprep.subr.bf16.mxu0 %v4228
  %5722 = vmatpush1.bf16.msra.mxu0 %v4227
  %5723 = vmatprep.subr.bf16.mxu0 %v4260
  %5724 = vmatpush1.bf16.msra.mxu0 %v4259
  %5725 = vmatprep.subr.bf16.mxu0 %v4292
  %5726 = vmatpush1.bf16.msra.mxu0 %v4291
  %5727 = vmatprep.subr.bf16.mxu0 0
  %5728 = vmatpush1.bf16.msra.mxu0 0
  %5729 = vmatprep.subr.bf16.mxu0 0
  %5730 = vmatpush1.bf16.msra.mxu0 0
  %5731 = vmatprep.subr.bf16.mxu0 0
  %5732 = vmatpush1.bf16.msra.mxu0 0
  %5733 = vmatprep.subr.bf16.mxu0 0
  %5734 = vmatpush1.bf16.msra.mxu0 0
  %5735 = vmatprep.subr.bf16.mxu0 0
  %5736 = vmatpush1.bf16.msra.mxu0 0
  %5737 = vmatprep.subr.bf16.mxu0 0
  %5738 = vmatpush1.bf16.msra.mxu0 0
  %5739 = vmatprep.subr.bf16.mxu0 0
  %5740 = vmatpush1.bf16.msra.mxu0 0
  %5741 = vmatprep.subr.bf16.mxu0 0
  %5742 = vmatpush1.bf16.msra.mxu0 0
  %5743 = vmatprep.subr.bf16.mxu0 0
  %5744 = vmatpush1.bf16.msra.mxu0 0
  %5745 = vmatprep.subr.bf16.mxu0 0
  %5746 = vmatpush1.bf16.msra.mxu0 0
  %5747 = vmatprep.subr.bf16.mxu0 0
  %5748 = vmatpush1.bf16.msra.mxu0 0
  %5749 = vmatprep.subr.bf16.mxu0 0
  %5750 = vmatpush1.bf16.msra.mxu0 0
  %5751 = vmatprep.mubr.bf16.mxu0 0
  %5752 = vmatmul.mubr.bf16.gmra.mrb[0].mxu0 %v4340
  %v5753 = vpop.f32.mrb[0].mxu0
  %v5754 = vadd.f32 0.0, %v5753
  %v5755 = vpop.f32.mrb[0].mxu0
  %v5756 = vadd.f32 0.0, %v5755
  %v5757 = vpop.f32.mrb[0].mxu0
  %v5758 = vadd.f32 0.0, %v5757
  %v5759 = vpop.f32.mrb[0].mxu0
  %v5760 = vadd.f32 0.0, %v5759
  %5761 = vmatprep.mubr.bf16.mxu0 0
  %5762 = vmatmul.mubr.bf16.gmra.mrb[0].mxu0 %v4343
  %v5763 = vpop.f32.mrb[0].mxu0
  %v5764 = vadd.f32 0.0, %v5763
  %v5765 = vpop.f32.mrb[0].mxu0
  %v5766 = vadd.f32 0.0, %v5765
  %v5767 = vpop.f32.mrb[0].mxu0
  %v5768 = vadd.f32 0.0, %v5767
  %v5769 = vpop.f32.mrb[0].mxu0
  %v5770 = vadd.f32 0.0, %v5769
  %5771 = vmatprep.mubr.bf16.mxu0 0
  %5772 = vmatmul.mubr.bf16.gmra.mrb[0].mxu0 %v4346
  %v5773 = vpop.f32.mrb[0].mxu0
  %v5774 = vadd.f32 0.0, %v5773
  %v5775 = vpop.f32.mrb[0].mxu0
  %v5776 = vadd.f32 0.0, %v5775
  %v5777 = vpop.f32.mrb[0].mxu0
  %v5778 = vadd.f32 0.0, %v5777
  %v5779 = vpop.f32.mrb[0].mxu0
  %v5780 = vadd.f32 0.0, %v5779
  %5781 = vmatprep.mubr.bf16.mxu0 0
  %5782 = vmatmul.mubr.bf16.gmra.mrb[0].mxu0 %v4349
  %v5783 = vpop.f32.mrb[0].mxu0
  %v5784 = vadd.f32 0.0, %v5783
  %v5785 = vpop.f32.mrb[0].mxu0
  %v5786 = vadd.f32 0.0, %v5785
  %v5787 = vpop.f32.mrb[0].mxu0
  %v5788 = vadd.f32 0.0, %v5787
  %v5789 = vpop.f32.mrb[0].mxu0
  %v5790 = vadd.f32 0.0, %v5789
  %5791 = vmatprep.mubr.bf16.mxu0 0
  %5792 = vmatmul.mubr.bf16.gmra.mrb[0].mxu0 %v4352
  %v5793 = vpop.f32.mrb[0].mxu0
  %v5794 = vadd.f32 0.0, %v5793
  %v5795 = vpop.f32.mrb[0].mxu0
  %v5796 = vadd.f32 0.0, %v5795
  %v5797 = vpop.f32.mrb[0].mxu0
  %v5798 = vadd.f32 0.0, %v5797
  %v5799 = vpop.f32.mrb[0].mxu0
  %v5800 = vadd.f32 0.0, %v5799
  %5801 = vmatprep.mubr.bf16.mxu0 0
  %5802 = vmatmul.mubr.bf16.gmra.mrb[0].mxu0 %v4355
  %v5803 = vpop.f32.mrb[0].mxu0
  %v5804 = vadd.f32 0.0, %v5803
  %v5805 = vpop.f32.mrb[0].mxu0
  %v5806 = vadd.f32 0.0, %v5805
  %v5807 = vpop.f32.mrb[0].mxu0
  %v5808 = vadd.f32 0.0, %v5807
  %v5809 = vpop.f32.mrb[0].mxu0
  %v5810 = vadd.f32 0.0, %v5809
  %5811 = vmatprep.mubr.bf16.mxu0 0
  %5812 = vmatmul.mubr.bf16.gmra.mrb[0].mxu0 %v4358
  %v5813 = vpop.f32.mrb[0].mxu0
  %v5814 = vadd.f32 0.0, %v5813
  %v5815 = vpop.f32.mrb[0].mxu0
  %v5816 = vadd.f32 0.0, %v5815
  %v5817 = vpop.f32.mrb[0].mxu0
  %v5818 = vadd.f32 0.0, %v5817
  %v5819 = vpop.f32.mrb[0].mxu0
  %v5820 = vadd.f32 0.0, %v5819
  %5821 = vmatprep.mubr.bf16.mxu0 0
  %5822 = vmatmul.mubr.bf16.gmra.mrb[0].mxu0 %v4361
  %v5823 = vpop.f32.mrb[0].mxu0
  %v5824 = vadd.f32 0.0, %v5823
  %v5825 = vpop.f32.mrb[0].mxu0
  %v5826 = vadd.f32 0.0, %v5825
  %v5827 = vpop.f32.mrb[0].mxu0
  %v5828 = vadd.f32 0.0, %v5827
  %v5829 = vpop.f32.mrb[0].mxu0
  %v5830 = vadd.f32 0.0, %v5829
  %5831 = vdwg.mxu0
  %5832 = vmatprep.subr.bf16.mxu0 %v4198
  %5833 = vmatpush1.bf16.msra.mxu0 %v4197
  %5834 = vmatprep.subr.bf16.mxu0 %v4230
  %5835 = vmatpush1.bf16.msra.mxu0 %v4229
  %5836 = vmatprep.subr.bf16.mxu0 %v4262
  %5837 = vmatpush1.bf16.msra.mxu0 %v4261
  %5838 = vmatprep.subr.bf16.mxu0 %v4294
  %5839 = vmatpush1.bf16.msra.mxu0 %v4293
  %5840 = vmatprep.subr.bf16.mxu0 0
  %5841 = vmatpush1.bf16.msra.mxu0 0
  %5842 = vmatprep.subr.bf16.mxu0 0
  %5843 = vmatpush1.bf16.msra.mxu0 0
  %5844 = vmatprep.subr.bf16.mxu0 0
  %5845 = vmatpush1.bf16.msra.mxu0 0
  %5846 = vmatprep.subr.bf16.mxu0 0
  %5847 = vmatpush1.bf16.msra.mxu0 0
  %5848 = vmatprep.subr.bf16.mxu0 0
  %5849 = vmatpush1.bf16.msra.mxu0 0
  %5850 = vmatprep.subr.bf16.mxu0 0
  %5851 = vmatpush1.bf16.msra.mxu0 0
  %5852 = vmatprep.subr.bf16.mxu0 0
  %5853 = vmatpush1.bf16.msra.mxu0 0
  %5854 = vmatprep.subr.bf16.mxu0 0
  %5855 = vmatpush1.bf16.msra.mxu0 0
  %5856 = vmatprep.subr.bf16.mxu0 0
  %5857 = vmatpush1.bf16.msra.mxu0 0
  %5858 = vmatprep.subr.bf16.mxu0 0
  %5859 = vmatpush1.bf16.msra.mxu0 0
  %5860 = vmatprep.subr.bf16.mxu0 0
  %5861 = vmatpush1.bf16.msra.mxu0 0
  %5862 = vmatprep.subr.bf16.mxu0 0
  %5863 = vmatpush1.bf16.msra.mxu0 0
  %5864 = vmatprep.mubr.bf16.mxu0 0
  %5865 = vmatmul.mubr.bf16.gmra.mrb[0].mxu0 %v4340
  %v5866 = vpop.f32.mrb[0].mxu0
  %v5867 = vadd.f32 0.0, %v5866
  %v5868 = vpop.f32.mrb[0].mxu0
  %v5869 = vadd.f32 0.0, %v5868
  %v5870 = vpop.f32.mrb[0].mxu0
  %v5871 = vadd.f32 0.0, %v5870
  %v5872 = vpop.f32.mrb[0].mxu0
  %v5873 = vadd.f32 0.0, %v5872
  %5874 = vmatprep.mubr.bf16.mxu0 0
  %5875 = vmatmul.mubr.bf16.gmra.mrb[0].mxu0 %v4343
  %v5876 = vpop.f32.mrb[0].mxu0
  %v5877 = vadd.f32 0.0, %v5876
  %v5878 = vpop.f32.mrb[0].mxu0
  %v5879 = vadd.f32 0.0, %v5878
  %v5880 = vpop.f32.mrb[0].mxu0
  %v5881 = vadd.f32 0.0, %v5880
  %v5882 = vpop.f32.mrb[0].mxu0
  %v5883 = vadd.f32 0.0, %v5882
  %5884 = vmatprep.mubr.bf16.mxu0 0
  %5885 = vmatmul.mubr.bf16.gmra.mrb[0].mxu0 %v4346
  %v5886 = vpop.f32.mrb[0].mxu0
  %v5887 = vadd.f32 0.0, %v5886
  %v5888 = vpop.f32.mrb[0].mxu0
  %v5889 = vadd.f32 0.0, %v5888
  %v5890 = vpop.f32.mrb[0].mxu0
  %v5891 = vadd.f32 0.0, %v5890
  %v5892 = vpop.f32.mrb[0].mxu0
  %v5893 = vadd.f32 0.0, %v5892
  %5894 = vmatprep.mubr.bf16.mxu0 0
  %5895 = vmatmul.mubr.bf16.gmra.mrb[0].mxu0 %v4349
  %v5896 = vpop.f32.mrb[0].mxu0
  %v5897 = vadd.f32 0.0, %v5896
  %v5898 = vpop.f32.mrb[0].mxu0
  %v5899 = vadd.f32 0.0, %v5898
  %v5900 = vpop.f32.mrb[0].mxu0
  %v5901 = vadd.f32 0.0, %v5900
  %v5902 = vpop.f32.mrb[0].mxu0
  %v5903 = vadd.f32 0.0, %v5902
  %5904 = vmatprep.mubr.bf16.mxu0 0
  %5905 = vmatmul.mubr.bf16.gmra.mrb[0].mxu0 %v4352
  %v5906 = vpop.f32.mrb[0].mxu0
  %v5907 = vadd.f32 0.0, %v5906
  %v5908 = vpop.f32.mrb[0].mxu0
  %v5909 = vadd.f32 0.0, %v5908
  %v5910 = vpop.f32.mrb[0].mxu0
  %v5911 = vadd.f32 0.0, %v5910
  %v5912 = vpop.f32.mrb[0].mxu0
  %v5913 = vadd.f32 0.0, %v5912
  %5914 = vmatprep.mubr.bf16.mxu0 0
  %5915 = vmatmul.mubr.bf16.gmra.mrb[0].mxu0 %v4355
  %v5916 = vpop.f32.mrb[0].mxu0
  %v5917 = vadd.f32 0.0, %v5916
  %v5918 = vpop.f32.mrb[0].mxu0
  %v5919 = vadd.f32 0.0, %v5918
  %v5920 = vpop.f32.mrb[0].mxu0
  %v5921 = vadd.f32 0.0, %v5920
  %v5922 = vpop.f32.mrb[0].mxu0
  %v5923 = vadd.f32 0.0, %v5922
  %5924 = vmatprep.mubr.bf16.mxu0 0
  %5925 = vmatmul.mubr.bf16.gmra.mrb[0].mxu0 %v4358
  %v5926 = vpop.f32.mrb[0].mxu0
  %v5927 = vadd.f32 0.0, %v5926
  %v5928 = vpop.f32.mrb[0].mxu0
  %v5929 = vadd.f32 0.0, %v5928
  %v5930 = vpop.f32.mrb[0].mxu0
  %v5931 = vadd.f32 0.0, %v5930
  %v5932 = vpop.f32.mrb[0].mxu0
  %v5933 = vadd.f32 0.0, %v5932
  %5934 = vmatprep.mubr.bf16.mxu0 0
  %5935 = vmatmul.mubr.bf16.gmra.mrb[0].mxu0 %v4361
  %v5936 = vpop.f32.mrb[0].mxu0
  %v5937 = vadd.f32 0.0, %v5936
  %v5938 = vpop.f32.mrb[0].mxu0
  %v5939 = vadd.f32 0.0, %v5938
  %v5940 = vpop.f32.mrb[0].mxu0
  %v5941 = vadd.f32 0.0, %v5940
  %v5942 = vpop.f32.mrb[0].mxu0
  %v5943 = vadd.f32 0.0, %v5942
  %5944 = vdwg.mxu0
  %5945 = vmatprep.subr.bf16.mxu0 %v4200
  %5946 = vmatpush1.bf16.msra.mxu0 %v4199
  %5947 = vmatprep.subr.bf16.mxu0 %v4232
  %5948 = vmatpush1.bf16.msra.mxu0 %v4231
  %5949 = vmatprep.subr.bf16.mxu0 %v4264
  %5950 = vmatpush1.bf16.msra.mxu0 %v4263
  %5951 = vmatprep.subr.bf16.mxu0 %v4296
  %5952 = vmatpush1.bf16.msra.mxu0 %v4295
  %5953 = vmatprep.subr.bf16.mxu0 0
  %5954 = vmatpush1.bf16.msra.mxu0 0
  %5955 = vmatprep.subr.bf16.mxu0 0
  %5956 = vmatpush1.bf16.msra.mxu0 0
  %5957 = vmatprep.subr.bf16.mxu0 0
  %5958 = vmatpush1.bf16.msra.mxu0 0
  %5959 = vmatprep.subr.bf16.mxu0 0
  %5960 = vmatpush1.bf16.msra.mxu0 0
  %5961 = vmatprep.subr.bf16.mxu0 0
  %5962 = vmatpush1.bf16.msra.mxu0 0
  %5963 = vmatprep.subr.bf16.mxu0 0
  %5964 = vmatpush1.bf16.msra.mxu0 0
  %5965 = vmatprep.subr.bf16.mxu0 0
  %5966 = vmatpush1.bf16.msra.mxu0 0
  %5967 = vmatprep.subr.bf16.mxu0 0
  %5968 = vmatpush1.bf16.msra.mxu0 0
  %5969 = vmatprep.subr.bf16.mxu0 0
  %5970 = vmatpush1.bf16.msra.mxu0 0
  %5971 = vmatprep.subr.bf16.mxu0 0
  %5972 = vmatpush1.bf16.msra.mxu0 0
  %5973 = vmatprep.subr.bf16.mxu0 0
  %5974 = vmatpush1.bf16.msra.mxu0 0
  %5975 = vmatprep.subr.bf16.mxu0 0
  %5976 = vmatpush1.bf16.msra.mxu0 0
  %5977 = vmatprep.mubr.bf16.mxu0 0
  %5978 = vmatmul.mubr.bf16.gmra.mrb[0].mxu0 %v4340
  %v5979 = vpop.f32.mrb[0].mxu0
  %v5980 = vadd.f32 0.0, %v5979
  %v5981 = vpop.f32.mrb[0].mxu0
  %v5982 = vadd.f32 0.0, %v5981
  %v5983 = vpop.f32.mrb[0].mxu0
  %v5984 = vadd.f32 0.0, %v5983
  %v5985 = vpop.f32.mrb[0].mxu0
  %v5986 = vadd.f32 0.0, %v5985
  %5987 = vmatprep.mubr.bf16.mxu0 0
  %5988 = vmatmul.mubr.bf16.gmra.mrb[0].mxu0 %v4343
  %v5989 = vpop.f32.mrb[0].mxu0
  %v5990 = vadd.f32 0.0, %v5989
  %v5991 = vpop.f32.mrb[0].mxu0
  %v5992 = vadd.f32 0.0, %v5991
  %v5993 = vpop.f32.mrb[0].mxu0
  %v5994 = vadd.f32 0.0, %v5993
  %v5995 = vpop.f32.mrb[0].mxu0
  %v5996 = vadd.f32 0.0, %v5995
  %5997 = vmatprep.mubr.bf16.mxu0 0
  %5998 = vmatmul.mubr.bf16.gmra.mrb[0].mxu0 %v4346
  %v5999 = vpop.f32.mrb[0].mxu0
  %v6000 = vadd.f32 0.0, %v5999
  %v6001 = vpop.f32.mrb[0].mxu0
  %v6002 = vadd.f32 0.0, %v6001
  %v6003 = vpop.f32.mrb[0].mxu0
  %v6004 = vadd.f32 0.0, %v6003
  %v6005 = vpop.f32.mrb[0].mxu0
  %v6006 = vadd.f32 0.0, %v6005
  %6007 = vmatprep.mubr.bf16.mxu0 0
  %6008 = vmatmul.mubr.bf16.gmra.mrb[0].mxu0 %v4349
  %v6009 = vpop.f32.mrb[0].mxu0
  %v6010 = vadd.f32 0.0, %v6009
  %v6011 = vpop.f32.mrb[0].mxu0
  %v6012 = vadd.f32 0.0, %v6011
  %v6013 = vpop.f32.mrb[0].mxu0
  %v6014 = vadd.f32 0.0, %v6013
  %v6015 = vpop.f32.mrb[0].mxu0
  %v6016 = vadd.f32 0.0, %v6015
  %6017 = vmatprep.mubr.bf16.mxu0 0
  %6018 = vmatmul.mubr.bf16.gmra.mrb[0].mxu0 %v4352
  %v6019 = vpop.f32.mrb[0].mxu0
  %v6020 = vadd.f32 0.0, %v6019
  %v6021 = vpop.f32.mrb[0].mxu0
  %v6022 = vadd.f32 0.0, %v6021
  %v6023 = vpop.f32.mrb[0].mxu0
  %v6024 = vadd.f32 0.0, %v6023
  %v6025 = vpop.f32.mrb[0].mxu0
  %v6026 = vadd.f32 0.0, %v6025
  %6027 = vmatprep.mubr.bf16.mxu0 0
  %6028 = vmatmul.mubr.bf16.gmra.mrb[0].mxu0 %v4355
  %v6029 = vpop.f32.mrb[0].mxu0
  %v6030 = vadd.f32 0.0, %v6029
  %v6031 = vpop.f32.mrb[0].mxu0
  %v6032 = vadd.f32 0.0, %v6031
  %v6033 = vpop.f32.mrb[0].mxu0
  %v6034 = vadd.f32 0.0, %v6033
  %v6035 = vpop.f32.mrb[0].mxu0
  %v6036 = vadd.f32 0.0, %v6035
  %6037 = vmatprep.mubr.bf16.mxu0 0
  %6038 = vmatmul.mubr.bf16.gmra.mrb[0].mxu0 %v4358
  %v6039 = vpop.f32.mrb[0].mxu0
  %v6040 = vadd.f32 0.0, %v6039
  %v6041 = vpop.f32.mrb[0].mxu0
  %v6042 = vadd.f32 0.0, %v6041
  %v6043 = vpop.f32.mrb[0].mxu0
  %v6044 = vadd.f32 0.0, %v6043
  %v6045 = vpop.f32.mrb[0].mxu0
  %v6046 = vadd.f32 0.0, %v6045
  %6047 = vmatprep.mubr.bf16.mxu0 0
  %6048 = vmatmul.mubr.bf16.gmra.mrb[0].mxu0 %v4361
  %v6049 = vpop.f32.mrb[0].mxu0
  %v6050 = vadd.f32 0.0, %v6049
  %v6051 = vpop.f32.mrb[0].mxu0
  %v6052 = vadd.f32 0.0, %v6051
  %v6053 = vpop.f32.mrb[0].mxu0
  %v6054 = vadd.f32 0.0, %v6053
  %v6055 = vpop.f32.mrb[0].mxu0
  %v6056 = vadd.f32 0.0, %v6055
  %6057 = vdwg.mxu0
  %6058 = vmatprep.subr.bf16.mxu0 %v4202
  %6059 = vmatpush1.bf16.msra.mxu0 %v4201
  %6060 = vmatprep.subr.bf16.mxu0 %v4234
  %6061 = vmatpush1.bf16.msra.mxu0 %v4233
  %6062 = vmatprep.subr.bf16.mxu0 %v4266
  %6063 = vmatpush1.bf16.msra.mxu0 %v4265
  %6064 = vmatprep.subr.bf16.mxu0 %v4298
  %6065 = vmatpush1.bf16.msra.mxu0 %v4297
  %6066 = vmatprep.subr.bf16.mxu0 0
  %6067 = vmatpush1.bf16.msra.mxu0 0
  %6068 = vmatprep.subr.bf16.mxu0 0
  %6069 = vmatpush1.bf16.msra.mxu0 0
  %6070 = vmatprep.subr.bf16.mxu0 0
  %6071 = vmatpush1.bf16.msra.mxu0 0
  %6072 = vmatprep.subr.bf16.mxu0 0
  %6073 = vmatpush1.bf16.msra.mxu0 0
  %6074 = vmatprep.subr.bf16.mxu0 0
  %6075 = vmatpush1.bf16.msra.mxu0 0
  %6076 = vmatprep.subr.bf16.mxu0 0
  %6077 = vmatpush1.bf16.msra.mxu0 0
  %6078 = vmatprep.subr.bf16.mxu0 0
  %6079 = vmatpush1.bf16.msra.mxu0 0
  %6080 = vmatprep.subr.bf16.mxu0 0
  %6081 = vmatpush1.bf16.msra.mxu0 0
  %6082 = vmatprep.subr.bf16.mxu0 0
  %6083 = vmatpush1.bf16.msra.mxu0 0
  %6084 = vmatprep.subr.bf16.mxu0 0
  %6085 = vmatpush1.bf16.msra.mxu0 0
  %6086 = vmatprep.subr.bf16.mxu0 0
  %6087 = vmatpush1.bf16.msra.mxu0 0
  %6088 = vmatprep.subr.bf16.mxu0 0
  %6089 = vmatpush1.bf16.msra.mxu0 0
  %6090 = vmatprep.mubr.bf16.mxu0 0
  %6091 = vmatmul.mubr.bf16.gmra.mrb[0].mxu0 %v4340
  %v6092 = vpop.f32.mrb[0].mxu0
  %v6093 = vadd.f32 0.0, %v6092
  %v6094 = vpop.f32.mrb[0].mxu0
  %v6095 = vadd.f32 0.0, %v6094
  %v6096 = vpop.f32.mrb[0].mxu0
  %v6097 = vadd.f32 0.0, %v6096
  %v6098 = vpop.f32.mrb[0].mxu0
  %v6099 = vadd.f32 0.0, %v6098
  %6100 = vmatprep.mubr.bf16.mxu0 0
  %6101 = vmatmul.mubr.bf16.gmra.mrb[0].mxu0 %v4343
  %v6102 = vpop.f32.mrb[0].mxu0
  %v6103 = vadd.f32 0.0, %v6102
  %v6104 = vpop.f32.mrb[0].mxu0
  %v6105 = vadd.f32 0.0, %v6104
  %v6106 = vpop.f32.mrb[0].mxu0
  %v6107 = vadd.f32 0.0, %v6106
  %v6108 = vpop.f32.mrb[0].mxu0
  %v6109 = vadd.f32 0.0, %v6108
  %6110 = vmatprep.mubr.bf16.mxu0 0
  %6111 = vmatmul.mubr.bf16.gmra.mrb[0].mxu0 %v4346
  %v6112 = vpop.f32.mrb[0].mxu0
  %v6113 = vadd.f32 0.0, %v6112
  %v6114 = vpop.f32.mrb[0].mxu0
  %v6115 = vadd.f32 0.0, %v6114
  %v6116 = vpop.f32.mrb[0].mxu0
  %v6117 = vadd.f32 0.0, %v6116
  %v6118 = vpop.f32.mrb[0].mxu0
  %v6119 = vadd.f32 0.0, %v6118
  %6120 = vmatprep.mubr.bf16.mxu0 0
  %6121 = vmatmul.mubr.bf16.gmra.mrb[0].mxu0 %v4349
  %v6122 = vpop.f32.mrb[0].mxu0
  %v6123 = vadd.f32 0.0, %v6122
  %v6124 = vpop.f32.mrb[0].mxu0
  %v6125 = vadd.f32 0.0, %v6124
  %v6126 = vpop.f32.mrb[0].mxu0
  %v6127 = vadd.f32 0.0, %v6126
  %v6128 = vpop.f32.mrb[0].mxu0
  %v6129 = vadd.f32 0.0, %v6128
  %6130 = vmatprep.mubr.bf16.mxu0 0
  %6131 = vmatmul.mubr.bf16.gmra.mrb[0].mxu0 %v4352
  %v6132 = vpop.f32.mrb[0].mxu0
  %v6133 = vadd.f32 0.0, %v6132
  %v6134 = vpop.f32.mrb[0].mxu0
  %v6135 = vadd.f32 0.0, %v6134
  %v6136 = vpop.f32.mrb[0].mxu0
  %v6137 = vadd.f32 0.0, %v6136
  %v6138 = vpop.f32.mrb[0].mxu0
  %v6139 = vadd.f32 0.0, %v6138
  %6140 = vmatprep.mubr.bf16.mxu0 0
  %6141 = vmatmul.mubr.bf16.gmra.mrb[0].mxu0 %v4355
  %v6142 = vpop.f32.mrb[0].mxu0
  %v6143 = vadd.f32 0.0, %v6142
  %v6144 = vpop.f32.mrb[0].mxu0
  %v6145 = vadd.f32 0.0, %v6144
  %v6146 = vpop.f32.mrb[0].mxu0
  %v6147 = vadd.f32 0.0, %v6146
  %v6148 = vpop.f32.mrb[0].mxu0
  %v6149 = vadd.f32 0.0, %v6148
  %6150 = vmatprep.mubr.bf16.mxu0 0
  %6151 = vmatmul.mubr.bf16.gmra.mrb[0].mxu0 %v4358
  %v6152 = vpop.f32.mrb[0].mxu0
  %v6153 = vadd.f32 0.0, %v6152
  %v6154 = vpop.f32.mrb[0].mxu0
  %v6155 = vadd.f32 0.0, %v6154
  %v6156 = vpop.f32.mrb[0].mxu0
  %v6157 = vadd.f32 0.0, %v6156
  %v6158 = vpop.f32.mrb[0].mxu0
  %v6159 = vadd.f32 0.0, %v6158
  %6160 = vmatprep.mubr.bf16.mxu0 0
  %6161 = vmatmul.mubr.bf16.gmra.mrb[0].mxu0 %v4361
  %v6162 = vpop.f32.mrb[0].mxu0
  %v6163 = vadd.f32 0.0, %v6162
  %v6164 = vpop.f32.mrb[0].mxu0
  %v6165 = vadd.f32 0.0, %v6164
  %v6166 = vpop.f32.mrb[0].mxu0
  %v6167 = vadd.f32 0.0, %v6166
  %v6168 = vpop.f32.mrb[0].mxu0
  %v6169 = vadd.f32 0.0, %v6168
  %6170 = vdwg.mxu0
  %v6171 = vmax.f32 %v4398, 0.0
  %v6172 = vmax.f32 %v4400, 0.0
  %v6173 = vmax.f32 %v4511, 0.0
  %v6174 = vmax.f32 %v4513, 0.0
  %v6175 = vmax.f32 %v4624, 0.0
  %v6176 = vmax.f32 %v4626, 0.0
  %v6177 = vmax.f32 %v4737, 0.0
  %v6178 = vmax.f32 %v4739, 0.0
  %v6179 = vmax.f32 %v4850, 0.0
  %v6180 = vmax.f32 %v4852, 0.0
  %v6181 = vmax.f32 %v4963, 0.0
  %v6182 = vmax.f32 %v4965, 0.0
  %v6183 = vmax.f32 %v5076, 0.0
  %v6184 = vmax.f32 %v5078, 0.0
  %v6185 = vmax.f32 %v5189, 0.0
  %v6186 = vmax.f32 %v5191, 0.0
  %v6187 = vmax.f32 %v5302, 0.0
  %v6188 = vmax.f32 %v5304, 0.0
  %v6189 = vmax.f32 %v5415, 0.0
  %v6190 = vmax.f32 %v5417, 0.0
  %v6191 = vmax.f32 %v5528, 0.0
  %v6192 = vmax.f32 %v5530, 0.0
  %v6193 = vmax.f32 %v5641, 0.0
  %v6194 = vmax.f32 %v5643, 0.0
  %v6195 = vmax.f32 %v5754, 0.0
  %v6196 = vmax.f32 %v5756, 0.0
  %v6197 = vmax.f32 %v5867, 0.0
  %v6198 = vmax.f32 %v5869, 0.0
  %v6199 = vmax.f32 %v5980, 0.0
  %v6200 = vmax.f32 %v5982, 0.0
  %v6201 = vmax.f32 %v6093, 0.0
  %v6202 = vmax.f32 %v6095, 0.0
  %v6203 = vmax.f32 %v4402, 0.0
  %v6204 = vmax.f32 %v4404, 0.0
  %v6205 = vmax.f32 %v4515, 0.0
  %v6206 = vmax.f32 %v4517, 0.0
  %v6207 = vmax.f32 %v4628, 0.0
  %v6208 = vmax.f32 %v4630, 0.0
  %v6209 = vmax.f32 %v4741, 0.0
  %v6210 = vmax.f32 %v4743, 0.0
  %v6211 = vmax.f32 %v4854, 0.0
  %v6212 = vmax.f32 %v4856, 0.0
  %v6213 = vmax.f32 %v4967, 0.0
  %v6214 = vmax.f32 %v4969, 0.0
  %v6215 = vmax.f32 %v5080, 0.0
  %v6216 = vmax.f32 %v5082, 0.0
  %v6217 = vmax.f32 %v5193, 0.0
  %v6218 = vmax.f32 %v5195, 0.0
  %v6219 = vmax.f32 %v5306, 0.0
  %v6220 = vmax.f32 %v5308, 0.0
  %v6221 = vmax.f32 %v5419, 0.0
  %v6222 = vmax.f32 %v5421, 0.0
  %v6223 = vmax.f32 %v5532, 0.0
  %v6224 = vmax.f32 %v5534, 0.0
  %v6225 = vmax.f32 %v5645, 0.0
  %v6226 = vmax.f32 %v5647, 0.0
  %v6227 = vmax.f32 %v5758, 0.0
  %v6228 = vmax.f32 %v5760, 0.0
  %v6229 = vmax.f32 %v5871, 0.0
  %v6230 = vmax.f32 %v5873, 0.0
  %v6231 = vmax.f32 %v5984, 0.0
  %v6232 = vmax.f32 %v5986, 0.0
  %v6233 = vmax.f32 %v6097, 0.0
  %v6234 = vmax.f32 %v6099, 0.0
  %v6235 = vmax.f32 %v4408, 0.0
  %v6236 = vmax.f32 %v4410, 0.0
  %v6237 = vmax.f32 %v4521, 0.0
  %v6238 = vmax.f32 %v4523, 0.0
  %v6239 = vmax.f32 %v4634, 0.0
  %v6240 = vmax.f32 %v4636, 0.0
  %v6241 = vmax.f32 %v4747, 0.0
  %v6242 = vmax.f32 %v4749, 0.0
  %v6243 = vmax.f32 %v4860, 0.0
  %v6244 = vmax.f32 %v4862, 0.0
  %v6245 = vmax.f32 %v4973, 0.0
  %v6246 = vmax.f32 %v4975, 0.0
  %v6247 = vmax.f32 %v5086, 0.0
  %v6248 = vmax.f32 %v5088, 0.0
  %v6249 = vmax.f32 %v5199, 0.0
  %v6250 = vmax.f32 %v5201, 0.0
  %v6251 = vmax.f32 %v5312, 0.0
  %v6252 = vmax.f32 %v5314, 0.0
  %v6253 = vmax.f32 %v5425, 0.0
  %v6254 = vmax.f32 %v5427, 0.0
  %v6255 = vmax.f32 %v5538, 0.0
  %v6256 = vmax.f32 %v5540, 0.0
  %v6257 = vmax.f32 %v5651, 0.0
  %v6258 = vmax.f32 %v5653, 0.0
  %v6259 = vmax.f32 %v5764, 0.0
  %v6260 = vmax.f32 %v5766, 0.0
  %v6261 = vmax.f32 %v5877, 0.0
  %v6262 = vmax.f32 %v5879, 0.0
  %v6263 = vmax.f32 %v5990, 0.0
  %v6264 = vmax.f32 %v5992, 0.0
  %v6265 = vmax.f32 %v6103, 0.0
  %v6266 = vmax.f32 %v6105, 0.0
  %v6267 = vmax.f32 %v4412, 0.0
  %v6268 = vmax.f32 %v4414, 0.0
  %v6269 = vmax.f32 %v4525, 0.0
  %v6270 = vmax.f32 %v4527, 0.0
  %v6271 = vmax.f32 %v4638, 0.0
  %v6272 = vmax.f32 %v4640, 0.0
  %v6273 = vmax.f32 %v4751, 0.0
  %v6274 = vmax.f32 %v4753, 0.0
  %v6275 = vmax.f32 %v4864, 0.0
  %v6276 = vmax.f32 %v4866, 0.0
  %v6277 = vmax.f32 %v4977, 0.0
  %v6278 = vmax.f32 %v4979, 0.0
  %v6279 = vmax.f32 %v5090, 0.0
  %v6280 = vmax.f32 %v5092, 0.0
  %v6281 = vmax.f32 %v5203, 0.0
  %v6282 = vmax.f32 %v5205, 0.0
  %v6283 = vmax.f32 %v5316, 0.0
  %v6284 = vmax.f32 %v5318, 0.0
  %v6285 = vmax.f32 %v5429, 0.0
  %v6286 = vmax.f32 %v5431, 0.0
  %v6287 = vmax.f32 %v5542, 0.0
  %v6288 = vmax.f32 %v5544, 0.0
  %v6289 = vmax.f32 %v5655, 0.0
  %v6290 = vmax.f32 %v5657, 0.0
  %v6291 = vmax.f32 %v5768, 0.0
  %v6292 = vmax.f32 %v5770, 0.0
  %v6293 = vmax.f32 %v5881, 0.0
  %v6294 = vmax.f32 %v5883, 0.0
  %v6295 = vmax.f32 %v5994, 0.0
  %v6296 = vmax.f32 %v5996, 0.0
  %v6297 = vmax.f32 %v6107, 0.0
  %v6298 = vmax.f32 %v6109, 0.0
  %v6299 = vmax.f32 %v4418, 0.0
  %v6300 = vmax.f32 %v4420, 0.0
  %v6301 = vmax.f32 %v4531, 0.0
  %v6302 = vmax.f32 %v4533, 0.0
  %v6303 = vmax.f32 %v4644, 0.0
  %v6304 = vmax.f32 %v4646, 0.0
  %v6305 = vmax.f32 %v4757, 0.0
  %v6306 = vmax.f32 %v4759, 0.0
  %v6307 = vmax.f32 %v4870, 0.0
  %v6308 = vmax.f32 %v4872, 0.0
  %v6309 = vmax.f32 %v4983, 0.0
  %v6310 = vmax.f32 %v4985, 0.0
  %v6311 = vmax.f32 %v5096, 0.0
  %v6312 = vmax.f32 %v5098, 0.0
  %v6313 = vmax.f32 %v5209, 0.0
  %v6314 = vmax.f32 %v5211, 0.0
  %v6315 = vmax.f32 %v5322, 0.0
  %v6316 = vmax.f32 %v5324, 0.0
  %v6317 = vmax.f32 %v5435, 0.0
  %v6318 = vmax.f32 %v5437, 0.0
  %v6319 = vmax.f32 %v5548, 0.0
  %v6320 = vmax.f32 %v5550, 0.0
  %v6321 = vmax.f32 %v5661, 0.0
  %v6322 = vmax.f32 %v5663, 0.0
  %v6323 = vmax.f32 %v5774, 0.0
  %v6324 = vmax.f32 %v5776, 0.0
  %v6325 = vmax.f32 %v5887, 0.0
  %v6326 = vmax.f32 %v5889, 0.0
  %v6327 = vmax.f32 %v6000, 0.0
  %v6328 = vmax.f32 %v6002, 0.0
  %v6329 = vmax.f32 %v6113, 0.0
  %v6330 = vmax.f32 %v6115, 0.0
  %v6331 = vmax.f32 %v4422, 0.0
  %v6332 = vmax.f32 %v4424, 0.0
  %v6333 = vmax.f32 %v4535, 0.0
  %v6334 = vmax.f32 %v4537, 0.0
  %v6335 = vmax.f32 %v4648, 0.0
  %v6336 = vmax.f32 %v4650, 0.0
  %v6337 = vmax.f32 %v4761, 0.0
  %v6338 = vmax.f32 %v4763, 0.0
  %v6339 = vmax.f32 %v4874, 0.0
  %v6340 = vmax.f32 %v4876, 0.0
  %v6341 = vmax.f32 %v4987, 0.0
  %v6342 = vmax.f32 %v4989, 0.0
  %v6343 = vmax.f32 %v5100, 0.0
  %v6344 = vmax.f32 %v5102, 0.0
  %v6345 = vmax.f32 %v5213, 0.0
  %v6346 = vmax.f32 %v5215, 0.0
  %v6347 = vmax.f32 %v5326, 0.0
  %v6348 = vmax.f32 %v5328, 0.0
  %v6349 = vmax.f32 %v5439, 0.0
  %v6350 = vmax.f32 %v5441, 0.0
  %v6351 = vmax.f32 %v5552, 0.0
  %v6352 = vmax.f32 %v5554, 0.0
  %v6353 = vmax.f32 %v5665, 0.0
  %v6354 = vmax.f32 %v5667, 0.0
  %v6355 = vmax.f32 %v5778, 0.0
  %v6356 = vmax.f32 %v5780, 0.0
  %v6357 = vmax.f32 %v5891, 0.0
  %v6358 = vmax.f32 %v5893, 0.0
  %v6359 = vmax.f32 %v6004, 0.0
  %v6360 = vmax.f32 %v6006, 0.0
  %v6361 = vmax.f32 %v6117, 0.0
  %v6362 = vmax.f32 %v6119, 0.0
  %v6363 = vmax.f32 %v4428, 0.0
  %v6364 = vmax.f32 %v4430, 0.0
  %v6365 = vmax.f32 %v4541, 0.0
  %v6366 = vmax.f32 %v4543, 0.0
  %v6367 = vmax.f32 %v4654, 0.0
  %v6368 = vmax.f32 %v4656, 0.0
  %v6369 = vmax.f32 %v4767, 0.0
  %v6370 = vmax.f32 %v4769, 0.0
  %v6371 = vmax.f32 %v4880, 0.0
  %v6372 = vmax.f32 %v4882, 0.0
  %v6373 = vmax.f32 %v4993, 0.0
  %v6374 = vmax.f32 %v4995, 0.0
  %v6375 = vmax.f32 %v5106, 0.0
  %v6376 = vmax.f32 %v5108, 0.0
  %v6377 = vmax.f32 %v5219, 0.0
  %v6378 = vmax.f32 %v5221, 0.0
  %v6379 = vmax.f32 %v5332, 0.0
  %v6380 = vmax.f32 %v5334, 0.0
  %v6381 = vmax.f32 %v5445, 0.0
  %v6382 = vmax.f32 %v5447, 0.0
  %v6383 = vmax.f32 %v5558, 0.0
  %v6384 = vmax.f32 %v5560, 0.0
  %v6385 = vmax.f32 %v5671, 0.0
  %v6386 = vmax.f32 %v5673, 0.0
  %v6387 = vmax.f32 %v5784, 0.0
  %v6388 = vmax.f32 %v5786, 0.0
  %v6389 = vmax.f32 %v5897, 0.0
  %v6390 = vmax.f32 %v5899, 0.0
  %v6391 = vmax.f32 %v6010, 0.0
  %v6392 = vmax.f32 %v6012, 0.0
  %v6393 = vmax.f32 %v6123, 0.0
  %v6394 = vmax.f32 %v6125, 0.0
  %v6395 = vmax.f32 %v4432, 0.0
  %v6396 = vmax.f32 %v4434, 0.0
  %v6397 = vmax.f32 %v4545, 0.0
  %v6398 = vmax.f32 %v4547, 0.0
  %v6399 = vmax.f32 %v4658, 0.0
  %v6400 = vmax.f32 %v4660, 0.0
  %v6401 = vmax.f32 %v4771, 0.0
  %v6402 = vmax.f32 %v4773, 0.0
  %v6403 = vmax.f32 %v4884, 0.0
  %v6404 = vmax.f32 %v4886, 0.0
  %v6405 = vmax.f32 %v4997, 0.0
  %v6406 = vmax.f32 %v4999, 0.0
  %v6407 = vmax.f32 %v5110, 0.0
  %v6408 = vmax.f32 %v5112, 0.0
  %v6409 = vmax.f32 %v5223, 0.0
  %v6410 = vmax.f32 %v5225, 0.0
  %v6411 = vmax.f32 %v5336, 0.0
  %v6412 = vmax.f32 %v5338, 0.0
  %v6413 = vmax.f32 %v5449, 0.0
  %v6414 = vmax.f32 %v5451, 0.0
  %v6415 = vmax.f32 %v5562, 0.0
  %v6416 = vmax.f32 %v5564, 0.0
  %v6417 = vmax.f32 %v5675, 0.0
  %v6418 = vmax.f32 %v5677, 0.0
  %v6419 = vmax.f32 %v5788, 0.0
  %v6420 = vmax.f32 %v5790, 0.0
  %v6421 = vmax.f32 %v5901, 0.0
  %v6422 = vmax.f32 %v5903, 0.0
  %v6423 = vmax.f32 %v6014, 0.0
  %v6424 = vmax.f32 %v6016, 0.0
  %v6425 = vmax.f32 %v6127, 0.0
  %v6426 = vmax.f32 %v6129, 0.0
  %v6427 = vmax.f32 %v4438, 0.0
  %v6428 = vmax.f32 %v4440, 0.0
  %v6429 = vmax.f32 %v4551, 0.0
  %v6430 = vmax.f32 %v4553, 0.0
  %v6431 = vmax.f32 %v4664, 0.0
  %v6432 = vmax.f32 %v4666, 0.0
  %v6433 = vmax.f32 %v4777, 0.0
  %v6434 = vmax.f32 %v4779, 0.0
  %v6435 = vmax.f32 %v4890, 0.0
  %v6436 = vmax.f32 %v4892, 0.0
  %v6437 = vmax.f32 %v5003, 0.0
  %v6438 = vmax.f32 %v5005, 0.0
  %v6439 = vmax.f32 %v5116, 0.0
  %v6440 = vmax.f32 %v5118, 0.0
  %v6441 = vmax.f32 %v5229, 0.0
  %v6442 = vmax.f32 %v5231, 0.0
  %v6443 = vmax.f32 %v5342, 0.0
  %v6444 = vmax.f32 %v5344, 0.0
  %v6445 = vmax.f32 %v5455, 0.0
  %v6446 = vmax.f32 %v5457, 0.0
  %v6447 = vmax.f32 %v5568, 0.0
  %v6448 = vmax.f32 %v5570, 0.0
  %v6449 = vmax.f32 %v5681, 0.0
  %v6450 = vmax.f32 %v5683, 0.0
  %v6451 = vmax.f32 %v5794, 0.0
  %v6452 = vmax.f32 %v5796, 0.0
  %v6453 = vmax.f32 %v5907, 0.0
  %v6454 = vmax.f32 %v5909, 0.0
  %v6455 = vmax.f32 %v6020, 0.0
  %v6456 = vmax.f32 %v6022, 0.0
  %v6457 = vmax.f32 %v6133, 0.0
  %v6458 = vmax.f32 %v6135, 0.0
  %v6459 = vmax.f32 %v4442, 0.0
  %v6460 = vmax.f32 %v4444, 0.0
  %v6461 = vmax.f32 %v4555, 0.0
  %v6462 = vmax.f32 %v4557, 0.0
  %v6463 = vmax.f32 %v4668, 0.0
  %v6464 = vmax.f32 %v4670, 0.0
  %v6465 = vmax.f32 %v4781, 0.0
  %v6466 = vmax.f32 %v4783, 0.0
  %v6467 = vmax.f32 %v4894, 0.0
  %v6468 = vmax.f32 %v4896, 0.0
  %v6469 = vmax.f32 %v5007, 0.0
  %v6470 = vmax.f32 %v5009, 0.0
  %v6471 = vmax.f32 %v5120, 0.0
  %v6472 = vmax.f32 %v5122, 0.0
  %v6473 = vmax.f32 %v5233, 0.0
  %v6474 = vmax.f32 %v5235, 0.0
  %v6475 = vmax.f32 %v5346, 0.0
  %v6476 = vmax.f32 %v5348, 0.0
  %v6477 = vmax.f32 %v5459, 0.0
  %v6478 = vmax.f32 %v5461, 0.0
  %v6479 = vmax.f32 %v5572, 0.0
  %v6480 = vmax.f32 %v5574, 0.0
  %v6481 = vmax.f32 %v5685, 0.0
  %v6482 = vmax.f32 %v5687, 0.0
  %v6483 = vmax.f32 %v5798, 0.0
  %v6484 = vmax.f32 %v5800, 0.0
  %v6485 = vmax.f32 %v5911, 0.0
  %v6486 = vmax.f32 %v5913, 0.0
  %v6487 = vmax.f32 %v6024, 0.0
  %v6488 = vmax.f32 %v6026, 0.0
  %v6489 = vmax.f32 %v6137, 0.0
  %v6490 = vmax.f32 %v6139, 0.0
  %v6491 = vmax.f32 %v4448, 0.0
  %v6492 = vmax.f32 %v4450, 0.0
  %v6493 = vmax.f32 %v4561, 0.0
  %v6494 = vmax.f32 %v4563, 0.0
  %v6495 = vmax.f32 %v4674, 0.0
  %v6496 = vmax.f32 %v4676, 0.0
  %v6497 = vmax.f32 %v4787, 0.0
  %v6498 = vmax.f32 %v4789, 0.0
  %v6499 = vmax.f32 %v4900, 0.0
  %v6500 = vmax.f32 %v4902, 0.0
  %v6501 = vmax.f32 %v5013, 0.0
  %v6502 = vmax.f32 %v5015, 0.0
  %v6503 = vmax.f32 %v5126, 0.0
  %v6504 = vmax.f32 %v5128, 0.0
  %v6505 = vmax.f32 %v5239, 0.0
  %v6506 = vmax.f32 %v5241, 0.0
  %v6507 = vmax.f32 %v5352, 0.0
  %v6508 = vmax.f32 %v5354, 0.0
  %v6509 = vmax.f32 %v5465, 0.0
  %v6510 = vmax.f32 %v5467, 0.0
  %v6511 = vmax.f32 %v5578, 0.0
  %v6512 = vmax.f32 %v5580, 0.0
  %v6513 = vmax.f32 %v5691, 0.0
  %v6514 = vmax.f32 %v5693, 0.0
  %v6515 = vmax.f32 %v5804, 0.0
  %v6516 = vmax.f32 %v5806, 0.0
  %v6517 = vmax.f32 %v5917, 0.0
  %v6518 = vmax.f32 %v5919, 0.0
  %v6519 = vmax.f32 %v6030, 0.0
  %v6520 = vmax.f32 %v6032, 0.0
  %v6521 = vmax.f32 %v6143, 0.0
  %v6522 = vmax.f32 %v6145, 0.0
  %v6523 = vmax.f32 %v4452, 0.0
  %v6524 = vmax.f32 %v4454, 0.0
  %v6525 = vmax.f32 %v4565, 0.0
  %v6526 = vmax.f32 %v4567, 0.0
  %v6527 = vmax.f32 %v4678, 0.0
  %v6528 = vmax.f32 %v4680, 0.0
  %v6529 = vmax.f32 %v4791, 0.0
  %v6530 = vmax.f32 %v4793, 0.0
  %v6531 = vmax.f32 %v4904, 0.0
  %v6532 = vmax.f32 %v4906, 0.0
  %v6533 = vmax.f32 %v5017, 0.0
  %v6534 = vmax.f32 %v5019, 0.0
  %v6535 = vmax.f32 %v5130, 0.0
  %v6536 = vmax.f32 %v5132, 0.0
  %v6537 = vmax.f32 %v5243, 0.0
  %v6538 = vmax.f32 %v5245, 0.0
  %v6539 = vmax.f32 %v5356, 0.0
  %v6540 = vmax.f32 %v5358, 0.0
  %v6541 = vmax.f32 %v5469, 0.0
  %v6542 = vmax.f32 %v5471, 0.0
  %v6543 = vmax.f32 %v5582, 0.0
  %v6544 = vmax.f32 %v5584, 0.0
  %v6545 = vmax.f32 %v5695, 0.0
  %v6546 = vmax.f32 %v5697, 0.0
  %v6547 = vmax.f32 %v5808, 0.0
  %v6548 = vmax.f32 %v5810, 0.0
  %v6549 = vmax.f32 %v5921, 0.0
  %v6550 = vmax.f32 %v5923, 0.0
  %v6551 = vmax.f32 %v6034, 0.0
  %v6552 = vmax.f32 %v6036, 0.0
  %v6553 = vmax.f32 %v6147, 0.0
  %v6554 = vmax.f32 %v6149, 0.0
  %v6555 = vmax.f32 %v4458, 0.0
  %v6556 = vmax.f32 %v4460, 0.0
  %v6557 = vmax.f32 %v4571, 0.0
  %v6558 = vmax.f32 %v4573, 0.0
  %v6559 = vmax.f32 %v4684, 0.0
  %v6560 = vmax.f32 %v4686, 0.0
  %v6561 = vmax.f32 %v4797, 0.0
  %v6562 = vmax.f32 %v4799, 0.0
  %v6563 = vmax.f32 %v4910, 0.0
  %v6564 = vmax.f32 %v4912, 0.0
  %v6565 = vmax.f32 %v5023, 0.0
  %v6566 = vmax.f32 %v5025, 0.0
  %v6567 = vmax.f32 %v5136, 0.0
  %v6568 = vmax.f32 %v5138, 0.0
  %v6569 = vmax.f32 %v5249, 0.0
  %v6570 = vmax.f32 %v5251, 0.0
  %v6571 = vmax.f32 %v5362, 0.0
  %v6572 = vmax.f32 %v5364, 0.0
  %v6573 = vmax.f32 %v5475, 0.0
  %v6574 = vmax.f32 %v5477, 0.0
  %v6575 = vmax.f32 %v5588, 0.0
  %v6576 = vmax.f32 %v5590, 0.0
  %v6577 = vmax.f32 %v5701, 0.0
  %v6578 = vmax.f32 %v5703, 0.0
  %v6579 = vmax.f32 %v5814, 0.0
  %v6580 = vmax.f32 %v5816, 0.0
  %v6581 = vmax.f32 %v5927, 0.0
  %v6582 = vmax.f32 %v5929, 0.0
  %v6583 = vmax.f32 %v6040, 0.0
  %v6584 = vmax.f32 %v6042, 0.0
  %v6585 = vmax.f32 %v6153, 0.0
  %v6586 = vmax.f32 %v6155, 0.0
  %v6587 = vmax.f32 %v4462, 0.0
  %v6588 = vmax.f32 %v4464, 0.0
  %v6589 = vmax.f32 %v4575, 0.0
  %v6590 = vmax.f32 %v4577, 0.0
  %v6591 = vmax.f32 %v4688, 0.0
  %v6592 = vmax.f32 %v4690, 0.0
  %v6593 = vmax.f32 %v4801, 0.0
  %v6594 = vmax.f32 %v4803, 0.0
  %v6595 = vmax.f32 %v4914, 0.0
  %v6596 = vmax.f32 %v4916, 0.0
  %v6597 = vmax.f32 %v5027, 0.0
  %v6598 = vmax.f32 %v5029, 0.0
  %v6599 = vmax.f32 %v5140, 0.0
  %v6600 = vmax.f32 %v5142, 0.0
  %v6601 = vmax.f32 %v5253, 0.0
  %v6602 = vmax.f32 %v5255, 0.0
  %v6603 = vmax.f32 %v5366, 0.0
  %v6604 = vmax.f32 %v5368, 0.0
  %v6605 = vmax.f32 %v5479, 0.0
  %v6606 = vmax.f32 %v5481, 0.0
  %v6607 = vmax.f32 %v5592, 0.0
  %v6608 = vmax.f32 %v5594, 0.0
  %v6609 = vmax.f32 %v5705, 0.0
  %v6610 = vmax.f32 %v5707, 0.0
  %v6611 = vmax.f32 %v5818, 0.0
  %v6612 = vmax.f32 %v5820, 0.0
  %v6613 = vmax.f32 %v5931, 0.0
  %v6614 = vmax.f32 %v5933, 0.0
  %v6615 = vmax.f32 %v6044, 0.0
  %v6616 = vmax.f32 %v6046, 0.0
  %v6617 = vmax.f32 %v6157, 0.0
  %v6618 = vmax.f32 %v6159, 0.0
  %v6619 = vmax.f32 %v4468, 0.0
  %v6620 = vmax.f32 %v4470, 0.0
  %v6621 = vmax.f32 %v4581, 0.0
  %v6622 = vmax.f32 %v4583, 0.0
  %v6623 = vmax.f32 %v4694, 0.0
  %v6624 = vmax.f32 %v4696, 0.0
  %v6625 = vmax.f32 %v4807, 0.0
  %v6626 = vmax.f32 %v4809, 0.0
  %v6627 = vmax.f32 %v4920, 0.0
  %v6628 = vmax.f32 %v4922, 0.0
  %v6629 = vmax.f32 %v5033, 0.0
  %v6630 = vmax.f32 %v5035, 0.0
  %v6631 = vmax.f32 %v5146, 0.0
  %v6632 = vmax.f32 %v5148, 0.0
  %v6633 = vmax.f32 %v5259, 0.0
  %v6634 = vmax.f32 %v5261, 0.0
  %v6635 = vmax.f32 %v5372, 0.0
  %v6636 = vmax.f32 %v5374, 0.0
  %v6637 = vmax.f32 %v5485, 0.0
  %v6638 = vmax.f32 %v5487, 0.0
  %v6639 = vmax.f32 %v5598, 0.0
  %v6640 = vmax.f32 %v5600, 0.0
  %v6641 = vmax.f32 %v5711, 0.0
  %v6642 = vmax.f32 %v5713, 0.0
  %v6643 = vmax.f32 %v5824, 0.0
  %v6644 = vmax.f32 %v5826, 0.0
  %v6645 = vmax.f32 %v5937, 0.0
  %v6646 = vmax.f32 %v5939, 0.0
  %v6647 = vmax.f32 %v6050, 0.0
  %v6648 = vmax.f32 %v6052, 0.0
  %v6649 = vmax.f32 %v6163, 0.0
  %v6650 = vmax.f32 %v6165, 0.0
  %v6651 = vmax.f32 %v4472, 0.0
  %v6652 = vmax.f32 %v4474, 0.0
  %v6653 = vmax.f32 %v4585, 0.0
  %v6654 = vmax.f32 %v4587, 0.0
  %v6655 = vmax.f32 %v4698, 0.0
  %v6656 = vmax.f32 %v4700, 0.0
  %v6657 = vmax.f32 %v4811, 0.0
  %v6658 = vmax.f32 %v4813, 0.0
  %v6659 = vmax.f32 %v4924, 0.0
  %v6660 = vmax.f32 %v4926, 0.0
  %v6661 = vmax.f32 %v5037, 0.0
  %v6662 = vmax.f32 %v5039, 0.0
  %v6663 = vmax.f32 %v5150, 0.0
  %v6664 = vmax.f32 %v5152, 0.0
  %v6665 = vmax.f32 %v5263, 0.0
  %v6666 = vmax.f32 %v5265, 0.0
  %v6667 = vmax.f32 %v5376, 0.0
  %v6668 = vmax.f32 %v5378, 0.0
  %v6669 = vmax.f32 %v5489, 0.0
  %v6670 = vmax.f32 %v5491, 0.0
  %v6671 = vmax.f32 %v5602, 0.0
  %v6672 = vmax.f32 %v5604, 0.0
  %v6673 = vmax.f32 %v5715, 0.0
  %v6674 = vmax.f32 %v5717, 0.0
  %v6675 = vmax.f32 %v5828, 0.0
  %v6676 = vmax.f32 %v5830, 0.0
  %v6677 = vmax.f32 %v5941, 0.0
  %v6678 = vmax.f32 %v5943, 0.0
  %v6679 = vmax.f32 %v6054, 0.0
  %v6680 = vmax.f32 %v6056, 0.0
  %v6681 = vmax.f32 %v6167, 0.0
  %v6682 = vmax.f32 %v6169, 0.0
  %v6683 = vmax.f32 %v6171, %v6172
  %v6684 = vmax.f32 %v6203, %v6204
  %v6685 = vmax.f32 %v6235, %v6236
  %v6686 = vmax.f32 %v6267, %v6268
  %v6687 = vmax.f32 %v6299, %v6300
  %v6688 = vmax.f32 %v6331, %v6332
  %v6689 = vmax.f32 %v6363, %v6364
  %v6690 = vmax.f32 %v6395, %v6396
  %v6691 = vmax.f32 %v6427, %v6428
  %v6692 = vmax.f32 %v6459, %v6460
  %v6693 = vmax.f32 %v6491, %v6492
  %v6694 = vmax.f32 %v6523, %v6524
  %v6695 = vmax.f32 %v6555, %v6556
  %v6696 = vmax.f32 %v6587, %v6588
  %v6697 = vmax.f32 %v6619, %v6620
  %v6698 = vmax.f32 %v6651, %v6652
  %v6699 = vmax.f32 %v6173, %v6174
  %v6700 = vmax.f32 %v6205, %v6206
  %v6701 = vmax.f32 %v6237, %v6238
  %v6702 = vmax.f32 %v6269, %v6270
  %v6703 = vmax.f32 %v6301, %v6302
  %v6704 = vmax.f32 %v6333, %v6334
  %v6705 = vmax.f32 %v6365, %v6366
  %v6706 = vmax.f32 %v6397, %v6398
  %v6707 = vmax.f32 %v6429, %v6430
  %v6708 = vmax.f32 %v6461, %v6462
  %v6709 = vmax.f32 %v6493, %v6494
  %v6710 = vmax.f32 %v6525, %v6526
  %v6711 = vmax.f32 %v6557, %v6558
  %v6712 = vmax.f32 %v6589, %v6590
  %v6713 = vmax.f32 %v6621, %v6622
  %v6714 = vmax.f32 %v6653, %v6654
  %v6715 = vmax.f32 %v6175, %v6176
  %v6716 = vmax.f32 %v6207, %v6208
  %v6717 = vmax.f32 %v6239, %v6240
  %v6718 = vmax.f32 %v6271, %v6272
  %v6719 = vmax.f32 %v6303, %v6304
  %v6720 = vmax.f32 %v6335, %v6336
  %v6721 = vmax.f32 %v6367, %v6368
  %v6722 = vmax.f32 %v6399, %v6400
  %v6723 = vmax.f32 %v6431, %v6432
  %v6724 = vmax.f32 %v6463, %v6464
  %v6725 = vmax.f32 %v6495, %v6496
  %v6726 = vmax.f32 %v6527, %v6528
  %v6727 = vmax.f32 %v6559, %v6560
  %v6728 = vmax.f32 %v6591, %v6592
  %v6729 = vmax.f32 %v6623, %v6624
  %v6730 = vmax.f32 %v6655, %v6656
  %v6731 = vmax.f32 %v6177, %v6178
  %v6732 = vmax.f32 %v6209, %v6210
  %v6733 = vmax.f32 %v6241, %v6242
  %v6734 = vmax.f32 %v6273, %v6274
  %v6735 = vmax.f32 %v6305, %v6306
  %v6736 = vmax.f32 %v6337, %v6338
  %v6737 = vmax.f32 %v6369, %v6370
  %v6738 = vmax.f32 %v6401, %v6402
  %v6739 = vmax.f32 %v6433, %v6434
  %v6740 = vmax.f32 %v6465, %v6466
  %v6741 = vmax.f32 %v6497, %v6498
  %v6742 = vmax.f32 %v6529, %v6530
  %v6743 = vmax.f32 %v6561, %v6562
  %v6744 = vmax.f32 %v6593, %v6594
  %v6745 = vmax.f32 %v6625, %v6626
  %v6746 = vmax.f32 %v6657, %v6658
  %v6747 = vmax.f32 %v6179, %v6180
  %v6748 = vmax.f32 %v6211, %v6212
  %v6749 = vmax.f32 %v6243, %v6244
  %v6750 = vmax.f32 %v6275, %v6276
  %v6751 = vmax.f32 %v6307, %v6308
  %v6752 = vmax.f32 %v6339, %v6340
  %v6753 = vmax.f32 %v6371, %v6372
  %v6754 = vmax.f32 %v6403, %v6404
  %v6755 = vmax.f32 %v6435, %v6436
  %v6756 = vmax.f32 %v6467, %v6468
  %v6757 = vmax.f32 %v6499, %v6500
  %v6758 = vmax.f32 %v6531, %v6532
  %v6759 = vmax.f32 %v6563, %v6564
  %v6760 = vmax.f32 %v6595, %v6596
  %v6761 = vmax.f32 %v6627, %v6628
  %v6762 = vmax.f32 %v6659, %v6660
  %v6763 = vmax.f32 %v6181, %v6182
  %v6764 = vmax.f32 %v6213, %v6214
  %v6765 = vmax.f32 %v6245, %v6246
  %v6766 = vmax.f32 %v6277, %v6278
  %v6767 = vmax.f32 %v6309, %v6310
  %v6768 = vmax.f32 %v6341, %v6342
  %v6769 = vmax.f32 %v6373, %v6374
  %v6770 = vmax.f32 %v6405, %v6406
  %v6771 = vmax.f32 %v6437, %v6438
  %v6772 = vmax.f32 %v6469, %v6470
  %v6773 = vmax.f32 %v6501, %v6502
  %v6774 = vmax.f32 %v6533, %v6534
  %v6775 = vmax.f32 %v6565, %v6566
  %v6776 = vmax.f32 %v6597, %v6598
  %v6777 = vmax.f32 %v6629, %v6630
  %v6778 = vmax.f32 %v6661, %v6662
  %v6779 = vmax.f32 %v6183, %v6184
  %v6780 = vmax.f32 %v6215, %v6216
  %v6781 = vmax.f32 %v6247, %v6248
  %v6782 = vmax.f32 %v6279, %v6280
  %v6783 = vmax.f32 %v6311, %v6312
  %v6784 = vmax.f32 %v6343, %v6344
  %v6785 = vmax.f32 %v6375, %v6376
  %v6786 = vmax.f32 %v6407, %v6408
  %v6787 = vmax.f32 %v6439, %v6440
  %v6788 = vmax.f32 %v6471, %v6472
  %v6789 = vmax.f32 %v6503, %v6504
  %v6790 = vmax.f32 %v6535, %v6536
  %v6791 = vmax.f32 %v6567, %v6568
  %v6792 = vmax.f32 %v6599, %v6600
  %v6793 = vmax.f32 %v6631, %v6632
  %v6794 = vmax.f32 %v6663, %v6664
  %v6795 = vmax.f32 %v6185, %v6186
  %v6796 = vmax.f32 %v6217, %v6218
  %v6797 = vmax.f32 %v6249, %v6250
  %v6798 = vmax.f32 %v6281, %v6282
  %v6799 = vmax.f32 %v6313, %v6314
  %v6800 = vmax.f32 %v6345, %v6346
  %v6801 = vmax.f32 %v6377, %v6378
  %v6802 = vmax.f32 %v6409, %v6410
  %v6803 = vmax.f32 %v6441, %v6442
  %v6804 = vmax.f32 %v6473, %v6474
  %v6805 = vmax.f32 %v6505, %v6506
  %v6806 = vmax.f32 %v6537, %v6538
  %v6807 = vmax.f32 %v6569, %v6570
  %v6808 = vmax.f32 %v6601, %v6602
  %v6809 = vmax.f32 %v6633, %v6634
  %v6810 = vmax.f32 %v6665, %v6666
  %v6811 = vmax.f32 %v6187, %v6188
  %v6812 = vmax.f32 %v6219, %v6220
  %v6813 = vmax.f32 %v6251, %v6252
  %v6814 = vmax.f32 %v6283, %v6284
  %v6815 = vmax.f32 %v6315, %v6316
  %v6816 = vmax.f32 %v6347, %v6348
  %v6817 = vmax.f32 %v6379, %v6380
  %v6818 = vmax.f32 %v6411, %v6412
  %v6819 = vmax.f32 %v6443, %v6444
  %v6820 = vmax.f32 %v6475, %v6476
  %v6821 = vmax.f32 %v6507, %v6508
  %v6822 = vmax.f32 %v6539, %v6540
  %v6823 = vmax.f32 %v6571, %v6572
  %v6824 = vmax.f32 %v6603, %v6604
  %v6825 = vmax.f32 %v6635, %v6636
  %v6826 = vmax.f32 %v6667, %v6668
  %v6827 = vmax.f32 %v6189, %v6190
  %v6828 = vmax.f32 %v6221, %v6222
  %v6829 = vmax.f32 %v6253, %v6254
  %v6830 = vmax.f32 %v6285, %v6286
  %v6831 = vmax.f32 %v6317, %v6318
  %v6832 = vmax.f32 %v6349, %v6350
  %v6833 = vmax.f32 %v6381, %v6382
  %v6834 = vmax.f32 %v6413, %v6414
  %v6835 = vmax.f32 %v6445, %v6446
  %v6836 = vmax.f32 %v6477, %v6478
  %v6837 = vmax.f32 %v6509, %v6510
  %v6838 = vmax.f32 %v6541, %v6542
  %v6839 = vmax.f32 %v6573, %v6574
  %v6840 = vmax.f32 %v6605, %v6606
  %v6841 = vmax.f32 %v6637, %v6638
  %v6842 = vmax.f32 %v6669, %v6670
  %v6843 = vmax.f32 %v6191, %v6192
  %v6844 = vmax.f32 %v6223, %v6224
  %v6845 = vmax.f32 %v6255, %v6256
  %v6846 = vmax.f32 %v6287, %v6288
  %v6847 = vmax.f32 %v6319, %v6320
  %v6848 = vmax.f32 %v6351, %v6352
  %v6849 = vmax.f32 %v6383, %v6384
  %v6850 = vmax.f32 %v6415, %v6416
  %v6851 = vmax.f32 %v6447, %v6448
  %v6852 = vmax.f32 %v6479, %v6480
  %v6853 = vmax.f32 %v6511, %v6512
  %v6854 = vmax.f32 %v6543, %v6544
  %v6855 = vmax.f32 %v6575, %v6576
  %v6856 = vmax.f32 %v6607, %v6608
  %v6857 = vmax.f32 %v6639, %v6640
  %v6858 = vmax.f32 %v6671, %v6672
  %v6859 = vmax.f32 %v6193, %v6194
  %v6860 = vmax.f32 %v6225, %v6226
  %v6861 = vmax.f32 %v6257, %v6258
  %v6862 = vmax.f32 %v6289, %v6290
  %v6863 = vmax.f32 %v6321, %v6322
  %v6864 = vmax.f32 %v6353, %v6354
  %v6865 = vmax.f32 %v6385, %v6386
  %v6866 = vmax.f32 %v6417, %v6418
  %v6867 = vmax.f32 %v6449, %v6450
  %v6868 = vmax.f32 %v6481, %v6482
  %v6869 = vmax.f32 %v6513, %v6514
  %v6870 = vmax.f32 %v6545, %v6546
  %v6871 = vmax.f32 %v6577, %v6578
  %v6872 = vmax.f32 %v6609, %v6610
  %v6873 = vmax.f32 %v6641, %v6642
  %v6874 = vmax.f32 %v6673, %v6674
  %v6875 = vmax.f32 %v6195, %v6196
  %v6876 = vmax.f32 %v6227, %v6228
  %v6877 = vmax.f32 %v6259, %v6260
  %v6878 = vmax.f32 %v6291, %v6292
  %v6879 = vmax.f32 %v6323, %v6324
  %v6880 = vmax.f32 %v6355, %v6356
  %v6881 = vmax.f32 %v6387, %v6388
  %v6882 = vmax.f32 %v6419, %v6420
  %v6883 = vmax.f32 %v6451, %v6452
  %v6884 = vmax.f32 %v6483, %v6484
  %v6885 = vmax.f32 %v6515, %v6516
  %v6886 = vmax.f32 %v6547, %v6548
  %v6887 = vmax.f32 %v6579, %v6580
  %v6888 = vmax.f32 %v6611, %v6612
  %v6889 = vmax.f32 %v6643, %v6644
  %v6890 = vmax.f32 %v6675, %v6676
  %v6891 = vmax.f32 %v6197, %v6198
  %v6892 = vmax.f32 %v6229, %v6230
  %v6893 = vmax.f32 %v6261, %v6262
  %v6894 = vmax.f32 %v6293, %v6294
  %v6895 = vmax.f32 %v6325, %v6326
  %v6896 = vmax.f32 %v6357, %v6358
  %v6897 = vmax.f32 %v6389, %v6390
  %v6898 = vmax.f32 %v6421, %v6422
  %v6899 = vmax.f32 %v6453, %v6454
  %v6900 = vmax.f32 %v6485, %v6486
  %v6901 = vmax.f32 %v6517, %v6518
  %v6902 = vmax.f32 %v6549, %v6550
  %v6903 = vmax.f32 %v6581, %v6582
  %v6904 = vmax.f32 %v6613, %v6614
  %v6905 = vmax.f32 %v6645, %v6646
  %v6906 = vmax.f32 %v6677, %v6678
  %v6907 = vmax.f32 %v6199, %v6200
  %v6908 = vmax.f32 %v6231, %v6232
  %v6909 = vmax.f32 %v6263, %v6264
  %v6910 = vmax.f32 %v6295, %v6296
  %v6911 = vmax.f32 %v6327, %v6328
  %v6912 = vmax.f32 %v6359, %v6360
  %v6913 = vmax.f32 %v6391, %v6392
  %v6914 = vmax.f32 %v6423, %v6424
  %v6915 = vmax.f32 %v6455, %v6456
  %v6916 = vmax.f32 %v6487, %v6488
  %v6917 = vmax.f32 %v6519, %v6520
  %v6918 = vmax.f32 %v6551, %v6552
  %v6919 = vmax.f32 %v6583, %v6584
  %v6920 = vmax.f32 %v6615, %v6616
  %v6921 = vmax.f32 %v6647, %v6648
  %v6922 = vmax.f32 %v6679, %v6680
  %v6923 = vmax.f32 %v6201, %v6202
  %v6924 = vmax.f32 %v6233, %v6234
  %v6925 = vmax.f32 %v6265, %v6266
  %v6926 = vmax.f32 %v6297, %v6298
  %v6927 = vmax.f32 %v6329, %v6330
  %v6928 = vmax.f32 %v6361, %v6362
  %v6929 = vmax.f32 %v6393, %v6394
  %v6930 = vmax.f32 %v6425, %v6426
  %v6931 = vmax.f32 %v6457, %v6458
  %v6932 = vmax.f32 %v6489, %v6490
  %v6933 = vmax.f32 %v6521, %v6522
  %v6934 = vmax.f32 %v6553, %v6554
  %v6935 = vmax.f32 %v6585, %v6586
  %v6936 = vmax.f32 %v6617, %v6618
  %v6937 = vmax.f32 %v6649, %v6650
  %v6938 = vmax.f32 %v6681, %v6682
  %v6939 = vmax.f32 %v6683, %v6699
  %v6940 = vmax.f32 %v6684, %v6700
  %v6941 = vmax.f32 %v6685, %v6701
  %v6942 = vmax.f32 %v6686, %v6702
  %v6943 = vmax.f32 %v6687, %v6703
  %v6944 = vmax.f32 %v6688, %v6704
  %v6945 = vmax.f32 %v6689, %v6705
  %v6946 = vmax.f32 %v6690, %v6706
  %v6947 = vmax.f32 %v6691, %v6707
  %v6948 = vmax.f32 %v6692, %v6708
  %v6949 = vmax.f32 %v6693, %v6709
  %v6950 = vmax.f32 %v6694, %v6710
  %v6951 = vmax.f32 %v6695, %v6711
  %v6952 = vmax.f32 %v6696, %v6712
  %v6953 = vmax.f32 %v6697, %v6713
  %v6954 = vmax.f32 %v6698, %v6714
  %v6955 = vmax.f32 %v6715, %v6731
  %v6956 = vmax.f32 %v6716, %v6732
  %v6957 = vmax.f32 %v6717, %v6733
  %v6958 = vmax.f32 %v6718, %v6734
  %v6959 = vmax.f32 %v6719, %v6735
  %v6960 = vmax.f32 %v6720, %v6736
  %v6961 = vmax.f32 %v6721, %v6737
  %v6962 = vmax.f32 %v6722, %v6738
  %v6963 = vmax.f32 %v6723, %v6739
  %v6964 = vmax.f32 %v6724, %v6740
  %v6965 = vmax.f32 %v6725, %v6741
  %v6966 = vmax.f32 %v6726, %v6742
  %v6967 = vmax.f32 %v6727, %v6743
  %v6968 = vmax.f32 %v6728, %v6744
  %v6969 = vmax.f32 %v6729, %v6745
  %v6970 = vmax.f32 %v6730, %v6746
  %v6971 = vmax.f32 %v6747, %v6763
  %v6972 = vmax.f32 %v6748, %v6764
  %v6973 = vmax.f32 %v6749, %v6765
  %v6974 = vmax.f32 %v6750, %v6766
  %v6975 = vmax.f32 %v6751, %v6767
  %v6976 = vmax.f32 %v6752, %v6768
  %v6977 = vmax.f32 %v6753, %v6769
  %v6978 = vmax.f32 %v6754, %v6770
  %v6979 = vmax.f32 %v6755, %v6771
  %v6980 = vmax.f32 %v6756, %v6772
  %v6981 = vmax.f32 %v6757, %v6773
  %v6982 = vmax.f32 %v6758, %v6774
  %v6983 = vmax.f32 %v6759, %v6775
  %v6984 = vmax.f32 %v6760, %v6776
  %v6985 = vmax.f32 %v6761, %v6777
  %v6986 = vmax.f32 %v6762, %v6778
  %v6987 = vmax.f32 %v6779, %v6795
  %v6988 = vmax.f32 %v6780, %v6796
  %v6989 = vmax.f32 %v6781, %v6797
  %v6990 = vmax.f32 %v6782, %v6798
  %v6991 = vmax.f32 %v6783, %v6799
  %v6992 = vmax.f32 %v6784, %v6800
  %v6993 = vmax.f32 %v6785, %v6801
  %v6994 = vmax.f32 %v6786, %v6802
  %v6995 = vmax.f32 %v6787, %v6803
  %v6996 = vmax.f32 %v6788, %v6804
  %v6997 = vmax.f32 %v6789, %v6805
  %v6998 = vmax.f32 %v6790, %v6806
  %v6999 = vmax.f32 %v6791, %v6807
  %v7000 = vmax.f32 %v6792, %v6808
  %v7001 = vmax.f32 %v6793, %v6809
  %v7002 = vmax.f32 %v6794, %v6810
  %v7003 = vmax.f32 %v6811, %v6827
  %v7004 = vmax.f32 %v6812, %v6828
  %v7005 = vmax.f32 %v6813, %v6829
  %v7006 = vmax.f32 %v6814, %v6830
  %v7007 = vmax.f32 %v6815, %v6831
  %v7008 = vmax.f32 %v6816, %v6832
  %v7009 = vmax.f32 %v6817, %v6833
  %v7010 = vmax.f32 %v6818, %v6834
  %v7011 = vmax.f32 %v6819, %v6835
  %v7012 = vmax.f32 %v6820, %v6836
  %v7013 = vmax.f32 %v6821, %v6837
  %v7014 = vmax.f32 %v6822, %v6838
  %v7015 = vmax.f32 %v6823, %v6839
  %v7016 = vmax.f32 %v6824, %v6840
  %v7017 = vmax.f32 %v6825, %v6841
  %v7018 = vmax.f32 %v6826, %v6842
  %v7019 = vmax.f32 %v6843, %v6859
  %v7020 = vmax.f32 %v6844, %v6860
  %v7021 = vmax.f32 %v6845, %v6861
  %v7022 = vmax.f32 %v6846, %v6862
  %v7023 = vmax.f32 %v6847, %v6863
  %v7024 = vmax.f32 %v6848, %v6864
  %v7025 = vmax.f32 %v6849, %v6865
  %v7026 = vmax.f32 %v6850, %v6866
  %v7027 = vmax.f32 %v6851, %v6867
  %v7028 = vmax.f32 %v6852, %v6868
  %v7029 = vmax.f32 %v6853, %v6869
  %v7030 = vmax.f32 %v6854, %v6870
  %v7031 = vmax.f32 %v6855, %v6871
  %v7032 = vmax.f32 %v6856, %v6872
  %v7033 = vmax.f32 %v6857, %v6873
  %v7034 = vmax.f32 %v6858, %v6874
  %v7035 = vmax.f32 %v6875, %v6891
  %v7036 = vmax.f32 %v6876, %v6892
  %v7037 = vmax.f32 %v6877, %v6893
  %v7038 = vmax.f32 %v6878, %v6894
  %v7039 = vmax.f32 %v6879, %v6895
  %v7040 = vmax.f32 %v6880, %v6896
  %v7041 = vmax.f32 %v6881, %v6897
  %v7042 = vmax.f32 %v6882, %v6898
  %v7043 = vmax.f32 %v6883, %v6899
  %v7044 = vmax.f32 %v6884, %v6900
  %v7045 = vmax.f32 %v6885, %v6901
  %v7046 = vmax.f32 %v6886, %v6902
  %v7047 = vmax.f32 %v6887, %v6903
  %v7048 = vmax.f32 %v6888, %v6904
  %v7049 = vmax.f32 %v6889, %v6905
  %v7050 = vmax.f32 %v6890, %v6906
  %v7051 = vmax.f32 %v6907, %v6923
  %v7052 = vmax.f32 %v6908, %v6924
  %v7053 = vmax.f32 %v6909, %v6925
  %v7054 = vmax.f32 %v6910, %v6926
  %v7055 = vmax.f32 %v6911, %v6927
  %v7056 = vmax.f32 %v6912, %v6928
  %v7057 = vmax.f32 %v6913, %v6929
  %v7058 = vmax.f32 %v6914, %v6930
  %v7059 = vmax.f32 %v6915, %v6931
  %v7060 = vmax.f32 %v6916, %v6932
  %v7061 = vmax.f32 %v6917, %v6933
  %v7062 = vmax.f32 %v6918, %v6934
  %v7063 = vmax.f32 %v6919, %v6935
  %v7064 = vmax.f32 %v6920, %v6936
  %v7065 = vmax.f32 %v6921, %v6937
  %v7066 = vmax.f32 %v6922, %v6938
  %v7067 = vmax.f32 %v6939, %v6955
  %v7068 = vmax.f32 %v6940, %v6956
  %v7069 = vmax.f32 %v6941, %v6957
  %v7070 = vmax.f32 %v6942, %v6958
  %v7071 = vmax.f32 %v6943, %v6959
  %v7072 = vmax.f32 %v6944, %v6960
  %v7073 = vmax.f32 %v6945, %v6961
  %v7074 = vmax.f32 %v6946, %v6962
  %v7075 = vmax.f32 %v6947, %v6963
  %v7076 = vmax.f32 %v6948, %v6964
  %v7077 = vmax.f32 %v6949, %v6965
  %v7078 = vmax.f32 %v6950, %v6966
  %v7079 = vmax.f32 %v6951, %v6967
  %v7080 = vmax.f32 %v6952, %v6968
  %v7081 = vmax.f32 %v6953, %v6969
  %v7082 = vmax.f32 %v6954, %v6970
  %v7083 = vmax.f32 %v6971, %v6987
  %v7084 = vmax.f32 %v6972, %v6988
  %v7085 = vmax.f32 %v6973, %v6989
  %v7086 = vmax.f32 %v6974, %v6990
  %v7087 = vmax.f32 %v6975, %v6991
  %v7088 = vmax.f32 %v6976, %v6992
  %v7089 = vmax.f32 %v6977, %v6993
  %v7090 = vmax.f32 %v6978, %v6994
  %v7091 = vmax.f32 %v6979, %v6995
  %v7092 = vmax.f32 %v6980, %v6996
  %v7093 = vmax.f32 %v6981, %v6997
  %v7094 = vmax.f32 %v6982, %v6998
  %v7095 = vmax.f32 %v6983, %v6999
  %v7096 = vmax.f32 %v6984, %v7000
  %v7097 = vmax.f32 %v6985, %v7001
  %v7098 = vmax.f32 %v6986, %v7002
  %v7099 = vmax.f32 %v7003, %v7019
  %v7100 = vmax.f32 %v7004, %v7020
  %v7101 = vmax.f32 %v7005, %v7021
  %v7102 = vmax.f32 %v7006, %v7022
  %v7103 = vmax.f32 %v7007, %v7023
  %v7104 = vmax.f32 %v7008, %v7024
  %v7105 = vmax.f32 %v7009, %v7025
  %v7106 = vmax.f32 %v7010, %v7026
  %v7107 = vmax.f32 %v7011, %v7027
  %v7108 = vmax.f32 %v7012, %v7028
  %v7109 = vmax.f32 %v7013, %v7029
  %v7110 = vmax.f32 %v7014, %v7030
  %v7111 = vmax.f32 %v7015, %v7031
  %v7112 = vmax.f32 %v7016, %v7032
  %v7113 = vmax.f32 %v7017, %v7033
  %v7114 = vmax.f32 %v7018, %v7034
  %v7115 = vmax.f32 %v7035, %v7051
  %v7116 = vmax.f32 %v7036, %v7052
  %v7117 = vmax.f32 %v7037, %v7053
  %v7118 = vmax.f32 %v7038, %v7054
  %v7119 = vmax.f32 %v7039, %v7055
  %v7120 = vmax.f32 %v7040, %v7056
  %v7121 = vmax.f32 %v7041, %v7057
  %v7122 = vmax.f32 %v7042, %v7058
  %v7123 = vmax.f32 %v7043, %v7059
  %v7124 = vmax.f32 %v7044, %v7060
  %v7125 = vmax.f32 %v7045, %v7061
  %v7126 = vmax.f32 %v7046, %v7062
  %v7127 = vmax.f32 %v7047, %v7063
  %v7128 = vmax.f32 %v7048, %v7064
  %v7129 = vmax.f32 %v7049, %v7065
  %v7130 = vmax.f32 %v7050, %v7066
  %v7131 = vmax.f32 %v7067, %v7083
  %v7132 = vmax.f32 %v7068, %v7084
  %v7133 = vmax.f32 %v7069, %v7085
  %v7134 = vmax.f32 %v7070, %v7086
  %v7135 = vmax.f32 %v7071, %v7087
  %v7136 = vmax.f32 %v7072, %v7088
  %v7137 = vmax.f32 %v7073, %v7089
  %v7138 = vmax.f32 %v7074, %v7090
  %v7139 = vmax.f32 %v7075, %v7091
  %v7140 = vmax.f32 %v7076, %v7092
  %v7141 = vmax.f32 %v7077, %v7093
  %v7142 = vmax.f32 %v7078, %v7094
  %v7143 = vmax.f32 %v7079, %v7095
  %v7144 = vmax.f32 %v7080, %v7096
  %v7145 = vmax.f32 %v7081, %v7097
  %v7146 = vmax.f32 %v7082, %v7098
  %v7147 = vmax.f32 %v7099, %v7115
  %v7148 = vmax.f32 %v7100, %v7116
  %v7149 = vmax.f32 %v7101, %v7117
  %v7150 = vmax.f32 %v7102, %v7118
  %v7151 = vmax.f32 %v7103, %v7119
  %v7152 = vmax.f32 %v7104, %v7120
  %v7153 = vmax.f32 %v7105, %v7121
  %v7154 = vmax.f32 %v7106, %v7122
  %v7155 = vmax.f32 %v7107, %v7123
  %v7156 = vmax.f32 %v7108, %v7124
  %v7157 = vmax.f32 %v7109, %v7125
  %v7158 = vmax.f32 %v7110, %v7126
  %v7159 = vmax.f32 %v7111, %v7127
  %v7160 = vmax.f32 %v7112, %v7128
  %v7161 = vmax.f32 %v7113, %v7129
  %v7162 = vmax.f32 %v7114, %v7130
  %v7163 = vmax.f32 %v7131, %v7147
  %v7164 = vmax.f32 %v7132, %v7148
  %v7165 = vmax.f32 %v7133, %v7149
  %v7166 = vmax.f32 %v7134, %v7150
  %v7167 = vmax.f32 %v7135, %v7151
  %v7168 = vmax.f32 %v7136, %v7152
  %v7169 = vmax.f32 %v7137, %v7153
  %v7170 = vmax.f32 %v7138, %v7154
  %v7171 = vmax.f32 %v7139, %v7155
  %v7172 = vmax.f32 %v7140, %v7156
  %v7173 = vmax.f32 %v7141, %v7157
  %v7174 = vmax.f32 %v7142, %v7158
  %v7175 = vmax.f32 %v7143, %v7159
  %v7176 = vmax.f32 %v7144, %v7160
  %v7177 = vmax.f32 %v7145, %v7161
  %v7178 = vmax.f32 %v7146, %v7162
  %7179 = vst [vmem:[%s4] sm:$0xff] %v7163
  %7180 = vst [vmem:[%s4 + $0x8] sm:$0xff] %v7164
  %7181 = vst [vmem:[%s4 + $0x10] sm:$0xff] %v7165
  %7182 = vst [vmem:[%s4 + $0x18] sm:$0xff] %v7166
  %7183 = vst [vmem:[%s4 + $0x20] sm:$0xff] %v7167
  %7184 = vst [vmem:[%s4 + $0x28] sm:$0xff] %v7168
  %7185 = vst [vmem:[%s4 + $0x30] sm:$0xff] %v7169
  %7186 = vst [vmem:[%s4 + $0x38] sm:$0xff] %v7170
  %7187 = vst [vmem:[%s4 + $0x40] sm:$0xff] %v7171
  %7188 = vst [vmem:[%s4 + $0x48] sm:$0xff] %v7172
  %7189 = vst [vmem:[%s4 + $0x50] sm:$0xff] %v7173
  %7190 = vst [vmem:[%s4 + $0x58] sm:$0xff] %v7174
  %7191 = vst [vmem:[%s4 + $0x60] sm:$0xff] %v7175
  %7192 = vst [vmem:[%s4 + $0x68] sm:$0xff] %v7176
  %7193 = vst [vmem:[%s4 + $0x70] sm:$0xff] %v7177
  %7194 = vst [vmem:[%s4 + $0x78] sm:$0xff] %v7178
  // Predicated region
  $region18: #{_sa_module_forward.1} parent=0 // pred_check
    _
  $region19: #{_sa_module_forward.1} parent=0 // pred_check_branch
    %7196 = sbr.rel (0) target = $region21
  $region20: #{_sa_module_forward.1} parent=0 // pred_region
    _
  $region21: #{_sa_module_forward.1} parent=0 // pred_fallthru
    _
  // Predicated region
  $region22: #{_sa_module_forward.1} parent=0 // pred_check
    _
  $region23: #{_sa_module_forward.1} parent=0 // pred_check_branch
    %7198 = sbr.rel (0) target = $region25
  $region24: #{_sa_module_forward.1} parent=0 // pred_region
    _
  $region25: #{_sa_module_forward.1} parent=0 // pred_fallthru
    _

</llo_original>
